<compile_context>
chip_gen: v7x
topology: tpu7x:2x2x1
jax: 0.10.0
libtpu: 0.0.40
codegen_flags: <defaults>
</compile_context>

<pallas_src>
import jax
import jax.numpy as jnp
from jax import lax
from jax.experimental import pallas as pl
from jax.experimental.pallas import tpu as pltpu


_BM = 8  # images per grid step; multiple of 8 keeps every in-kernel reshape sublane-aligned


# ----------------------------- Pallas kernel --------------------------------

def _fused_net_kernel(p1_ref, w1_ref, b1_ref, w2_ref, b2_ref,
                      fw1_ref, fb1_ref, fw2_ref, fb2_ref, fw3_ref, fb3_ref,
                      o_ref):
    """Whole forward pass for `bm` images.

    p1_ref : (144*bm, 100) conv1 im2col patches; rows ordered
             (i_parity, j_parity, i//2, j//2, image), lanes (pool_pos, kh*kw)
    w1_ref : (100, 24)  block-diag of 4 copies of conv1 weight (25, 6)
    w2_ref : (600, 64)  block-diag of 4 copies of conv2 weight (150, 16)
    fw1_ref: (256, 120) fc1 weight, rows permuted to (i2, j2, c) order
    fw3_ref: (84, 128)  fc3 weight zero-padded to 128 output lanes
    o_ref  : (bm, 128)  lane-dense logits (cols 10..127 are zero)
    """
    bm = o_ref.shape[0]

    # ---- conv1: one matmul over all 4 pool offsets, then pool-max + bias + ReLU
    c1 = jnp.dot(p1_ref[...], w1_ref[...],
                 preferred_element_type=jnp.float32)            # (144*bm, 24)
    h1 = jnp.maximum(jnp.maximum(c1[:, 0:6], c1[:, 6:12]),
                     jnp.maximum(c1[:, 12:18], c1[:, 18:24]))   # max over pool pos
    h1 = jnp.maximum(h1 + b1_ref[...], 0.0)                     # (144*bm, 6)
    # rows are (ai, aj, p, q, b) with pooled coords i = 2p+ai, j = 2q+aj
    h1 = h1.reshape(2, 2, 6, 6, bm, 6)

    # ---- conv2: in-kernel im2col via static slices of the parity-split layout,
    #      one matmul over all 4 pool offsets, pool-max + bias + ReLU
    pieces = []
    for ph in range(2):
        for pw in range(2):
            for dh in range(5):
                for dw in range(5):
                    s, t = ph + dh, pw + dw
                    v = h1[s % 2, t % 2,
                           (s // 2):(s // 2) + 4,
                           (t // 2):(t // 2) + 4, :, :]          # (4, 4, bm, 6)
                    pieces.append(v)
    p2 = jnp.concatenate(pieces, axis=-1)                        # (4, 4, bm, 600)
    p2 = p2.reshape(16 * bm, 600)                                # rows (i2, j2, b)
    c2 = jnp.dot(p2, w2_ref[...],
                 preferred_element_type=jnp.float32)             # (16*bm, 64)
    h2 = jnp.maximum(jnp.maximum(c2[:, 0:16], c2[:, 16:32]),
                     jnp.maximum(c2[:, 32:48], c2[:, 48:64]))
    h2 = jnp.maximum(h2 + b2_ref[...], 0.0)                      # (16*bm, 16)

    # ---- flatten (i2, j2, c) into lanes, then the classifier MLP
    flat = jnp.concatenate(
        [h2[sp * bm:(sp + 1) * bm, :] for sp in range(16)], axis=1)  # (bm, 256)
    z = jnp.dot(flat, fw1_ref[...], preferred_element_type=jnp.float32)
    z = jnp.maximum(z + fb1_ref[...], 0.0)
    z = jnp.dot(z, fw2_ref[...], preferred_element_type=jnp.float32)
    z = jnp.maximum(z + fb2_ref[...], 0.0)
    z = jnp.dot(z, fw3_ref[...], preferred_element_type=jnp.float32)
    o_ref[...] = z + fb3_ref[...]                                # (bm, 128), lane-dense


# ----------------------------- param prep (one-time layout work) ------------

def _block_diag4(m):
    k, c = m.shape
    out = jnp.zeros((4 * k, 4 * c), m.dtype)
    for i in range(4):
        out = out.at[i * k:(i + 1) * k, i * c:(i + 1) * c].set(m)
    return out


def _prep_params(params):
    (w1, b1, w2, b2, fw1, fb1, fw2, fb2, fw3, fb3) = params
    w1bd = _block_diag4(w1.reshape(6, 25).T)                          # (100, 24)
    w2bd = _block_diag4(w2.transpose(2, 3, 1, 0).reshape(150, 16))    # (600, 64)
    # torch flatten order is (c, i2, j2); our in-kernel flatten is (i2, j2, c)
    fw1p = fw1.reshape(16, 4, 4, 120).transpose(1, 2, 0, 3).reshape(256, 120)
    fw3p = jnp.pad(fw3, ((0, 0), (0, 118)))                           # (84, 128)
    fb3p = jnp.pad(fb3, (0, 118)).reshape(1, 128)
    return (w1bd, b1.reshape(1, 6), w2bd, b2.reshape(1, 16),
            fw1p, fb1.reshape(1, 120), fw2, fb2.reshape(1, 84), fw3p, fb3p)


# ----------------------------- wrapper ---------------------------------------

@jax.jit
def net_forward(x, params):
    """x: (B, 4, 1, 28, 28) float32 -> (B*4, 10) logits (bn=False branch of Net)."""
    N = x.shape[0] * x.shape[1]
    bm = _BM
    nb = -(-N // bm)
    n_pad = nb * bm
    xi = x.reshape(N, 1, 28, 28)
    if n_pad != N:
        xi = jnp.pad(xi, ((0, n_pad - N), (0, 0), (0, 0), (0, 0)))

    # conv1 im2col (exact: identity filter at HIGHEST precision), then a single
    # reorder so rows are (block, i_parity, j_parity, i//2, j//2, image) and
    # lanes are (pool_pos, kh, kw).  conv2's im2col happens inside the kernel.
    pa = lax.conv_general_dilated_patches(
        xi, (5, 5), (1, 1), 'VALID',
        precision=lax.Precision.HIGHEST)                # (n_pad, 25, 24, 24)
    pa = pa.reshape(nb, bm, 25, 6, 2, 2, 6, 2, 2)       # (nb,b,k, p,ai,ph, q,aj,pw)
    pa = pa.transpose(0, 4, 7, 3, 6, 1, 5, 8, 2)        # (nb,ai,aj,p,q,b,ph,pw,k)
    p1 = pa.reshape(nb * 144 * bm, 100)

    (w1bd, b1r, w2bd, b2r,
     fw1p, fb1r, fw2, fb2r, fw3p, fb3p) = _prep_params(params)

    out = pl.pallas_call(
        _fused_net_kernel,
        out_shape=jax.ShapeDtypeStruct((n_pad, 128), jnp.float32),
        grid=(nb,),
        in_specs=[
            pl.BlockSpec((144 * bm, 100), lambda n: (n, 0)),
            pl.BlockSpec((100, 24), lambda n: (0, 0)),
            pl.BlockSpec((1, 6), lambda n: (0, 0)),
            pl.BlockSpec((600, 64), lambda n: (0, 0)),
            pl.BlockSpec((1, 16), lambda n: (0, 0)),
            pl.BlockSpec((256, 120), lambda n: (0, 0)),
            pl.BlockSpec((1, 120), lambda n: (0, 0)),
            pl.BlockSpec((120, 84), lambda n: (0, 0)),
            pl.BlockSpec((1, 84), lambda n: (0, 0)),
            pl.BlockSpec((84, 128), lambda n: (0, 0)),
            pl.BlockSpec((1, 128), lambda n: (0, 0)),
        ],
        out_specs=pl.BlockSpec((bm, 128), lambda n: (n, 0)),
        compiler_params=pltpu.CompilerParams(
            dimension_semantics=("parallel",)),
    )(p1, w1bd, b1r, w2bd, b2r, fw1p, fb1r, fw2, fb2r, fw3p, fb3p)

    return out[:N, :10]


# ----------------------------- reference (pure JAX) -------------------------

def net_forward_ref(x, params):
    (w1, b1, w2, b2, fw1, fb1, fw2, fb2, fw3, fb3) = params
    N = x.shape[0] * x.shape[1]
    xi = x.reshape(N, 1, 28, 28)
    dn = ('NCHW', 'OIHW', 'NCHW')
    hp = lax.Precision.HIGHEST

    y = lax.conv_general_dilated(xi, w1, (1, 1), 'VALID',
                                 dimension_numbers=dn, precision=hp)
    y = y + b1[None, :, None, None]
    y = lax.reduce_window(y, -jnp.inf, lax.max, (1, 1, 2, 2), (1, 1, 2, 2), 'VALID')
    y = jnp.maximum(y, 0.0)

    y = lax.conv_general_dilated(y, w2, (1, 1), 'VALID',
                                 dimension_numbers=dn, precision=hp)
    y = y + b2[None, :, None, None]
    y = lax.reduce_window(y, -jnp.inf, lax.max, (1, 1, 2, 2), (1, 1, 2, 2), 'VALID')
    y = jnp.maximum(y, 0.0)

    y = y.reshape(N, 16 * 4 * 4)
    y = jnp.maximum(jnp.dot(y, fw1, precision=hp) + fb1, 0.0)
    y = jnp.maximum(jnp.dot(y, fw2, precision=hp) + fb2, 0.0)
    return jnp.dot(y, fw3, precision=hp) + fb3


# ----------------------------- main ------------------------------------------

def init_params(key):
    ks = jax.random.split(key, 10)
    w1 = 0.2 * jax.random.normal(ks[0], (6, 1, 5, 5), jnp.float32)
    b1 = 0.1 * jax.random.normal(ks[1], (6,), jnp.float32)
    w2 = 0.1 * jax.random.normal(ks[2], (16, 6, 5, 5), jnp.float32)
    b2 = 0.1 * jax.random.normal(ks[3], (16,), jnp.float32)
    fw1 = 0.05 * jax.random.normal(ks[4], (256, 120), jnp.float32)
    fb1 = 0.1 * jax.random.normal(ks[5], (120,), jnp.float32)
    fw2 = 0.1 * jax.random.normal(ks[6], (120, 84), jnp.float32)
    fb2 = 0.1 * jax.random.normal(ks[7], (84,), jnp.float32)
    fw3 = 0.1 * jax.random.normal(ks[8], (84, 10), jnp.float32)
    fb3 = 0.1 * jax.random.normal(ks[9], (10,), jnp.float32)
    return (w1, b1, w2, b2, fw1, fb1, fw2, fb2, fw3, fb3)


if __name__ == "__main__":
    key = jax.random.PRNGKey(0)
    kx, kp = jax.random.split(key)
    # forward() implies (batch, 4, 1, 28, 28) NCHW-style input
    x = jax.random.normal(kx, (2, 4, 1, 28, 28), jnp.float32)
    params = init_params(kp)

    out = jax.block_until_ready(net_forward(x, params))      # (8, 10)
    ref = jax.block_until_ready(net_forward_ref(x, params))  # (8, 10)

    assert out.shape == (8, 10), out.shape
    err = float(jnp.max(jnp.abs(out - ref)))
    assert jnp.allclose(out, ref, rtol=1e-2, atol=1e-2), err
    print("KERNEL_OK")
</pallas_src>

<mosaic_0001>
module attributes {stable_mosaic.version = 11 : i64} {
  func.func @_fused_net_kernel(%arg0: i32, %arg1: memref<1152x100xf32, #tpu.memory_space<vmem>>, %arg2: memref<100x24xf32, #tpu.memory_space<vmem>>, %arg3: memref<1x6xf32, #tpu.memory_space<vmem>>, %arg4: memref<600x64xf32, #tpu.memory_space<vmem>>, %arg5: memref<1x16xf32, #tpu.memory_space<vmem>>, %arg6: memref<256x120xf32, #tpu.memory_space<vmem>>, %arg7: memref<1x120xf32, #tpu.memory_space<vmem>>, %arg8: memref<120x84xf32, #tpu.memory_space<vmem>>, %arg9: memref<1x84xf32, #tpu.memory_space<vmem>>, %arg10: memref<84x128xf32, #tpu.memory_space<vmem>>, %arg11: memref<1x128xf32, #tpu.memory_space<vmem>>, %arg12: memref<8x128xf32, #tpu.memory_space<vmem>>) attributes {dimension_semantics = [#tpu.dimension_semantics<parallel>], iteration_bounds = array<i64: 1>, scalar_prefetch = 0 : i64, scratch_operands = 0 : i64, tpu.core_type = #tpu.core_type<tc>, window_params = [{transform_indices = @transform_0, window_bounds = array<i64: 1152, 100>}, {pipeline_mode = #tpu.pipeline_mode<synchronous>, transform_indices = @transform_1, window_bounds = array<i64: 100, 24>}, {pipeline_mode = #tpu.pipeline_mode<synchronous>, transform_indices = @transform_2, window_bounds = array<i64: 1, 6>}, {pipeline_mode = #tpu.pipeline_mode<synchronous>, transform_indices = @transform_3, window_bounds = array<i64: 600, 64>}, {pipeline_mode = #tpu.pipeline_mode<synchronous>, transform_indices = @transform_4, window_bounds = array<i64: 1, 16>}, {pipeline_mode = #tpu.pipeline_mode<synchronous>, transform_indices = @transform_5, window_bounds = array<i64: 256, 120>}, {pipeline_mode = #tpu.pipeline_mode<synchronous>, transform_indices = @transform_6, window_bounds = array<i64: 1, 120>}, {pipeline_mode = #tpu.pipeline_mode<synchronous>, transform_indices = @transform_7, window_bounds = array<i64: 120, 84>}, {pipeline_mode = #tpu.pipeline_mode<synchronous>, transform_indices = @transform_8, window_bounds = array<i64: 1, 84>}, {pipeline_mode = #tpu.pipeline_mode<synchronous>, transform_indices = @transform_9, window_bounds = array<i64: 84, 128>}, {pipeline_mode = #tpu.pipeline_mode<synchronous>, transform_indices = @transform_10, window_bounds = array<i64: 1, 128>}, {transform_indices = @transform_11, window_bounds = array<i64: 8, 128>}]} {
    %c0 = arith.constant 0 : index
    %c0_0 = arith.constant 0 : index
    %0 = vector.load %arg1[%c0, %c0_0] : memref<1152x100xf32, #tpu.memory_space<vmem>>, vector<1152x100xf32>
    %c0_1 = arith.constant 0 : index
    %c0_2 = arith.constant 0 : index
    %1 = vector.load %arg2[%c0_1, %c0_2] : memref<100x24xf32, #tpu.memory_space<vmem>>, vector<100x24xf32>
    %cst = arith.constant dense<0.000000e+00> : vector<1152x24xf32>
    %2 = tpu.matmul %0, %1, %cst {dimension_numbers = #tpu.dot_dimension_numbers<[1], [0], [0], [1], [0, 0, 1, 1], [], []>} : vector<1152x100xf32>, vector<100x24xf32>, vector<1152x24xf32> -> vector<1152x24xf32>
    %3 = vector.extract_strided_slice %2 {offsets = [0, 0], sizes = [1152, 6], strides = [1, 1]} : vector<1152x24xf32> to vector<1152x6xf32>
    %4 = vector.extract_strided_slice %2 {offsets = [0, 6], sizes = [1152, 6], strides = [1, 1]} : vector<1152x24xf32> to vector<1152x6xf32>
    %5 = arith.maximumf %3, %4 : vector<1152x6xf32>
    %6 = vector.extract_strided_slice %2 {offsets = [0, 12], sizes = [1152, 6], strides = [1, 1]} : vector<1152x24xf32> to vector<1152x6xf32>
    %7 = vector.extract_strided_slice %2 {offsets = [0, 18], sizes = [1152, 6], strides = [1, 1]} : vector<1152x24xf32> to vector<1152x6xf32>
    %8 = arith.maximumf %6, %7 : vector<1152x6xf32>
    %9 = arith.maximumf %5, %8 : vector<1152x6xf32>
    %c0_3 = arith.constant 0 : index
    %c0_4 = arith.constant 0 : index
    %10 = vector.load %arg3[%c0_3, %c0_4] : memref<1x6xf32, #tpu.memory_space<vmem>>, vector<1x6xf32>
    %11 = vector.broadcast %10 : vector<1x6xf32> to vector<1152x6xf32>
    %12 = arith.addf %9, %11 : vector<1152x6xf32>
    %cst_5 = arith.constant 0.000000e+00 : f32
    %13 = vector.broadcast %cst_5 : f32 to vector<1152x6xf32>
    %14 = arith.maximumf %12, %13 : vector<1152x6xf32>
    %15 = vector.shape_cast %14 : vector<1152x6xf32> to vector<2x2x6x6x8x6xf32>
    %16 = vector.extract_strided_slice %15 {offsets = [0, 0, 0, 0, 0, 0], sizes = [1, 1, 4, 4, 8, 6], strides = [1, 1, 1, 1, 1, 1]} : vector<2x2x6x6x8x6xf32> to vector<1x1x4x4x8x6xf32>
    %17 = vector.shape_cast %16 : vector<1x1x4x4x8x6xf32> to vector<4x4x8x6xf32>
    %18 = vector.extract_strided_slice %15 {offsets = [0, 1, 0, 0, 0, 0], sizes = [1, 1, 4, 4, 8, 6], strides = [1, 1, 1, 1, 1, 1]} : vector<2x2x6x6x8x6xf32> to vector<1x1x4x4x8x6xf32>
    %19 = vector.shape_cast %18 : vector<1x1x4x4x8x6xf32> to vector<4x4x8x6xf32>
    %20 = vector.extract_strided_slice %15 {offsets = [0, 0, 0, 1, 0, 0], sizes = [1, 1, 4, 4, 8, 6], strides = [1, 1, 1, 1, 1, 1]} : vector<2x2x6x6x8x6xf32> to vector<1x1x4x4x8x6xf32>
    %21 = vector.shape_cast %20 : vector<1x1x4x4x8x6xf32> to vector<4x4x8x6xf32>
    %22 = vector.extract_strided_slice %15 {offsets = [0, 1, 0, 1, 0, 0], sizes = [1, 1, 4, 4, 8, 6], strides = [1, 1, 1, 1, 1, 1]} : vector<2x2x6x6x8x6xf32> to vector<1x1x4x4x8x6xf32>
    %23 = vector.shape_cast %22 : vector<1x1x4x4x8x6xf32> to vector<4x4x8x6xf32>
    %24 = vector.extract_strided_slice %15 {offsets = [0, 0, 0, 2, 0, 0], sizes = [1, 1, 4, 4, 8, 6], strides = [1, 1, 1, 1, 1, 1]} : vector<2x2x6x6x8x6xf32> to vector<1x1x4x4x8x6xf32>
    %25 = vector.shape_cast %24 : vector<1x1x4x4x8x6xf32> to vector<4x4x8x6xf32>
    %26 = vector.extract_strided_slice %15 {offsets = [1, 0, 0, 0, 0, 0], sizes = [1, 1, 4, 4, 8, 6], strides = [1, 1, 1, 1, 1, 1]} : vector<2x2x6x6x8x6xf32> to vector<1x1x4x4x8x6xf32>
    %27 = vector.shape_cast %26 : vector<1x1x4x4x8x6xf32> to vector<4x4x8x6xf32>
    %28 = vector.extract_strided_slice %15 {offsets = [1, 1, 0, 0, 0, 0], sizes = [1, 1, 4, 4, 8, 6], strides = [1, 1, 1, 1, 1, 1]} : vector<2x2x6x6x8x6xf32> to vector<1x1x4x4x8x6xf32>
    %29 = vector.shape_cast %28 : vector<1x1x4x4x8x6xf32> to vector<4x4x8x6xf32>
    %30 = vector.extract_strided_slice %15 {offsets = [1, 0, 0, 1, 0, 0], sizes = [1, 1, 4, 4, 8, 6], strides = [1, 1, 1, 1, 1, 1]} : vector<2x2x6x6x8x6xf32> to vector<1x1x4x4x8x6xf32>
    %31 = vector.shape_cast %30 : vector<1x1x4x4x8x6xf32> to vector<4x4x8x6xf32>
    %32 = vector.extract_strided_slice %15 {offsets = [1, 1, 0, 1, 0, 0], sizes = [1, 1, 4, 4, 8, 6], strides = [1, 1, 1, 1, 1, 1]} : vector<2x2x6x6x8x6xf32> to vector<1x1x4x4x8x6xf32>
    %33 = vector.shape_cast %32 : vector<1x1x4x4x8x6xf32> to vector<4x4x8x6xf32>
    %34 = vector.extract_strided_slice %15 {offsets = [1, 0, 0, 2, 0, 0], sizes = [1, 1, 4, 4, 8, 6], strides = [1, 1, 1, 1, 1, 1]} : vector<2x2x6x6x8x6xf32> to vector<1x1x4x4x8x6xf32>
    %35 = vector.shape_cast %34 : vector<1x1x4x4x8x6xf32> to vector<4x4x8x6xf32>
    %36 = vector.extract_strided_slice %15 {offsets = [0, 0, 1, 0, 0, 0], sizes = [1, 1, 4, 4, 8, 6], strides = [1, 1, 1, 1, 1, 1]} : vector<2x2x6x6x8x6xf32> to vector<1x1x4x4x8x6xf32>
    %37 = vector.shape_cast %36 : vector<1x1x4x4x8x6xf32> to vector<4x4x8x6xf32>
    %38 = vector.extract_strided_slice %15 {offsets = [0, 1, 1, 0, 0, 0], sizes = [1, 1, 4, 4, 8, 6], strides = [1, 1, 1, 1, 1, 1]} : vector<2x2x6x6x8x6xf32> to vector<1x1x4x4x8x6xf32>
    %39 = vector.shape_cast %38 : vector<1x1x4x4x8x6xf32> to vector<4x4x8x6xf32>
    %40 = vector.extract_strided_slice %15 {offsets = [0, 0, 1, 1, 0, 0], sizes = [1, 1, 4, 4, 8, 6], strides = [1, 1, 1, 1, 1, 1]} : vector<2x2x6x6x8x6xf32> to vector<1x1x4x4x8x6xf32>
    %41 = vector.shape_cast %40 : vector<1x1x4x4x8x6xf32> to vector<4x4x8x6xf32>
    %42 = vector.extract_strided_slice %15 {offsets = [0, 1, 1, 1, 0, 0], sizes = [1, 1, 4, 4, 8, 6], strides = [1, 1, 1, 1, 1, 1]} : vector<2x2x6x6x8x6xf32> to vector<1x1x4x4x8x6xf32>
    %43 = vector.shape_cast %42 : vector<1x1x4x4x8x6xf32> to vector<4x4x8x6xf32>
    %44 = vector.extract_strided_slice %15 {offsets = [0, 0, 1, 2, 0, 0], sizes = [1, 1, 4, 4, 8, 6], strides = [1, 1, 1, 1, 1, 1]} : vector<2x2x6x6x8x6xf32> to vector<1x1x4x4x8x6xf32>
    %45 = vector.shape_cast %44 : vector<1x1x4x4x8x6xf32> to vector<4x4x8x6xf32>
    %46 = vector.extract_strided_slice %15 {offsets = [1, 0, 1, 0, 0, 0], sizes = [1, 1, 4, 4, 8, 6], strides = [1, 1, 1, 1, 1, 1]} : vector<2x2x6x6x8x6xf32> to vector<1x1x4x4x8x6xf32>
    %47 = vector.shape_cast %46 : vector<1x1x4x4x8x6xf32> to vector<4x4x8x6xf32>
    %48 = vector.extract_strided_slice %15 {offsets = [1, 1, 1, 0, 0, 0], sizes = [1, 1, 4, 4, 8, 6], strides = [1, 1, 1, 1, 1, 1]} : vector<2x2x6x6x8x6xf32> to vector<1x1x4x4x8x6xf32>
    %49 = vector.shape_cast %48 : vector<1x1x4x4x8x6xf32> to vector<4x4x8x6xf32>
    %50 = vector.extract_strided_slice %15 {offsets = [1, 0, 1, 1, 0, 0], sizes = [1, 1, 4, 4, 8, 6], strides = [1, 1, 1, 1, 1, 1]} : vector<2x2x6x6x8x6xf32> to vector<1x1x4x4x8x6xf32>
    %51 = vector.shape_cast %50 : vector<1x1x4x4x8x6xf32> to vector<4x4x8x6xf32>
    %52 = vector.extract_strided_slice %15 {offsets = [1, 1, 1, 1, 0, 0], sizes = [1, 1, 4, 4, 8, 6], strides = [1, 1, 1, 1, 1, 1]} : vector<2x2x6x6x8x6xf32> to vector<1x1x4x4x8x6xf32>
    %53 = vector.shape_cast %52 : vector<1x1x4x4x8x6xf32> to vector<4x4x8x6xf32>
    %54 = vector.extract_strided_slice %15 {offsets = [1, 0, 1, 2, 0, 0], sizes = [1, 1, 4, 4, 8, 6], strides = [1, 1, 1, 1, 1, 1]} : vector<2x2x6x6x8x6xf32> to vector<1x1x4x4x8x6xf32>
    %55 = vector.shape_cast %54 : vector<1x1x4x4x8x6xf32> to vector<4x4x8x6xf32>
    %56 = vector.extract_strided_slice %15 {offsets = [0, 0, 2, 0, 0, 0], sizes = [1, 1, 4, 4, 8, 6], strides = [1, 1, 1, 1, 1, 1]} : vector<2x2x6x6x8x6xf32> to vector<1x1x4x4x8x6xf32>
    %57 = vector.shape_cast %56 : vector<1x1x4x4x8x6xf32> to vector<4x4x8x6xf32>
    %58 = vector.extract_strided_slice %15 {offsets = [0, 1, 2, 0, 0, 0], sizes = [1, 1, 4, 4, 8, 6], strides = [1, 1, 1, 1, 1, 1]} : vector<2x2x6x6x8x6xf32> to vector<1x1x4x4x8x6xf32>
    %59 = vector.shape_cast %58 : vector<1x1x4x4x8x6xf32> to vector<4x4x8x6xf32>
    %60 = vector.extract_strided_slice %15 {offsets = [0, 0, 2, 1, 0, 0], sizes = [1, 1, 4, 4, 8, 6], strides = [1, 1, 1, 1, 1, 1]} : vector<2x2x6x6x8x6xf32> to vector<1x1x4x4x8x6xf32>
    %61 = vector.shape_cast %60 : vector<1x1x4x4x8x6xf32> to vector<4x4x8x6xf32>
    %62 = vector.extract_strided_slice %15 {offsets = [0, 1, 2, 1, 0, 0], sizes = [1, 1, 4, 4, 8, 6], strides = [1, 1, 1, 1, 1, 1]} : vector<2x2x6x6x8x6xf32> to vector<1x1x4x4x8x6xf32>
    %63 = vector.shape_cast %62 : vector<1x1x4x4x8x6xf32> to vector<4x4x8x6xf32>
    %64 = vector.extract_strided_slice %15 {offsets = [0, 0, 2, 2, 0, 0], sizes = [1, 1, 4, 4, 8, 6], strides = [1, 1, 1, 1, 1, 1]} : vector<2x2x6x6x8x6xf32> to vector<1x1x4x4x8x6xf32>
    %65 = vector.shape_cast %64 : vector<1x1x4x4x8x6xf32> to vector<4x4x8x6xf32>
    %66 = vector.extract_strided_slice %15 {offsets = [0, 1, 0, 0, 0, 0], sizes = [1, 1, 4, 4, 8, 6], strides = [1, 1, 1, 1, 1, 1]} : vector<2x2x6x6x8x6xf32> to vector<1x1x4x4x8x6xf32>
    %67 = vector.shape_cast %66 : vector<1x1x4x4x8x6xf32> to vector<4x4x8x6xf32>
    %68 = vector.extract_strided_slice %15 {offsets = [0, 0, 0, 1, 0, 0], sizes = [1, 1, 4, 4, 8, 6], strides = [1, 1, 1, 1, 1, 1]} : vector<2x2x6x6x8x6xf32> to vector<1x1x4x4x8x6xf32>
    %69 = vector.shape_cast %68 : vector<1x1x4x4x8x6xf32> to vector<4x4x8x6xf32>
    %70 = vector.extract_strided_slice %15 {offsets = [0, 1, 0, 1, 0, 0], sizes = [1, 1, 4, 4, 8, 6], strides = [1, 1, 1, 1, 1, 1]} : vector<2x2x6x6x8x6xf32> to vector<1x1x4x4x8x6xf32>
    %71 = vector.shape_cast %70 : vector<1x1x4x4x8x6xf32> to vector<4x4x8x6xf32>
    %72 = vector.extract_strided_slice %15 {offsets = [0, 0, 0, 2, 0, 0], sizes = [1, 1, 4, 4, 8, 6], strides = [1, 1, 1, 1, 1, 1]} : vector<2x2x6x6x8x6xf32> to vector<1x1x4x4x8x6xf32>
    %73 = vector.shape_cast %72 : vector<1x1x4x4x8x6xf32> to vector<4x4x8x6xf32>
    %74 = vector.extract_strided_slice %15 {offsets = [0, 1, 0, 2, 0, 0], sizes = [1, 1, 4, 4, 8, 6], strides = [1, 1, 1, 1, 1, 1]} : vector<2x2x6x6x8x6xf32> to vector<1x1x4x4x8x6xf32>
    %75 = vector.shape_cast %74 : vector<1x1x4x4x8x6xf32> to vector<4x4x8x6xf32>
    %76 = vector.extract_strided_slice %15 {offsets = [1, 1, 0, 0, 0, 0], sizes = [1, 1, 4, 4, 8, 6], strides = [1, 1, 1, 1, 1, 1]} : vector<2x2x6x6x8x6xf32> to vector<1x1x4x4x8x6xf32>
    %77 = vector.shape_cast %76 : vector<1x1x4x4x8x6xf32> to vector<4x4x8x6xf32>
    %78 = vector.extract_strided_slice %15 {offsets = [1, 0, 0, 1, 0, 0], sizes = [1, 1, 4, 4, 8, 6], strides = [1, 1, 1, 1, 1, 1]} : vector<2x2x6x6x8x6xf32> to vector<1x1x4x4x8x6xf32>
    %79 = vector.shape_cast %78 : vector<1x1x4x4x8x6xf32> to vector<4x4x8x6xf32>
    %80 = vector.extract_strided_slice %15 {offsets = [1, 1, 0, 1, 0, 0], sizes = [1, 1, 4, 4, 8, 6], strides = [1, 1, 1, 1, 1, 1]} : vector<2x2x6x6x8x6xf32> to vector<1x1x4x4x8x6xf32>
    %81 = vector.shape_cast %80 : vector<1x1x4x4x8x6xf32> to vector<4x4x8x6xf32>
    %82 = vector.extract_strided_slice %15 {offsets = [1, 0, 0, 2, 0, 0], sizes = [1, 1, 4, 4, 8, 6], strides = [1, 1, 1, 1, 1, 1]} : vector<2x2x6x6x8x6xf32> to vector<1x1x4x4x8x6xf32>
    %83 = vector.shape_cast %82 : vector<1x1x4x4x8x6xf32> to vector<4x4x8x6xf32>
    %84 = vector.extract_strided_slice %15 {offsets = [1, 1, 0, 2, 0, 0], sizes = [1, 1, 4, 4, 8, 6], strides = [1, 1, 1, 1, 1, 1]} : vector<2x2x6x6x8x6xf32> to vector<1x1x4x4x8x6xf32>
    %85 = vector.shape_cast %84 : vector<1x1x4x4x8x6xf32> to vector<4x4x8x6xf32>
    %86 = vector.extract_strided_slice %15 {offsets = [0, 1, 1, 0, 0, 0], sizes = [1, 1, 4, 4, 8, 6], strides = [1, 1, 1, 1, 1, 1]} : vector<2x2x6x6x8x6xf32> to vector<1x1x4x4x8x6xf32>
    %87 = vector.shape_cast %86 : vector<1x1x4x4x8x6xf32> to vector<4x4x8x6xf32>
    %88 = vector.extract_strided_slice %15 {offsets = [0, 0, 1, 1, 0, 0], sizes = [1, 1, 4, 4, 8, 6], strides = [1, 1, 1, 1, 1, 1]} : vector<2x2x6x6x8x6xf32> to vector<1x1x4x4x8x6xf32>
    %89 = vector.shape_cast %88 : vector<1x1x4x4x8x6xf32> to vector<4x4x8x6xf32>
    %90 = vector.extract_strided_slice %15 {offsets = [0, 1, 1, 1, 0, 0], sizes = [1, 1, 4, 4, 8, 6], strides = [1, 1, 1, 1, 1, 1]} : vector<2x2x6x6x8x6xf32> to vector<1x1x4x4x8x6xf32>
    %91 = vector.shape_cast %90 : vector<1x1x4x4x8x6xf32> to vector<4x4x8x6xf32>
    %92 = vector.extract_strided_slice %15 {offsets = [0, 0, 1, 2, 0, 0], sizes = [1, 1, 4, 4, 8, 6], strides = [1, 1, 1, 1, 1, 1]} : vector<2x2x6x6x8x6xf32> to vector<1x1x4x4x8x6xf32>
    %93 = vector.shape_cast %92 : vector<1x1x4x4x8x6xf32> to vector<4x4x8x6xf32>
    %94 = vector.extract_strided_slice %15 {offsets = [0, 1, 1, 2, 0, 0], sizes = [1, 1, 4, 4, 8, 6], strides = [1, 1, 1, 1, 1, 1]} : vector<2x2x6x6x8x6xf32> to vector<1x1x4x4x8x6xf32>
    %95 = vector.shape_cast %94 : vector<1x1x4x4x8x6xf32> to vector<4x4x8x6xf32>
    %96 = vector.extract_strided_slice %15 {offsets = [1, 1, 1, 0, 0, 0], sizes = [1, 1, 4, 4, 8, 6], strides = [1, 1, 1, 1, 1, 1]} : vector<2x2x6x6x8x6xf32> to vector<1x1x4x4x8x6xf32>
    %97 = vector.shape_cast %96 : vector<1x1x4x4x8x6xf32> to vector<4x4x8x6xf32>
    %98 = vector.extract_strided_slice %15 {offsets = [1, 0, 1, 1, 0, 0], sizes = [1, 1, 4, 4, 8, 6], strides = [1, 1, 1, 1, 1, 1]} : vector<2x2x6x6x8x6xf32> to vector<1x1x4x4x8x6xf32>
    %99 = vector.shape_cast %98 : vector<1x1x4x4x8x6xf32> to vector<4x4x8x6xf32>
    %100 = vector.extract_strided_slice %15 {offsets = [1, 1, 1, 1, 0, 0], sizes = [1, 1, 4, 4, 8, 6], strides = [1, 1, 1, 1, 1, 1]} : vector<2x2x6x6x8x6xf32> to vector<1x1x4x4x8x6xf32>
    %101 = vector.shape_cast %100 : vector<1x1x4x4x8x6xf32> to vector<4x4x8x6xf32>
    %102 = vector.extract_strided_slice %15 {offsets = [1, 0, 1, 2, 0, 0], sizes = [1, 1, 4, 4, 8, 6], strides = [1, 1, 1, 1, 1, 1]} : vector<2x2x6x6x8x6xf32> to vector<1x1x4x4x8x6xf32>
    %103 = vector.shape_cast %102 : vector<1x1x4x4x8x6xf32> to vector<4x4x8x6xf32>
    %104 = vector.extract_strided_slice %15 {offsets = [1, 1, 1, 2, 0, 0], sizes = [1, 1, 4, 4, 8, 6], strides = [1, 1, 1, 1, 1, 1]} : vector<2x2x6x6x8x6xf32> to vector<1x1x4x4x8x6xf32>
    %105 = vector.shape_cast %104 : vector<1x1x4x4x8x6xf32> to vector<4x4x8x6xf32>
    %106 = vector.extract_strided_slice %15 {offsets = [0, 1, 2, 0, 0, 0], sizes = [1, 1, 4, 4, 8, 6], strides = [1, 1, 1, 1, 1, 1]} : vector<2x2x6x6x8x6xf32> to vector<1x1x4x4x8x6xf32>
    %107 = vector.shape_cast %106 : vector<1x1x4x4x8x6xf32> to vector<4x4x8x6xf32>
    %108 = vector.extract_strided_slice %15 {offsets = [0, 0, 2, 1, 0, 0], sizes = [1, 1, 4, 4, 8, 6], strides = [1, 1, 1, 1, 1, 1]} : vector<2x2x6x6x8x6xf32> to vector<1x1x4x4x8x6xf32>
    %109 = vector.shape_cast %108 : vector<1x1x4x4x8x6xf32> to vector<4x4x8x6xf32>
    %110 = vector.extract_strided_slice %15 {offsets = [0, 1, 2, 1, 0, 0], sizes = [1, 1, 4, 4, 8, 6], strides = [1, 1, 1, 1, 1, 1]} : vector<2x2x6x6x8x6xf32> to vector<1x1x4x4x8x6xf32>
    %111 = vector.shape_cast %110 : vector<1x1x4x4x8x6xf32> to vector<4x4x8x6xf32>
    %112 = vector.extract_strided_slice %15 {offsets = [0, 0, 2, 2, 0, 0], sizes = [1, 1, 4, 4, 8, 6], strides = [1, 1, 1, 1, 1, 1]} : vector<2x2x6x6x8x6xf32> to vector<1x1x4x4x8x6xf32>
    %113 = vector.shape_cast %112 : vector<1x1x4x4x8x6xf32> to vector<4x4x8x6xf32>
    %114 = vector.extract_strided_slice %15 {offsets = [0, 1, 2, 2, 0, 0], sizes = [1, 1, 4, 4, 8, 6], strides = [1, 1, 1, 1, 1, 1]} : vector<2x2x6x6x8x6xf32> to vector<1x1x4x4x8x6xf32>
    %115 = vector.shape_cast %114 : vector<1x1x4x4x8x6xf32> to vector<4x4x8x6xf32>
    %116 = vector.extract_strided_slice %15 {offsets = [1, 0, 0, 0, 0, 0], sizes = [1, 1, 4, 4, 8, 6], strides = [1, 1, 1, 1, 1, 1]} : vector<2x2x6x6x8x6xf32> to vector<1x1x4x4x8x6xf32>
    %117 = vector.shape_cast %116 : vector<1x1x4x4x8x6xf32> to vector<4x4x8x6xf32>
    %118 = vector.extract_strided_slice %15 {offsets = [1, 1, 0, 0, 0, 0], sizes = [1, 1, 4, 4, 8, 6], strides = [1, 1, 1, 1, 1, 1]} : vector<2x2x6x6x8x6xf32> to vector<1x1x4x4x8x6xf32>
    %119 = vector.shape_cast %118 : vector<1x1x4x4x8x6xf32> to vector<4x4x8x6xf32>
    %120 = vector.extract_strided_slice %15 {offsets = [1, 0, 0, 1, 0, 0], sizes = [1, 1, 4, 4, 8, 6], strides = [1, 1, 1, 1, 1, 1]} : vector<2x2x6x6x8x6xf32> to vector<1x1x4x4x8x6xf32>
    %121 = vector.shape_cast %120 : vector<1x1x4x4x8x6xf32> to vector<4x4x8x6xf32>
    %122 = vector.extract_strided_slice %15 {offsets = [1, 1, 0, 1, 0, 0], sizes = [1, 1, 4, 4, 8, 6], strides = [1, 1, 1, 1, 1, 1]} : vector<2x2x6x6x8x6xf32> to vector<1x1x4x4x8x6xf32>
    %123 = vector.shape_cast %122 : vector<1x1x4x4x8x6xf32> to vector<4x4x8x6xf32>
    %124 = vector.extract_strided_slice %15 {offsets = [1, 0, 0, 2, 0, 0], sizes = [1, 1, 4, 4, 8, 6], strides = [1, 1, 1, 1, 1, 1]} : vector<2x2x6x6x8x6xf32> to vector<1x1x4x4x8x6xf32>
    %125 = vector.shape_cast %124 : vector<1x1x4x4x8x6xf32> to vector<4x4x8x6xf32>
    %126 = vector.extract_strided_slice %15 {offsets = [0, 0, 1, 0, 0, 0], sizes = [1, 1, 4, 4, 8, 6], strides = [1, 1, 1, 1, 1, 1]} : vector<2x2x6x6x8x6xf32> to vector<1x1x4x4x8x6xf32>
    %127 = vector.shape_cast %126 : vector<1x1x4x4x8x6xf32> to vector<4x4x8x6xf32>
    %128 = vector.extract_strided_slice %15 {offsets = [0, 1, 1, 0, 0, 0], sizes = [1, 1, 4, 4, 8, 6], strides = [1, 1, 1, 1, 1, 1]} : vector<2x2x6x6x8x6xf32> to vector<1x1x4x4x8x6xf32>
    %129 = vector.shape_cast %128 : vector<1x1x4x4x8x6xf32> to vector<4x4x8x6xf32>
    %130 = vector.extract_strided_slice %15 {offsets = [0, 0, 1, 1, 0, 0], sizes = [1, 1, 4, 4, 8, 6], strides = [1, 1, 1, 1, 1, 1]} : vector<2x2x6x6x8x6xf32> to vector<1x1x4x4x8x6xf32>
    %131 = vector.shape_cast %130 : vector<1x1x4x4x8x6xf32> to vector<4x4x8x6xf32>
    %132 = vector.extract_strided_slice %15 {offsets = [0, 1, 1, 1, 0, 0], sizes = [1, 1, 4, 4, 8, 6], strides = [1, 1, 1, 1, 1, 1]} : vector<2x2x6x6x8x6xf32> to vector<1x1x4x4x8x6xf32>
    %133 = vector.shape_cast %132 : vector<1x1x4x4x8x6xf32> to vector<4x4x8x6xf32>
    %134 = vector.extract_strided_slice %15 {offsets = [0, 0, 1, 2, 0, 0], sizes = [1, 1, 4, 4, 8, 6], strides = [1, 1, 1, 1, 1, 1]} : vector<2x2x6x6x8x6xf32> to vector<1x1x4x4x8x6xf32>
    %135 = vector.shape_cast %134 : vector<1x1x4x4x8x6xf32> to vector<4x4x8x6xf32>
    %136 = vector.extract_strided_slice %15 {offsets = [1, 0, 1, 0, 0, 0], sizes = [1, 1, 4, 4, 8, 6], strides = [1, 1, 1, 1, 1, 1]} : vector<2x2x6x6x8x6xf32> to vector<1x1x4x4x8x6xf32>
    %137 = vector.shape_cast %136 : vector<1x1x4x4x8x6xf32> to vector<4x4x8x6xf32>
    %138 = vector.extract_strided_slice %15 {offsets = [1, 1, 1, 0, 0, 0], sizes = [1, 1, 4, 4, 8, 6], strides = [1, 1, 1, 1, 1, 1]} : vector<2x2x6x6x8x6xf32> to vector<1x1x4x4x8x6xf32>
    %139 = vector.shape_cast %138 : vector<1x1x4x4x8x6xf32> to vector<4x4x8x6xf32>
    %140 = vector.extract_strided_slice %15 {offsets = [1, 0, 1, 1, 0, 0], sizes = [1, 1, 4, 4, 8, 6], strides = [1, 1, 1, 1, 1, 1]} : vector<2x2x6x6x8x6xf32> to vector<1x1x4x4x8x6xf32>
    %141 = vector.shape_cast %140 : vector<1x1x4x4x8x6xf32> to vector<4x4x8x6xf32>
    %142 = vector.extract_strided_slice %15 {offsets = [1, 1, 1, 1, 0, 0], sizes = [1, 1, 4, 4, 8, 6], strides = [1, 1, 1, 1, 1, 1]} : vector<2x2x6x6x8x6xf32> to vector<1x1x4x4x8x6xf32>
    %143 = vector.shape_cast %142 : vector<1x1x4x4x8x6xf32> to vector<4x4x8x6xf32>
    %144 = vector.extract_strided_slice %15 {offsets = [1, 0, 1, 2, 0, 0], sizes = [1, 1, 4, 4, 8, 6], strides = [1, 1, 1, 1, 1, 1]} : vector<2x2x6x6x8x6xf32> to vector<1x1x4x4x8x6xf32>
    %145 = vector.shape_cast %144 : vector<1x1x4x4x8x6xf32> to vector<4x4x8x6xf32>
    %146 = vector.extract_strided_slice %15 {offsets = [0, 0, 2, 0, 0, 0], sizes = [1, 1, 4, 4, 8, 6], strides = [1, 1, 1, 1, 1, 1]} : vector<2x2x6x6x8x6xf32> to vector<1x1x4x4x8x6xf32>
    %147 = vector.shape_cast %146 : vector<1x1x4x4x8x6xf32> to vector<4x4x8x6xf32>
    %148 = vector.extract_strided_slice %15 {offsets = [0, 1, 2, 0, 0, 0], sizes = [1, 1, 4, 4, 8, 6], strides = [1, 1, 1, 1, 1, 1]} : vector<2x2x6x6x8x6xf32> to vector<1x1x4x4x8x6xf32>
    %149 = vector.shape_cast %148 : vector<1x1x4x4x8x6xf32> to vector<4x4x8x6xf32>
    %150 = vector.extract_strided_slice %15 {offsets = [0, 0, 2, 1, 0, 0], sizes = [1, 1, 4, 4, 8, 6], strides = [1, 1, 1, 1, 1, 1]} : vector<2x2x6x6x8x6xf32> to vector<1x1x4x4x8x6xf32>
    %151 = vector.shape_cast %150 : vector<1x1x4x4x8x6xf32> to vector<4x4x8x6xf32>
    %152 = vector.extract_strided_slice %15 {offsets = [0, 1, 2, 1, 0, 0], sizes = [1, 1, 4, 4, 8, 6], strides = [1, 1, 1, 1, 1, 1]} : vector<2x2x6x6x8x6xf32> to vector<1x1x4x4x8x6xf32>
    %153 = vector.shape_cast %152 : vector<1x1x4x4x8x6xf32> to vector<4x4x8x6xf32>
    %154 = vector.extract_strided_slice %15 {offsets = [0, 0, 2, 2, 0, 0], sizes = [1, 1, 4, 4, 8, 6], strides = [1, 1, 1, 1, 1, 1]} : vector<2x2x6x6x8x6xf32> to vector<1x1x4x4x8x6xf32>
    %155 = vector.shape_cast %154 : vector<1x1x4x4x8x6xf32> to vector<4x4x8x6xf32>
    %156 = vector.extract_strided_slice %15 {offsets = [1, 0, 2, 0, 0, 0], sizes = [1, 1, 4, 4, 8, 6], strides = [1, 1, 1, 1, 1, 1]} : vector<2x2x6x6x8x6xf32> to vector<1x1x4x4x8x6xf32>
    %157 = vector.shape_cast %156 : vector<1x1x4x4x8x6xf32> to vector<4x4x8x6xf32>
    %158 = vector.extract_strided_slice %15 {offsets = [1, 1, 2, 0, 0, 0], sizes = [1, 1, 4, 4, 8, 6], strides = [1, 1, 1, 1, 1, 1]} : vector<2x2x6x6x8x6xf32> to vector<1x1x4x4x8x6xf32>
    %159 = vector.shape_cast %158 : vector<1x1x4x4x8x6xf32> to vector<4x4x8x6xf32>
    %160 = vector.extract_strided_slice %15 {offsets = [1, 0, 2, 1, 0, 0], sizes = [1, 1, 4, 4, 8, 6], strides = [1, 1, 1, 1, 1, 1]} : vector<2x2x6x6x8x6xf32> to vector<1x1x4x4x8x6xf32>
    %161 = vector.shape_cast %160 : vector<1x1x4x4x8x6xf32> to vector<4x4x8x6xf32>
    %162 = vector.extract_strided_slice %15 {offsets = [1, 1, 2, 1, 0, 0], sizes = [1, 1, 4, 4, 8, 6], strides = [1, 1, 1, 1, 1, 1]} : vector<2x2x6x6x8x6xf32> to vector<1x1x4x4x8x6xf32>
    %163 = vector.shape_cast %162 : vector<1x1x4x4x8x6xf32> to vector<4x4x8x6xf32>
    %164 = vector.extract_strided_slice %15 {offsets = [1, 0, 2, 2, 0, 0], sizes = [1, 1, 4, 4, 8, 6], strides = [1, 1, 1, 1, 1, 1]} : vector<2x2x6x6x8x6xf32> to vector<1x1x4x4x8x6xf32>
    %165 = vector.shape_cast %164 : vector<1x1x4x4x8x6xf32> to vector<4x4x8x6xf32>
    %166 = vector.extract_strided_slice %15 {offsets = [1, 1, 0, 0, 0, 0], sizes = [1, 1, 4, 4, 8, 6], strides = [1, 1, 1, 1, 1, 1]} : vector<2x2x6x6x8x6xf32> to vector<1x1x4x4x8x6xf32>
    %167 = vector.shape_cast %166 : vector<1x1x4x4x8x6xf32> to vector<4x4x8x6xf32>
    %168 = vector.extract_strided_slice %15 {offsets = [1, 0, 0, 1, 0, 0], sizes = [1, 1, 4, 4, 8, 6], strides = [1, 1, 1, 1, 1, 1]} : vector<2x2x6x6x8x6xf32> to vector<1x1x4x4x8x6xf32>
    %169 = vector.shape_cast %168 : vector<1x1x4x4x8x6xf32> to vector<4x4x8x6xf32>
    %170 = vector.extract_strided_slice %15 {offsets = [1, 1, 0, 1, 0, 0], sizes = [1, 1, 4, 4, 8, 6], strides = [1, 1, 1, 1, 1, 1]} : vector<2x2x6x6x8x6xf32> to vector<1x1x4x4x8x6xf32>
    %171 = vector.shape_cast %170 : vector<1x1x4x4x8x6xf32> to vector<4x4x8x6xf32>
    %172 = vector.extract_strided_slice %15 {offsets = [1, 0, 0, 2, 0, 0], sizes = [1, 1, 4, 4, 8, 6], strides = [1, 1, 1, 1, 1, 1]} : vector<2x2x6x6x8x6xf32> to vector<1x1x4x4x8x6xf32>
    %173 = vector.shape_cast %172 : vector<1x1x4x4x8x6xf32> to vector<4x4x8x6xf32>
    %174 = vector.extract_strided_slice %15 {offsets = [1, 1, 0, 2, 0, 0], sizes = [1, 1, 4, 4, 8, 6], strides = [1, 1, 1, 1, 1, 1]} : vector<2x2x6x6x8x6xf32> to vector<1x1x4x4x8x6xf32>
    %175 = vector.shape_cast %174 : vector<1x1x4x4x8x6xf32> to vector<4x4x8x6xf32>
    %176 = vector.extract_strided_slice %15 {offsets = [0, 1, 1, 0, 0, 0], sizes = [1, 1, 4, 4, 8, 6], strides = [1, 1, 1, 1, 1, 1]} : vector<2x2x6x6x8x6xf32> to vector<1x1x4x4x8x6xf32>
    %177 = vector.shape_cast %176 : vector<1x1x4x4x8x6xf32> to vector<4x4x8x6xf32>
    %178 = vector.extract_strided_slice %15 {offsets = [0, 0, 1, 1, 0, 0], sizes = [1, 1, 4, 4, 8, 6], strides = [1, 1, 1, 1, 1, 1]} : vector<2x2x6x6x8x6xf32> to vector<1x1x4x4x8x6xf32>
    %179 = vector.shape_cast %178 : vector<1x1x4x4x8x6xf32> to vector<4x4x8x6xf32>
    %180 = vector.extract_strided_slice %15 {offsets = [0, 1, 1, 1, 0, 0], sizes = [1, 1, 4, 4, 8, 6], strides = [1, 1, 1, 1, 1, 1]} : vector<2x2x6x6x8x6xf32> to vector<1x1x4x4x8x6xf32>
    %181 = vector.shape_cast %180 : vector<1x1x4x4x8x6xf32> to vector<4x4x8x6xf32>
    %182 = vector.extract_strided_slice %15 {offsets = [0, 0, 1, 2, 0, 0], sizes = [1, 1, 4, 4, 8, 6], strides = [1, 1, 1, 1, 1, 1]} : vector<2x2x6x6x8x6xf32> to vector<1x1x4x4x8x6xf32>
    %183 = vector.shape_cast %182 : vector<1x1x4x4x8x6xf32> to vector<4x4x8x6xf32>
    %184 = vector.extract_strided_slice %15 {offsets = [0, 1, 1, 2, 0, 0], sizes = [1, 1, 4, 4, 8, 6], strides = [1, 1, 1, 1, 1, 1]} : vector<2x2x6x6x8x6xf32> to vector<1x1x4x4x8x6xf32>
    %185 = vector.shape_cast %184 : vector<1x1x4x4x8x6xf32> to vector<4x4x8x6xf32>
    %186 = vector.extract_strided_slice %15 {offsets = [1, 1, 1, 0, 0, 0], sizes = [1, 1, 4, 4, 8, 6], strides = [1, 1, 1, 1, 1, 1]} : vector<2x2x6x6x8x6xf32> to vector<1x1x4x4x8x6xf32>
    %187 = vector.shape_cast %186 : vector<1x1x4x4x8x6xf32> to vector<4x4x8x6xf32>
    %188 = vector.extract_strided_slice %15 {offsets = [1, 0, 1, 1, 0, 0], sizes = [1, 1, 4, 4, 8, 6], strides = [1, 1, 1, 1, 1, 1]} : vector<2x2x6x6x8x6xf32> to vector<1x1x4x4x8x6xf32>
    %189 = vector.shape_cast %188 : vector<1x1x4x4x8x6xf32> to vector<4x4x8x6xf32>
    %190 = vector.extract_strided_slice %15 {offsets = [1, 1, 1, 1, 0, 0], sizes = [1, 1, 4, 4, 8, 6], strides = [1, 1, 1, 1, 1, 1]} : vector<2x2x6x6x8x6xf32> to vector<1x1x4x4x8x6xf32>
    %191 = vector.shape_cast %190 : vector<1x1x4x4x8x6xf32> to vector<4x4x8x6xf32>
    %192 = vector.extract_strided_slice %15 {offsets = [1, 0, 1, 2, 0, 0], sizes = [1, 1, 4, 4, 8, 6], strides = [1, 1, 1, 1, 1, 1]} : vector<2x2x6x6x8x6xf32> to vector<1x1x4x4x8x6xf32>
    %193 = vector.shape_cast %192 : vector<1x1x4x4x8x6xf32> to vector<4x4x8x6xf32>
    %194 = vector.extract_strided_slice %15 {offsets = [1, 1, 1, 2, 0, 0], sizes = [1, 1, 4, 4, 8, 6], strides = [1, 1, 1, 1, 1, 1]} : vector<2x2x6x6x8x6xf32> to vector<1x1x4x4x8x6xf32>
    %195 = vector.shape_cast %194 : vector<1x1x4x4x8x6xf32> to vector<4x4x8x6xf32>
    %196 = vector.extract_strided_slice %15 {offsets = [0, 1, 2, 0, 0, 0], sizes = [1, 1, 4, 4, 8, 6], strides = [1, 1, 1, 1, 1, 1]} : vector<2x2x6x6x8x6xf32> to vector<1x1x4x4x8x6xf32>
    %197 = vector.shape_cast %196 : vector<1x1x4x4x8x6xf32> to vector<4x4x8x6xf32>
    %198 = vector.extract_strided_slice %15 {offsets = [0, 0, 2, 1, 0, 0], sizes = [1, 1, 4, 4, 8, 6], strides = [1, 1, 1, 1, 1, 1]} : vector<2x2x6x6x8x6xf32> to vector<1x1x4x4x8x6xf32>
    %199 = vector.shape_cast %198 : vector<1x1x4x4x8x6xf32> to vector<4x4x8x6xf32>
    %200 = vector.extract_strided_slice %15 {offsets = [0, 1, 2, 1, 0, 0], sizes = [1, 1, 4, 4, 8, 6], strides = [1, 1, 1, 1, 1, 1]} : vector<2x2x6x6x8x6xf32> to vector<1x1x4x4x8x6xf32>
    %201 = vector.shape_cast %200 : vector<1x1x4x4x8x6xf32> to vector<4x4x8x6xf32>
    %202 = vector.extract_strided_slice %15 {offsets = [0, 0, 2, 2, 0, 0], sizes = [1, 1, 4, 4, 8, 6], strides = [1, 1, 1, 1, 1, 1]} : vector<2x2x6x6x8x6xf32> to vector<1x1x4x4x8x6xf32>
    %203 = vector.shape_cast %202 : vector<1x1x4x4x8x6xf32> to vector<4x4x8x6xf32>
    %204 = vector.extract_strided_slice %15 {offsets = [0, 1, 2, 2, 0, 0], sizes = [1, 1, 4, 4, 8, 6], strides = [1, 1, 1, 1, 1, 1]} : vector<2x2x6x6x8x6xf32> to vector<1x1x4x4x8x6xf32>
    %205 = vector.shape_cast %204 : vector<1x1x4x4x8x6xf32> to vector<4x4x8x6xf32>
    %206 = vector.extract_strided_slice %15 {offsets = [1, 1, 2, 0, 0, 0], sizes = [1, 1, 4, 4, 8, 6], strides = [1, 1, 1, 1, 1, 1]} : vector<2x2x6x6x8x6xf32> to vector<1x1x4x4x8x6xf32>
    %207 = vector.shape_cast %206 : vector<1x1x4x4x8x6xf32> to vector<4x4x8x6xf32>
    %208 = vector.extract_strided_slice %15 {offsets = [1, 0, 2, 1, 0, 0], sizes = [1, 1, 4, 4, 8, 6], strides = [1, 1, 1, 1, 1, 1]} : vector<2x2x6x6x8x6xf32> to vector<1x1x4x4x8x6xf32>
    %209 = vector.shape_cast %208 : vector<1x1x4x4x8x6xf32> to vector<4x4x8x6xf32>
    %210 = vector.extract_strided_slice %15 {offsets = [1, 1, 2, 1, 0, 0], sizes = [1, 1, 4, 4, 8, 6], strides = [1, 1, 1, 1, 1, 1]} : vector<2x2x6x6x8x6xf32> to vector<1x1x4x4x8x6xf32>
    %211 = vector.shape_cast %210 : vector<1x1x4x4x8x6xf32> to vector<4x4x8x6xf32>
    %212 = vector.extract_strided_slice %15 {offsets = [1, 0, 2, 2, 0, 0], sizes = [1, 1, 4, 4, 8, 6], strides = [1, 1, 1, 1, 1, 1]} : vector<2x2x6x6x8x6xf32> to vector<1x1x4x4x8x6xf32>
    %213 = vector.shape_cast %212 : vector<1x1x4x4x8x6xf32> to vector<4x4x8x6xf32>
    %214 = vector.extract_strided_slice %15 {offsets = [1, 1, 2, 2, 0, 0], sizes = [1, 1, 4, 4, 8, 6], strides = [1, 1, 1, 1, 1, 1]} : vector<2x2x6x6x8x6xf32> to vector<1x1x4x4x8x6xf32>
    %215 = vector.shape_cast %214 : vector<1x1x4x4x8x6xf32> to vector<4x4x8x6xf32>
    %216 = tpu.concatenate %17, %19, %21, %23, %25, %27, %29, %31, %33, %35, %37, %39, %41, %43, %45, %47 in 3 : vector<4x4x8x6xf32>, vector<4x4x8x6xf32>, vector<4x4x8x6xf32>, vector<4x4x8x6xf32>, vector<4x4x8x6xf32>, vector<4x4x8x6xf32>, vector<4x4x8x6xf32>, vector<4x4x8x6xf32>, vector<4x4x8x6xf32>, vector<4x4x8x6xf32>, vector<4x4x8x6xf32>, vector<4x4x8x6xf32>, vector<4x4x8x6xf32>, vector<4x4x8x6xf32>, vector<4x4x8x6xf32>, vector<4x4x8x6xf32> -> vector<4x4x8x96xf32>
    %217 = tpu.concatenate %49, %51, %53, %55, %57, %59, %61, %63, %65, %67, %69, %71, %73, %75, %77, %79 in 3 : vector<4x4x8x6xf32>, vector<4x4x8x6xf32>, vector<4x4x8x6xf32>, vector<4x4x8x6xf32>, vector<4x4x8x6xf32>, vector<4x4x8x6xf32>, vector<4x4x8x6xf32>, vector<4x4x8x6xf32>, vector<4x4x8x6xf32>, vector<4x4x8x6xf32>, vector<4x4x8x6xf32>, vector<4x4x8x6xf32>, vector<4x4x8x6xf32>, vector<4x4x8x6xf32>, vector<4x4x8x6xf32>, vector<4x4x8x6xf32> -> vector<4x4x8x96xf32>
    %218 = tpu.concatenate %81, %83, %85, %87, %89, %91, %93, %95, %97, %99, %101, %103, %105, %107, %109, %111 in 3 : vector<4x4x8x6xf32>, vector<4x4x8x6xf32>, vector<4x4x8x6xf32>, vector<4x4x8x6xf32>, vector<4x4x8x6xf32>, vector<4x4x8x6xf32>, vector<4x4x8x6xf32>, vector<4x4x8x6xf32>, vector<4x4x8x6xf32>, vector<4x4x8x6xf32>, vector<4x4x8x6xf32>, vector<4x4x8x6xf32>, vector<4x4x8x6xf32>, vector<4x4x8x6xf32>, vector<4x4x8x6xf32>, vector<4x4x8x6xf32> -> vector<4x4x8x96xf32>
    %219 = tpu.concatenate %113, %115, %117, %119, %121, %123, %125, %127, %129, %131, %133, %135, %137, %139, %141, %143 in 3 : vector<4x4x8x6xf32>, vector<4x4x8x6xf32>, vector<4x4x8x6xf32>, vector<4x4x8x6xf32>, vector<4x4x8x6xf32>, vector<4x4x8x6xf32>, vector<4x4x8x6xf32>, vector<4x4x8x6xf32>, vector<4x4x8x6xf32>, vector<4x4x8x6xf32>, vector<4x4x8x6xf32>, vector<4x4x8x6xf32>, vector<4x4x8x6xf32>, vector<4x4x8x6xf32>, vector<4x4x8x6xf32>, vector<4x4x8x6xf32> -> vector<4x4x8x96xf32>
    %220 = tpu.concatenate %145, %147, %149, %151, %153, %155, %157, %159, %161, %163, %165, %167, %169, %171, %173, %175 in 3 : vector<4x4x8x6xf32>, vector<4x4x8x6xf32>, vector<4x4x8x6xf32>, vector<4x4x8x6xf32>, vector<4x4x8x6xf32>, vector<4x4x8x6xf32>, vector<4x4x8x6xf32>, vector<4x4x8x6xf32>, vector<4x4x8x6xf32>, vector<4x4x8x6xf32>, vector<4x4x8x6xf32>, vector<4x4x8x6xf32>, vector<4x4x8x6xf32>, vector<4x4x8x6xf32>, vector<4x4x8x6xf32>, vector<4x4x8x6xf32> -> vector<4x4x8x96xf32>
    %221 = tpu.concatenate %177, %179, %181, %183, %185, %187, %189, %191, %193, %195, %197, %199, %201, %203, %205, %207 in 3 : vector<4x4x8x6xf32>, vector<4x4x8x6xf32>, vector<4x4x8x6xf32>, vector<4x4x8x6xf32>, vector<4x4x8x6xf32>, vector<4x4x8x6xf32>, vector<4x4x8x6xf32>, vector<4x4x8x6xf32>, vector<4x4x8x6xf32>, vector<4x4x8x6xf32>, vector<4x4x8x6xf32>, vector<4x4x8x6xf32>, vector<4x4x8x6xf32>, vector<4x4x8x6xf32>, vector<4x4x8x6xf32>, vector<4x4x8x6xf32> -> vector<4x4x8x96xf32>
    %222 = tpu.concatenate %209, %211, %213, %215 in 3 : vector<4x4x8x6xf32>, vector<4x4x8x6xf32>, vector<4x4x8x6xf32>, vector<4x4x8x6xf32> -> vector<4x4x8x24xf32>
    %223 = tpu.concatenate %216, %217, %218, %219, %220, %221, %222 in 3 : vector<4x4x8x96xf32>, vector<4x4x8x96xf32>, vector<4x4x8x96xf32>, vector<4x4x8x96xf32>, vector<4x4x8x96xf32>, vector<4x4x8x96xf32>, vector<4x4x8x24xf32> -> vector<4x4x8x600xf32>
    %224 = vector.shape_cast %223 : vector<4x4x8x600xf32> to vector<128x600xf32>
    %c0_6 = arith.constant 0 : index
    %c0_7 = arith.constant 0 : index
    %225 = vector.load %arg4[%c0_6, %c0_7] : memref<600x64xf32, #tpu.memory_space<vmem>>, vector<600x64xf32>
    %cst_8 = arith.constant dense<0.000000e+00> : vector<128x64xf32>
    %226 = tpu.matmul %224, %225, %cst_8 {dimension_numbers = #tpu.dot_dimension_numbers<[1], [0], [0], [1], [0, 0, 1, 1], [], []>} : vector<128x600xf32>, vector<600x64xf32>, vector<128x64xf32> -> vector<128x64xf32>
    %227 = vector.extract_strided_slice %226 {offsets = [0, 0], sizes = [128, 16], strides = [1, 1]} : vector<128x64xf32> to vector<128x16xf32>
    %228 = vector.extract_strided_slice %226 {offsets = [0, 16], sizes = [128, 16], strides = [1, 1]} : vector<128x64xf32> to vector<128x16xf32>
    %229 = arith.maximumf %227, %228 : vector<128x16xf32>
    %230 = vector.extract_strided_slice %226 {offsets = [0, 32], sizes = [128, 16], strides = [1, 1]} : vector<128x64xf32> to vector<128x16xf32>
    %231 = vector.extract_strided_slice %226 {offsets = [0, 48], sizes = [128, 16], strides = [1, 1]} : vector<128x64xf32> to vector<128x16xf32>
    %232 = arith.maximumf %230, %231 : vector<128x16xf32>
    %233 = arith.maximumf %229, %232 : vector<128x16xf32>
    %c0_9 = arith.constant 0 : index
    %c0_10 = arith.constant 0 : index
    %234 = vector.load %arg5[%c0_9, %c0_10] : memref<1x16xf32, #tpu.memory_space<vmem>>, vector<1x16xf32>
    %235 = vector.broadcast %234 : vector<1x16xf32> to vector<128x16xf32>
    %236 = arith.addf %233, %235 : vector<128x16xf32>
    %cst_11 = arith.constant 0.000000e+00 : f32
    %237 = vector.broadcast %cst_11 : f32 to vector<128x16xf32>
    %238 = arith.maximumf %236, %237 : vector<128x16xf32>
    %239 = vector.extract_strided_slice %238 {offsets = [0, 0], sizes = [8, 16], strides = [1, 1]} : vector<128x16xf32> to vector<8x16xf32>
    %240 = vector.extract_strided_slice %238 {offsets = [8, 0], sizes = [8, 16], strides = [1, 1]} : vector<128x16xf32> to vector<8x16xf32>
    %241 = vector.extract_strided_slice %238 {offsets = [16, 0], sizes = [8, 16], strides = [1, 1]} : vector<128x16xf32> to vector<8x16xf32>
    %242 = vector.extract_strided_slice %238 {offsets = [24, 0], sizes = [8, 16], strides = [1, 1]} : vector<128x16xf32> to vector<8x16xf32>
    %243 = vector.extract_strided_slice %238 {offsets = [32, 0], sizes = [8, 16], strides = [1, 1]} : vector<128x16xf32> to vector<8x16xf32>
    %244 = vector.extract_strided_slice %238 {offsets = [40, 0], sizes = [8, 16], strides = [1, 1]} : vector<128x16xf32> to vector<8x16xf32>
    %245 = vector.extract_strided_slice %238 {offsets = [48, 0], sizes = [8, 16], strides = [1, 1]} : vector<128x16xf32> to vector<8x16xf32>
    %246 = vector.extract_strided_slice %238 {offsets = [56, 0], sizes = [8, 16], strides = [1, 1]} : vector<128x16xf32> to vector<8x16xf32>
    %247 = vector.extract_strided_slice %238 {offsets = [64, 0], sizes = [8, 16], strides = [1, 1]} : vector<128x16xf32> to vector<8x16xf32>
    %248 = vector.extract_strided_slice %238 {offsets = [72, 0], sizes = [8, 16], strides = [1, 1]} : vector<128x16xf32> to vector<8x16xf32>
    %249 = vector.extract_strided_slice %238 {offsets = [80, 0], sizes = [8, 16], strides = [1, 1]} : vector<128x16xf32> to vector<8x16xf32>
    %250 = vector.extract_strided_slice %238 {offsets = [88, 0], sizes = [8, 16], strides = [1, 1]} : vector<128x16xf32> to vector<8x16xf32>
    %251 = vector.extract_strided_slice %238 {offsets = [96, 0], sizes = [8, 16], strides = [1, 1]} : vector<128x16xf32> to vector<8x16xf32>
    %252 = vector.extract_strided_slice %238 {offsets = [104, 0], sizes = [8, 16], strides = [1, 1]} : vector<128x16xf32> to vector<8x16xf32>
    %253 = vector.extract_strided_slice %238 {offsets = [112, 0], sizes = [8, 16], strides = [1, 1]} : vector<128x16xf32> to vector<8x16xf32>
    %254 = vector.extract_strided_slice %238 {offsets = [120, 0], sizes = [8, 16], strides = [1, 1]} : vector<128x16xf32> to vector<8x16xf32>
    %255 = tpu.concatenate %239, %240, %241, %242, %243, %244, %245, %246, %247, %248, %249, %250, %251, %252, %253, %254 in 1 : vector<8x16xf32>, vector<8x16xf32>, vector<8x16xf32>, vector<8x16xf32>, vector<8x16xf32>, vector<8x16xf32>, vector<8x16xf32>, vector<8x16xf32>, vector<8x16xf32>, vector<8x16xf32>, vector<8x16xf32>, vector<8x16xf32>, vector<8x16xf32>, vector<8x16xf32>, vector<8x16xf32>, vector<8x16xf32> -> vector<8x256xf32>
    %c0_12 = arith.constant 0 : index
    %c0_13 = arith.constant 0 : index
    %256 = vector.load %arg6[%c0_12, %c0_13] : memref<256x120xf32, #tpu.memory_space<vmem>>, vector<256x120xf32>
    %cst_14 = arith.constant dense<0.000000e+00> : vector<8x120xf32>
    %257 = tpu.matmul %255, %256, %cst_14 {dimension_numbers = #tpu.dot_dimension_numbers<[1], [0], [0], [1], [0, 0, 1, 1], [], []>} : vector<8x256xf32>, vector<256x120xf32>, vector<8x120xf32> -> vector<8x120xf32>
    %c0_15 = arith.constant 0 : index
    %c0_16 = arith.constant 0 : index
    %258 = vector.load %arg7[%c0_15, %c0_16] : memref<1x120xf32, #tpu.memory_space<vmem>>, vector<1x120xf32>
    %259 = vector.broadcast %258 : vector<1x120xf32> to vector<8x120xf32>
    %260 = arith.addf %257, %259 : vector<8x120xf32>
    %cst_17 = arith.constant 0.000000e+00 : f32
    %261 = vector.broadcast %cst_17 : f32 to vector<8x120xf32>
    %262 = arith.maximumf %260, %261 : vector<8x120xf32>
    %c0_18 = arith.constant 0 : index
    %c0_19 = arith.constant 0 : index
    %263 = vector.load %arg8[%c0_18, %c0_19] : memref<120x84xf32, #tpu.memory_space<vmem>>, vector<120x84xf32>
    %cst_20 = arith.constant dense<0.000000e+00> : vector<8x84xf32>
    %264 = tpu.matmul %262, %263, %cst_20 {dimension_numbers = #tpu.dot_dimension_numbers<[1], [0], [0], [1], [0, 0, 1, 1], [], []>} : vector<8x120xf32>, vector<120x84xf32>, vector<8x84xf32> -> vector<8x84xf32>
    %c0_21 = arith.constant 0 : index
    %c0_22 = arith.constant 0 : index
    %265 = vector.load %arg9[%c0_21, %c0_22] : memref<1x84xf32, #tpu.memory_space<vmem>>, vector<1x84xf32>
    %266 = vector.broadcast %265 : vector<1x84xf32> to vector<8x84xf32>
    %267 = arith.addf %264, %266 : vector<8x84xf32>
    %cst_23 = arith.constant 0.000000e+00 : f32
    %268 = vector.broadcast %cst_23 : f32 to vector<8x84xf32>
    %269 = arith.maximumf %267, %268 : vector<8x84xf32>
    %c0_24 = arith.constant 0 : index
    %c0_25 = arith.constant 0 : index
    %270 = vector.load %arg10[%c0_24, %c0_25] : memref<84x128xf32, #tpu.memory_space<vmem>>, vector<84x128xf32>
    %cst_26 = arith.constant dense<0.000000e+00> : vector<8x128xf32>
    %271 = tpu.matmul %269, %270, %cst_26 {dimension_numbers = #tpu.dot_dimension_numbers<[1], [0], [0], [1], [0, 0, 1, 1], [], []>} : vector<8x84xf32>, vector<84x128xf32>, vector<8x128xf32> -> vector<8x128xf32>
    %c0_27 = arith.constant 0 : index
    %c0_28 = arith.constant 0 : index
    %272 = vector.load %arg11[%c0_27, %c0_28] : memref<1x128xf32, #tpu.memory_space<vmem>>, vector<1x128xf32>
    %273 = vector.broadcast %272 : vector<1x128xf32> to vector<8x128xf32>
    %274 = arith.addf %271, %273 : vector<8x128xf32>
    %c0_29 = arith.constant 0 : index
    %c0_30 = arith.constant 0 : index
    %275 = vector.load %arg12[%c0_29, %c0_30] : memref<8x128xf32, #tpu.memory_space<vmem>>, vector<8x128xf32>
    tpu.vector_store %arg12[%c0_29, %c0_30], %274 {strides = array<i32>} : memref<8x128xf32, #tpu.memory_space<vmem>>, vector<8x128xf32>,
    return
  }
  func.func @transform_0(%arg0: i32) -> (i32, i32) {
    %c0_i32 = arith.constant 0 : i32
    %c0_i32_0 = arith.constant 0 : i32
    return %arg0, %c0_i32 : i32, i32
  }
  func.func @transform_1(%arg0: i32) -> (i32, i32) {
    %c0_i32 = arith.constant 0 : i32
    %c0_i32_0 = arith.constant 0 : i32
    %c0_i32_1 = arith.constant 0 : i32
    return %c0_i32, %c0_i32_0 : i32, i32
  }
  func.func @transform_2(%arg0: i32) -> (i32, i32) {
    %c0_i32 = arith.constant 0 : i32
    %c0_i32_0 = arith.constant 0 : i32
    %c0_i32_1 = arith.constant 0 : i32
    return %c0_i32, %c0_i32_0 : i32, i32
  }
  func.func @transform_3(%arg0: i32) -> (i32, i32) {
    %c0_i32 = arith.constant 0 : i32
    %c0_i32_0 = arith.constant 0 : i32
    %c0_i32_1 = arith.constant 0 : i32
    return %c0_i32, %c0_i32_0 : i32, i32
  }
  func.func @transform_4(%arg0: i32) -> (i32, i32) {
    %c0_i32 = arith.constant 0 : i32
    %c0_i32_0 = arith.constant 0 : i32
    %c0_i32_1 = arith.constant 0 : i32
    return %c0_i32, %c0_i32_0 : i32, i32
  }
  func.func @transform_5(%arg0: i32) -> (i32, i32) {
    %c0_i32 = arith.constant 0 : i32
    %c0_i32_0 = arith.constant 0 : i32
    %c0_i32_1 = arith.constant 0 : i32
    return %c0_i32, %c0_i32_0 : i32, i32
  }
  func.func @transform_6(%arg0: i32) -> (i32, i32) {
    %c0_i32 = arith.constant 0 : i32
    %c0_i32_0 = arith.constant 0 : i32
    %c0_i32_1 = arith.constant 0 : i32
    return %c0_i32, %c0_i32_0 : i32, i32
  }
  func.func @transform_7(%arg0: i32) -> (i32, i32) {
    %c0_i32 = arith.constant 0 : i32
    %c0_i32_0 = arith.constant 0 : i32
    %c0_i32_1 = arith.constant 0 : i32
    return %c0_i32, %c0_i32_0 : i32, i32
  }
  func.func @transform_8(%arg0: i32) -> (i32, i32) {
    %c0_i32 = arith.constant 0 : i32
    %c0_i32_0 = arith.constant 0 : i32
    %c0_i32_1 = arith.constant 0 : i32
    return %c0_i32, %c0_i32_0 : i32, i32
  }
  func.func @transform_9(%arg0: i32) -> (i32, i32) {
    %c0_i32 = arith.constant 0 : i32
    %c0_i32_0 = arith.constant 0 : i32
    %c0_i32_1 = arith.constant 0 : i32
    return %c0_i32, %c0_i32_0 : i32, i32
  }
  func.func @transform_10(%arg0: i32) -> (i32, i32) {
    %c0_i32 = arith.constant 0 : i32
    %c0_i32_0 = arith.constant 0 : i32
    %c0_i32_1 = arith.constant 0 : i32
    return %c0_i32, %c0_i32_0 : i32, i32
  }
  func.func @transform_11(%arg0: i32) -> (i32, i32) {
    %c0_i32 = arith.constant 0 : i32
    %c0_i32_0 = arith.constant 0 : i32
    return %arg0, %c0_i32 : i32, i32
  }
}

</mosaic_0001>

<llo_original>
// kernel: net_forward.1
$region0: #{net_forward.1}
  #allocation0 [shape = 'u32[]', space=smem, size = 0x4, offset = 0x4, fixed_abs, tag = 'smem constant byte address 0x4 - core index']
  #allocation1 [shape = 'u32[144,128]{1,0:T(1,128)}', space=vmem, size = 0x12000, scoped, tag = 'internal scratch']
  %s0 = inlined_call_operand.vmem [shape: f32[1152,100], index: 0, kind: input, shape index: {}]
  %s1 = inlined_call_operand.vmem [shape: f32[100,24], index: 1, kind: input, shape index: {}]
  %s2 = inlined_call_operand.vmem [shape: f32[1,6], index: 2, kind: input, shape index: {}]
  %s3 = inlined_call_operand.vmem [shape: f32[600,64], index: 3, kind: input, shape index: {}]
  %s4 = inlined_call_operand.vmem [shape: f32[1,16], index: 4, kind: input, shape index: {}]
  %s5 = inlined_call_operand.vmem [shape: f32[256,120], index: 5, kind: input, shape index: {}]
  %s6 = inlined_call_operand.vmem [shape: f32[1,120], index: 6, kind: input, shape index: {}]
  %s7 = inlined_call_operand.vmem [shape: f32[120,84], index: 7, kind: input, shape index: {}]
  %s8 = inlined_call_operand.vmem [shape: f32[1,84], index: 8, kind: input, shape index: {}]
  %s9 = inlined_call_operand.vmem [shape: f32[84,128], index: 9, kind: input, shape index: {}]
  %s10 = inlined_call_operand.vmem [shape: f32[1,128], index: 10, kind: input, shape index: {}]
  %s11 = inlined_call_operand.hbm [shape: f32[8,128], index: 11, kind: output, shape index: {}]
  %s12 = sld [smem:[#allocation0]]
  $region54: #{net_forward.1} parent=0
    _
  %s14 = ssub.s32 1, %s12
  %s15 = scalar_select 0, %s14, %s12
  $region1: #{net_forward.1} parent=0
    #allocation2 [shape = 'u8[4096]{0}', space=vmem, size = 0x1000, scoped, tag = 'output window, operand 0, single buffered']
    #allocation3 [shape = 's32[1]{0}', space=sflag, size = 0x4, scoped, tag = 'scoped memory for net_forward.1']
    %16 = vsyncpa [#allocation3], 0
    // Predicated region
    $region2: #{net_forward.1} parent=1 // pred_check
      _
    $region3: #{net_forward.1} parent=1 // pred_check_branch
      %18 = sbr.rel (0) target = $region5
    $region4: #{net_forward.1} parent=1 // pred_region
      _
    $region5: #{net_forward.1} parent=1 // pred_fallthru
      _
    // Predicated region
    $region6: #{net_forward.1} parent=1 // pred_check
      _
    $region7: #{net_forward.1} parent=1 // pred_check_branch
      %20 = sbr.rel (0) target = $region9
    $region8: #{net_forward.1} parent=1 // pred_region
      _
    $region9: #{net_forward.1} parent=1 // pred_fallthru
      _
    // Predicated region
    $region10: #{net_forward.1} parent=1 // pred_check
      _
    $region11: #{net_forward.1} parent=1 // pred_check_branch
      %22 = sbr.rel (0) target = $region13
    $region12: #{net_forward.1} parent=1 // pred_region
      _
    $region13: #{net_forward.1} parent=1 // pred_fallthru
      _
    // Predicated region
    $region14: #{net_forward.1} parent=1 // pred_check
      _
    $region15: #{net_forward.1} parent=1 // pred_check_branch
      %24 = sbr.rel (0) target = $region17
    $region16: #{net_forward.1} parent=1 // pred_region
      _
    $region17: #{net_forward.1} parent=1 // pred_fallthru
      _
    // Predicated region
    $region18: #{net_forward.1} parent=1 // pred_check
      _
    $region19: #{net_forward.1} parent=1 // pred_check_branch
      %26 = sbr.rel (0) target = $region21
    $region20: #{net_forward.1} parent=1 // pred_region
      _
    $region21: #{net_forward.1} parent=1 // pred_fallthru
      _
    // Predicated region
    $region22: #{net_forward.1} parent=1 // pred_check
      _
    $region23: #{net_forward.1} parent=1 // pred_check_branch
      %28 = sbr.rel (0) target = $region25
    $region24: #{net_forward.1} parent=1 // pred_region
      _
    $region25: #{net_forward.1} parent=1 // pred_fallthru
      _
    // Predicated region
    $region26: #{net_forward.1} parent=1 // pred_check
      _
    $region27: #{net_forward.1} parent=1 // pred_check_branch
      %30 = sbr.rel (0) target = $region29
    $region28: #{net_forward.1} parent=1 // pred_region
      _
    $region29: #{net_forward.1} parent=1 // pred_fallthru
      _
    // Predicated region
    $region30: #{net_forward.1} parent=1 // pred_check
      _
    $region31: #{net_forward.1} parent=1 // pred_check_branch
      %32 = sbr.rel (0) target = $region33
    $region32: #{net_forward.1} parent=1 // pred_region
      _
    $region33: #{net_forward.1} parent=1 // pred_fallthru
      _
    // Predicated region
    $region34: #{net_forward.1} parent=1 // pred_check
      _
    $region35: #{net_forward.1} parent=1 // pred_check_branch
      %34 = sbr.rel (0) target = $region37
    $region36: #{net_forward.1} parent=1 // pred_region
      _
    $region37: #{net_forward.1} parent=1 // pred_fallthru
      _
    // Predicated region
    $region38: #{net_forward.1} parent=1 // pred_check
      _
    $region39: #{net_forward.1} parent=1 // pred_check_branch
      %36 = sbr.rel (0) target = $region41
    $region40: #{net_forward.1} parent=1 // pred_region
      _
    $region41: #{net_forward.1} parent=1 // pred_fallthru
      _
    // Predicated region
    $region42: #{net_forward.1} parent=1 // pred_check
      _
    $region43: #{net_forward.1} parent=1 // pred_check_branch
      %38 = sbr.rel (0) target = $region45
    $region44: #{net_forward.1} parent=1 // pred_region
      _
    $region45: #{net_forward.1} parent=1 // pred_fallthru
      _
    %v39 = vld [vmem:[%s0] sm:$0xff]
    %v40 = vld [vmem:[%s0 + $0x8] sm:$0xff]
    %v41 = vld [vmem:[%s0 + $0x10] sm:$0xff]
    %v42 = vld [vmem:[%s0 + $0x18] sm:$0xff]
    %v43 = vld [vmem:[%s0 + $0x20] sm:$0xff]
    %v44 = vld [vmem:[%s0 + $0x28] sm:$0xff]
    %v45 = vld [vmem:[%s0 + $0x30] sm:$0xff]
    %v46 = vld [vmem:[%s0 + $0x38] sm:$0xff]
    %v47 = vld [vmem:[%s0 + $0x40] sm:$0xff]
    %v48 = vld [vmem:[%s0 + $0x48] sm:$0xff]
    %v49 = vld [vmem:[%s0 + $0x50] sm:$0xff]
    %v50 = vld [vmem:[%s0 + $0x58] sm:$0xff]
    %v51 = vld [vmem:[%s0 + $0x60] sm:$0xff]
    %v52 = vld [vmem:[%s0 + $0x68] sm:$0xff]
    %v53 = vld [vmem:[%s0 + $0x70] sm:$0xff]
    %v54 = vld [vmem:[%s0 + $0x78] sm:$0xff]
    %v55 = vld [vmem:[%s0 + $0x80] sm:$0xff]
    %v56 = vld [vmem:[%s0 + $0x88] sm:$0xff]
    %v57 = vld [vmem:[%s0 + $0x90] sm:$0xff]
    %v58 = vld [vmem:[%s0 + $0x98] sm:$0xff]
    %v59 = vld [vmem:[%s0 + $0xa0] sm:$0xff]
    %v60 = vld [vmem:[%s0 + $0xa8] sm:$0xff]
    %v61 = vld [vmem:[%s0 + $0xb0] sm:$0xff]
    %v62 = vld [vmem:[%s0 + $0xb8] sm:$0xff]
    %v63 = vld [vmem:[%s0 + $0xc0] sm:$0xff]
    %v64 = vld [vmem:[%s0 + $0xc8] sm:$0xff]
    %v65 = vld [vmem:[%s0 + $0xd0] sm:$0xff]
    %v66 = vld [vmem:[%s0 + $0xd8] sm:$0xff]
    %v67 = vld [vmem:[%s0 + $0xe0] sm:$0xff]
    %v68 = vld [vmem:[%s0 + $0xe8] sm:$0xff]
    %v69 = vld [vmem:[%s0 + $0xf0] sm:$0xff]
    %v70 = vld [vmem:[%s0 + $0xf8] sm:$0xff]
    %v71 = vld [vmem:[%s0 + $0x100] sm:$0xff]
    %v72 = vld [vmem:[%s0 + $0x108] sm:$0xff]
    %v73 = vld [vmem:[%s0 + $0x110] sm:$0xff]
    %v74 = vld [vmem:[%s0 + $0x118] sm:$0xff]
    %v75 = vld [vmem:[%s0 + $0x120] sm:$0xff]
    %v76 = vld [vmem:[%s0 + $0x128] sm:$0xff]
    %v77 = vld [vmem:[%s0 + $0x130] sm:$0xff]
    %v78 = vld [vmem:[%s0 + $0x138] sm:$0xff]
    %v79 = vld [vmem:[%s0 + $0x140] sm:$0xff]
    %v80 = vld [vmem:[%s0 + $0x148] sm:$0xff]
    %v81 = vld [vmem:[%s0 + $0x150] sm:$0xff]
    %v82 = vld [vmem:[%s0 + $0x158] sm:$0xff]
    %v83 = vld [vmem:[%s0 + $0x160] sm:$0xff]
    %v84 = vld [vmem:[%s0 + $0x168] sm:$0xff]
    %v85 = vld [vmem:[%s0 + $0x170] sm:$0xff]
    %v86 = vld [vmem:[%s0 + $0x178] sm:$0xff]
    %v87 = vld [vmem:[%s0 + $0x180] sm:$0xff]
    %v88 = vld [vmem:[%s0 + $0x188] sm:$0xff]
    %v89 = vld [vmem:[%s0 + $0x190] sm:$0xff]
    %v90 = vld [vmem:[%s0 + $0x198] sm:$0xff]
    %v91 = vld [vmem:[%s0 + $0x1a0] sm:$0xff]
    %v92 = vld [vmem:[%s0 + $0x1a8] sm:$0xff]
    %v93 = vld [vmem:[%s0 + $0x1b0] sm:$0xff]
    %v94 = vld [vmem:[%s0 + $0x1b8] sm:$0xff]
    %v95 = vld [vmem:[%s0 + $0x1c0] sm:$0xff]
    %v96 = vld [vmem:[%s0 + $0x1c8] sm:$0xff]
    %v97 = vld [vmem:[%s0 + $0x1d0] sm:$0xff]
    %v98 = vld [vmem:[%s0 + $0x1d8] sm:$0xff]
    %v99 = vld [vmem:[%s0 + $0x1e0] sm:$0xff]
    %v100 = vld [vmem:[%s0 + $0x1e8] sm:$0xff]
    %v101 = vld [vmem:[%s0 + $0x1f0] sm:$0xff]
    %v102 = vld [vmem:[%s0 + $0x1f8] sm:$0xff]
    %v103 = vld [vmem:[%s0 + $0x200] sm:$0xff]
    %v104 = vld [vmem:[%s0 + $0x208] sm:$0xff]
    %v105 = vld [vmem:[%s0 + $0x210] sm:$0xff]
    %v106 = vld [vmem:[%s0 + $0x218] sm:$0xff]
    %v107 = vld [vmem:[%s0 + $0x220] sm:$0xff]
    %v108 = vld [vmem:[%s0 + $0x228] sm:$0xff]
    %v109 = vld [vmem:[%s0 + $0x230] sm:$0xff]
    %v110 = vld [vmem:[%s0 + $0x238] sm:$0xff]
    %v111 = vld [vmem:[%s0 + $0x240] sm:$0xff]
    %v112 = vld [vmem:[%s0 + $0x248] sm:$0xff]
    %v113 = vld [vmem:[%s0 + $0x250] sm:$0xff]
    %v114 = vld [vmem:[%s0 + $0x258] sm:$0xff]
    %v115 = vld [vmem:[%s0 + $0x260] sm:$0xff]
    %v116 = vld [vmem:[%s0 + $0x268] sm:$0xff]
    %v117 = vld [vmem:[%s0 + $0x270] sm:$0xff]
    %v118 = vld [vmem:[%s0 + $0x278] sm:$0xff]
    %v119 = vld [vmem:[%s0 + $0x280] sm:$0xff]
    %v120 = vld [vmem:[%s0 + $0x288] sm:$0xff]
    %v121 = vld [vmem:[%s0 + $0x290] sm:$0xff]
    %v122 = vld [vmem:[%s0 + $0x298] sm:$0xff]
    %v123 = vld [vmem:[%s0 + $0x2a0] sm:$0xff]
    %v124 = vld [vmem:[%s0 + $0x2a8] sm:$0xff]
    %v125 = vld [vmem:[%s0 + $0x2b0] sm:$0xff]
    %v126 = vld [vmem:[%s0 + $0x2b8] sm:$0xff]
    %v127 = vld [vmem:[%s0 + $0x2c0] sm:$0xff]
    %v128 = vld [vmem:[%s0 + $0x2c8] sm:$0xff]
    %v129 = vld [vmem:[%s0 + $0x2d0] sm:$0xff]
    %v130 = vld [vmem:[%s0 + $0x2d8] sm:$0xff]
    %v131 = vld [vmem:[%s0 + $0x2e0] sm:$0xff]
    %v132 = vld [vmem:[%s0 + $0x2e8] sm:$0xff]
    %v133 = vld [vmem:[%s0 + $0x2f0] sm:$0xff]
    %v134 = vld [vmem:[%s0 + $0x2f8] sm:$0xff]
    %v135 = vld [vmem:[%s0 + $0x300] sm:$0xff]
    %v136 = vld [vmem:[%s0 + $0x308] sm:$0xff]
    %v137 = vld [vmem:[%s0 + $0x310] sm:$0xff]
    %v138 = vld [vmem:[%s0 + $0x318] sm:$0xff]
    %v139 = vld [vmem:[%s0 + $0x320] sm:$0xff]
    %v140 = vld [vmem:[%s0 + $0x328] sm:$0xff]
    %v141 = vld [vmem:[%s0 + $0x330] sm:$0xff]
    %v142 = vld [vmem:[%s0 + $0x338] sm:$0xff]
    %v143 = vld [vmem:[%s0 + $0x340] sm:$0xff]
    %v144 = vld [vmem:[%s0 + $0x348] sm:$0xff]
    %v145 = vld [vmem:[%s0 + $0x350] sm:$0xff]
    %v146 = vld [vmem:[%s0 + $0x358] sm:$0xff]
    %v147 = vld [vmem:[%s0 + $0x360] sm:$0xff]
    %v148 = vld [vmem:[%s0 + $0x368] sm:$0xff]
    %v149 = vld [vmem:[%s0 + $0x370] sm:$0xff]
    %v150 = vld [vmem:[%s0 + $0x378] sm:$0xff]
    %v151 = vld [vmem:[%s0 + $0x380] sm:$0xff]
    %v152 = vld [vmem:[%s0 + $0x388] sm:$0xff]
    %v153 = vld [vmem:[%s0 + $0x390] sm:$0xff]
    %v154 = vld [vmem:[%s0 + $0x398] sm:$0xff]
    %v155 = vld [vmem:[%s0 + $0x3a0] sm:$0xff]
    %v156 = vld [vmem:[%s0 + $0x3a8] sm:$0xff]
    %v157 = vld [vmem:[%s0 + $0x3b0] sm:$0xff]
    %v158 = vld [vmem:[%s0 + $0x3b8] sm:$0xff]
    %v159 = vld [vmem:[%s0 + $0x3c0] sm:$0xff]
    %v160 = vld [vmem:[%s0 + $0x3c8] sm:$0xff]
    %v161 = vld [vmem:[%s0 + $0x3d0] sm:$0xff]
    %v162 = vld [vmem:[%s0 + $0x3d8] sm:$0xff]
    %v163 = vld [vmem:[%s0 + $0x3e0] sm:$0xff]
    %v164 = vld [vmem:[%s0 + $0x3e8] sm:$0xff]
    %v165 = vld [vmem:[%s0 + $0x3f0] sm:$0xff]
    %v166 = vld [vmem:[%s0 + $0x3f8] sm:$0xff]
    %v167 = vld [vmem:[%s0 + $0x400] sm:$0xff]
    %v168 = vld [vmem:[%s0 + $0x408] sm:$0xff]
    %v169 = vld [vmem:[%s0 + $0x410] sm:$0xff]
    %v170 = vld [vmem:[%s0 + $0x418] sm:$0xff]
    %v171 = vld [vmem:[%s0 + $0x420] sm:$0xff]
    %v172 = vld [vmem:[%s0 + $0x428] sm:$0xff]
    %v173 = vld [vmem:[%s0 + $0x430] sm:$0xff]
    %v174 = vld [vmem:[%s0 + $0x438] sm:$0xff]
    %v175 = vld [vmem:[%s0 + $0x440] sm:$0xff]
    %v176 = vld [vmem:[%s0 + $0x448] sm:$0xff]
    %v177 = vld [vmem:[%s0 + $0x450] sm:$0xff]
    %v178 = vld [vmem:[%s0 + $0x458] sm:$0xff]
    %v179 = vld [vmem:[%s0 + $0x460] sm:$0xff]
    %v180 = vld [vmem:[%s0 + $0x468] sm:$0xff]
    %v181 = vld [vmem:[%s0 + $0x470] sm:$0xff]
    %v182 = vld [vmem:[%s0 + $0x478] sm:$0xff]
    %v183 = vld [vmem:[%s1] sm:$0xff]
    %v184 = vld [vmem:[%s1 + $0x8] sm:$0xff]
    %v185 = vld [vmem:[%s1 + $0x10] sm:$0xff]
    %v186 = vld [vmem:[%s1 + $0x18] sm:$0xff]
    %v187 = vld [vmem:[%s1 + $0x20] sm:$0xff]
    %v188 = vld [vmem:[%s1 + $0x28] sm:$0xff]
    %v189 = vld [vmem:[%s1 + $0x30] sm:$0xff]
    %v190 = vld [vmem:[%s1 + $0x38] sm:$0xff]
    %v191 = vld [vmem:[%s1 + $0x40] sm:$0xff]
    %v192 = vld [vmem:[%s1 + $0x48] sm:$0xff]
    %v193 = vld [vmem:[%s1 + $0x50] sm:$0xff]
    %v194 = vld [vmem:[%s1 + $0x58] sm:$0xff]
    %v195 = vld [vmem:[%s1 + $0x60] sm:$0xf]
    %vm196 = vcmask 818176
    %v198 = vsel %vm196, %v39, 0
    %v201 = vsel %vm196, %v40, 0
    %v204 = vsel %vm196, %v41, 0
    %v207 = vsel %vm196, %v42, 0
    %v210 = vsel %vm196, %v43, 0
    %v213 = vsel %vm196, %v44, 0
    %v216 = vsel %vm196, %v45, 0
    %v219 = vsel %vm196, %v46, 0
    %v222 = vsel %vm196, %v47, 0
    %v225 = vsel %vm196, %v48, 0
    %v228 = vsel %vm196, %v49, 0
    %v231 = vsel %vm196, %v50, 0
    %v234 = vsel %vm196, %v51, 0
    %v237 = vsel %vm196, %v52, 0
    %v240 = vsel %vm196, %v53, 0
    %v243 = vsel %vm196, %v54, 0
    %v246 = vsel %vm196, %v55, 0
    %v249 = vsel %vm196, %v56, 0
    %v252 = vsel %vm196, %v57, 0
    %v255 = vsel %vm196, %v58, 0
    %v258 = vsel %vm196, %v59, 0
    %v261 = vsel %vm196, %v60, 0
    %v264 = vsel %vm196, %v61, 0
    %v267 = vsel %vm196, %v62, 0
    %v270 = vsel %vm196, %v63, 0
    %v273 = vsel %vm196, %v64, 0
    %v276 = vsel %vm196, %v65, 0
    %v279 = vsel %vm196, %v66, 0
    %v282 = vsel %vm196, %v67, 0
    %v285 = vsel %vm196, %v68, 0
    %v288 = vsel %vm196, %v69, 0
    %v291 = vsel %vm196, %v70, 0
    %v294 = vsel %vm196, %v71, 0
    %v297 = vsel %vm196, %v72, 0
    %v300 = vsel %vm196, %v73, 0
    %v303 = vsel %vm196, %v74, 0
    %v306 = vsel %vm196, %v75, 0
    %v309 = vsel %vm196, %v76, 0
    %v312 = vsel %vm196, %v77, 0
    %v315 = vsel %vm196, %v78, 0
    %v318 = vsel %vm196, %v79, 0
    %v321 = vsel %vm196, %v80, 0
    %v324 = vsel %vm196, %v81, 0
    %v327 = vsel %vm196, %v82, 0
    %v330 = vsel %vm196, %v83, 0
    %v333 = vsel %vm196, %v84, 0
    %v336 = vsel %vm196, %v85, 0
    %v339 = vsel %vm196, %v86, 0
    %v342 = vsel %vm196, %v87, 0
    %v345 = vsel %vm196, %v88, 0
    %v348 = vsel %vm196, %v89, 0
    %v351 = vsel %vm196, %v90, 0
    %v354 = vsel %vm196, %v91, 0
    %v357 = vsel %vm196, %v92, 0
    %v360 = vsel %vm196, %v93, 0
    %v363 = vsel %vm196, %v94, 0
    %v366 = vsel %vm196, %v95, 0
    %v369 = vsel %vm196, %v96, 0
    %v372 = vsel %vm196, %v97, 0
    %v375 = vsel %vm196, %v98, 0
    %v378 = vsel %vm196, %v99, 0
    %v381 = vsel %vm196, %v100, 0
    %v384 = vsel %vm196, %v101, 0
    %v387 = vsel %vm196, %v102, 0
    %v390 = vsel %vm196, %v103, 0
    %v393 = vsel %vm196, %v104, 0
    %v396 = vsel %vm196, %v105, 0
    %v399 = vsel %vm196, %v106, 0
    %v402 = vsel %vm196, %v107, 0
    %v405 = vsel %vm196, %v108, 0
    %v408 = vsel %vm196, %v109, 0
    %v411 = vsel %vm196, %v110, 0
    %v414 = vsel %vm196, %v111, 0
    %v417 = vsel %vm196, %v112, 0
    %v420 = vsel %vm196, %v113, 0
    %v423 = vsel %vm196, %v114, 0
    %v426 = vsel %vm196, %v115, 0
    %v429 = vsel %vm196, %v116, 0
    %v432 = vsel %vm196, %v117, 0
    %v435 = vsel %vm196, %v118, 0
    %v438 = vsel %vm196, %v119, 0
    %v441 = vsel %vm196, %v120, 0
    %v444 = vsel %vm196, %v121, 0
    %v447 = vsel %vm196, %v122, 0
    %v450 = vsel %vm196, %v123, 0
    %v453 = vsel %vm196, %v124, 0
    %v456 = vsel %vm196, %v125, 0
    %v459 = vsel %vm196, %v126, 0
    %v462 = vsel %vm196, %v127, 0
    %v465 = vsel %vm196, %v128, 0
    %v468 = vsel %vm196, %v129, 0
    %v471 = vsel %vm196, %v130, 0
    %v474 = vsel %vm196, %v131, 0
    %v477 = vsel %vm196, %v132, 0
    %v480 = vsel %vm196, %v133, 0
    %v483 = vsel %vm196, %v134, 0
    %v486 = vsel %vm196, %v135, 0
    %v489 = vsel %vm196, %v136, 0
    %v492 = vsel %vm196, %v137, 0
    %v495 = vsel %vm196, %v138, 0
    %v498 = vsel %vm196, %v139, 0
    %v501 = vsel %vm196, %v140, 0
    %v504 = vsel %vm196, %v141, 0
    %v507 = vsel %vm196, %v142, 0
    %v510 = vsel %vm196, %v143, 0
    %v513 = vsel %vm196, %v144, 0
    %v516 = vsel %vm196, %v145, 0
    %v519 = vsel %vm196, %v146, 0
    %v522 = vsel %vm196, %v147, 0
    %v525 = vsel %vm196, %v148, 0
    %v528 = vsel %vm196, %v149, 0
    %v531 = vsel %vm196, %v150, 0
    %v534 = vsel %vm196, %v151, 0
    %v537 = vsel %vm196, %v152, 0
    %v540 = vsel %vm196, %v153, 0
    %v543 = vsel %vm196, %v154, 0
    %v546 = vsel %vm196, %v155, 0
    %v549 = vsel %vm196, %v156, 0
    %v552 = vsel %vm196, %v157, 0
    %v555 = vsel %vm196, %v158, 0
    %v558 = vsel %vm196, %v159, 0
    %v561 = vsel %vm196, %v160, 0
    %v564 = vsel %vm196, %v161, 0
    %v567 = vsel %vm196, %v162, 0
    %v570 = vsel %vm196, %v163, 0
    %v573 = vsel %vm196, %v164, 0
    %v576 = vsel %vm196, %v165, 0
    %v579 = vsel %vm196, %v166, 0
    %v582 = vsel %vm196, %v167, 0
    %v585 = vsel %vm196, %v168, 0
    %v588 = vsel %vm196, %v169, 0
    %v591 = vsel %vm196, %v170, 0
    %v594 = vsel %vm196, %v171, 0
    %v597 = vsel %vm196, %v172, 0
    %v600 = vsel %vm196, %v173, 0
    %v603 = vsel %vm196, %v174, 0
    %v606 = vsel %vm196, %v175, 0
    %v609 = vsel %vm196, %v176, 0
    %v612 = vsel %vm196, %v177, 0
    %v615 = vsel %vm196, %v178, 0
    %v618 = vsel %vm196, %v179, 0
    %v621 = vsel %vm196, %v180, 0
    %v624 = vsel %vm196, %v181, 0
    %v627 = vsel %vm196, %v182, 0
    %vm629 = vcmask 1043456
    %v631 = vsel %vm629, %v195, 0
    %633 = vmatprep.subr.mxu0 0.0
    %634 = vmatpush1.msra.mxu0 %v183
    %635 = vmatprep.subr.mxu0 0.0
    %636 = vmatpush1.msra.mxu0 %v184
    %637 = vmatprep.subr.mxu0 0.0
    %638 = vmatpush1.msra.mxu0 %v185
    %639 = vmatprep.subr.mxu0 0.0
    %640 = vmatpush1.msra.mxu0 %v186
    %641 = vmatprep.subr.mxu0 0.0
    %642 = vmatpush1.msra.mxu0 %v187
    %643 = vmatprep.subr.mxu0 0.0
    %644 = vmatpush1.msra.mxu0 %v188
    %645 = vmatprep.subr.mxu0 0.0
    %646 = vmatpush1.msra.mxu0 %v189
    %647 = vmatprep.subr.mxu0 0.0
    %648 = vmatpush1.msra.mxu0 %v190
    %649 = vmatprep.subr.mxu0 0.0
    %650 = vmatpush1.msra.mxu0 %v191
    %651 = vmatprep.subr.mxu0 0.0
    %652 = vmatpush1.msra.mxu0 %v192
    %653 = vmatprep.subr.mxu0 0.0
    %654 = vmatpush1.msra.mxu0 %v193
    %655 = vmatprep.subr.mxu0 0.0
    %656 = vmatpush1.msra.mxu0 %v194
    %657 = vmatprep.subr.mxu0 0.0
    %658 = vmatpush1.msra.mxu0 %v631
    %659 = vmatprep.subr.mxu0 0.0
    %660 = vmatpush1.msra.mxu0 0.0
    %661 = vmatprep.subr.mxu0 0.0
    %662 = vmatpush1.msra.mxu0 0.0
    %663 = vmatprep.subr.mxu0 0.0
    %664 = vmatpush1.msra.mxu0 0.0
    %665 = vmatprep.subr.mxu0 0.0
    %666 = vmatpush1.msra.mxu0 0.0
    %667 = vmatprep.subr.mxu0 0.0
    %668 = vmatpush1.msra.mxu0 0.0
    %669 = vmatprep.subr.mxu0 0.0
    %670 = vmatpush1.msra.mxu0 0.0
    %671 = vmatprep.subr.mxu0 0.0
    %672 = vmatpush1.msra.mxu0 0.0
    %673 = vmatprep.subr.mxu0 0.0
    %674 = vmatpush1.msra.mxu0 0.0
    %675 = vmatprep.subr.mxu0 0.0
    %676 = vmatpush1.msra.mxu0 0.0
    %677 = vmatprep.subr.mxu0 0.0
    %678 = vmatpush1.msra.mxu0 0.0
    %679 = vmatprep.subr.mxu0 0.0
    %680 = vmatpush1.msra.mxu0 0.0
    %681 = vmatprep.subr.mxu0 0.0
    %682 = vmatpush1.msra.mxu0 0.0
    %683 = vmatprep.subr.mxu0 0.0
    %684 = vmatpush1.msra.mxu0 0.0
    %685 = vmatprep.subr.mxu0 0.0
    %686 = vmatpush1.msra.mxu0 0.0
    %687 = vmatprep.subr.mxu0 0.0
    %688 = vmatpush1.msra.mxu0 0.0
    %689 = vmatprep.subr.mxu0 0.0
    %690 = vmatpush1.msra.mxu0 0.0
    %691 = vmatprep.subr.mxu0 0.0
    %692 = vmatpush1.msra.mxu0 0.0
    %693 = vmatprep.subr.mxu0 0.0
    %694 = vmatpush1.msra.mxu0 0.0
    %695 = vmatprep.subr.mxu0 0.0
    %696 = vmatpush1.msra.mxu0 0.0
    %697 = vmatprep.mubr.f32.mxu0 0.0
    %698 = vmatmul.mubr.f32.gmra.mrb[0].mxu0 %v198
    %v699 = vpop.f32.mrb[0].mxu0
    %v700 = vadd.f32 0.0, %v699
    %v701 = vpop.f32.mrb[0].mxu0
    %702 = vmatprep.mubr.f32.mxu0 0.0
    %703 = vmatmul.mubr.f32.gmra.mrb[0].mxu0 %v201
    %v704 = vpop.f32.mrb[0].mxu0
    %v705 = vadd.f32 0.0, %v704
    %v706 = vpop.f32.mrb[0].mxu0
    %707 = vmatprep.mubr.f32.mxu0 0.0
    %708 = vmatmul.mubr.f32.gmra.mrb[0].mxu0 %v204
    %v709 = vpop.f32.mrb[0].mxu0
    %v710 = vadd.f32 0.0, %v709
    %v711 = vpop.f32.mrb[0].mxu0
    %712 = vmatprep.mubr.f32.mxu0 0.0
    %713 = vmatmul.mubr.f32.gmra.mrb[0].mxu0 %v207
    %v714 = vpop.f32.mrb[0].mxu0
    %v715 = vadd.f32 0.0, %v714
    %v716 = vpop.f32.mrb[0].mxu0
    %717 = vmatprep.mubr.f32.mxu0 0.0
    %718 = vmatmul.mubr.f32.gmra.mrb[0].mxu0 %v210
    %v719 = vpop.f32.mrb[0].mxu0
    %v720 = vadd.f32 0.0, %v719
    %v721 = vpop.f32.mrb[0].mxu0
    %722 = vmatprep.mubr.f32.mxu0 0.0
    %723 = vmatmul.mubr.f32.gmra.mrb[0].mxu0 %v213
    %v724 = vpop.f32.mrb[0].mxu0
    %v725 = vadd.f32 0.0, %v724
    %v726 = vpop.f32.mrb[0].mxu0
    %727 = vmatprep.mubr.f32.mxu0 0.0
    %728 = vmatmul.mubr.f32.gmra.mrb[0].mxu0 %v216
    %v729 = vpop.f32.mrb[0].mxu0
    %v730 = vadd.f32 0.0, %v729
    %v731 = vpop.f32.mrb[0].mxu0
    %732 = vmatprep.mubr.f32.mxu0 0.0
    %733 = vmatmul.mubr.f32.gmra.mrb[0].mxu0 %v219
    %v734 = vpop.f32.mrb[0].mxu0
    %v735 = vadd.f32 0.0, %v734
    %v736 = vpop.f32.mrb[0].mxu0
    %737 = vmatprep.mubr.f32.mxu0 0.0
    %738 = vmatmul.mubr.f32.gmra.mrb[0].mxu0 %v222
    %v739 = vpop.f32.mrb[0].mxu0
    %v740 = vadd.f32 0.0, %v739
    %v741 = vpop.f32.mrb[0].mxu0
    %742 = vmatprep.mubr.f32.mxu0 0.0
    %743 = vmatmul.mubr.f32.gmra.mrb[0].mxu0 %v225
    %v744 = vpop.f32.mrb[0].mxu0
    %v745 = vadd.f32 0.0, %v744
    %v746 = vpop.f32.mrb[0].mxu0
    %747 = vmatprep.mubr.f32.mxu0 0.0
    %748 = vmatmul.mubr.f32.gmra.mrb[0].mxu0 %v228
    %v749 = vpop.f32.mrb[0].mxu0
    %v750 = vadd.f32 0.0, %v749
    %v751 = vpop.f32.mrb[0].mxu0
    %752 = vmatprep.mubr.f32.mxu0 0.0
    %753 = vmatmul.mubr.f32.gmra.mrb[0].mxu0 %v231
    %v754 = vpop.f32.mrb[0].mxu0
    %v755 = vadd.f32 0.0, %v754
    %v756 = vpop.f32.mrb[0].mxu0
    %757 = vmatprep.mubr.f32.mxu0 0.0
    %758 = vmatmul.mubr.f32.gmra.mrb[0].mxu0 %v234
    %v759 = vpop.f32.mrb[0].mxu0
    %v760 = vadd.f32 0.0, %v759
    %v761 = vpop.f32.mrb[0].mxu0
    %762 = vmatprep.mubr.f32.mxu0 0.0
    %763 = vmatmul.mubr.f32.gmra.mrb[0].mxu0 %v237
    %v764 = vpop.f32.mrb[0].mxu0
    %v765 = vadd.f32 0.0, %v764
    %v766 = vpop.f32.mrb[0].mxu0
    %767 = vmatprep.mubr.f32.mxu0 0.0
    %768 = vmatmul.mubr.f32.gmra.mrb[0].mxu0 %v240
    %v769 = vpop.f32.mrb[0].mxu0
    %v770 = vadd.f32 0.0, %v769
    %v771 = vpop.f32.mrb[0].mxu0
    %772 = vmatprep.mubr.f32.mxu0 0.0
    %773 = vmatmul.mubr.f32.gmra.mrb[0].mxu0 %v243
    %v774 = vpop.f32.mrb[0].mxu0
    %v775 = vadd.f32 0.0, %v774
    %v776 = vpop.f32.mrb[0].mxu0
    %777 = vmatprep.mubr.f32.mxu0 0.0
    %778 = vmatmul.mubr.f32.gmra.mrb[0].mxu0 %v246
    %v779 = vpop.f32.mrb[0].mxu0
    %v780 = vadd.f32 0.0, %v779
    %v781 = vpop.f32.mrb[0].mxu0
    %782 = vmatprep.mubr.f32.mxu0 0.0
    %783 = vmatmul.mubr.f32.gmra.mrb[0].mxu0 %v249
    %v784 = vpop.f32.mrb[0].mxu0
    %v785 = vadd.f32 0.0, %v784
    %v786 = vpop.f32.mrb[0].mxu0
    %787 = vmatprep.mubr.f32.mxu0 0.0
    %788 = vmatmul.mubr.f32.gmra.mrb[0].mxu0 %v252
    %v789 = vpop.f32.mrb[0].mxu0
    %v790 = vadd.f32 0.0, %v789
    %v791 = vpop.f32.mrb[0].mxu0
    %792 = vmatprep.mubr.f32.mxu0 0.0
    %793 = vmatmul.mubr.f32.gmra.mrb[0].mxu0 %v255
    %v794 = vpop.f32.mrb[0].mxu0
    %v795 = vadd.f32 0.0, %v794
    %v796 = vpop.f32.mrb[0].mxu0
    %797 = vmatprep.mubr.f32.mxu0 0.0
    %798 = vmatmul.mubr.f32.gmra.mrb[0].mxu0 %v258
    %v799 = vpop.f32.mrb[0].mxu0
    %v800 = vadd.f32 0.0, %v799
    %v801 = vpop.f32.mrb[0].mxu0
    %802 = vmatprep.mubr.f32.mxu0 0.0
    %803 = vmatmul.mubr.f32.gmra.mrb[0].mxu0 %v261
    %v804 = vpop.f32.mrb[0].mxu0
    %v805 = vadd.f32 0.0, %v804
    %v806 = vpop.f32.mrb[0].mxu0
    %807 = vmatprep.mubr.f32.mxu0 0.0
    %808 = vmatmul.mubr.f32.gmra.mrb[0].mxu0 %v264
    %v809 = vpop.f32.mrb[0].mxu0
    %v810 = vadd.f32 0.0, %v809
    %v811 = vpop.f32.mrb[0].mxu0
    %812 = vmatprep.mubr.f32.mxu0 0.0
    %813 = vmatmul.mubr.f32.gmra.mrb[0].mxu0 %v267
    %v814 = vpop.f32.mrb[0].mxu0
    %v815 = vadd.f32 0.0, %v814
    %v816 = vpop.f32.mrb[0].mxu0
    %817 = vmatprep.mubr.f32.mxu0 0.0
    %818 = vmatmul.mubr.f32.gmra.mrb[0].mxu0 %v270
    %v819 = vpop.f32.mrb[0].mxu0
    %v820 = vadd.f32 0.0, %v819
    %v821 = vpop.f32.mrb[0].mxu0
    %822 = vmatprep.mubr.f32.mxu0 0.0
    %823 = vmatmul.mubr.f32.gmra.mrb[0].mxu0 %v273
    %v824 = vpop.f32.mrb[0].mxu0
    %v825 = vadd.f32 0.0, %v824
    %v826 = vpop.f32.mrb[0].mxu0
    %827 = vmatprep.mubr.f32.mxu0 0.0
    %828 = vmatmul.mubr.f32.gmra.mrb[0].mxu0 %v276
    %v829 = vpop.f32.mrb[0].mxu0
    %v830 = vadd.f32 0.0, %v829
    %v831 = vpop.f32.mrb[0].mxu0
    %832 = vmatprep.mubr.f32.mxu0 0.0
    %833 = vmatmul.mubr.f32.gmra.mrb[0].mxu0 %v279
    %v834 = vpop.f32.mrb[0].mxu0
    %v835 = vadd.f32 0.0, %v834
    %v836 = vpop.f32.mrb[0].mxu0
    %837 = vmatprep.mubr.f32.mxu0 0.0
    %838 = vmatmul.mubr.f32.gmra.mrb[0].mxu0 %v282
    %v839 = vpop.f32.mrb[0].mxu0
    %v840 = vadd.f32 0.0, %v839
    %v841 = vpop.f32.mrb[0].mxu0
    %842 = vmatprep.mubr.f32.mxu0 0.0
    %843 = vmatmul.mubr.f32.gmra.mrb[0].mxu0 %v285
    %v844 = vpop.f32.mrb[0].mxu0
    %v845 = vadd.f32 0.0, %v844
    %v846 = vpop.f32.mrb[0].mxu0
    %847 = vmatprep.mubr.f32.mxu0 0.0
    %848 = vmatmul.mubr.f32.gmra.mrb[0].mxu0 %v288
    %v849 = vpop.f32.mrb[0].mxu0
    %v850 = vadd.f32 0.0, %v849
    %v851 = vpop.f32.mrb[0].mxu0
    %852 = vmatprep.mubr.f32.mxu0 0.0
    %853 = vmatmul.mubr.f32.gmra.mrb[0].mxu0 %v291
    %v854 = vpop.f32.mrb[0].mxu0
    %v855 = vadd.f32 0.0, %v854
    %v856 = vpop.f32.mrb[0].mxu0
    %857 = vmatprep.mubr.f32.mxu0 0.0
    %858 = vmatmul.mubr.f32.gmra.mrb[0].mxu0 %v294
    %v859 = vpop.f32.mrb[0].mxu0
    %v860 = vadd.f32 0.0, %v859
    %v861 = vpop.f32.mrb[0].mxu0
    %862 = vmatprep.mubr.f32.mxu0 0.0
    %863 = vmatmul.mubr.f32.gmra.mrb[0].mxu0 %v297
    %v864 = vpop.f32.mrb[0].mxu0
    %v865 = vadd.f32 0.0, %v864
    %v866 = vpop.f32.mrb[0].mxu0
    %867 = vmatprep.mubr.f32.mxu0 0.0
    %868 = vmatmul.mubr.f32.gmra.mrb[0].mxu0 %v300
    %v869 = vpop.f32.mrb[0].mxu0
    %v870 = vadd.f32 0.0, %v869
    %v871 = vpop.f32.mrb[0].mxu0
    %872 = vmatprep.mubr.f32.mxu0 0.0
    %873 = vmatmul.mubr.f32.gmra.mrb[0].mxu0 %v303
    %v874 = vpop.f32.mrb[0].mxu0
    %v875 = vadd.f32 0.0, %v874
    %v876 = vpop.f32.mrb[0].mxu0
    %877 = vmatprep.mubr.f32.mxu0 0.0
    %878 = vmatmul.mubr.f32.gmra.mrb[0].mxu0 %v306
    %v879 = vpop.f32.mrb[0].mxu0
    %v880 = vadd.f32 0.0, %v879
    %v881 = vpop.f32.mrb[0].mxu0
    %882 = vmatprep.mubr.f32.mxu0 0.0
    %883 = vmatmul.mubr.f32.gmra.mrb[0].mxu0 %v309
    %v884 = vpop.f32.mrb[0].mxu0
    %v885 = vadd.f32 0.0, %v884
    %v886 = vpop.f32.mrb[0].mxu0
    %887 = vmatprep.mubr.f32.mxu0 0.0
    %888 = vmatmul.mubr.f32.gmra.mrb[0].mxu0 %v312
    %v889 = vpop.f32.mrb[0].mxu0
    %v890 = vadd.f32 0.0, %v889
    %v891 = vpop.f32.mrb[0].mxu0
    %892 = vmatprep.mubr.f32.mxu0 0.0
    %893 = vmatmul.mubr.f32.gmra.mrb[0].mxu0 %v315
    %v894 = vpop.f32.mrb[0].mxu0
    %v895 = vadd.f32 0.0, %v894
    %v896 = vpop.f32.mrb[0].mxu0
    %897 = vmatprep.mubr.f32.mxu0 0.0
    %898 = vmatmul.mubr.f32.gmra.mrb[0].mxu0 %v318
    %v899 = vpop.f32.mrb[0].mxu0
    %v900 = vadd.f32 0.0, %v899
    %v901 = vpop.f32.mrb[0].mxu0
    %902 = vmatprep.mubr.f32.mxu0 0.0
    %903 = vmatmul.mubr.f32.gmra.mrb[0].mxu0 %v321
    %v904 = vpop.f32.mrb[0].mxu0
    %v905 = vadd.f32 0.0, %v904
    %v906 = vpop.f32.mrb[0].mxu0
    %907 = vmatprep.mubr.f32.mxu0 0.0
    %908 = vmatmul.mubr.f32.gmra.mrb[0].mxu0 %v324
    %v909 = vpop.f32.mrb[0].mxu0
    %v910 = vadd.f32 0.0, %v909
    %v911 = vpop.f32.mrb[0].mxu0
    %912 = vmatprep.mubr.f32.mxu0 0.0
    %913 = vmatmul.mubr.f32.gmra.mrb[0].mxu0 %v327
    %v914 = vpop.f32.mrb[0].mxu0
    %v915 = vadd.f32 0.0, %v914
    %v916 = vpop.f32.mrb[0].mxu0
    %917 = vmatprep.mubr.f32.mxu0 0.0
    %918 = vmatmul.mubr.f32.gmra.mrb[0].mxu0 %v330
    %v919 = vpop.f32.mrb[0].mxu0
    %v920 = vadd.f32 0.0, %v919
    %v921 = vpop.f32.mrb[0].mxu0
    %922 = vmatprep.mubr.f32.mxu0 0.0
    %923 = vmatmul.mubr.f32.gmra.mrb[0].mxu0 %v333
    %v924 = vpop.f32.mrb[0].mxu0
    %v925 = vadd.f32 0.0, %v924
    %v926 = vpop.f32.mrb[0].mxu0
    %927 = vmatprep.mubr.f32.mxu0 0.0
    %928 = vmatmul.mubr.f32.gmra.mrb[0].mxu0 %v336
    %v929 = vpop.f32.mrb[0].mxu0
    %v930 = vadd.f32 0.0, %v929
    %v931 = vpop.f32.mrb[0].mxu0
    %932 = vmatprep.mubr.f32.mxu0 0.0
    %933 = vmatmul.mubr.f32.gmra.mrb[0].mxu0 %v339
    %v934 = vpop.f32.mrb[0].mxu0
    %v935 = vadd.f32 0.0, %v934
    %v936 = vpop.f32.mrb[0].mxu0
    %937 = vmatprep.mubr.f32.mxu0 0.0
    %938 = vmatmul.mubr.f32.gmra.mrb[0].mxu0 %v342
    %v939 = vpop.f32.mrb[0].mxu0
    %v940 = vadd.f32 0.0, %v939
    %v941 = vpop.f32.mrb[0].mxu0
    %942 = vmatprep.mubr.f32.mxu0 0.0
    %943 = vmatmul.mubr.f32.gmra.mrb[0].mxu0 %v345
    %v944 = vpop.f32.mrb[0].mxu0
    %v945 = vadd.f32 0.0, %v944
    %v946 = vpop.f32.mrb[0].mxu0
    %947 = vmatprep.mubr.f32.mxu0 0.0
    %948 = vmatmul.mubr.f32.gmra.mrb[0].mxu0 %v348
    %v949 = vpop.f32.mrb[0].mxu0
    %v950 = vadd.f32 0.0, %v949
    %v951 = vpop.f32.mrb[0].mxu0
    %952 = vmatprep.mubr.f32.mxu0 0.0
    %953 = vmatmul.mubr.f32.gmra.mrb[0].mxu0 %v351
    %v954 = vpop.f32.mrb[0].mxu0
    %v955 = vadd.f32 0.0, %v954
    %v956 = vpop.f32.mrb[0].mxu0
    %957 = vmatprep.mubr.f32.mxu0 0.0
    %958 = vmatmul.mubr.f32.gmra.mrb[0].mxu0 %v354
    %v959 = vpop.f32.mrb[0].mxu0
    %v960 = vadd.f32 0.0, %v959
    %v961 = vpop.f32.mrb[0].mxu0
    %962 = vmatprep.mubr.f32.mxu0 0.0
    %963 = vmatmul.mubr.f32.gmra.mrb[0].mxu0 %v357
    %v964 = vpop.f32.mrb[0].mxu0
    %v965 = vadd.f32 0.0, %v964
    %v966 = vpop.f32.mrb[0].mxu0
    %967 = vmatprep.mubr.f32.mxu0 0.0
    %968 = vmatmul.mubr.f32.gmra.mrb[0].mxu0 %v360
    %v969 = vpop.f32.mrb[0].mxu0
    %v970 = vadd.f32 0.0, %v969
    %v971 = vpop.f32.mrb[0].mxu0
    %972 = vmatprep.mubr.f32.mxu0 0.0
    %973 = vmatmul.mubr.f32.gmra.mrb[0].mxu0 %v363
    %v974 = vpop.f32.mrb[0].mxu0
    %v975 = vadd.f32 0.0, %v974
    %v976 = vpop.f32.mrb[0].mxu0
    %977 = vmatprep.mubr.f32.mxu0 0.0
    %978 = vmatmul.mubr.f32.gmra.mrb[0].mxu0 %v366
    %v979 = vpop.f32.mrb[0].mxu0
    %v980 = vadd.f32 0.0, %v979
    %v981 = vpop.f32.mrb[0].mxu0
    %982 = vmatprep.mubr.f32.mxu0 0.0
    %983 = vmatmul.mubr.f32.gmra.mrb[0].mxu0 %v369
    %v984 = vpop.f32.mrb[0].mxu0
    %v985 = vadd.f32 0.0, %v984
    %v986 = vpop.f32.mrb[0].mxu0
    %987 = vmatprep.mubr.f32.mxu0 0.0
    %988 = vmatmul.mubr.f32.gmra.mrb[0].mxu0 %v372
    %v989 = vpop.f32.mrb[0].mxu0
    %v990 = vadd.f32 0.0, %v989
    %v991 = vpop.f32.mrb[0].mxu0
    %992 = vmatprep.mubr.f32.mxu0 0.0
    %993 = vmatmul.mubr.f32.gmra.mrb[0].mxu0 %v375
    %v994 = vpop.f32.mrb[0].mxu0
    %v995 = vadd.f32 0.0, %v994
    %v996 = vpop.f32.mrb[0].mxu0
    %997 = vmatprep.mubr.f32.mxu0 0.0
    %998 = vmatmul.mubr.f32.gmra.mrb[0].mxu0 %v378
    %v999 = vpop.f32.mrb[0].mxu0
    %v1000 = vadd.f32 0.0, %v999
    %v1001 = vpop.f32.mrb[0].mxu0
    %1002 = vmatprep.mubr.f32.mxu0 0.0
    %1003 = vmatmul.mubr.f32.gmra.mrb[0].mxu0 %v381
    %v1004 = vpop.f32.mrb[0].mxu0
    %v1005 = vadd.f32 0.0, %v1004
    %v1006 = vpop.f32.mrb[0].mxu0
    %1007 = vmatprep.mubr.f32.mxu0 0.0
    %1008 = vmatmul.mubr.f32.gmra.mrb[0].mxu0 %v384
    %v1009 = vpop.f32.mrb[0].mxu0
    %v1010 = vadd.f32 0.0, %v1009
    %v1011 = vpop.f32.mrb[0].mxu0
    %1012 = vmatprep.mubr.f32.mxu0 0.0
    %1013 = vmatmul.mubr.f32.gmra.mrb[0].mxu0 %v387
    %v1014 = vpop.f32.mrb[0].mxu0
    %v1015 = vadd.f32 0.0, %v1014
    %v1016 = vpop.f32.mrb[0].mxu0
    %1017 = vmatprep.mubr.f32.mxu0 0.0
    %1018 = vmatmul.mubr.f32.gmra.mrb[0].mxu0 %v390
    %v1019 = vpop.f32.mrb[0].mxu0
    %v1020 = vadd.f32 0.0, %v1019
    %v1021 = vpop.f32.mrb[0].mxu0
    %1022 = vmatprep.mubr.f32.mxu0 0.0
    %1023 = vmatmul.mubr.f32.gmra.mrb[0].mxu0 %v393
    %v1024 = vpop.f32.mrb[0].mxu0
    %v1025 = vadd.f32 0.0, %v1024
    %v1026 = vpop.f32.mrb[0].mxu0
    %1027 = vmatprep.mubr.f32.mxu0 0.0
    %1028 = vmatmul.mubr.f32.gmra.mrb[0].mxu0 %v396
    %v1029 = vpop.f32.mrb[0].mxu0
    %v1030 = vadd.f32 0.0, %v1029
    %v1031 = vpop.f32.mrb[0].mxu0
    %1032 = vmatprep.mubr.f32.mxu0 0.0
    %1033 = vmatmul.mubr.f32.gmra.mrb[0].mxu0 %v399
    %v1034 = vpop.f32.mrb[0].mxu0
    %v1035 = vadd.f32 0.0, %v1034
    %v1036 = vpop.f32.mrb[0].mxu0
    %1037 = vmatprep.mubr.f32.mxu0 0.0
    %1038 = vmatmul.mubr.f32.gmra.mrb[0].mxu0 %v402
    %v1039 = vpop.f32.mrb[0].mxu0
    %v1040 = vadd.f32 0.0, %v1039
    %v1041 = vpop.f32.mrb[0].mxu0
    %1042 = vmatprep.mubr.f32.mxu0 0.0
    %1043 = vmatmul.mubr.f32.gmra.mrb[0].mxu0 %v405
    %v1044 = vpop.f32.mrb[0].mxu0
    %v1045 = vadd.f32 0.0, %v1044
    %v1046 = vpop.f32.mrb[0].mxu0
    %1047 = vmatprep.mubr.f32.mxu0 0.0
    %1048 = vmatmul.mubr.f32.gmra.mrb[0].mxu0 %v408
    %v1049 = vpop.f32.mrb[0].mxu0
    %v1050 = vadd.f32 0.0, %v1049
    %v1051 = vpop.f32.mrb[0].mxu0
    %1052 = vmatprep.mubr.f32.mxu0 0.0
    %1053 = vmatmul.mubr.f32.gmra.mrb[0].mxu0 %v411
    %v1054 = vpop.f32.mrb[0].mxu0
    %v1055 = vadd.f32 0.0, %v1054
    %v1056 = vpop.f32.mrb[0].mxu0
    %1057 = vmatprep.mubr.f32.mxu0 0.0
    %1058 = vmatmul.mubr.f32.gmra.mrb[0].mxu0 %v414
    %v1059 = vpop.f32.mrb[0].mxu0
    %v1060 = vadd.f32 0.0, %v1059
    %v1061 = vpop.f32.mrb[0].mxu0
    %1062 = vmatprep.mubr.f32.mxu0 0.0
    %1063 = vmatmul.mubr.f32.gmra.mrb[0].mxu0 %v417
    %v1064 = vpop.f32.mrb[0].mxu0
    %v1065 = vadd.f32 0.0, %v1064
    %v1066 = vpop.f32.mrb[0].mxu0
    %1067 = vmatprep.mubr.f32.mxu0 0.0
    %1068 = vmatmul.mubr.f32.gmra.mrb[0].mxu0 %v420
    %v1069 = vpop.f32.mrb[0].mxu0
    %v1070 = vadd.f32 0.0, %v1069
    %v1071 = vpop.f32.mrb[0].mxu0
    %1072 = vmatprep.mubr.f32.mxu0 0.0
    %1073 = vmatmul.mubr.f32.gmra.mrb[0].mxu0 %v423
    %v1074 = vpop.f32.mrb[0].mxu0
    %v1075 = vadd.f32 0.0, %v1074
    %v1076 = vpop.f32.mrb[0].mxu0
    %1077 = vmatprep.mubr.f32.mxu0 0.0
    %1078 = vmatmul.mubr.f32.gmra.mrb[0].mxu0 %v426
    %v1079 = vpop.f32.mrb[0].mxu0
    %v1080 = vadd.f32 0.0, %v1079
    %v1081 = vpop.f32.mrb[0].mxu0
    %1082 = vmatprep.mubr.f32.mxu0 0.0
    %1083 = vmatmul.mubr.f32.gmra.mrb[0].mxu0 %v429
    %v1084 = vpop.f32.mrb[0].mxu0
    %v1085 = vadd.f32 0.0, %v1084
    %v1086 = vpop.f32.mrb[0].mxu0
    %1087 = vmatprep.mubr.f32.mxu0 0.0
    %1088 = vmatmul.mubr.f32.gmra.mrb[0].mxu0 %v432
    %v1089 = vpop.f32.mrb[0].mxu0
    %v1090 = vadd.f32 0.0, %v1089
    %v1091 = vpop.f32.mrb[0].mxu0
    %1092 = vmatprep.mubr.f32.mxu0 0.0
    %1093 = vmatmul.mubr.f32.gmra.mrb[0].mxu0 %v435
    %v1094 = vpop.f32.mrb[0].mxu0
    %v1095 = vadd.f32 0.0, %v1094
    %v1096 = vpop.f32.mrb[0].mxu0
    %1097 = vmatprep.mubr.f32.mxu0 0.0
    %1098 = vmatmul.mubr.f32.gmra.mrb[0].mxu0 %v438
    %v1099 = vpop.f32.mrb[0].mxu0
    %v1100 = vadd.f32 0.0, %v1099
    %v1101 = vpop.f32.mrb[0].mxu0
    %1102 = vmatprep.mubr.f32.mxu0 0.0
    %1103 = vmatmul.mubr.f32.gmra.mrb[0].mxu0 %v441
    %v1104 = vpop.f32.mrb[0].mxu0
    %v1105 = vadd.f32 0.0, %v1104
    %v1106 = vpop.f32.mrb[0].mxu0
    %1107 = vmatprep.mubr.f32.mxu0 0.0
    %1108 = vmatmul.mubr.f32.gmra.mrb[0].mxu0 %v444
    %v1109 = vpop.f32.mrb[0].mxu0
    %v1110 = vadd.f32 0.0, %v1109
    %v1111 = vpop.f32.mrb[0].mxu0
    %1112 = vmatprep.mubr.f32.mxu0 0.0
    %1113 = vmatmul.mubr.f32.gmra.mrb[0].mxu0 %v447
    %v1114 = vpop.f32.mrb[0].mxu0
    %v1115 = vadd.f32 0.0, %v1114
    %v1116 = vpop.f32.mrb[0].mxu0
    %1117 = vmatprep.mubr.f32.mxu0 0.0
    %1118 = vmatmul.mubr.f32.gmra.mrb[0].mxu0 %v450
    %v1119 = vpop.f32.mrb[0].mxu0
    %v1120 = vadd.f32 0.0, %v1119
    %v1121 = vpop.f32.mrb[0].mxu0
    %1122 = vmatprep.mubr.f32.mxu0 0.0
    %1123 = vmatmul.mubr.f32.gmra.mrb[0].mxu0 %v453
    %v1124 = vpop.f32.mrb[0].mxu0
    %v1125 = vadd.f32 0.0, %v1124
    %v1126 = vpop.f32.mrb[0].mxu0
    %1127 = vmatprep.mubr.f32.mxu0 0.0
    %1128 = vmatmul.mubr.f32.gmra.mrb[0].mxu0 %v456
    %v1129 = vpop.f32.mrb[0].mxu0
    %v1130 = vadd.f32 0.0, %v1129
    %v1131 = vpop.f32.mrb[0].mxu0
    %1132 = vmatprep.mubr.f32.mxu0 0.0
    %1133 = vmatmul.mubr.f32.gmra.mrb[0].mxu0 %v459
    %v1134 = vpop.f32.mrb[0].mxu0
    %v1135 = vadd.f32 0.0, %v1134
    %v1136 = vpop.f32.mrb[0].mxu0
    %1137 = vmatprep.mubr.f32.mxu0 0.0
    %1138 = vmatmul.mubr.f32.gmra.mrb[0].mxu0 %v462
    %v1139 = vpop.f32.mrb[0].mxu0
    %v1140 = vadd.f32 0.0, %v1139
    %v1141 = vpop.f32.mrb[0].mxu0
    %1142 = vmatprep.mubr.f32.mxu0 0.0
    %1143 = vmatmul.mubr.f32.gmra.mrb[0].mxu0 %v465
    %v1144 = vpop.f32.mrb[0].mxu0
    %v1145 = vadd.f32 0.0, %v1144
    %v1146 = vpop.f32.mrb[0].mxu0
    %1147 = vmatprep.mubr.f32.mxu0 0.0
    %1148 = vmatmul.mubr.f32.gmra.mrb[0].mxu0 %v468
    %v1149 = vpop.f32.mrb[0].mxu0
    %v1150 = vadd.f32 0.0, %v1149
    %v1151 = vpop.f32.mrb[0].mxu0
    %1152 = vmatprep.mubr.f32.mxu0 0.0
    %1153 = vmatmul.mubr.f32.gmra.mrb[0].mxu0 %v471
    %v1154 = vpop.f32.mrb[0].mxu0
    %v1155 = vadd.f32 0.0, %v1154
    %v1156 = vpop.f32.mrb[0].mxu0
    %1157 = vmatprep.mubr.f32.mxu0 0.0
    %1158 = vmatmul.mubr.f32.gmra.mrb[0].mxu0 %v474
    %v1159 = vpop.f32.mrb[0].mxu0
    %v1160 = vadd.f32 0.0, %v1159
    %v1161 = vpop.f32.mrb[0].mxu0
    %1162 = vmatprep.mubr.f32.mxu0 0.0
    %1163 = vmatmul.mubr.f32.gmra.mrb[0].mxu0 %v477
    %v1164 = vpop.f32.mrb[0].mxu0
    %v1165 = vadd.f32 0.0, %v1164
    %v1166 = vpop.f32.mrb[0].mxu0
    %1167 = vmatprep.mubr.f32.mxu0 0.0
    %1168 = vmatmul.mubr.f32.gmra.mrb[0].mxu0 %v480
    %v1169 = vpop.f32.mrb[0].mxu0
    %v1170 = vadd.f32 0.0, %v1169
    %v1171 = vpop.f32.mrb[0].mxu0
    %1172 = vmatprep.mubr.f32.mxu0 0.0
    %1173 = vmatmul.mubr.f32.gmra.mrb[0].mxu0 %v483
    %v1174 = vpop.f32.mrb[0].mxu0
    %v1175 = vadd.f32 0.0, %v1174
    %v1176 = vpop.f32.mrb[0].mxu0
    %1177 = vmatprep.mubr.f32.mxu0 0.0
    %1178 = vmatmul.mubr.f32.gmra.mrb[0].mxu0 %v486
    %v1179 = vpop.f32.mrb[0].mxu0
    %v1180 = vadd.f32 0.0, %v1179
    %v1181 = vpop.f32.mrb[0].mxu0
    %1182 = vmatprep.mubr.f32.mxu0 0.0
    %1183 = vmatmul.mubr.f32.gmra.mrb[0].mxu0 %v489
    %v1184 = vpop.f32.mrb[0].mxu0
    %v1185 = vadd.f32 0.0, %v1184
    %v1186 = vpop.f32.mrb[0].mxu0
    %1187 = vmatprep.mubr.f32.mxu0 0.0
    %1188 = vmatmul.mubr.f32.gmra.mrb[0].mxu0 %v492
    %v1189 = vpop.f32.mrb[0].mxu0
    %v1190 = vadd.f32 0.0, %v1189
    %v1191 = vpop.f32.mrb[0].mxu0
    %1192 = vmatprep.mubr.f32.mxu0 0.0
    %1193 = vmatmul.mubr.f32.gmra.mrb[0].mxu0 %v495
    %v1194 = vpop.f32.mrb[0].mxu0
    %v1195 = vadd.f32 0.0, %v1194
    %v1196 = vpop.f32.mrb[0].mxu0
    %1197 = vmatprep.mubr.f32.mxu0 0.0
    %1198 = vmatmul.mubr.f32.gmra.mrb[0].mxu0 %v498
    %v1199 = vpop.f32.mrb[0].mxu0
    %v1200 = vadd.f32 0.0, %v1199
    %v1201 = vpop.f32.mrb[0].mxu0
    %1202 = vmatprep.mubr.f32.mxu0 0.0
    %1203 = vmatmul.mubr.f32.gmra.mrb[0].mxu0 %v501
    %v1204 = vpop.f32.mrb[0].mxu0
    %v1205 = vadd.f32 0.0, %v1204
    %v1206 = vpop.f32.mrb[0].mxu0
    %1207 = vmatprep.mubr.f32.mxu0 0.0
    %1208 = vmatmul.mubr.f32.gmra.mrb[0].mxu0 %v504
    %v1209 = vpop.f32.mrb[0].mxu0
    %v1210 = vadd.f32 0.0, %v1209
    %v1211 = vpop.f32.mrb[0].mxu0
    %1212 = vmatprep.mubr.f32.mxu0 0.0
    %1213 = vmatmul.mubr.f32.gmra.mrb[0].mxu0 %v507
    %v1214 = vpop.f32.mrb[0].mxu0
    %v1215 = vadd.f32 0.0, %v1214
    %v1216 = vpop.f32.mrb[0].mxu0
    %1217 = vmatprep.mubr.f32.mxu0 0.0
    %1218 = vmatmul.mubr.f32.gmra.mrb[0].mxu0 %v510
    %v1219 = vpop.f32.mrb[0].mxu0
    %v1220 = vadd.f32 0.0, %v1219
    %v1221 = vpop.f32.mrb[0].mxu0
    %1222 = vmatprep.mubr.f32.mxu0 0.0
    %1223 = vmatmul.mubr.f32.gmra.mrb[0].mxu0 %v513
    %v1224 = vpop.f32.mrb[0].mxu0
    %v1225 = vadd.f32 0.0, %v1224
    %v1226 = vpop.f32.mrb[0].mxu0
    %1227 = vmatprep.mubr.f32.mxu0 0.0
    %1228 = vmatmul.mubr.f32.gmra.mrb[0].mxu0 %v516
    %v1229 = vpop.f32.mrb[0].mxu0
    %v1230 = vadd.f32 0.0, %v1229
    %v1231 = vpop.f32.mrb[0].mxu0
    %1232 = vmatprep.mubr.f32.mxu0 0.0
    %1233 = vmatmul.mubr.f32.gmra.mrb[0].mxu0 %v519
    %v1234 = vpop.f32.mrb[0].mxu0
    %v1235 = vadd.f32 0.0, %v1234
    %v1236 = vpop.f32.mrb[0].mxu0
    %1237 = vmatprep.mubr.f32.mxu0 0.0
    %1238 = vmatmul.mubr.f32.gmra.mrb[0].mxu0 %v522
    %v1239 = vpop.f32.mrb[0].mxu0
    %v1240 = vadd.f32 0.0, %v1239
    %v1241 = vpop.f32.mrb[0].mxu0
    %1242 = vmatprep.mubr.f32.mxu0 0.0
    %1243 = vmatmul.mubr.f32.gmra.mrb[0].mxu0 %v525
    %v1244 = vpop.f32.mrb[0].mxu0
    %v1245 = vadd.f32 0.0, %v1244
    %v1246 = vpop.f32.mrb[0].mxu0
    %1247 = vmatprep.mubr.f32.mxu0 0.0
    %1248 = vmatmul.mubr.f32.gmra.mrb[0].mxu0 %v528
    %v1249 = vpop.f32.mrb[0].mxu0
    %v1250 = vadd.f32 0.0, %v1249
    %v1251 = vpop.f32.mrb[0].mxu0
    %1252 = vmatprep.mubr.f32.mxu0 0.0
    %1253 = vmatmul.mubr.f32.gmra.mrb[0].mxu0 %v531
    %v1254 = vpop.f32.mrb[0].mxu0
    %v1255 = vadd.f32 0.0, %v1254
    %v1256 = vpop.f32.mrb[0].mxu0
    %1257 = vmatprep.mubr.f32.mxu0 0.0
    %1258 = vmatmul.mubr.f32.gmra.mrb[0].mxu0 %v534
    %v1259 = vpop.f32.mrb[0].mxu0
    %v1260 = vadd.f32 0.0, %v1259
    %v1261 = vpop.f32.mrb[0].mxu0
    %1262 = vmatprep.mubr.f32.mxu0 0.0
    %1263 = vmatmul.mubr.f32.gmra.mrb[0].mxu0 %v537
    %v1264 = vpop.f32.mrb[0].mxu0
    %v1265 = vadd.f32 0.0, %v1264
    %v1266 = vpop.f32.mrb[0].mxu0
    %1267 = vmatprep.mubr.f32.mxu0 0.0
    %1268 = vmatmul.mubr.f32.gmra.mrb[0].mxu0 %v540
    %v1269 = vpop.f32.mrb[0].mxu0
    %v1270 = vadd.f32 0.0, %v1269
    %v1271 = vpop.f32.mrb[0].mxu0
    %1272 = vmatprep.mubr.f32.mxu0 0.0
    %1273 = vmatmul.mubr.f32.gmra.mrb[0].mxu0 %v543
    %v1274 = vpop.f32.mrb[0].mxu0
    %v1275 = vadd.f32 0.0, %v1274
    %v1276 = vpop.f32.mrb[0].mxu0
    %1277 = vmatprep.mubr.f32.mxu0 0.0
    %1278 = vmatmul.mubr.f32.gmra.mrb[0].mxu0 %v546
    %v1279 = vpop.f32.mrb[0].mxu0
    %v1280 = vadd.f32 0.0, %v1279
    %v1281 = vpop.f32.mrb[0].mxu0
    %1282 = vmatprep.mubr.f32.mxu0 0.0
    %1283 = vmatmul.mubr.f32.gmra.mrb[0].mxu0 %v549
    %v1284 = vpop.f32.mrb[0].mxu0
    %v1285 = vadd.f32 0.0, %v1284
    %v1286 = vpop.f32.mrb[0].mxu0
    %1287 = vmatprep.mubr.f32.mxu0 0.0
    %1288 = vmatmul.mubr.f32.gmra.mrb[0].mxu0 %v552
    %v1289 = vpop.f32.mrb[0].mxu0
    %v1290 = vadd.f32 0.0, %v1289
    %v1291 = vpop.f32.mrb[0].mxu0
    %1292 = vmatprep.mubr.f32.mxu0 0.0
    %1293 = vmatmul.mubr.f32.gmra.mrb[0].mxu0 %v555
    %v1294 = vpop.f32.mrb[0].mxu0
    %v1295 = vadd.f32 0.0, %v1294
    %v1296 = vpop.f32.mrb[0].mxu0
    %1297 = vmatprep.mubr.f32.mxu0 0.0
    %1298 = vmatmul.mubr.f32.gmra.mrb[0].mxu0 %v558
    %v1299 = vpop.f32.mrb[0].mxu0
    %v1300 = vadd.f32 0.0, %v1299
    %v1301 = vpop.f32.mrb[0].mxu0
    %1302 = vmatprep.mubr.f32.mxu0 0.0
    %1303 = vmatmul.mubr.f32.gmra.mrb[0].mxu0 %v561
    %v1304 = vpop.f32.mrb[0].mxu0
    %v1305 = vadd.f32 0.0, %v1304
    %v1306 = vpop.f32.mrb[0].mxu0
    %1307 = vmatprep.mubr.f32.mxu0 0.0
    %1308 = vmatmul.mubr.f32.gmra.mrb[0].mxu0 %v564
    %v1309 = vpop.f32.mrb[0].mxu0
    %v1310 = vadd.f32 0.0, %v1309
    %v1311 = vpop.f32.mrb[0].mxu0
    %1312 = vmatprep.mubr.f32.mxu0 0.0
    %1313 = vmatmul.mubr.f32.gmra.mrb[0].mxu0 %v567
    %v1314 = vpop.f32.mrb[0].mxu0
    %v1315 = vadd.f32 0.0, %v1314
    %v1316 = vpop.f32.mrb[0].mxu0
    %1317 = vmatprep.mubr.f32.mxu0 0.0
    %1318 = vmatmul.mubr.f32.gmra.mrb[0].mxu0 %v570
    %v1319 = vpop.f32.mrb[0].mxu0
    %v1320 = vadd.f32 0.0, %v1319
    %v1321 = vpop.f32.mrb[0].mxu0
    %1322 = vmatprep.mubr.f32.mxu0 0.0
    %1323 = vmatmul.mubr.f32.gmra.mrb[0].mxu0 %v573
    %v1324 = vpop.f32.mrb[0].mxu0
    %v1325 = vadd.f32 0.0, %v1324
    %v1326 = vpop.f32.mrb[0].mxu0
    %1327 = vmatprep.mubr.f32.mxu0 0.0
    %1328 = vmatmul.mubr.f32.gmra.mrb[0].mxu0 %v576
    %v1329 = vpop.f32.mrb[0].mxu0
    %v1330 = vadd.f32 0.0, %v1329
    %v1331 = vpop.f32.mrb[0].mxu0
    %1332 = vmatprep.mubr.f32.mxu0 0.0
    %1333 = vmatmul.mubr.f32.gmra.mrb[0].mxu0 %v579
    %v1334 = vpop.f32.mrb[0].mxu0
    %v1335 = vadd.f32 0.0, %v1334
    %v1336 = vpop.f32.mrb[0].mxu0
    %1337 = vmatprep.mubr.f32.mxu0 0.0
    %1338 = vmatmul.mubr.f32.gmra.mrb[0].mxu0 %v582
    %v1339 = vpop.f32.mrb[0].mxu0
    %v1340 = vadd.f32 0.0, %v1339
    %v1341 = vpop.f32.mrb[0].mxu0
    %1342 = vmatprep.mubr.f32.mxu0 0.0
    %1343 = vmatmul.mubr.f32.gmra.mrb[0].mxu0 %v585
    %v1344 = vpop.f32.mrb[0].mxu0
    %v1345 = vadd.f32 0.0, %v1344
    %v1346 = vpop.f32.mrb[0].mxu0
    %1347 = vmatprep.mubr.f32.mxu0 0.0
    %1348 = vmatmul.mubr.f32.gmra.mrb[0].mxu0 %v588
    %v1349 = vpop.f32.mrb[0].mxu0
    %v1350 = vadd.f32 0.0, %v1349
    %v1351 = vpop.f32.mrb[0].mxu0
    %1352 = vmatprep.mubr.f32.mxu0 0.0
    %1353 = vmatmul.mubr.f32.gmra.mrb[0].mxu0 %v591
    %v1354 = vpop.f32.mrb[0].mxu0
    %v1355 = vadd.f32 0.0, %v1354
    %v1356 = vpop.f32.mrb[0].mxu0
    %1357 = vmatprep.mubr.f32.mxu0 0.0
    %1358 = vmatmul.mubr.f32.gmra.mrb[0].mxu0 %v594
    %v1359 = vpop.f32.mrb[0].mxu0
    %v1360 = vadd.f32 0.0, %v1359
    %v1361 = vpop.f32.mrb[0].mxu0
    %1362 = vmatprep.mubr.f32.mxu0 0.0
    %1363 = vmatmul.mubr.f32.gmra.mrb[0].mxu0 %v597
    %v1364 = vpop.f32.mrb[0].mxu0
    %v1365 = vadd.f32 0.0, %v1364
    %v1366 = vpop.f32.mrb[0].mxu0
    %1367 = vmatprep.mubr.f32.mxu0 0.0
    %1368 = vmatmul.mubr.f32.gmra.mrb[0].mxu0 %v600
    %v1369 = vpop.f32.mrb[0].mxu0
    %v1370 = vadd.f32 0.0, %v1369
    %v1371 = vpop.f32.mrb[0].mxu0
    %1372 = vmatprep.mubr.f32.mxu0 0.0
    %1373 = vmatmul.mubr.f32.gmra.mrb[0].mxu0 %v603
    %v1374 = vpop.f32.mrb[0].mxu0
    %v1375 = vadd.f32 0.0, %v1374
    %v1376 = vpop.f32.mrb[0].mxu0
    %1377 = vmatprep.mubr.f32.mxu0 0.0
    %1378 = vmatmul.mubr.f32.gmra.mrb[0].mxu0 %v606
    %v1379 = vpop.f32.mrb[0].mxu0
    %v1380 = vadd.f32 0.0, %v1379
    %v1381 = vpop.f32.mrb[0].mxu0
    %1382 = vmatprep.mubr.f32.mxu0 0.0
    %1383 = vmatmul.mubr.f32.gmra.mrb[0].mxu0 %v609
    %v1384 = vpop.f32.mrb[0].mxu0
    %v1385 = vadd.f32 0.0, %v1384
    %v1386 = vpop.f32.mrb[0].mxu0
    %1387 = vmatprep.mubr.f32.mxu0 0.0
    %1388 = vmatmul.mubr.f32.gmra.mrb[0].mxu0 %v612
    %v1389 = vpop.f32.mrb[0].mxu0
    %v1390 = vadd.f32 0.0, %v1389
    %v1391 = vpop.f32.mrb[0].mxu0
    %1392 = vmatprep.mubr.f32.mxu0 0.0
    %1393 = vmatmul.mubr.f32.gmra.mrb[0].mxu0 %v615
    %v1394 = vpop.f32.mrb[0].mxu0
    %v1395 = vadd.f32 0.0, %v1394
    %v1396 = vpop.f32.mrb[0].mxu0
    %1397 = vmatprep.mubr.f32.mxu0 0.0
    %1398 = vmatmul.mubr.f32.gmra.mrb[0].mxu0 %v618
    %v1399 = vpop.f32.mrb[0].mxu0
    %v1400 = vadd.f32 0.0, %v1399
    %v1401 = vpop.f32.mrb[0].mxu0
    %1402 = vmatprep.mubr.f32.mxu0 0.0
    %1403 = vmatmul.mubr.f32.gmra.mrb[0].mxu0 %v621
    %v1404 = vpop.f32.mrb[0].mxu0
    %v1405 = vadd.f32 0.0, %v1404
    %v1406 = vpop.f32.mrb[0].mxu0
    %1407 = vmatprep.mubr.f32.mxu0 0.0
    %1408 = vmatmul.mubr.f32.gmra.mrb[0].mxu0 %v624
    %v1409 = vpop.f32.mrb[0].mxu0
    %v1410 = vadd.f32 0.0, %v1409
    %v1411 = vpop.f32.mrb[0].mxu0
    %1412 = vmatprep.mubr.f32.mxu0 0.0
    %1413 = vmatmul.mubr.f32.gmra.mrb[0].mxu0 %v627
    %v1414 = vpop.f32.mrb[0].mxu0
    %v1415 = vadd.f32 0.0, %v1414
    %v1416 = vpop.f32.mrb[0].mxu0
    %1417 = vdwg.mxu0
    %1562 = vrot.lane.b32.xlu0 %v700, 122
    %v1563 = vpop.permute.xlu0 %1562
    %1564 = vrot.lane.b32.xlu0 %v705, 122
    %v1565 = vpop.permute.xlu0 %1564
    %1566 = vrot.lane.b32.xlu0 %v710, 122
    %v1567 = vpop.permute.xlu0 %1566
    %1568 = vrot.lane.b32.xlu0 %v715, 122
    %v1569 = vpop.permute.xlu0 %1568
    %1570 = vrot.lane.b32.xlu0 %v720, 122
    %v1571 = vpop.permute.xlu0 %1570
    %1572 = vrot.lane.b32.xlu0 %v725, 122
    %v1573 = vpop.permute.xlu0 %1572
    %1574 = vrot.lane.b32.xlu0 %v730, 122
    %v1575 = vpop.permute.xlu0 %1574
    %1576 = vrot.lane.b32.xlu0 %v735, 122
    %v1577 = vpop.permute.xlu0 %1576
    %1578 = vrot.lane.b32.xlu0 %v740, 122
    %v1579 = vpop.permute.xlu0 %1578
    %1580 = vrot.lane.b32.xlu0 %v745, 122
    %v1581 = vpop.permute.xlu0 %1580
    %1582 = vrot.lane.b32.xlu0 %v750, 122
    %v1583 = vpop.permute.xlu0 %1582
    %1584 = vrot.lane.b32.xlu0 %v755, 122
    %v1585 = vpop.permute.xlu0 %1584
    %1586 = vrot.lane.b32.xlu0 %v760, 122
    %v1587 = vpop.permute.xlu0 %1586
    %1588 = vrot.lane.b32.xlu0 %v765, 122
    %v1589 = vpop.permute.xlu0 %1588
    %1590 = vrot.lane.b32.xlu0 %v770, 122
    %v1591 = vpop.permute.xlu0 %1590
    %1592 = vrot.lane.b32.xlu0 %v775, 122
    %v1593 = vpop.permute.xlu0 %1592
    %1594 = vrot.lane.b32.xlu0 %v780, 122
    %v1595 = vpop.permute.xlu0 %1594
    %1596 = vrot.lane.b32.xlu0 %v785, 122
    %v1597 = vpop.permute.xlu0 %1596
    %1598 = vrot.lane.b32.xlu0 %v790, 122
    %v1599 = vpop.permute.xlu0 %1598
    %1600 = vrot.lane.b32.xlu0 %v795, 122
    %v1601 = vpop.permute.xlu0 %1600
    %1602 = vrot.lane.b32.xlu0 %v800, 122
    %v1603 = vpop.permute.xlu0 %1602
    %1604 = vrot.lane.b32.xlu0 %v805, 122
    %v1605 = vpop.permute.xlu0 %1604
    %1606 = vrot.lane.b32.xlu0 %v810, 122
    %v1607 = vpop.permute.xlu0 %1606
    %1608 = vrot.lane.b32.xlu0 %v815, 122
    %v1609 = vpop.permute.xlu0 %1608
    %1610 = vrot.lane.b32.xlu0 %v820, 122
    %v1611 = vpop.permute.xlu0 %1610
    %1612 = vrot.lane.b32.xlu0 %v825, 122
    %v1613 = vpop.permute.xlu0 %1612
    %1614 = vrot.lane.b32.xlu0 %v830, 122
    %v1615 = vpop.permute.xlu0 %1614
    %1616 = vrot.lane.b32.xlu0 %v835, 122
    %v1617 = vpop.permute.xlu0 %1616
    %1618 = vrot.lane.b32.xlu0 %v840, 122
    %v1619 = vpop.permute.xlu0 %1618
    %1620 = vrot.lane.b32.xlu0 %v845, 122
    %v1621 = vpop.permute.xlu0 %1620
    %1622 = vrot.lane.b32.xlu0 %v850, 122
    %v1623 = vpop.permute.xlu0 %1622
    %1624 = vrot.lane.b32.xlu0 %v855, 122
    %v1625 = vpop.permute.xlu0 %1624
    %1626 = vrot.lane.b32.xlu0 %v860, 122
    %v1627 = vpop.permute.xlu0 %1626
    %1628 = vrot.lane.b32.xlu0 %v865, 122
    %v1629 = vpop.permute.xlu0 %1628
    %1630 = vrot.lane.b32.xlu0 %v870, 122
    %v1631 = vpop.permute.xlu0 %1630
    %1632 = vrot.lane.b32.xlu0 %v875, 122
    %v1633 = vpop.permute.xlu0 %1632
    %1634 = vrot.lane.b32.xlu0 %v880, 122
    %v1635 = vpop.permute.xlu0 %1634
    %1636 = vrot.lane.b32.xlu0 %v885, 122
    %v1637 = vpop.permute.xlu0 %1636
    %1638 = vrot.lane.b32.xlu0 %v890, 122
    %v1639 = vpop.permute.xlu0 %1638
    %1640 = vrot.lane.b32.xlu0 %v895, 122
    %v1641 = vpop.permute.xlu0 %1640
    %1642 = vrot.lane.b32.xlu0 %v900, 122
    %v1643 = vpop.permute.xlu0 %1642
    %1644 = vrot.lane.b32.xlu0 %v905, 122
    %v1645 = vpop.permute.xlu0 %1644
    %1646 = vrot.lane.b32.xlu0 %v910, 122
    %v1647 = vpop.permute.xlu0 %1646
    %1648 = vrot.lane.b32.xlu0 %v915, 122
    %v1649 = vpop.permute.xlu0 %1648
    %1650 = vrot.lane.b32.xlu0 %v920, 122
    %v1651 = vpop.permute.xlu0 %1650
    %1652 = vrot.lane.b32.xlu0 %v925, 122
    %v1653 = vpop.permute.xlu0 %1652
    %1654 = vrot.lane.b32.xlu0 %v930, 122
    %v1655 = vpop.permute.xlu0 %1654
    %1656 = vrot.lane.b32.xlu0 %v935, 122
    %v1657 = vpop.permute.xlu0 %1656
    %1658 = vrot.lane.b32.xlu0 %v940, 122
    %v1659 = vpop.permute.xlu0 %1658
    %1660 = vrot.lane.b32.xlu0 %v945, 122
    %v1661 = vpop.permute.xlu0 %1660
    %1662 = vrot.lane.b32.xlu0 %v950, 122
    %v1663 = vpop.permute.xlu0 %1662
    %1664 = vrot.lane.b32.xlu0 %v955, 122
    %v1665 = vpop.permute.xlu0 %1664
    %1666 = vrot.lane.b32.xlu0 %v960, 122
    %v1667 = vpop.permute.xlu0 %1666
    %1668 = vrot.lane.b32.xlu0 %v965, 122
    %v1669 = vpop.permute.xlu0 %1668
    %1670 = vrot.lane.b32.xlu0 %v970, 122
    %v1671 = vpop.permute.xlu0 %1670
    %1672 = vrot.lane.b32.xlu0 %v975, 122
    %v1673 = vpop.permute.xlu0 %1672
    %1674 = vrot.lane.b32.xlu0 %v980, 122
    %v1675 = vpop.permute.xlu0 %1674
    %1676 = vrot.lane.b32.xlu0 %v985, 122
    %v1677 = vpop.permute.xlu0 %1676
    %1678 = vrot.lane.b32.xlu0 %v990, 122
    %v1679 = vpop.permute.xlu0 %1678
    %1680 = vrot.lane.b32.xlu0 %v995, 122
    %v1681 = vpop.permute.xlu0 %1680
    %1682 = vrot.lane.b32.xlu0 %v1000, 122
    %v1683 = vpop.permute.xlu0 %1682
    %1684 = vrot.lane.b32.xlu0 %v1005, 122
    %v1685 = vpop.permute.xlu0 %1684
    %1686 = vrot.lane.b32.xlu0 %v1010, 122
    %v1687 = vpop.permute.xlu0 %1686
    %1688 = vrot.lane.b32.xlu0 %v1015, 122
    %v1689 = vpop.permute.xlu0 %1688
    %1690 = vrot.lane.b32.xlu0 %v1020, 122
    %v1691 = vpop.permute.xlu0 %1690
    %1692 = vrot.lane.b32.xlu0 %v1025, 122
    %v1693 = vpop.permute.xlu0 %1692
    %1694 = vrot.lane.b32.xlu0 %v1030, 122
    %v1695 = vpop.permute.xlu0 %1694
    %1696 = vrot.lane.b32.xlu0 %v1035, 122
    %v1697 = vpop.permute.xlu0 %1696
    %1698 = vrot.lane.b32.xlu0 %v1040, 122
    %v1699 = vpop.permute.xlu0 %1698
    %1700 = vrot.lane.b32.xlu0 %v1045, 122
    %v1701 = vpop.permute.xlu0 %1700
    %1702 = vrot.lane.b32.xlu0 %v1050, 122
    %v1703 = vpop.permute.xlu0 %1702
    %1704 = vrot.lane.b32.xlu0 %v1055, 122
    %v1705 = vpop.permute.xlu0 %1704
    %1706 = vrot.lane.b32.xlu0 %v1060, 122
    %v1707 = vpop.permute.xlu0 %1706
    %1708 = vrot.lane.b32.xlu0 %v1065, 122
    %v1709 = vpop.permute.xlu0 %1708
    %1710 = vrot.lane.b32.xlu0 %v1070, 122
    %v1711 = vpop.permute.xlu0 %1710
    %1712 = vrot.lane.b32.xlu0 %v1075, 122
    %v1713 = vpop.permute.xlu0 %1712
    %1714 = vrot.lane.b32.xlu0 %v1080, 122
    %v1715 = vpop.permute.xlu0 %1714
    %1716 = vrot.lane.b32.xlu0 %v1085, 122
    %v1717 = vpop.permute.xlu0 %1716
    %1718 = vrot.lane.b32.xlu0 %v1090, 122
    %v1719 = vpop.permute.xlu0 %1718
    %1720 = vrot.lane.b32.xlu0 %v1095, 122
    %v1721 = vpop.permute.xlu0 %1720
    %1722 = vrot.lane.b32.xlu0 %v1100, 122
    %v1723 = vpop.permute.xlu0 %1722
    %1724 = vrot.lane.b32.xlu0 %v1105, 122
    %v1725 = vpop.permute.xlu0 %1724
    %1726 = vrot.lane.b32.xlu0 %v1110, 122
    %v1727 = vpop.permute.xlu0 %1726
    %1728 = vrot.lane.b32.xlu0 %v1115, 122
    %v1729 = vpop.permute.xlu0 %1728
    %1730 = vrot.lane.b32.xlu0 %v1120, 122
    %v1731 = vpop.permute.xlu0 %1730
    %1732 = vrot.lane.b32.xlu0 %v1125, 122
    %v1733 = vpop.permute.xlu0 %1732
    %1734 = vrot.lane.b32.xlu0 %v1130, 122
    %v1735 = vpop.permute.xlu0 %1734
    %1736 = vrot.lane.b32.xlu0 %v1135, 122
    %v1737 = vpop.permute.xlu0 %1736
    %1738 = vrot.lane.b32.xlu0 %v1140, 122
    %v1739 = vpop.permute.xlu0 %1738
    %1740 = vrot.lane.b32.xlu0 %v1145, 122
    %v1741 = vpop.permute.xlu0 %1740
    %1742 = vrot.lane.b32.xlu0 %v1150, 122
    %v1743 = vpop.permute.xlu0 %1742
    %1744 = vrot.lane.b32.xlu0 %v1155, 122
    %v1745 = vpop.permute.xlu0 %1744
    %1746 = vrot.lane.b32.xlu0 %v1160, 122
    %v1747 = vpop.permute.xlu0 %1746
    %1748 = vrot.lane.b32.xlu0 %v1165, 122
    %v1749 = vpop.permute.xlu0 %1748
    %1750 = vrot.lane.b32.xlu0 %v1170, 122
    %v1751 = vpop.permute.xlu0 %1750
    %1752 = vrot.lane.b32.xlu0 %v1175, 122
    %v1753 = vpop.permute.xlu0 %1752
    %1754 = vrot.lane.b32.xlu0 %v1180, 122
    %v1755 = vpop.permute.xlu0 %1754
    %1756 = vrot.lane.b32.xlu0 %v1185, 122
    %v1757 = vpop.permute.xlu0 %1756
    %1758 = vrot.lane.b32.xlu0 %v1190, 122
    %v1759 = vpop.permute.xlu0 %1758
    %1760 = vrot.lane.b32.xlu0 %v1195, 122
    %v1761 = vpop.permute.xlu0 %1760
    %1762 = vrot.lane.b32.xlu0 %v1200, 122
    %v1763 = vpop.permute.xlu0 %1762
    %1764 = vrot.lane.b32.xlu0 %v1205, 122
    %v1765 = vpop.permute.xlu0 %1764
    %1766 = vrot.lane.b32.xlu0 %v1210, 122
    %v1767 = vpop.permute.xlu0 %1766
    %1768 = vrot.lane.b32.xlu0 %v1215, 122
    %v1769 = vpop.permute.xlu0 %1768
    %1770 = vrot.lane.b32.xlu0 %v1220, 122
    %v1771 = vpop.permute.xlu0 %1770
    %1772 = vrot.lane.b32.xlu0 %v1225, 122
    %v1773 = vpop.permute.xlu0 %1772
    %1774 = vrot.lane.b32.xlu0 %v1230, 122
    %v1775 = vpop.permute.xlu0 %1774
    %1776 = vrot.lane.b32.xlu0 %v1235, 122
    %v1777 = vpop.permute.xlu0 %1776
    %1778 = vrot.lane.b32.xlu0 %v1240, 122
    %v1779 = vpop.permute.xlu0 %1778
    %1780 = vrot.lane.b32.xlu0 %v1245, 122
    %v1781 = vpop.permute.xlu0 %1780
    %1782 = vrot.lane.b32.xlu0 %v1250, 122
    %v1783 = vpop.permute.xlu0 %1782
    %1784 = vrot.lane.b32.xlu0 %v1255, 122
    %v1785 = vpop.permute.xlu0 %1784
    %1786 = vrot.lane.b32.xlu0 %v1260, 122
    %v1787 = vpop.permute.xlu0 %1786
    %1788 = vrot.lane.b32.xlu0 %v1265, 122
    %v1789 = vpop.permute.xlu0 %1788
    %1790 = vrot.lane.b32.xlu0 %v1270, 122
    %v1791 = vpop.permute.xlu0 %1790
    %1792 = vrot.lane.b32.xlu0 %v1275, 122
    %v1793 = vpop.permute.xlu0 %1792
    %1794 = vrot.lane.b32.xlu0 %v1280, 122
    %v1795 = vpop.permute.xlu0 %1794
    %1796 = vrot.lane.b32.xlu0 %v1285, 122
    %v1797 = vpop.permute.xlu0 %1796
    %1798 = vrot.lane.b32.xlu0 %v1290, 122
    %v1799 = vpop.permute.xlu0 %1798
    %1800 = vrot.lane.b32.xlu0 %v1295, 122
    %v1801 = vpop.permute.xlu0 %1800
    %1802 = vrot.lane.b32.xlu0 %v1300, 122
    %v1803 = vpop.permute.xlu0 %1802
    %1804 = vrot.lane.b32.xlu0 %v1305, 122
    %v1805 = vpop.permute.xlu0 %1804
    %1806 = vrot.lane.b32.xlu0 %v1310, 122
    %v1807 = vpop.permute.xlu0 %1806
    %1808 = vrot.lane.b32.xlu0 %v1315, 122
    %v1809 = vpop.permute.xlu0 %1808
    %1810 = vrot.lane.b32.xlu0 %v1320, 122
    %v1811 = vpop.permute.xlu0 %1810
    %1812 = vrot.lane.b32.xlu0 %v1325, 122
    %v1813 = vpop.permute.xlu0 %1812
    %1814 = vrot.lane.b32.xlu0 %v1330, 122
    %v1815 = vpop.permute.xlu0 %1814
    %1816 = vrot.lane.b32.xlu0 %v1335, 122
    %v1817 = vpop.permute.xlu0 %1816
    %1818 = vrot.lane.b32.xlu0 %v1340, 122
    %v1819 = vpop.permute.xlu0 %1818
    %1820 = vrot.lane.b32.xlu0 %v1345, 122
    %v1821 = vpop.permute.xlu0 %1820
    %1822 = vrot.lane.b32.xlu0 %v1350, 122
    %v1823 = vpop.permute.xlu0 %1822
    %1824 = vrot.lane.b32.xlu0 %v1355, 122
    %v1825 = vpop.permute.xlu0 %1824
    %1826 = vrot.lane.b32.xlu0 %v1360, 122
    %v1827 = vpop.permute.xlu0 %1826
    %1828 = vrot.lane.b32.xlu0 %v1365, 122
    %v1829 = vpop.permute.xlu0 %1828
    %1830 = vrot.lane.b32.xlu0 %v1370, 122
    %v1831 = vpop.permute.xlu0 %1830
    %1832 = vrot.lane.b32.xlu0 %v1375, 122
    %v1833 = vpop.permute.xlu0 %1832
    %1834 = vrot.lane.b32.xlu0 %v1380, 122
    %v1835 = vpop.permute.xlu0 %1834
    %1836 = vrot.lane.b32.xlu0 %v1385, 122
    %v1837 = vpop.permute.xlu0 %1836
    %1838 = vrot.lane.b32.xlu0 %v1390, 122
    %v1839 = vpop.permute.xlu0 %1838
    %1840 = vrot.lane.b32.xlu0 %v1395, 122
    %v1841 = vpop.permute.xlu0 %1840
    %1842 = vrot.lane.b32.xlu0 %v1400, 122
    %v1843 = vpop.permute.xlu0 %1842
    %1844 = vrot.lane.b32.xlu0 %v1405, 122
    %v1845 = vpop.permute.xlu0 %1844
    %1846 = vrot.lane.b32.xlu0 %v1410, 122
    %v1847 = vpop.permute.xlu0 %1846
    %1848 = vrot.lane.b32.xlu0 %v1415, 122
    %v1849 = vpop.permute.xlu0 %1848
    %v1994 = vmax.f32 %v700, %v1563
    %v1995 = vmax.f32 %v705, %v1565
    %v1996 = vmax.f32 %v710, %v1567
    %v1997 = vmax.f32 %v715, %v1569
    %v1998 = vmax.f32 %v720, %v1571
    %v1999 = vmax.f32 %v725, %v1573
    %v2000 = vmax.f32 %v730, %v1575
    %v2001 = vmax.f32 %v735, %v1577
    %v2002 = vmax.f32 %v740, %v1579
    %v2003 = vmax.f32 %v745, %v1581
    %v2004 = vmax.f32 %v750, %v1583
    %v2005 = vmax.f32 %v755, %v1585
    %v2006 = vmax.f32 %v760, %v1587
    %v2007 = vmax.f32 %v765, %v1589
    %v2008 = vmax.f32 %v770, %v1591
    %v2009 = vmax.f32 %v775, %v1593
    %v2010 = vmax.f32 %v780, %v1595
    %v2011 = vmax.f32 %v785, %v1597
    %v2012 = vmax.f32 %v790, %v1599
    %v2013 = vmax.f32 %v795, %v1601
    %v2014 = vmax.f32 %v800, %v1603
    %v2015 = vmax.f32 %v805, %v1605
    %v2016 = vmax.f32 %v810, %v1607
    %v2017 = vmax.f32 %v815, %v1609
    %v2018 = vmax.f32 %v820, %v1611
    %v2019 = vmax.f32 %v825, %v1613
    %v2020 = vmax.f32 %v830, %v1615
    %v2021 = vmax.f32 %v835, %v1617
    %v2022 = vmax.f32 %v840, %v1619
    %v2023 = vmax.f32 %v845, %v1621
    %v2024 = vmax.f32 %v850, %v1623
    %v2025 = vmax.f32 %v855, %v1625
    %v2026 = vmax.f32 %v860, %v1627
    %v2027 = vmax.f32 %v865, %v1629
    %v2028 = vmax.f32 %v870, %v1631
    %v2029 = vmax.f32 %v875, %v1633
    %v2030 = vmax.f32 %v880, %v1635
    %v2031 = vmax.f32 %v885, %v1637
    %v2032 = vmax.f32 %v890, %v1639
    %v2033 = vmax.f32 %v895, %v1641
    %v2034 = vmax.f32 %v900, %v1643
    %v2035 = vmax.f32 %v905, %v1645
    %v2036 = vmax.f32 %v910, %v1647
    %v2037 = vmax.f32 %v915, %v1649
    %v2038 = vmax.f32 %v920, %v1651
    %v2039 = vmax.f32 %v925, %v1653
    %v2040 = vmax.f32 %v930, %v1655
    %v2041 = vmax.f32 %v935, %v1657
    %v2042 = vmax.f32 %v940, %v1659
    %v2043 = vmax.f32 %v945, %v1661
    %v2044 = vmax.f32 %v950, %v1663
    %v2045 = vmax.f32 %v955, %v1665
    %v2046 = vmax.f32 %v960, %v1667
    %v2047 = vmax.f32 %v965, %v1669
    %v2048 = vmax.f32 %v970, %v1671
    %v2049 = vmax.f32 %v975, %v1673
    %v2050 = vmax.f32 %v980, %v1675
    %v2051 = vmax.f32 %v985, %v1677
    %v2052 = vmax.f32 %v990, %v1679
    %v2053 = vmax.f32 %v995, %v1681
    %v2054 = vmax.f32 %v1000, %v1683
    %v2055 = vmax.f32 %v1005, %v1685
    %v2056 = vmax.f32 %v1010, %v1687
    %v2057 = vmax.f32 %v1015, %v1689
    %v2058 = vmax.f32 %v1020, %v1691
    %v2059 = vmax.f32 %v1025, %v1693
    %v2060 = vmax.f32 %v1030, %v1695
    %v2061 = vmax.f32 %v1035, %v1697
    %v2062 = vmax.f32 %v1040, %v1699
    %v2063 = vmax.f32 %v1045, %v1701
    %v2064 = vmax.f32 %v1050, %v1703
    %v2065 = vmax.f32 %v1055, %v1705
    %v2066 = vmax.f32 %v1060, %v1707
    %v2067 = vmax.f32 %v1065, %v1709
    %v2068 = vmax.f32 %v1070, %v1711
    %v2069 = vmax.f32 %v1075, %v1713
    %v2070 = vmax.f32 %v1080, %v1715
    %v2071 = vmax.f32 %v1085, %v1717
    %v2072 = vmax.f32 %v1090, %v1719
    %v2073 = vmax.f32 %v1095, %v1721
    %v2074 = vmax.f32 %v1100, %v1723
    %v2075 = vmax.f32 %v1105, %v1725
    %v2076 = vmax.f32 %v1110, %v1727
    %v2077 = vmax.f32 %v1115, %v1729
    %v2078 = vmax.f32 %v1120, %v1731
    %v2079 = vmax.f32 %v1125, %v1733
    %v2080 = vmax.f32 %v1130, %v1735
    %v2081 = vmax.f32 %v1135, %v1737
    %v2082 = vmax.f32 %v1140, %v1739
    %v2083 = vmax.f32 %v1145, %v1741
    %v2084 = vmax.f32 %v1150, %v1743
    %v2085 = vmax.f32 %v1155, %v1745
    %v2086 = vmax.f32 %v1160, %v1747
    %v2087 = vmax.f32 %v1165, %v1749
    %v2088 = vmax.f32 %v1170, %v1751
    %v2089 = vmax.f32 %v1175, %v1753
    %v2090 = vmax.f32 %v1180, %v1755
    %v2091 = vmax.f32 %v1185, %v1757
    %v2092 = vmax.f32 %v1190, %v1759
    %v2093 = vmax.f32 %v1195, %v1761
    %v2094 = vmax.f32 %v1200, %v1763
    %v2095 = vmax.f32 %v1205, %v1765
    %v2096 = vmax.f32 %v1210, %v1767
    %v2097 = vmax.f32 %v1215, %v1769
    %v2098 = vmax.f32 %v1220, %v1771
    %v2099 = vmax.f32 %v1225, %v1773
    %v2100 = vmax.f32 %v1230, %v1775
    %v2101 = vmax.f32 %v1235, %v1777
    %v2102 = vmax.f32 %v1240, %v1779
    %v2103 = vmax.f32 %v1245, %v1781
    %v2104 = vmax.f32 %v1250, %v1783
    %v2105 = vmax.f32 %v1255, %v1785
    %v2106 = vmax.f32 %v1260, %v1787
    %v2107 = vmax.f32 %v1265, %v1789
    %v2108 = vmax.f32 %v1270, %v1791
    %v2109 = vmax.f32 %v1275, %v1793
    %v2110 = vmax.f32 %v1280, %v1795
    %v2111 = vmax.f32 %v1285, %v1797
    %v2112 = vmax.f32 %v1290, %v1799
    %v2113 = vmax.f32 %v1295, %v1801
    %v2114 = vmax.f32 %v1300, %v1803
    %v2115 = vmax.f32 %v1305, %v1805
    %v2116 = vmax.f32 %v1310, %v1807
    %v2117 = vmax.f32 %v1315, %v1809
    %v2118 = vmax.f32 %v1320, %v1811
    %v2119 = vmax.f32 %v1325, %v1813
    %v2120 = vmax.f32 %v1330, %v1815
    %v2121 = vmax.f32 %v1335, %v1817
    %v2122 = vmax.f32 %v1340, %v1819
    %v2123 = vmax.f32 %v1345, %v1821
    %v2124 = vmax.f32 %v1350, %v1823
    %v2125 = vmax.f32 %v1355, %v1825
    %v2126 = vmax.f32 %v1360, %v1827
    %v2127 = vmax.f32 %v1365, %v1829
    %v2128 = vmax.f32 %v1370, %v1831
    %v2129 = vmax.f32 %v1375, %v1833
    %v2130 = vmax.f32 %v1380, %v1835
    %v2131 = vmax.f32 %v1385, %v1837
    %v2132 = vmax.f32 %v1390, %v1839
    %v2133 = vmax.f32 %v1395, %v1841
    %v2134 = vmax.f32 %v1400, %v1843
    %v2135 = vmax.f32 %v1405, %v1845
    %v2136 = vmax.f32 %v1410, %v1847
    %v2137 = vmax.f32 %v1415, %v1849
    %2282 = vrot.lane.b32.xlu0 %v1994, 116
    %v2283 = vpop.permute.xlu0 %2282
    %2284 = vrot.lane.b32.xlu0 %v1995, 116
    %v2285 = vpop.permute.xlu0 %2284
    %2286 = vrot.lane.b32.xlu0 %v1996, 116
    %v2287 = vpop.permute.xlu0 %2286
    %2288 = vrot.lane.b32.xlu0 %v1997, 116
    %v2289 = vpop.permute.xlu0 %2288
    %2290 = vrot.lane.b32.xlu0 %v1998, 116
    %v2291 = vpop.permute.xlu0 %2290
    %2292 = vrot.lane.b32.xlu0 %v1999, 116
    %v2293 = vpop.permute.xlu0 %2292
    %2294 = vrot.lane.b32.xlu0 %v2000, 116
    %v2295 = vpop.permute.xlu0 %2294
    %2296 = vrot.lane.b32.xlu0 %v2001, 116
    %v2297 = vpop.permute.xlu0 %2296
    %2298 = vrot.lane.b32.xlu0 %v2002, 116
    %v2299 = vpop.permute.xlu0 %2298
    %2300 = vrot.lane.b32.xlu0 %v2003, 116
    %v2301 = vpop.permute.xlu0 %2300
    %2302 = vrot.lane.b32.xlu0 %v2004, 116
    %v2303 = vpop.permute.xlu0 %2302
    %2304 = vrot.lane.b32.xlu0 %v2005, 116
    %v2305 = vpop.permute.xlu0 %2304
    %2306 = vrot.lane.b32.xlu0 %v2006, 116
    %v2307 = vpop.permute.xlu0 %2306
    %2308 = vrot.lane.b32.xlu0 %v2007, 116
    %v2309 = vpop.permute.xlu0 %2308
    %2310 = vrot.lane.b32.xlu0 %v2008, 116
    %v2311 = vpop.permute.xlu0 %2310
    %2312 = vrot.lane.b32.xlu0 %v2009, 116
    %v2313 = vpop.permute.xlu0 %2312
    %2314 = vrot.lane.b32.xlu0 %v2010, 116
    %v2315 = vpop.permute.xlu0 %2314
    %2316 = vrot.lane.b32.xlu0 %v2011, 116
    %v2317 = vpop.permute.xlu0 %2316
    %2318 = vrot.lane.b32.xlu0 %v2012, 116
    %v2319 = vpop.permute.xlu0 %2318
    %2320 = vrot.lane.b32.xlu0 %v2013, 116
    %v2321 = vpop.permute.xlu0 %2320
    %2322 = vrot.lane.b32.xlu0 %v2014, 116
    %v2323 = vpop.permute.xlu0 %2322
    %2324 = vrot.lane.b32.xlu0 %v2015, 116
    %v2325 = vpop.permute.xlu0 %2324
    %2326 = vrot.lane.b32.xlu0 %v2016, 116
    %v2327 = vpop.permute.xlu0 %2326
    %2328 = vrot.lane.b32.xlu0 %v2017, 116
    %v2329 = vpop.permute.xlu0 %2328
    %2330 = vrot.lane.b32.xlu0 %v2018, 116
    %v2331 = vpop.permute.xlu0 %2330
    %2332 = vrot.lane.b32.xlu0 %v2019, 116
    %v2333 = vpop.permute.xlu0 %2332
    %2334 = vrot.lane.b32.xlu0 %v2020, 116
    %v2335 = vpop.permute.xlu0 %2334
    %2336 = vrot.lane.b32.xlu0 %v2021, 116
    %v2337 = vpop.permute.xlu0 %2336
    %2338 = vrot.lane.b32.xlu0 %v2022, 116
    %v2339 = vpop.permute.xlu0 %2338
    %2340 = vrot.lane.b32.xlu0 %v2023, 116
    %v2341 = vpop.permute.xlu0 %2340
    %2342 = vrot.lane.b32.xlu0 %v2024, 116
    %v2343 = vpop.permute.xlu0 %2342
    %2344 = vrot.lane.b32.xlu0 %v2025, 116
    %v2345 = vpop.permute.xlu0 %2344
    %2346 = vrot.lane.b32.xlu0 %v2026, 116
    %v2347 = vpop.permute.xlu0 %2346
    %2348 = vrot.lane.b32.xlu0 %v2027, 116
    %v2349 = vpop.permute.xlu0 %2348
    %2350 = vrot.lane.b32.xlu0 %v2028, 116
    %v2351 = vpop.permute.xlu0 %2350
    %2352 = vrot.lane.b32.xlu0 %v2029, 116
    %v2353 = vpop.permute.xlu0 %2352
    %2354 = vrot.lane.b32.xlu0 %v2030, 116
    %v2355 = vpop.permute.xlu0 %2354
    %2356 = vrot.lane.b32.xlu0 %v2031, 116
    %v2357 = vpop.permute.xlu0 %2356
    %2358 = vrot.lane.b32.xlu0 %v2032, 116
    %v2359 = vpop.permute.xlu0 %2358
    %2360 = vrot.lane.b32.xlu0 %v2033, 116
    %v2361 = vpop.permute.xlu0 %2360
    %2362 = vrot.lane.b32.xlu0 %v2034, 116
    %v2363 = vpop.permute.xlu0 %2362
    %2364 = vrot.lane.b32.xlu0 %v2035, 116
    %v2365 = vpop.permute.xlu0 %2364
    %2366 = vrot.lane.b32.xlu0 %v2036, 116
    %v2367 = vpop.permute.xlu0 %2366
    %2368 = vrot.lane.b32.xlu0 %v2037, 116
    %v2369 = vpop.permute.xlu0 %2368
    %2370 = vrot.lane.b32.xlu0 %v2038, 116
    %v2371 = vpop.permute.xlu0 %2370
    %2372 = vrot.lane.b32.xlu0 %v2039, 116
    %v2373 = vpop.permute.xlu0 %2372
    %2374 = vrot.lane.b32.xlu0 %v2040, 116
    %v2375 = vpop.permute.xlu0 %2374
    %2376 = vrot.lane.b32.xlu0 %v2041, 116
    %v2377 = vpop.permute.xlu0 %2376
    %2378 = vrot.lane.b32.xlu0 %v2042, 116
    %v2379 = vpop.permute.xlu0 %2378
    %2380 = vrot.lane.b32.xlu0 %v2043, 116
    %v2381 = vpop.permute.xlu0 %2380
    %2382 = vrot.lane.b32.xlu0 %v2044, 116
    %v2383 = vpop.permute.xlu0 %2382
    %2384 = vrot.lane.b32.xlu0 %v2045, 116
    %v2385 = vpop.permute.xlu0 %2384
    %2386 = vrot.lane.b32.xlu0 %v2046, 116
    %v2387 = vpop.permute.xlu0 %2386
    %2388 = vrot.lane.b32.xlu0 %v2047, 116
    %v2389 = vpop.permute.xlu0 %2388
    %2390 = vrot.lane.b32.xlu0 %v2048, 116
    %v2391 = vpop.permute.xlu0 %2390
    %2392 = vrot.lane.b32.xlu0 %v2049, 116
    %v2393 = vpop.permute.xlu0 %2392
    %2394 = vrot.lane.b32.xlu0 %v2050, 116
    %v2395 = vpop.permute.xlu0 %2394
    %2396 = vrot.lane.b32.xlu0 %v2051, 116
    %v2397 = vpop.permute.xlu0 %2396
    %2398 = vrot.lane.b32.xlu0 %v2052, 116
    %v2399 = vpop.permute.xlu0 %2398
    %2400 = vrot.lane.b32.xlu0 %v2053, 116
    %v2401 = vpop.permute.xlu0 %2400
    %2402 = vrot.lane.b32.xlu0 %v2054, 116
    %v2403 = vpop.permute.xlu0 %2402
    %2404 = vrot.lane.b32.xlu0 %v2055, 116
    %v2405 = vpop.permute.xlu0 %2404
    %2406 = vrot.lane.b32.xlu0 %v2056, 116
    %v2407 = vpop.permute.xlu0 %2406
    %2408 = vrot.lane.b32.xlu0 %v2057, 116
    %v2409 = vpop.permute.xlu0 %2408
    %2410 = vrot.lane.b32.xlu0 %v2058, 116
    %v2411 = vpop.permute.xlu0 %2410
    %2412 = vrot.lane.b32.xlu0 %v2059, 116
    %v2413 = vpop.permute.xlu0 %2412
    %2414 = vrot.lane.b32.xlu0 %v2060, 116
    %v2415 = vpop.permute.xlu0 %2414
    %2416 = vrot.lane.b32.xlu0 %v2061, 116
    %v2417 = vpop.permute.xlu0 %2416
    %2418 = vrot.lane.b32.xlu0 %v2062, 116
    %v2419 = vpop.permute.xlu0 %2418
    %2420 = vrot.lane.b32.xlu0 %v2063, 116
    %v2421 = vpop.permute.xlu0 %2420
    %2422 = vrot.lane.b32.xlu0 %v2064, 116
    %v2423 = vpop.permute.xlu0 %2422
    %2424 = vrot.lane.b32.xlu0 %v2065, 116
    %v2425 = vpop.permute.xlu0 %2424
    %2426 = vrot.lane.b32.xlu0 %v2066, 116
    %v2427 = vpop.permute.xlu0 %2426
    %2428 = vrot.lane.b32.xlu0 %v2067, 116
    %v2429 = vpop.permute.xlu0 %2428
    %2430 = vrot.lane.b32.xlu0 %v2068, 116
    %v2431 = vpop.permute.xlu0 %2430
    %2432 = vrot.lane.b32.xlu0 %v2069, 116
    %v2433 = vpop.permute.xlu0 %2432
    %2434 = vrot.lane.b32.xlu0 %v2070, 116
    %v2435 = vpop.permute.xlu0 %2434
    %2436 = vrot.lane.b32.xlu0 %v2071, 116
    %v2437 = vpop.permute.xlu0 %2436
    %2438 = vrot.lane.b32.xlu0 %v2072, 116
    %v2439 = vpop.permute.xlu0 %2438
    %2440 = vrot.lane.b32.xlu0 %v2073, 116
    %v2441 = vpop.permute.xlu0 %2440
    %2442 = vrot.lane.b32.xlu0 %v2074, 116
    %v2443 = vpop.permute.xlu0 %2442
    %2444 = vrot.lane.b32.xlu0 %v2075, 116
    %v2445 = vpop.permute.xlu0 %2444
    %2446 = vrot.lane.b32.xlu0 %v2076, 116
    %v2447 = vpop.permute.xlu0 %2446
    %2448 = vrot.lane.b32.xlu0 %v2077, 116
    %v2449 = vpop.permute.xlu0 %2448
    %2450 = vrot.lane.b32.xlu0 %v2078, 116
    %v2451 = vpop.permute.xlu0 %2450
    %2452 = vrot.lane.b32.xlu0 %v2079, 116
    %v2453 = vpop.permute.xlu0 %2452
    %2454 = vrot.lane.b32.xlu0 %v2080, 116
    %v2455 = vpop.permute.xlu0 %2454
    %2456 = vrot.lane.b32.xlu0 %v2081, 116
    %v2457 = vpop.permute.xlu0 %2456
    %2458 = vrot.lane.b32.xlu0 %v2082, 116
    %v2459 = vpop.permute.xlu0 %2458
    %2460 = vrot.lane.b32.xlu0 %v2083, 116
    %v2461 = vpop.permute.xlu0 %2460
    %2462 = vrot.lane.b32.xlu0 %v2084, 116
    %v2463 = vpop.permute.xlu0 %2462
    %2464 = vrot.lane.b32.xlu0 %v2085, 116
    %v2465 = vpop.permute.xlu0 %2464
    %2466 = vrot.lane.b32.xlu0 %v2086, 116
    %v2467 = vpop.permute.xlu0 %2466
    %2468 = vrot.lane.b32.xlu0 %v2087, 116
    %v2469 = vpop.permute.xlu0 %2468
    %2470 = vrot.lane.b32.xlu0 %v2088, 116
    %v2471 = vpop.permute.xlu0 %2470
    %2472 = vrot.lane.b32.xlu0 %v2089, 116
    %v2473 = vpop.permute.xlu0 %2472
    %2474 = vrot.lane.b32.xlu0 %v2090, 116
    %v2475 = vpop.permute.xlu0 %2474
    %2476 = vrot.lane.b32.xlu0 %v2091, 116
    %v2477 = vpop.permute.xlu0 %2476
    %2478 = vrot.lane.b32.xlu0 %v2092, 116
    %v2479 = vpop.permute.xlu0 %2478
    %2480 = vrot.lane.b32.xlu0 %v2093, 116
    %v2481 = vpop.permute.xlu0 %2480
    %2482 = vrot.lane.b32.xlu0 %v2094, 116
    %v2483 = vpop.permute.xlu0 %2482
    %2484 = vrot.lane.b32.xlu0 %v2095, 116
    %v2485 = vpop.permute.xlu0 %2484
    %2486 = vrot.lane.b32.xlu0 %v2096, 116
    %v2487 = vpop.permute.xlu0 %2486
    %2488 = vrot.lane.b32.xlu0 %v2097, 116
    %v2489 = vpop.permute.xlu0 %2488
    %2490 = vrot.lane.b32.xlu0 %v2098, 116
    %v2491 = vpop.permute.xlu0 %2490
    %2492 = vrot.lane.b32.xlu0 %v2099, 116
    %v2493 = vpop.permute.xlu0 %2492
    %2494 = vrot.lane.b32.xlu0 %v2100, 116
    %v2495 = vpop.permute.xlu0 %2494
    %2496 = vrot.lane.b32.xlu0 %v2101, 116
    %v2497 = vpop.permute.xlu0 %2496
    %2498 = vrot.lane.b32.xlu0 %v2102, 116
    %v2499 = vpop.permute.xlu0 %2498
    %2500 = vrot.lane.b32.xlu0 %v2103, 116
    %v2501 = vpop.permute.xlu0 %2500
    %2502 = vrot.lane.b32.xlu0 %v2104, 116
    %v2503 = vpop.permute.xlu0 %2502
    %2504 = vrot.lane.b32.xlu0 %v2105, 116
    %v2505 = vpop.permute.xlu0 %2504
    %2506 = vrot.lane.b32.xlu0 %v2106, 116
    %v2507 = vpop.permute.xlu0 %2506
    %2508 = vrot.lane.b32.xlu0 %v2107, 116
    %v2509 = vpop.permute.xlu0 %2508
    %2510 = vrot.lane.b32.xlu0 %v2108, 116
    %v2511 = vpop.permute.xlu0 %2510
    %2512 = vrot.lane.b32.xlu0 %v2109, 116
    %v2513 = vpop.permute.xlu0 %2512
    %2514 = vrot.lane.b32.xlu0 %v2110, 116
    %v2515 = vpop.permute.xlu0 %2514
    %2516 = vrot.lane.b32.xlu0 %v2111, 116
    %v2517 = vpop.permute.xlu0 %2516
    %2518 = vrot.lane.b32.xlu0 %v2112, 116
    %v2519 = vpop.permute.xlu0 %2518
    %2520 = vrot.lane.b32.xlu0 %v2113, 116
    %v2521 = vpop.permute.xlu0 %2520
    %2522 = vrot.lane.b32.xlu0 %v2114, 116
    %v2523 = vpop.permute.xlu0 %2522
    %2524 = vrot.lane.b32.xlu0 %v2115, 116
    %v2525 = vpop.permute.xlu0 %2524
    %2526 = vrot.lane.b32.xlu0 %v2116, 116
    %v2527 = vpop.permute.xlu0 %2526
    %2528 = vrot.lane.b32.xlu0 %v2117, 116
    %v2529 = vpop.permute.xlu0 %2528
    %2530 = vrot.lane.b32.xlu0 %v2118, 116
    %v2531 = vpop.permute.xlu0 %2530
    %2532 = vrot.lane.b32.xlu0 %v2119, 116
    %v2533 = vpop.permute.xlu0 %2532
    %2534 = vrot.lane.b32.xlu0 %v2120, 116
    %v2535 = vpop.permute.xlu0 %2534
    %2536 = vrot.lane.b32.xlu0 %v2121, 116
    %v2537 = vpop.permute.xlu0 %2536
    %2538 = vrot.lane.b32.xlu0 %v2122, 116
    %v2539 = vpop.permute.xlu0 %2538
    %2540 = vrot.lane.b32.xlu0 %v2123, 116
    %v2541 = vpop.permute.xlu0 %2540
    %2542 = vrot.lane.b32.xlu0 %v2124, 116
    %v2543 = vpop.permute.xlu0 %2542
    %2544 = vrot.lane.b32.xlu0 %v2125, 116
    %v2545 = vpop.permute.xlu0 %2544
    %2546 = vrot.lane.b32.xlu0 %v2126, 116
    %v2547 = vpop.permute.xlu0 %2546
    %2548 = vrot.lane.b32.xlu0 %v2127, 116
    %v2549 = vpop.permute.xlu0 %2548
    %2550 = vrot.lane.b32.xlu0 %v2128, 116
    %v2551 = vpop.permute.xlu0 %2550
    %2552 = vrot.lane.b32.xlu0 %v2129, 116
    %v2553 = vpop.permute.xlu0 %2552
    %2554 = vrot.lane.b32.xlu0 %v2130, 116
    %v2555 = vpop.permute.xlu0 %2554
    %2556 = vrot.lane.b32.xlu0 %v2131, 116
    %v2557 = vpop.permute.xlu0 %2556
    %2558 = vrot.lane.b32.xlu0 %v2132, 116
    %v2559 = vpop.permute.xlu0 %2558
    %2560 = vrot.lane.b32.xlu0 %v2133, 116
    %v2561 = vpop.permute.xlu0 %2560
    %2562 = vrot.lane.b32.xlu0 %v2134, 116
    %v2563 = vpop.permute.xlu0 %2562
    %2564 = vrot.lane.b32.xlu0 %v2135, 116
    %v2565 = vpop.permute.xlu0 %2564
    %2566 = vrot.lane.b32.xlu0 %v2136, 116
    %v2567 = vpop.permute.xlu0 %2566
    %2568 = vrot.lane.b32.xlu0 %v2137, 116
    %v2569 = vpop.permute.xlu0 %2568
    %v2714 = vmax.f32 %v1994, %v2283
    %v2715 = vmax.f32 %v1995, %v2285
    %v2716 = vmax.f32 %v1996, %v2287
    %v2717 = vmax.f32 %v1997, %v2289
    %v2718 = vmax.f32 %v1998, %v2291
    %v2719 = vmax.f32 %v1999, %v2293
    %v2720 = vmax.f32 %v2000, %v2295
    %v2721 = vmax.f32 %v2001, %v2297
    %v2722 = vmax.f32 %v2002, %v2299
    %v2723 = vmax.f32 %v2003, %v2301
    %v2724 = vmax.f32 %v2004, %v2303
    %v2725 = vmax.f32 %v2005, %v2305
    %v2726 = vmax.f32 %v2006, %v2307
    %v2727 = vmax.f32 %v2007, %v2309
    %v2728 = vmax.f32 %v2008, %v2311
    %v2729 = vmax.f32 %v2009, %v2313
    %v2730 = vmax.f32 %v2010, %v2315
    %v2731 = vmax.f32 %v2011, %v2317
    %v2732 = vmax.f32 %v2012, %v2319
    %v2733 = vmax.f32 %v2013, %v2321
    %v2734 = vmax.f32 %v2014, %v2323
    %v2735 = vmax.f32 %v2015, %v2325
    %v2736 = vmax.f32 %v2016, %v2327
    %v2737 = vmax.f32 %v2017, %v2329
    %v2738 = vmax.f32 %v2018, %v2331
    %v2739 = vmax.f32 %v2019, %v2333
    %v2740 = vmax.f32 %v2020, %v2335
    %v2741 = vmax.f32 %v2021, %v2337
    %v2742 = vmax.f32 %v2022, %v2339
    %v2743 = vmax.f32 %v2023, %v2341
    %v2744 = vmax.f32 %v2024, %v2343
    %v2745 = vmax.f32 %v2025, %v2345
    %v2746 = vmax.f32 %v2026, %v2347
    %v2747 = vmax.f32 %v2027, %v2349
    %v2748 = vmax.f32 %v2028, %v2351
    %v2749 = vmax.f32 %v2029, %v2353
    %v2750 = vmax.f32 %v2030, %v2355
    %v2751 = vmax.f32 %v2031, %v2357
    %v2752 = vmax.f32 %v2032, %v2359
    %v2753 = vmax.f32 %v2033, %v2361
    %v2754 = vmax.f32 %v2034, %v2363
    %v2755 = vmax.f32 %v2035, %v2365
    %v2756 = vmax.f32 %v2036, %v2367
    %v2757 = vmax.f32 %v2037, %v2369
    %v2758 = vmax.f32 %v2038, %v2371
    %v2759 = vmax.f32 %v2039, %v2373
    %v2760 = vmax.f32 %v2040, %v2375
    %v2761 = vmax.f32 %v2041, %v2377
    %v2762 = vmax.f32 %v2042, %v2379
    %v2763 = vmax.f32 %v2043, %v2381
    %v2764 = vmax.f32 %v2044, %v2383
    %v2765 = vmax.f32 %v2045, %v2385
    %v2766 = vmax.f32 %v2046, %v2387
    %v2767 = vmax.f32 %v2047, %v2389
    %v2768 = vmax.f32 %v2048, %v2391
    %v2769 = vmax.f32 %v2049, %v2393
    %v2770 = vmax.f32 %v2050, %v2395
    %v2771 = vmax.f32 %v2051, %v2397
    %v2772 = vmax.f32 %v2052, %v2399
    %v2773 = vmax.f32 %v2053, %v2401
    %v2774 = vmax.f32 %v2054, %v2403
    %v2775 = vmax.f32 %v2055, %v2405
    %v2776 = vmax.f32 %v2056, %v2407
    %v2777 = vmax.f32 %v2057, %v2409
    %v2778 = vmax.f32 %v2058, %v2411
    %v2779 = vmax.f32 %v2059, %v2413
    %v2780 = vmax.f32 %v2060, %v2415
    %v2781 = vmax.f32 %v2061, %v2417
    %v2782 = vmax.f32 %v2062, %v2419
    %v2783 = vmax.f32 %v2063, %v2421
    %v2784 = vmax.f32 %v2064, %v2423
    %v2785 = vmax.f32 %v2065, %v2425
    %v2786 = vmax.f32 %v2066, %v2427
    %v2787 = vmax.f32 %v2067, %v2429
    %v2788 = vmax.f32 %v2068, %v2431
    %v2789 = vmax.f32 %v2069, %v2433
    %v2790 = vmax.f32 %v2070, %v2435
    %v2791 = vmax.f32 %v2071, %v2437
    %v2792 = vmax.f32 %v2072, %v2439
    %v2793 = vmax.f32 %v2073, %v2441
    %v2794 = vmax.f32 %v2074, %v2443
    %v2795 = vmax.f32 %v2075, %v2445
    %v2796 = vmax.f32 %v2076, %v2447
    %v2797 = vmax.f32 %v2077, %v2449
    %v2798 = vmax.f32 %v2078, %v2451
    %v2799 = vmax.f32 %v2079, %v2453
    %v2800 = vmax.f32 %v2080, %v2455
    %v2801 = vmax.f32 %v2081, %v2457
    %v2802 = vmax.f32 %v2082, %v2459
    %v2803 = vmax.f32 %v2083, %v2461
    %v2804 = vmax.f32 %v2084, %v2463
    %v2805 = vmax.f32 %v2085, %v2465
    %v2806 = vmax.f32 %v2086, %v2467
    %v2807 = vmax.f32 %v2087, %v2469
    %v2808 = vmax.f32 %v2088, %v2471
    %v2809 = vmax.f32 %v2089, %v2473
    %v2810 = vmax.f32 %v2090, %v2475
    %v2811 = vmax.f32 %v2091, %v2477
    %v2812 = vmax.f32 %v2092, %v2479
    %v2813 = vmax.f32 %v2093, %v2481
    %v2814 = vmax.f32 %v2094, %v2483
    %v2815 = vmax.f32 %v2095, %v2485
    %v2816 = vmax.f32 %v2096, %v2487
    %v2817 = vmax.f32 %v2097, %v2489
    %v2818 = vmax.f32 %v2098, %v2491
    %v2819 = vmax.f32 %v2099, %v2493
    %v2820 = vmax.f32 %v2100, %v2495
    %v2821 = vmax.f32 %v2101, %v2497
    %v2822 = vmax.f32 %v2102, %v2499
    %v2823 = vmax.f32 %v2103, %v2501
    %v2824 = vmax.f32 %v2104, %v2503
    %v2825 = vmax.f32 %v2105, %v2505
    %v2826 = vmax.f32 %v2106, %v2507
    %v2827 = vmax.f32 %v2107, %v2509
    %v2828 = vmax.f32 %v2108, %v2511
    %v2829 = vmax.f32 %v2109, %v2513
    %v2830 = vmax.f32 %v2110, %v2515
    %v2831 = vmax.f32 %v2111, %v2517
    %v2832 = vmax.f32 %v2112, %v2519
    %v2833 = vmax.f32 %v2113, %v2521
    %v2834 = vmax.f32 %v2114, %v2523
    %v2835 = vmax.f32 %v2115, %v2525
    %v2836 = vmax.f32 %v2116, %v2527
    %v2837 = vmax.f32 %v2117, %v2529
    %v2838 = vmax.f32 %v2118, %v2531
    %v2839 = vmax.f32 %v2119, %v2533
    %v2840 = vmax.f32 %v2120, %v2535
    %v2841 = vmax.f32 %v2121, %v2537
    %v2842 = vmax.f32 %v2122, %v2539
    %v2843 = vmax.f32 %v2123, %v2541
    %v2844 = vmax.f32 %v2124, %v2543
    %v2845 = vmax.f32 %v2125, %v2545
    %v2846 = vmax.f32 %v2126, %v2547
    %v2847 = vmax.f32 %v2127, %v2549
    %v2848 = vmax.f32 %v2128, %v2551
    %v2849 = vmax.f32 %v2129, %v2553
    %v2850 = vmax.f32 %v2130, %v2555
    %v2851 = vmax.f32 %v2131, %v2557
    %v2852 = vmax.f32 %v2132, %v2559
    %v2853 = vmax.f32 %v2133, %v2561
    %v2854 = vmax.f32 %v2134, %v2563
    %v2855 = vmax.f32 %v2135, %v2565
    %v2856 = vmax.f32 %v2136, %v2567
    %v2857 = vmax.f32 %v2137, %v2569
    %v2858 = vld [vmem:[%s2] sm:$0x1]
    %v2860 = vlaneseq
    %v2861 = vshrl.u32 %v2860, 7
    %v2862 = vsub.s32 0, %v2861
    %v2863 = vrot.slane %v2858, %v2862
    %v2865 = vadd.f32 %v2714, %v2863
    %v2866 = vadd.f32 %v2715, %v2863
    %v2867 = vadd.f32 %v2716, %v2863
    %v2868 = vadd.f32 %v2717, %v2863
    %v2869 = vadd.f32 %v2718, %v2863
    %v2870 = vadd.f32 %v2719, %v2863
    %v2871 = vadd.f32 %v2720, %v2863
    %v2872 = vadd.f32 %v2721, %v2863
    %v2873 = vadd.f32 %v2722, %v2863
    %v2874 = vadd.f32 %v2723, %v2863
    %v2875 = vadd.f32 %v2724, %v2863
    %v2876 = vadd.f32 %v2725, %v2863
    %v2877 = vadd.f32 %v2726, %v2863
    %v2878 = vadd.f32 %v2727, %v2863
    %v2879 = vadd.f32 %v2728, %v2863
    %v2880 = vadd.f32 %v2729, %v2863
    %v2881 = vadd.f32 %v2730, %v2863
    %v2882 = vadd.f32 %v2731, %v2863
    %v2883 = vadd.f32 %v2732, %v2863
    %v2884 = vadd.f32 %v2733, %v2863
    %v2885 = vadd.f32 %v2734, %v2863
    %v2886 = vadd.f32 %v2735, %v2863
    %v2887 = vadd.f32 %v2736, %v2863
    %v2888 = vadd.f32 %v2737, %v2863
    %v2889 = vadd.f32 %v2738, %v2863
    %v2890 = vadd.f32 %v2739, %v2863
    %v2891 = vadd.f32 %v2740, %v2863
    %v2892 = vadd.f32 %v2741, %v2863
    %v2893 = vadd.f32 %v2742, %v2863
    %v2894 = vadd.f32 %v2743, %v2863
    %v2895 = vadd.f32 %v2744, %v2863
    %v2896 = vadd.f32 %v2745, %v2863
    %v2897 = vadd.f32 %v2746, %v2863
    %v2898 = vadd.f32 %v2747, %v2863
    %v2899 = vadd.f32 %v2748, %v2863
    %v2900 = vadd.f32 %v2749, %v2863
    %v2901 = vadd.f32 %v2750, %v2863
    %v2902 = vadd.f32 %v2751, %v2863
    %v2903 = vadd.f32 %v2752, %v2863
    %v2904 = vadd.f32 %v2753, %v2863
    %v2905 = vadd.f32 %v2754, %v2863
    %v2906 = vadd.f32 %v2755, %v2863
    %v2907 = vadd.f32 %v2756, %v2863
    %v2908 = vadd.f32 %v2757, %v2863
    %v2909 = vadd.f32 %v2758, %v2863
    %v2910 = vadd.f32 %v2759, %v2863
    %v2911 = vadd.f32 %v2760, %v2863
    %v2912 = vadd.f32 %v2761, %v2863
    %v2913 = vadd.f32 %v2762, %v2863
    %v2914 = vadd.f32 %v2763, %v2863
    %v2915 = vadd.f32 %v2764, %v2863
    %v2916 = vadd.f32 %v2765, %v2863
    %v2917 = vadd.f32 %v2766, %v2863
    %v2918 = vadd.f32 %v2767, %v2863
    %v2919 = vadd.f32 %v2768, %v2863
    %v2920 = vadd.f32 %v2769, %v2863
    %v2921 = vadd.f32 %v2770, %v2863
    %v2922 = vadd.f32 %v2771, %v2863
    %v2923 = vadd.f32 %v2772, %v2863
    %v2924 = vadd.f32 %v2773, %v2863
    %v2925 = vadd.f32 %v2774, %v2863
    %v2926 = vadd.f32 %v2775, %v2863
    %v2927 = vadd.f32 %v2776, %v2863
    %v2928 = vadd.f32 %v2777, %v2863
    %v2929 = vadd.f32 %v2778, %v2863
    %v2930 = vadd.f32 %v2779, %v2863
    %v2931 = vadd.f32 %v2780, %v2863
    %v2932 = vadd.f32 %v2781, %v2863
    %v2933 = vadd.f32 %v2782, %v2863
    %v2934 = vadd.f32 %v2783, %v2863
    %v2935 = vadd.f32 %v2784, %v2863
    %v2936 = vadd.f32 %v2785, %v2863
    %v2937 = vadd.f32 %v2786, %v2863
    %v2938 = vadd.f32 %v2787, %v2863
    %v2939 = vadd.f32 %v2788, %v2863
    %v2940 = vadd.f32 %v2789, %v2863
    %v2941 = vadd.f32 %v2790, %v2863
    %v2942 = vadd.f32 %v2791, %v2863
    %v2943 = vadd.f32 %v2792, %v2863
    %v2944 = vadd.f32 %v2793, %v2863
    %v2945 = vadd.f32 %v2794, %v2863
    %v2946 = vadd.f32 %v2795, %v2863
    %v2947 = vadd.f32 %v2796, %v2863
    %v2948 = vadd.f32 %v2797, %v2863
    %v2949 = vadd.f32 %v2798, %v2863
    %v2950 = vadd.f32 %v2799, %v2863
    %v2951 = vadd.f32 %v2800, %v2863
    %v2952 = vadd.f32 %v2801, %v2863
    %v2953 = vadd.f32 %v2802, %v2863
    %v2954 = vadd.f32 %v2803, %v2863
    %v2955 = vadd.f32 %v2804, %v2863
    %v2956 = vadd.f32 %v2805, %v2863
    %v2957 = vadd.f32 %v2806, %v2863
    %v2958 = vadd.f32 %v2807, %v2863
    %v2959 = vadd.f32 %v2808, %v2863
    %v2960 = vadd.f32 %v2809, %v2863
    %v2961 = vadd.f32 %v2810, %v2863
    %v2962 = vadd.f32 %v2811, %v2863
    %v2963 = vadd.f32 %v2812, %v2863
    %v2964 = vadd.f32 %v2813, %v2863
    %v2965 = vadd.f32 %v2814, %v2863
    %v2966 = vadd.f32 %v2815, %v2863
    %v2967 = vadd.f32 %v2816, %v2863
    %v2968 = vadd.f32 %v2817, %v2863
    %v2969 = vadd.f32 %v2818, %v2863
    %v2970 = vadd.f32 %v2819, %v2863
    %v2971 = vadd.f32 %v2820, %v2863
    %v2972 = vadd.f32 %v2821, %v2863
    %v2973 = vadd.f32 %v2822, %v2863
    %v2974 = vadd.f32 %v2823, %v2863
    %v2975 = vadd.f32 %v2824, %v2863
    %v2976 = vadd.f32 %v2825, %v2863
    %v2977 = vadd.f32 %v2826, %v2863
    %v2978 = vadd.f32 %v2827, %v2863
    %v2979 = vadd.f32 %v2828, %v2863
    %v2980 = vadd.f32 %v2829, %v2863
    %v2981 = vadd.f32 %v2830, %v2863
    %v2982 = vadd.f32 %v2831, %v2863
    %v2983 = vadd.f32 %v2832, %v2863
    %v2984 = vadd.f32 %v2833, %v2863
    %v2985 = vadd.f32 %v2834, %v2863
    %v2986 = vadd.f32 %v2835, %v2863
    %v2987 = vadd.f32 %v2836, %v2863
    %v2988 = vadd.f32 %v2837, %v2863
    %v2989 = vadd.f32 %v2838, %v2863
    %v2990 = vadd.f32 %v2839, %v2863
    %v2991 = vadd.f32 %v2840, %v2863
    %v2992 = vadd.f32 %v2841, %v2863
    %v2993 = vadd.f32 %v2842, %v2863
    %v2994 = vadd.f32 %v2843, %v2863
    %v2995 = vadd.f32 %v2844, %v2863
    %v2996 = vadd.f32 %v2845, %v2863
    %v2997 = vadd.f32 %v2846, %v2863
    %v2998 = vadd.f32 %v2847, %v2863
    %v2999 = vadd.f32 %v2848, %v2863
    %v3000 = vadd.f32 %v2849, %v2863
    %v3001 = vadd.f32 %v2850, %v2863
    %v3002 = vadd.f32 %v2851, %v2863
    %v3003 = vadd.f32 %v2852, %v2863
    %v3004 = vadd.f32 %v2853, %v2863
    %v3005 = vadd.f32 %v2854, %v2863
    %v3006 = vadd.f32 %v2855, %v2863
    %v3007 = vadd.f32 %v2856, %v2863
    %v3008 = vadd.f32 %v2857, %v2863
    %v3009 = vmax.f32 %v2865, 0.0
    %v3010 = vmax.f32 %v2866, 0.0
    %v3011 = vmax.f32 %v2867, 0.0
    %v3012 = vmax.f32 %v2868, 0.0
    %v3013 = vmax.f32 %v2869, 0.0
    %v3014 = vmax.f32 %v2870, 0.0
    %v3015 = vmax.f32 %v2871, 0.0
    %v3016 = vmax.f32 %v2872, 0.0
    %v3017 = vmax.f32 %v2873, 0.0
    %v3018 = vmax.f32 %v2874, 0.0
    %v3019 = vmax.f32 %v2875, 0.0
    %v3020 = vmax.f32 %v2876, 0.0
    %v3021 = vmax.f32 %v2877, 0.0
    %v3022 = vmax.f32 %v2878, 0.0
    %v3023 = vmax.f32 %v2879, 0.0
    %v3024 = vmax.f32 %v2880, 0.0
    %v3025 = vmax.f32 %v2881, 0.0
    %v3026 = vmax.f32 %v2882, 0.0
    %v3027 = vmax.f32 %v2883, 0.0
    %v3028 = vmax.f32 %v2884, 0.0
    %v3029 = vmax.f32 %v2885, 0.0
    %v3030 = vmax.f32 %v2886, 0.0
    %v3031 = vmax.f32 %v2887, 0.0
    %v3032 = vmax.f32 %v2888, 0.0
    %v3033 = vmax.f32 %v2889, 0.0
    %v3034 = vmax.f32 %v2890, 0.0
    %v3035 = vmax.f32 %v2891, 0.0
    %v3036 = vmax.f32 %v2892, 0.0
    %v3037 = vmax.f32 %v2893, 0.0
    %v3038 = vmax.f32 %v2894, 0.0
    %v3039 = vmax.f32 %v2895, 0.0
    %v3040 = vmax.f32 %v2896, 0.0
    %v3041 = vmax.f32 %v2897, 0.0
    %v3042 = vmax.f32 %v2898, 0.0
    %v3043 = vmax.f32 %v2899, 0.0
    %v3044 = vmax.f32 %v2900, 0.0
    %v3045 = vmax.f32 %v2901, 0.0
    %v3046 = vmax.f32 %v2902, 0.0
    %v3047 = vmax.f32 %v2903, 0.0
    %v3048 = vmax.f32 %v2904, 0.0
    %v3049 = vmax.f32 %v2905, 0.0
    %v3050 = vmax.f32 %v2906, 0.0
    %v3051 = vmax.f32 %v2907, 0.0
    %v3052 = vmax.f32 %v2908, 0.0
    %v3053 = vmax.f32 %v2909, 0.0
    %v3054 = vmax.f32 %v2910, 0.0
    %v3055 = vmax.f32 %v2911, 0.0
    %v3056 = vmax.f32 %v2912, 0.0
    %v3057 = vmax.f32 %v2913, 0.0
    %v3058 = vmax.f32 %v2914, 0.0
    %v3059 = vmax.f32 %v2915, 0.0
    %v3060 = vmax.f32 %v2916, 0.0
    %v3061 = vmax.f32 %v2917, 0.0
    %v3062 = vmax.f32 %v2918, 0.0
    %v3063 = vmax.f32 %v2919, 0.0
    %v3064 = vmax.f32 %v2920, 0.0
    %v3065 = vmax.f32 %v2921, 0.0
    %v3066 = vmax.f32 %v2922, 0.0
    %v3067 = vmax.f32 %v2923, 0.0
    %v3068 = vmax.f32 %v2924, 0.0
    %v3069 = vmax.f32 %v2925, 0.0
    %v3070 = vmax.f32 %v2926, 0.0
    %v3071 = vmax.f32 %v2927, 0.0
    %v3072 = vmax.f32 %v2928, 0.0
    %v3073 = vmax.f32 %v2929, 0.0
    %v3074 = vmax.f32 %v2930, 0.0
    %v3075 = vmax.f32 %v2931, 0.0
    %v3076 = vmax.f32 %v2932, 0.0
    %v3077 = vmax.f32 %v2933, 0.0
    %v3078 = vmax.f32 %v2934, 0.0
    %v3079 = vmax.f32 %v2935, 0.0
    %v3080 = vmax.f32 %v2936, 0.0
    %v3081 = vmax.f32 %v2937, 0.0
    %v3082 = vmax.f32 %v2938, 0.0
    %v3083 = vmax.f32 %v2939, 0.0
    %v3084 = vmax.f32 %v2940, 0.0
    %v3085 = vmax.f32 %v2941, 0.0
    %v3086 = vmax.f32 %v2942, 0.0
    %v3087 = vmax.f32 %v2943, 0.0
    %v3088 = vmax.f32 %v2944, 0.0
    %v3089 = vmax.f32 %v2945, 0.0
    %v3090 = vmax.f32 %v2946, 0.0
    %v3091 = vmax.f32 %v2947, 0.0
    %v3092 = vmax.f32 %v2948, 0.0
    %v3093 = vmax.f32 %v2949, 0.0
    %v3094 = vmax.f32 %v2950, 0.0
    %v3095 = vmax.f32 %v2951, 0.0
    %v3096 = vmax.f32 %v2952, 0.0
    %v3097 = vmax.f32 %v2953, 0.0
    %v3098 = vmax.f32 %v2954, 0.0
    %v3099 = vmax.f32 %v2955, 0.0
    %v3100 = vmax.f32 %v2956, 0.0
    %v3101 = vmax.f32 %v2957, 0.0
    %v3102 = vmax.f32 %v2958, 0.0
    %v3103 = vmax.f32 %v2959, 0.0
    %v3104 = vmax.f32 %v2960, 0.0
    %v3105 = vmax.f32 %v2961, 0.0
    %v3106 = vmax.f32 %v2962, 0.0
    %v3107 = vmax.f32 %v2963, 0.0
    %v3108 = vmax.f32 %v2964, 0.0
    %v3109 = vmax.f32 %v2965, 0.0
    %v3110 = vmax.f32 %v2966, 0.0
    %v3111 = vmax.f32 %v2967, 0.0
    %v3112 = vmax.f32 %v2968, 0.0
    %v3113 = vmax.f32 %v2969, 0.0
    %v3114 = vmax.f32 %v2970, 0.0
    %v3115 = vmax.f32 %v2971, 0.0
    %v3116 = vmax.f32 %v2972, 0.0
    %v3117 = vmax.f32 %v2973, 0.0
    %v3118 = vmax.f32 %v2974, 0.0
    %v3119 = vmax.f32 %v2975, 0.0
    %v3120 = vmax.f32 %v2976, 0.0
    %v3121 = vmax.f32 %v2977, 0.0
    %v3122 = vmax.f32 %v2978, 0.0
    %v3123 = vmax.f32 %v2979, 0.0
    %v3124 = vmax.f32 %v2980, 0.0
    %v3125 = vmax.f32 %v2981, 0.0
    %v3126 = vmax.f32 %v2982, 0.0
    %v3127 = vmax.f32 %v2983, 0.0
    %v3128 = vmax.f32 %v2984, 0.0
    %v3129 = vmax.f32 %v2985, 0.0
    %v3130 = vmax.f32 %v2986, 0.0
    %v3131 = vmax.f32 %v2987, 0.0
    %v3132 = vmax.f32 %v2988, 0.0
    %v3133 = vmax.f32 %v2989, 0.0
    %v3134 = vmax.f32 %v2990, 0.0
    %v3135 = vmax.f32 %v2991, 0.0
    %v3136 = vmax.f32 %v2992, 0.0
    %v3137 = vmax.f32 %v2993, 0.0
    %v3138 = vmax.f32 %v2994, 0.0
    %v3139 = vmax.f32 %v2995, 0.0
    %v3140 = vmax.f32 %v2996, 0.0
    %v3141 = vmax.f32 %v2997, 0.0
    %v3142 = vmax.f32 %v2998, 0.0
    %v3143 = vmax.f32 %v2999, 0.0
    %v3144 = vmax.f32 %v3000, 0.0
    %v3145 = vmax.f32 %v3001, 0.0
    %v3146 = vmax.f32 %v3002, 0.0
    %v3147 = vmax.f32 %v3003, 0.0
    %v3148 = vmax.f32 %v3004, 0.0
    %v3149 = vmax.f32 %v3005, 0.0
    %v3150 = vmax.f32 %v3006, 0.0
    %v3151 = vmax.f32 %v3007, 0.0
    %v3152 = vmax.f32 %v3008, 0.0
    %3169 = vrot.lane.b32.xlu0 %v3045, 6
    %v3170 = vpop.permute.xlu0 %3169
    %3171 = vrot.lane.b32.xlu0 %v3046, 6
    %v3172 = vpop.permute.xlu0 %3171
    %3173 = vrot.lane.b32.xlu0 %v3047, 6
    %v3174 = vpop.permute.xlu0 %3173
    %3175 = vrot.lane.b32.xlu0 %v3048, 6
    %v3176 = vpop.permute.xlu0 %3175
    %3177 = vrot.lane.b32.xlu0 %v3051, 6
    %v3178 = vpop.permute.xlu0 %3177
    %3179 = vrot.lane.b32.xlu0 %v3052, 6
    %v3180 = vpop.permute.xlu0 %3179
    %3181 = vrot.lane.b32.xlu0 %v3053, 6
    %v3182 = vpop.permute.xlu0 %3181
    %3183 = vrot.lane.b32.xlu0 %v3054, 6
    %v3184 = vpop.permute.xlu0 %3183
    %3185 = vrot.lane.b32.xlu0 %v3057, 6
    %v3186 = vpop.permute.xlu0 %3185
    %3187 = vrot.lane.b32.xlu0 %v3058, 6
    %v3188 = vpop.permute.xlu0 %3187
    %3189 = vrot.lane.b32.xlu0 %v3059, 6
    %v3190 = vpop.permute.xlu0 %3189
    %3191 = vrot.lane.b32.xlu0 %v3060, 6
    %v3192 = vpop.permute.xlu0 %3191
    %3193 = vrot.lane.b32.xlu0 %v3063, 6
    %v3194 = vpop.permute.xlu0 %3193
    %3195 = vrot.lane.b32.xlu0 %v3064, 6
    %v3196 = vpop.permute.xlu0 %3195
    %3197 = vrot.lane.b32.xlu0 %v3065, 6
    %v3198 = vpop.permute.xlu0 %3197
    %3199 = vrot.lane.b32.xlu0 %v3066, 6
    %v3200 = vpop.permute.xlu0 %3199
    %3233 = vrot.lane.b32.xlu0 %v3010, 12
    %v3234 = vpop.permute.xlu0 %3233
    %3235 = vrot.lane.b32.xlu0 %v3011, 12
    %v3236 = vpop.permute.xlu0 %3235
    %3237 = vrot.lane.b32.xlu0 %v3012, 12
    %v3238 = vpop.permute.xlu0 %3237
    %3239 = vrot.lane.b32.xlu0 %v3013, 12
    %v3240 = vpop.permute.xlu0 %3239
    %3241 = vrot.lane.b32.xlu0 %v3016, 12
    %v3242 = vpop.permute.xlu0 %3241
    %3243 = vrot.lane.b32.xlu0 %v3017, 12
    %v3244 = vpop.permute.xlu0 %3243
    %3245 = vrot.lane.b32.xlu0 %v3018, 12
    %v3246 = vpop.permute.xlu0 %3245
    %3247 = vrot.lane.b32.xlu0 %v3019, 12
    %v3248 = vpop.permute.xlu0 %3247
    %3249 = vrot.lane.b32.xlu0 %v3022, 12
    %v3250 = vpop.permute.xlu0 %3249
    %3251 = vrot.lane.b32.xlu0 %v3023, 12
    %v3252 = vpop.permute.xlu0 %3251
    %3253 = vrot.lane.b32.xlu0 %v3024, 12
    %v3254 = vpop.permute.xlu0 %3253
    %3255 = vrot.lane.b32.xlu0 %v3025, 12
    %v3256 = vpop.permute.xlu0 %3255
    %3257 = vrot.lane.b32.xlu0 %v3028, 12
    %v3258 = vpop.permute.xlu0 %3257
    %3259 = vrot.lane.b32.xlu0 %v3029, 12
    %v3260 = vpop.permute.xlu0 %3259
    %3261 = vrot.lane.b32.xlu0 %v3030, 12
    %v3262 = vpop.permute.xlu0 %3261
    %3263 = vrot.lane.b32.xlu0 %v3031, 12
    %v3264 = vpop.permute.xlu0 %3263
    %3285 = vrot.lane.b32.xlu0 %v3046, 18
    %v3286 = vpop.permute.xlu0 %3285
    %3287 = vrot.lane.b32.xlu0 %v3047, 18
    %v3288 = vpop.permute.xlu0 %3287
    %3289 = vrot.lane.b32.xlu0 %v3048, 18
    %v3290 = vpop.permute.xlu0 %3289
    %3291 = vrot.lane.b32.xlu0 %v3049, 18
    %v3292 = vpop.permute.xlu0 %3291
    %3293 = vrot.lane.b32.xlu0 %v3052, 18
    %v3294 = vpop.permute.xlu0 %3293
    %3295 = vrot.lane.b32.xlu0 %v3053, 18
    %v3296 = vpop.permute.xlu0 %3295
    %3297 = vrot.lane.b32.xlu0 %v3054, 18
    %v3298 = vpop.permute.xlu0 %3297
    %3299 = vrot.lane.b32.xlu0 %v3055, 18
    %v3300 = vpop.permute.xlu0 %3299
    %3301 = vrot.lane.b32.xlu0 %v3058, 18
    %v3302 = vpop.permute.xlu0 %3301
    %3303 = vrot.lane.b32.xlu0 %v3059, 18
    %v3304 = vpop.permute.xlu0 %3303
    %3305 = vrot.lane.b32.xlu0 %v3060, 18
    %v3306 = vpop.permute.xlu0 %3305
    %3307 = vrot.lane.b32.xlu0 %v3061, 18
    %v3308 = vpop.permute.xlu0 %3307
    %3309 = vrot.lane.b32.xlu0 %v3064, 18
    %v3310 = vpop.permute.xlu0 %3309
    %3311 = vrot.lane.b32.xlu0 %v3065, 18
    %v3312 = vpop.permute.xlu0 %3311
    %3313 = vrot.lane.b32.xlu0 %v3066, 18
    %v3314 = vpop.permute.xlu0 %3313
    %3315 = vrot.lane.b32.xlu0 %v3067, 18
    %v3316 = vpop.permute.xlu0 %3315
    %3337 = vrot.lane.b32.xlu0 %v3011, 24
    %v3338 = vpop.permute.xlu0 %3337
    %3339 = vrot.lane.b32.xlu0 %v3012, 24
    %v3340 = vpop.permute.xlu0 %3339
    %3341 = vrot.lane.b32.xlu0 %v3013, 24
    %v3342 = vpop.permute.xlu0 %3341
    %3343 = vrot.lane.b32.xlu0 %v3014, 24
    %v3344 = vpop.permute.xlu0 %3343
    %3345 = vrot.lane.b32.xlu0 %v3017, 24
    %v3346 = vpop.permute.xlu0 %3345
    %3347 = vrot.lane.b32.xlu0 %v3018, 24
    %v3348 = vpop.permute.xlu0 %3347
    %3349 = vrot.lane.b32.xlu0 %v3019, 24
    %v3350 = vpop.permute.xlu0 %3349
    %3351 = vrot.lane.b32.xlu0 %v3020, 24
    %v3352 = vpop.permute.xlu0 %3351
    %3353 = vrot.lane.b32.xlu0 %v3023, 24
    %v3354 = vpop.permute.xlu0 %3353
    %3355 = vrot.lane.b32.xlu0 %v3024, 24
    %v3356 = vpop.permute.xlu0 %3355
    %3357 = vrot.lane.b32.xlu0 %v3025, 24
    %v3358 = vpop.permute.xlu0 %3357
    %3359 = vrot.lane.b32.xlu0 %v3026, 24
    %v3360 = vpop.permute.xlu0 %3359
    %3361 = vrot.lane.b32.xlu0 %v3029, 24
    %v3362 = vpop.permute.xlu0 %3361
    %3363 = vrot.lane.b32.xlu0 %v3030, 24
    %v3364 = vpop.permute.xlu0 %3363
    %3365 = vrot.lane.b32.xlu0 %v3031, 24
    %v3366 = vpop.permute.xlu0 %3365
    %3367 = vrot.lane.b32.xlu0 %v3032, 24
    %v3368 = vpop.permute.xlu0 %3367
    %3401 = vrot.lane.b32.xlu0 %v3081, 30
    %v3402 = vpop.permute.xlu0 %3401
    %3403 = vrot.lane.b32.xlu0 %v3082, 30
    %v3404 = vpop.permute.xlu0 %3403
    %3405 = vrot.lane.b32.xlu0 %v3083, 30
    %v3406 = vpop.permute.xlu0 %3405
    %3407 = vrot.lane.b32.xlu0 %v3084, 30
    %v3408 = vpop.permute.xlu0 %3407
    %3409 = vrot.lane.b32.xlu0 %v3087, 30
    %v3410 = vpop.permute.xlu0 %3409
    %3411 = vrot.lane.b32.xlu0 %v3088, 30
    %v3412 = vpop.permute.xlu0 %3411
    %3413 = vrot.lane.b32.xlu0 %v3089, 30
    %v3414 = vpop.permute.xlu0 %3413
    %3415 = vrot.lane.b32.xlu0 %v3090, 30
    %v3416 = vpop.permute.xlu0 %3415
    %3417 = vrot.lane.b32.xlu0 %v3093, 30
    %v3418 = vpop.permute.xlu0 %3417
    %3419 = vrot.lane.b32.xlu0 %v3094, 30
    %v3420 = vpop.permute.xlu0 %3419
    %3421 = vrot.lane.b32.xlu0 %v3095, 30
    %v3422 = vpop.permute.xlu0 %3421
    %3423 = vrot.lane.b32.xlu0 %v3096, 30
    %v3424 = vpop.permute.xlu0 %3423
    %3425 = vrot.lane.b32.xlu0 %v3099, 30
    %v3426 = vpop.permute.xlu0 %3425
    %3427 = vrot.lane.b32.xlu0 %v3100, 30
    %v3428 = vpop.permute.xlu0 %3427
    %3429 = vrot.lane.b32.xlu0 %v3101, 30
    %v3430 = vpop.permute.xlu0 %3429
    %3431 = vrot.lane.b32.xlu0 %v3102, 30
    %v3432 = vpop.permute.xlu0 %3431
    %3465 = vrot.lane.b32.xlu0 %v3117, 36
    %v3466 = vpop.permute.xlu0 %3465
    %3467 = vrot.lane.b32.xlu0 %v3118, 36
    %v3468 = vpop.permute.xlu0 %3467
    %3469 = vrot.lane.b32.xlu0 %v3119, 36
    %v3470 = vpop.permute.xlu0 %3469
    %3471 = vrot.lane.b32.xlu0 %v3120, 36
    %v3472 = vpop.permute.xlu0 %3471
    %3473 = vrot.lane.b32.xlu0 %v3123, 36
    %v3474 = vpop.permute.xlu0 %3473
    %3475 = vrot.lane.b32.xlu0 %v3124, 36
    %v3476 = vpop.permute.xlu0 %3475
    %3477 = vrot.lane.b32.xlu0 %v3125, 36
    %v3478 = vpop.permute.xlu0 %3477
    %3479 = vrot.lane.b32.xlu0 %v3126, 36
    %v3480 = vpop.permute.xlu0 %3479
    %3481 = vrot.lane.b32.xlu0 %v3129, 36
    %v3482 = vpop.permute.xlu0 %3481
    %3483 = vrot.lane.b32.xlu0 %v3130, 36
    %v3484 = vpop.permute.xlu0 %3483
    %3485 = vrot.lane.b32.xlu0 %v3131, 36
    %v3486 = vpop.permute.xlu0 %3485
    %3487 = vrot.lane.b32.xlu0 %v3132, 36
    %v3488 = vpop.permute.xlu0 %3487
    %3489 = vrot.lane.b32.xlu0 %v3135, 36
    %v3490 = vpop.permute.xlu0 %3489
    %3491 = vrot.lane.b32.xlu0 %v3136, 36
    %v3492 = vpop.permute.xlu0 %3491
    %3493 = vrot.lane.b32.xlu0 %v3137, 36
    %v3494 = vpop.permute.xlu0 %3493
    %3495 = vrot.lane.b32.xlu0 %v3138, 36
    %v3496 = vpop.permute.xlu0 %3495
    %3517 = vrot.lane.b32.xlu0 %v3082, 42
    %v3518 = vpop.permute.xlu0 %3517
    %3519 = vrot.lane.b32.xlu0 %v3083, 42
    %v3520 = vpop.permute.xlu0 %3519
    %3521 = vrot.lane.b32.xlu0 %v3084, 42
    %v3522 = vpop.permute.xlu0 %3521
    %3523 = vrot.lane.b32.xlu0 %v3085, 42
    %v3524 = vpop.permute.xlu0 %3523
    %3525 = vrot.lane.b32.xlu0 %v3088, 42
    %v3526 = vpop.permute.xlu0 %3525
    %3527 = vrot.lane.b32.xlu0 %v3089, 42
    %v3528 = vpop.permute.xlu0 %3527
    %3529 = vrot.lane.b32.xlu0 %v3090, 42
    %v3530 = vpop.permute.xlu0 %3529
    %3531 = vrot.lane.b32.xlu0 %v3091, 42
    %v3532 = vpop.permute.xlu0 %3531
    %3533 = vrot.lane.b32.xlu0 %v3094, 42
    %v3534 = vpop.permute.xlu0 %3533
    %3535 = vrot.lane.b32.xlu0 %v3095, 42
    %v3536 = vpop.permute.xlu0 %3535
    %3537 = vrot.lane.b32.xlu0 %v3096, 42
    %v3538 = vpop.permute.xlu0 %3537
    %3539 = vrot.lane.b32.xlu0 %v3097, 42
    %v3540 = vpop.permute.xlu0 %3539
    %3541 = vrot.lane.b32.xlu0 %v3100, 42
    %v3542 = vpop.permute.xlu0 %3541
    %3543 = vrot.lane.b32.xlu0 %v3101, 42
    %v3544 = vpop.permute.xlu0 %3543
    %3545 = vrot.lane.b32.xlu0 %v3102, 42
    %v3546 = vpop.permute.xlu0 %3545
    %3547 = vrot.lane.b32.xlu0 %v3103, 42
    %v3548 = vpop.permute.xlu0 %3547
    %3569 = vrot.lane.b32.xlu0 %v3118, 48
    %v3570 = vpop.permute.xlu0 %3569
    %3571 = vrot.lane.b32.xlu0 %v3119, 48
    %v3572 = vpop.permute.xlu0 %3571
    %3573 = vrot.lane.b32.xlu0 %v3120, 48
    %v3574 = vpop.permute.xlu0 %3573
    %3575 = vrot.lane.b32.xlu0 %v3121, 48
    %v3576 = vpop.permute.xlu0 %3575
    %3577 = vrot.lane.b32.xlu0 %v3124, 48
    %v3578 = vpop.permute.xlu0 %3577
    %3579 = vrot.lane.b32.xlu0 %v3125, 48
    %v3580 = vpop.permute.xlu0 %3579
    %3581 = vrot.lane.b32.xlu0 %v3126, 48
    %v3582 = vpop.permute.xlu0 %3581
    %3583 = vrot.lane.b32.xlu0 %v3127, 48
    %v3584 = vpop.permute.xlu0 %3583
    %3585 = vrot.lane.b32.xlu0 %v3130, 48
    %v3586 = vpop.permute.xlu0 %3585
    %3587 = vrot.lane.b32.xlu0 %v3131, 48
    %v3588 = vpop.permute.xlu0 %3587
    %3589 = vrot.lane.b32.xlu0 %v3132, 48
    %v3590 = vpop.permute.xlu0 %3589
    %3591 = vrot.lane.b32.xlu0 %v3133, 48
    %v3592 = vpop.permute.xlu0 %3591
    %3593 = vrot.lane.b32.xlu0 %v3136, 48
    %v3594 = vpop.permute.xlu0 %3593
    %3595 = vrot.lane.b32.xlu0 %v3137, 48
    %v3596 = vpop.permute.xlu0 %3595
    %3597 = vrot.lane.b32.xlu0 %v3138, 48
    %v3598 = vpop.permute.xlu0 %3597
    %3599 = vrot.lane.b32.xlu0 %v3139, 48
    %v3600 = vpop.permute.xlu0 %3599
    %3621 = vrot.lane.b32.xlu0 %v3083, 54
    %v3622 = vpop.permute.xlu0 %3621
    %3623 = vrot.lane.b32.xlu0 %v3084, 54
    %v3624 = vpop.permute.xlu0 %3623
    %3625 = vrot.lane.b32.xlu0 %v3085, 54
    %v3626 = vpop.permute.xlu0 %3625
    %3627 = vrot.lane.b32.xlu0 %v3086, 54
    %v3628 = vpop.permute.xlu0 %3627
    %3629 = vrot.lane.b32.xlu0 %v3089, 54
    %v3630 = vpop.permute.xlu0 %3629
    %3631 = vrot.lane.b32.xlu0 %v3090, 54
    %v3632 = vpop.permute.xlu0 %3631
    %3633 = vrot.lane.b32.xlu0 %v3091, 54
    %v3634 = vpop.permute.xlu0 %3633
    %3635 = vrot.lane.b32.xlu0 %v3092, 54
    %v3636 = vpop.permute.xlu0 %3635
    %3637 = vrot.lane.b32.xlu0 %v3095, 54
    %v3638 = vpop.permute.xlu0 %3637
    %3639 = vrot.lane.b32.xlu0 %v3096, 54
    %v3640 = vpop.permute.xlu0 %3639
    %3641 = vrot.lane.b32.xlu0 %v3097, 54
    %v3642 = vpop.permute.xlu0 %3641
    %3643 = vrot.lane.b32.xlu0 %v3098, 54
    %v3644 = vpop.permute.xlu0 %3643
    %3645 = vrot.lane.b32.xlu0 %v3101, 54
    %v3646 = vpop.permute.xlu0 %3645
    %3647 = vrot.lane.b32.xlu0 %v3102, 54
    %v3648 = vpop.permute.xlu0 %3647
    %3649 = vrot.lane.b32.xlu0 %v3103, 54
    %v3650 = vpop.permute.xlu0 %3649
    %3651 = vrot.lane.b32.xlu0 %v3104, 54
    %v3652 = vpop.permute.xlu0 %3651
    %3676 = vrot.lane.b32.xlu0 %v3015, 60
    %v3677 = vpop.permute.xlu0 %3676
    %3678 = vrot.lane.b32.xlu0 %v3016, 60
    %v3679 = vpop.permute.xlu0 %3678
    %3680 = vrot.lane.b32.xlu0 %v3017, 60
    %v3681 = vpop.permute.xlu0 %3680
    %3682 = vrot.lane.b32.xlu0 %v3018, 60
    %v3683 = vpop.permute.xlu0 %3682
    %3684 = vrot.lane.b32.xlu0 %v3021, 60
    %v3685 = vpop.permute.xlu0 %3684
    %3686 = vrot.lane.b32.xlu0 %v3022, 60
    %v3687 = vpop.permute.xlu0 %3686
    %3688 = vrot.lane.b32.xlu0 %v3023, 60
    %v3689 = vpop.permute.xlu0 %3688
    %3690 = vrot.lane.b32.xlu0 %v3024, 60
    %v3691 = vpop.permute.xlu0 %3690
    %3692 = vrot.lane.b32.xlu0 %v3027, 60
    %v3693 = vpop.permute.xlu0 %3692
    %3694 = vrot.lane.b32.xlu0 %v3028, 60
    %v3695 = vpop.permute.xlu0 %3694
    %3696 = vrot.lane.b32.xlu0 %v3029, 60
    %v3697 = vpop.permute.xlu0 %3696
    %3698 = vrot.lane.b32.xlu0 %v3030, 60
    %v3699 = vpop.permute.xlu0 %3698
    %3700 = vrot.lane.b32.xlu0 %v3033, 60
    %v3701 = vpop.permute.xlu0 %3700
    %3702 = vrot.lane.b32.xlu0 %v3034, 60
    %v3703 = vpop.permute.xlu0 %3702
    %3704 = vrot.lane.b32.xlu0 %v3035, 60
    %v3705 = vpop.permute.xlu0 %3704
    %3706 = vrot.lane.b32.xlu0 %v3036, 60
    %v3707 = vpop.permute.xlu0 %3706
    %3728 = vrot.lane.b32.xlu0 %v3051, 66
    %v3729 = vpop.permute.xlu0 %3728
    %3730 = vrot.lane.b32.xlu0 %v3052, 66
    %v3731 = vpop.permute.xlu0 %3730
    %3732 = vrot.lane.b32.xlu0 %v3053, 66
    %v3733 = vpop.permute.xlu0 %3732
    %3734 = vrot.lane.b32.xlu0 %v3054, 66
    %v3735 = vpop.permute.xlu0 %3734
    %3736 = vrot.lane.b32.xlu0 %v3057, 66
    %v3737 = vpop.permute.xlu0 %3736
    %3738 = vrot.lane.b32.xlu0 %v3058, 66
    %v3739 = vpop.permute.xlu0 %3738
    %3740 = vrot.lane.b32.xlu0 %v3059, 66
    %v3741 = vpop.permute.xlu0 %3740
    %3742 = vrot.lane.b32.xlu0 %v3060, 66
    %v3743 = vpop.permute.xlu0 %3742
    %3744 = vrot.lane.b32.xlu0 %v3063, 66
    %v3745 = vpop.permute.xlu0 %3744
    %3746 = vrot.lane.b32.xlu0 %v3064, 66
    %v3747 = vpop.permute.xlu0 %3746
    %3748 = vrot.lane.b32.xlu0 %v3065, 66
    %v3749 = vpop.permute.xlu0 %3748
    %3750 = vrot.lane.b32.xlu0 %v3066, 66
    %v3751 = vpop.permute.xlu0 %3750
    %3752 = vrot.lane.b32.xlu0 %v3069, 66
    %v3753 = vpop.permute.xlu0 %3752
    %3754 = vrot.lane.b32.xlu0 %v3070, 66
    %v3755 = vpop.permute.xlu0 %3754
    %3756 = vrot.lane.b32.xlu0 %v3071, 66
    %v3757 = vpop.permute.xlu0 %3756
    %3758 = vrot.lane.b32.xlu0 %v3072, 66
    %v3759 = vpop.permute.xlu0 %3758
    %3777 = vrot.lane.b32.xlu0 %v3016, 72
    %v3778 = vpop.permute.xlu0 %3777
    %3779 = vrot.lane.b32.xlu0 %v3017, 72
    %v3780 = vpop.permute.xlu0 %3779
    %3781 = vrot.lane.b32.xlu0 %v3018, 72
    %v3782 = vpop.permute.xlu0 %3781
    %3783 = vrot.lane.b32.xlu0 %v3019, 72
    %v3784 = vpop.permute.xlu0 %3783
    %3785 = vrot.lane.b32.xlu0 %v3022, 72
    %v3786 = vpop.permute.xlu0 %3785
    %3787 = vrot.lane.b32.xlu0 %v3023, 72
    %v3788 = vpop.permute.xlu0 %3787
    %3789 = vrot.lane.b32.xlu0 %v3024, 72
    %v3790 = vpop.permute.xlu0 %3789
    %3791 = vrot.lane.b32.xlu0 %v3025, 72
    %v3792 = vpop.permute.xlu0 %3791
    %3793 = vrot.lane.b32.xlu0 %v3028, 72
    %v3794 = vpop.permute.xlu0 %3793
    %3795 = vrot.lane.b32.xlu0 %v3029, 72
    %v3796 = vpop.permute.xlu0 %3795
    %3797 = vrot.lane.b32.xlu0 %v3030, 72
    %v3798 = vpop.permute.xlu0 %3797
    %3799 = vrot.lane.b32.xlu0 %v3031, 72
    %v3800 = vpop.permute.xlu0 %3799
    %3801 = vrot.lane.b32.xlu0 %v3034, 72
    %v3802 = vpop.permute.xlu0 %3801
    %3803 = vrot.lane.b32.xlu0 %v3035, 72
    %v3804 = vpop.permute.xlu0 %3803
    %3805 = vrot.lane.b32.xlu0 %v3036, 72
    %v3806 = vpop.permute.xlu0 %3805
    %3807 = vrot.lane.b32.xlu0 %v3037, 72
    %v3808 = vpop.permute.xlu0 %3807
    %3826 = vrot.lane.b32.xlu0 %v3052, 78
    %v3827 = vpop.permute.xlu0 %3826
    %3828 = vrot.lane.b32.xlu0 %v3053, 78
    %v3829 = vpop.permute.xlu0 %3828
    %3830 = vrot.lane.b32.xlu0 %v3054, 78
    %v3831 = vpop.permute.xlu0 %3830
    %3832 = vrot.lane.b32.xlu0 %v3055, 78
    %v3833 = vpop.permute.xlu0 %3832
    %3834 = vrot.lane.b32.xlu0 %v3058, 78
    %v3835 = vpop.permute.xlu0 %3834
    %3836 = vrot.lane.b32.xlu0 %v3059, 78
    %v3837 = vpop.permute.xlu0 %3836
    %3838 = vrot.lane.b32.xlu0 %v3060, 78
    %v3839 = vpop.permute.xlu0 %3838
    %3840 = vrot.lane.b32.xlu0 %v3061, 78
    %v3841 = vpop.permute.xlu0 %3840
    %3842 = vrot.lane.b32.xlu0 %v3064, 78
    %v3843 = vpop.permute.xlu0 %3842
    %3844 = vrot.lane.b32.xlu0 %v3065, 78
    %v3845 = vpop.permute.xlu0 %3844
    %3846 = vrot.lane.b32.xlu0 %v3066, 78
    %v3847 = vpop.permute.xlu0 %3846
    %3848 = vrot.lane.b32.xlu0 %v3067, 78
    %v3849 = vpop.permute.xlu0 %3848
    %3850 = vrot.lane.b32.xlu0 %v3070, 78
    %v3851 = vpop.permute.xlu0 %3850
    %3852 = vrot.lane.b32.xlu0 %v3071, 78
    %v3853 = vpop.permute.xlu0 %3852
    %3854 = vrot.lane.b32.xlu0 %v3072, 78
    %v3855 = vpop.permute.xlu0 %3854
    %3856 = vrot.lane.b32.xlu0 %v3073, 78
    %v3857 = vpop.permute.xlu0 %3856
    %3875 = vrot.lane.b32.xlu0 %v3017, 84
    %v3876 = vpop.permute.xlu0 %3875
    %3877 = vrot.lane.b32.xlu0 %v3018, 84
    %v3878 = vpop.permute.xlu0 %3877
    %3879 = vrot.lane.b32.xlu0 %v3019, 84
    %v3880 = vpop.permute.xlu0 %3879
    %3881 = vrot.lane.b32.xlu0 %v3020, 84
    %v3882 = vpop.permute.xlu0 %3881
    %3883 = vrot.lane.b32.xlu0 %v3023, 84
    %v3884 = vpop.permute.xlu0 %3883
    %3885 = vrot.lane.b32.xlu0 %v3024, 84
    %v3886 = vpop.permute.xlu0 %3885
    %3887 = vrot.lane.b32.xlu0 %v3025, 84
    %v3888 = vpop.permute.xlu0 %3887
    %3889 = vrot.lane.b32.xlu0 %v3026, 84
    %v3890 = vpop.permute.xlu0 %3889
    %3891 = vrot.lane.b32.xlu0 %v3029, 84
    %v3892 = vpop.permute.xlu0 %3891
    %3893 = vrot.lane.b32.xlu0 %v3030, 84
    %v3894 = vpop.permute.xlu0 %3893
    %3895 = vrot.lane.b32.xlu0 %v3031, 84
    %v3896 = vpop.permute.xlu0 %3895
    %3897 = vrot.lane.b32.xlu0 %v3032, 84
    %v3898 = vpop.permute.xlu0 %3897
    %3899 = vrot.lane.b32.xlu0 %v3035, 84
    %v3900 = vpop.permute.xlu0 %3899
    %3901 = vrot.lane.b32.xlu0 %v3036, 84
    %v3902 = vpop.permute.xlu0 %3901
    %3903 = vrot.lane.b32.xlu0 %v3037, 84
    %v3904 = vpop.permute.xlu0 %3903
    %3905 = vrot.lane.b32.xlu0 %v3038, 84
    %v3906 = vpop.permute.xlu0 %3905
    %3927 = vrot.lane.b32.xlu0 %v3087, 90
    %v3928 = vpop.permute.xlu0 %3927
    %3929 = vrot.lane.b32.xlu0 %v3088, 90
    %v3930 = vpop.permute.xlu0 %3929
    %3931 = vrot.lane.b32.xlu0 %v3089, 90
    %v3932 = vpop.permute.xlu0 %3931
    %3933 = vrot.lane.b32.xlu0 %v3090, 90
    %v3934 = vpop.permute.xlu0 %3933
    %3935 = vrot.lane.b32.xlu0 %v3093, 90
    %v3936 = vpop.permute.xlu0 %3935
    %3937 = vrot.lane.b32.xlu0 %v3094, 90
    %v3938 = vpop.permute.xlu0 %3937
    %3939 = vrot.lane.b32.xlu0 %v3095, 90
    %v3940 = vpop.permute.xlu0 %3939
    %3941 = vrot.lane.b32.xlu0 %v3096, 90
    %v3942 = vpop.permute.xlu0 %3941
    %3943 = vrot.lane.b32.xlu0 %v3099, 90
    %v3944 = vpop.permute.xlu0 %3943
    %3945 = vrot.lane.b32.xlu0 %v3100, 90
    %v3946 = vpop.permute.xlu0 %3945
    %3947 = vrot.lane.b32.xlu0 %v3101, 90
    %v3948 = vpop.permute.xlu0 %3947
    %3949 = vrot.lane.b32.xlu0 %v3102, 90
    %v3950 = vpop.permute.xlu0 %3949
    %3951 = vrot.lane.b32.xlu0 %v3105, 90
    %v3952 = vpop.permute.xlu0 %3951
    %3953 = vrot.lane.b32.xlu0 %v3106, 90
    %v3954 = vpop.permute.xlu0 %3953
    %3955 = vrot.lane.b32.xlu0 %v3107, 90
    %v3956 = vpop.permute.xlu0 %3955
    %3957 = vrot.lane.b32.xlu0 %v3108, 90
    %v3958 = vpop.permute.xlu0 %3957
    %vm3975 = vcmask 48128
    %v3976 = vsel %vm3975, %v3009, %v3170
    %v3977 = vsel %vm3975, %v3010, %v3172
    %v3978 = vsel %vm3975, %v3011, %v3174
    %v3979 = vsel %vm3975, %v3012, %v3176
    %v3980 = vsel %vm3975, %v3015, %v3178
    %v3981 = vsel %vm3975, %v3016, %v3180
    %v3982 = vsel %vm3975, %v3017, %v3182
    %v3983 = vsel %vm3975, %v3018, %v3184
    %v3984 = vsel %vm3975, %v3021, %v3186
    %v3985 = vsel %vm3975, %v3022, %v3188
    %v3986 = vsel %vm3975, %v3023, %v3190
    %v3987 = vsel %vm3975, %v3024, %v3192
    %v3988 = vsel %vm3975, %v3027, %v3194
    %v3989 = vsel %vm3975, %v3028, %v3196
    %v3990 = vsel %vm3975, %v3029, %v3198
    %v3991 = vsel %vm3975, %v3030, %v3200
    %vm3992 = vcmask 97280
    %v3993 = vsel %vm3992, %v3976, %v3234
    %v3994 = vsel %vm3992, %v3977, %v3236
    %v3995 = vsel %vm3992, %v3978, %v3238
    %v3996 = vsel %vm3992, %v3979, %v3240
    %v3997 = vsel %vm3992, %v3980, %v3242
    %v3998 = vsel %vm3992, %v3981, %v3244
    %v3999 = vsel %vm3992, %v3982, %v3246
    %v4000 = vsel %vm3992, %v3983, %v3248
    %v4001 = vsel %vm3992, %v3984, %v3250
    %v4002 = vsel %vm3992, %v3985, %v3252
    %v4003 = vsel %vm3992, %v3986, %v3254
    %v4004 = vsel %vm3992, %v3987, %v3256
    %v4005 = vsel %vm3992, %v3988, %v3258
    %v4006 = vsel %vm3992, %v3989, %v3260
    %v4007 = vsel %vm3992, %v3990, %v3262
    %v4008 = vsel %vm3992, %v3991, %v3264
    %vm4009 = vcmask 146432
    %v4010 = vsel %vm4009, %v3993, %v3286
    %v4011 = vsel %vm4009, %v3994, %v3288
    %v4012 = vsel %vm4009, %v3995, %v3290
    %v4013 = vsel %vm4009, %v3996, %v3292
    %v4014 = vsel %vm4009, %v3997, %v3294
    %v4015 = vsel %vm4009, %v3998, %v3296
    %v4016 = vsel %vm4009, %v3999, %v3298
    %v4017 = vsel %vm4009, %v4000, %v3300
    %v4018 = vsel %vm4009, %v4001, %v3302
    %v4019 = vsel %vm4009, %v4002, %v3304
    %v4020 = vsel %vm4009, %v4003, %v3306
    %v4021 = vsel %vm4009, %v4004, %v3308
    %v4022 = vsel %vm4009, %v4005, %v3310
    %v4023 = vsel %vm4009, %v4006, %v3312
    %v4024 = vsel %vm4009, %v4007, %v3314
    %v4025 = vsel %vm4009, %v4008, %v3316
    %vm4026 = vcmask 195584
    %v4027 = vsel %vm4026, %v4010, %v3338
    %v4028 = vsel %vm4026, %v4011, %v3340
    %v4029 = vsel %vm4026, %v4012, %v3342
    %v4030 = vsel %vm4026, %v4013, %v3344
    %v4031 = vsel %vm4026, %v4014, %v3346
    %v4032 = vsel %vm4026, %v4015, %v3348
    %v4033 = vsel %vm4026, %v4016, %v3350
    %v4034 = vsel %vm4026, %v4017, %v3352
    %v4035 = vsel %vm4026, %v4018, %v3354
    %v4036 = vsel %vm4026, %v4019, %v3356
    %v4037 = vsel %vm4026, %v4020, %v3358
    %v4038 = vsel %vm4026, %v4021, %v3360
    %v4039 = vsel %vm4026, %v4022, %v3362
    %v4040 = vsel %vm4026, %v4023, %v3364
    %v4041 = vsel %vm4026, %v4024, %v3366
    %v4042 = vsel %vm4026, %v4025, %v3368
    %vm4043 = vcmask 244736
    %v4044 = vsel %vm4043, %v4027, %v3402
    %v4045 = vsel %vm4043, %v4028, %v3404
    %v4046 = vsel %vm4043, %v4029, %v3406
    %v4047 = vsel %vm4043, %v4030, %v3408
    %v4048 = vsel %vm4043, %v4031, %v3410
    %v4049 = vsel %vm4043, %v4032, %v3412
    %v4050 = vsel %vm4043, %v4033, %v3414
    %v4051 = vsel %vm4043, %v4034, %v3416
    %v4052 = vsel %vm4043, %v4035, %v3418
    %v4053 = vsel %vm4043, %v4036, %v3420
    %v4054 = vsel %vm4043, %v4037, %v3422
    %v4055 = vsel %vm4043, %v4038, %v3424
    %v4056 = vsel %vm4043, %v4039, %v3426
    %v4057 = vsel %vm4043, %v4040, %v3428
    %v4058 = vsel %vm4043, %v4041, %v3430
    %v4059 = vsel %vm4043, %v4042, %v3432
    %vm4060 = vcmask 293888
    %v4061 = vsel %vm4060, %v4044, %v3466
    %v4062 = vsel %vm4060, %v4045, %v3468
    %v4063 = vsel %vm4060, %v4046, %v3470
    %v4064 = vsel %vm4060, %v4047, %v3472
    %v4065 = vsel %vm4060, %v4048, %v3474
    %v4066 = vsel %vm4060, %v4049, %v3476
    %v4067 = vsel %vm4060, %v4050, %v3478
    %v4068 = vsel %vm4060, %v4051, %v3480
    %v4069 = vsel %vm4060, %v4052, %v3482
    %v4070 = vsel %vm4060, %v4053, %v3484
    %v4071 = vsel %vm4060, %v4054, %v3486
    %v4072 = vsel %vm4060, %v4055, %v3488
    %v4073 = vsel %vm4060, %v4056, %v3490
    %v4074 = vsel %vm4060, %v4057, %v3492
    %v4075 = vsel %vm4060, %v4058, %v3494
    %v4076 = vsel %vm4060, %v4059, %v3496
    %vm4077 = vcmask 343040
    %v4078 = vsel %vm4077, %v4061, %v3518
    %v4079 = vsel %vm4077, %v4062, %v3520
    %v4080 = vsel %vm4077, %v4063, %v3522
    %v4081 = vsel %vm4077, %v4064, %v3524
    %v4082 = vsel %vm4077, %v4065, %v3526
    %v4083 = vsel %vm4077, %v4066, %v3528
    %v4084 = vsel %vm4077, %v4067, %v3530
    %v4085 = vsel %vm4077, %v4068, %v3532
    %v4086 = vsel %vm4077, %v4069, %v3534
    %v4087 = vsel %vm4077, %v4070, %v3536
    %v4088 = vsel %vm4077, %v4071, %v3538
    %v4089 = vsel %vm4077, %v4072, %v3540
    %v4090 = vsel %vm4077, %v4073, %v3542
    %v4091 = vsel %vm4077, %v4074, %v3544
    %v4092 = vsel %vm4077, %v4075, %v3546
    %v4093 = vsel %vm4077, %v4076, %v3548
    %vm4094 = vcmask 392192
    %v4095 = vsel %vm4094, %v4078, %v3570
    %v4096 = vsel %vm4094, %v4079, %v3572
    %v4097 = vsel %vm4094, %v4080, %v3574
    %v4098 = vsel %vm4094, %v4081, %v3576
    %v4099 = vsel %vm4094, %v4082, %v3578
    %v4100 = vsel %vm4094, %v4083, %v3580
    %v4101 = vsel %vm4094, %v4084, %v3582
    %v4102 = vsel %vm4094, %v4085, %v3584
    %v4103 = vsel %vm4094, %v4086, %v3586
    %v4104 = vsel %vm4094, %v4087, %v3588
    %v4105 = vsel %vm4094, %v4088, %v3590
    %v4106 = vsel %vm4094, %v4089, %v3592
    %v4107 = vsel %vm4094, %v4090, %v3594
    %v4108 = vsel %vm4094, %v4091, %v3596
    %v4109 = vsel %vm4094, %v4092, %v3598
    %v4110 = vsel %vm4094, %v4093, %v3600
    %vm4111 = vcmask 441344
    %v4112 = vsel %vm4111, %v4095, %v3622
    %v4113 = vsel %vm4111, %v4096, %v3624
    %v4114 = vsel %vm4111, %v4097, %v3626
    %v4115 = vsel %vm4111, %v4098, %v3628
    %v4116 = vsel %vm4111, %v4099, %v3630
    %v4117 = vsel %vm4111, %v4100, %v3632
    %v4118 = vsel %vm4111, %v4101, %v3634
    %v4119 = vsel %vm4111, %v4102, %v3636
    %v4120 = vsel %vm4111, %v4103, %v3638
    %v4121 = vsel %vm4111, %v4104, %v3640
    %v4122 = vsel %vm4111, %v4105, %v3642
    %v4123 = vsel %vm4111, %v4106, %v3644
    %v4124 = vsel %vm4111, %v4107, %v3646
    %v4125 = vsel %vm4111, %v4108, %v3648
    %v4126 = vsel %vm4111, %v4109, %v3650
    %v4127 = vsel %vm4111, %v4110, %v3652
    %vm4128 = vcmask 490496
    %v4129 = vsel %vm4128, %v4112, %v3677
    %v4130 = vsel %vm4128, %v4113, %v3679
    %v4131 = vsel %vm4128, %v4114, %v3681
    %v4132 = vsel %vm4128, %v4115, %v3683
    %v4133 = vsel %vm4128, %v4116, %v3685
    %v4134 = vsel %vm4128, %v4117, %v3687
    %v4135 = vsel %vm4128, %v4118, %v3689
    %v4136 = vsel %vm4128, %v4119, %v3691
    %v4137 = vsel %vm4128, %v4120, %v3693
    %v4138 = vsel %vm4128, %v4121, %v3695
    %v4139 = vsel %vm4128, %v4122, %v3697
    %v4140 = vsel %vm4128, %v4123, %v3699
    %v4141 = vsel %vm4128, %v4124, %v3701
    %v4142 = vsel %vm4128, %v4125, %v3703
    %v4143 = vsel %vm4128, %v4126, %v3705
    %v4144 = vsel %vm4128, %v4127, %v3707
    %vm4145 = vcmask 539648
    %v4146 = vsel %vm4145, %v4129, %v3729
    %v4147 = vsel %vm4145, %v4130, %v3731
    %v4148 = vsel %vm4145, %v4131, %v3733
    %v4149 = vsel %vm4145, %v4132, %v3735
    %v4150 = vsel %vm4145, %v4133, %v3737
    %v4151 = vsel %vm4145, %v4134, %v3739
    %v4152 = vsel %vm4145, %v4135, %v3741
    %v4153 = vsel %vm4145, %v4136, %v3743
    %v4154 = vsel %vm4145, %v4137, %v3745
    %v4155 = vsel %vm4145, %v4138, %v3747
    %v4156 = vsel %vm4145, %v4139, %v3749
    %v4157 = vsel %vm4145, %v4140, %v3751
    %v4158 = vsel %vm4145, %v4141, %v3753
    %v4159 = vsel %vm4145, %v4142, %v3755
    %v4160 = vsel %vm4145, %v4143, %v3757
    %v4161 = vsel %vm4145, %v4144, %v3759
    %vm4162 = vcmask 588800
    %v4163 = vsel %vm4162, %v4146, %v3778
    %v4164 = vsel %vm4162, %v4147, %v3780
    %v4165 = vsel %vm4162, %v4148, %v3782
    %v4166 = vsel %vm4162, %v4149, %v3784
    %v4167 = vsel %vm4162, %v4150, %v3786
    %v4168 = vsel %vm4162, %v4151, %v3788
    %v4169 = vsel %vm4162, %v4152, %v3790
    %v4170 = vsel %vm4162, %v4153, %v3792
    %v4171 = vsel %vm4162, %v4154, %v3794
    %v4172 = vsel %vm4162, %v4155, %v3796
    %v4173 = vsel %vm4162, %v4156, %v3798
    %v4174 = vsel %vm4162, %v4157, %v3800
    %v4175 = vsel %vm4162, %v4158, %v3802
    %v4176 = vsel %vm4162, %v4159, %v3804
    %v4177 = vsel %vm4162, %v4160, %v3806
    %v4178 = vsel %vm4162, %v4161, %v3808
    %vm4179 = vcmask 637952
    %v4180 = vsel %vm4179, %v4163, %v3827
    %v4181 = vsel %vm4179, %v4164, %v3829
    %v4182 = vsel %vm4179, %v4165, %v3831
    %v4183 = vsel %vm4179, %v4166, %v3833
    %v4184 = vsel %vm4179, %v4167, %v3835
    %v4185 = vsel %vm4179, %v4168, %v3837
    %v4186 = vsel %vm4179, %v4169, %v3839
    %v4187 = vsel %vm4179, %v4170, %v3841
    %v4188 = vsel %vm4179, %v4171, %v3843
    %v4189 = vsel %vm4179, %v4172, %v3845
    %v4190 = vsel %vm4179, %v4173, %v3847
    %v4191 = vsel %vm4179, %v4174, %v3849
    %v4192 = vsel %vm4179, %v4175, %v3851
    %v4193 = vsel %vm4179, %v4176, %v3853
    %v4194 = vsel %vm4179, %v4177, %v3855
    %v4195 = vsel %vm4179, %v4178, %v3857
    %vm4196 = vcmask 687104
    %v4197 = vsel %vm4196, %v4180, %v3876
    %v4198 = vsel %vm4196, %v4181, %v3878
    %v4199 = vsel %vm4196, %v4182, %v3880
    %v4200 = vsel %vm4196, %v4183, %v3882
    %v4201 = vsel %vm4196, %v4184, %v3884
    %v4202 = vsel %vm4196, %v4185, %v3886
    %v4203 = vsel %vm4196, %v4186, %v3888
    %v4204 = vsel %vm4196, %v4187, %v3890
    %v4205 = vsel %vm4196, %v4188, %v3892
    %v4206 = vsel %vm4196, %v4189, %v3894
    %v4207 = vsel %vm4196, %v4190, %v3896
    %v4208 = vsel %vm4196, %v4191, %v3898
    %v4209 = vsel %vm4196, %v4192, %v3900
    %v4210 = vsel %vm4196, %v4193, %v3902
    %v4211 = vsel %vm4196, %v4194, %v3904
    %v4212 = vsel %vm4196, %v4195, %v3906
    %vm4213 = vcmask 736256
    %v4214 = vsel %vm4213, %v4197, %v3928
    %v4215 = vsel %vm4213, %v4198, %v3930
    %v4216 = vsel %vm4213, %v4199, %v3932
    %v4217 = vsel %vm4213, %v4200, %v3934
    %v4218 = vsel %vm4213, %v4201, %v3936
    %v4219 = vsel %vm4213, %v4202, %v3938
    %v4220 = vsel %vm4213, %v4203, %v3940
    %v4221 = vsel %vm4213, %v4204, %v3942
    %v4222 = vsel %vm4213, %v4205, %v3944
    %v4223 = vsel %vm4213, %v4206, %v3946
    %v4224 = vsel %vm4213, %v4207, %v3948
    %v4225 = vsel %vm4213, %v4208, %v3950
    %v4226 = vsel %vm4213, %v4209, %v3952
    %v4227 = vsel %vm4213, %v4210, %v3954
    %v4228 = vsel %vm4213, %v4211, %v3956
    %v4229 = vsel %vm4213, %v4212, %v3958
    %4231 = vrot.lane.b32.xlu0 %v3088, 6
    %v4232 = vpop.permute.xlu0 %4231
    %4233 = vrot.lane.b32.xlu0 %v3089, 6
    %v4234 = vpop.permute.xlu0 %4233
    %4235 = vrot.lane.b32.xlu0 %v3090, 6
    %v4236 = vpop.permute.xlu0 %4235
    %4237 = vrot.lane.b32.xlu0 %v3091, 6
    %v4238 = vpop.permute.xlu0 %4237
    %4239 = vrot.lane.b32.xlu0 %v3094, 6
    %v4240 = vpop.permute.xlu0 %4239
    %4241 = vrot.lane.b32.xlu0 %v3095, 6
    %v4242 = vpop.permute.xlu0 %4241
    %4243 = vrot.lane.b32.xlu0 %v3096, 6
    %v4244 = vpop.permute.xlu0 %4243
    %4245 = vrot.lane.b32.xlu0 %v3097, 6
    %v4246 = vpop.permute.xlu0 %4245
    %4247 = vrot.lane.b32.xlu0 %v3100, 6
    %v4248 = vpop.permute.xlu0 %4247
    %4249 = vrot.lane.b32.xlu0 %v3101, 6
    %v4250 = vpop.permute.xlu0 %4249
    %4251 = vrot.lane.b32.xlu0 %v3102, 6
    %v4252 = vpop.permute.xlu0 %4251
    %4253 = vrot.lane.b32.xlu0 %v3103, 6
    %v4254 = vpop.permute.xlu0 %4253
    %4255 = vrot.lane.b32.xlu0 %v3106, 6
    %v4256 = vpop.permute.xlu0 %4255
    %4257 = vrot.lane.b32.xlu0 %v3107, 6
    %v4258 = vpop.permute.xlu0 %4257
    %4259 = vrot.lane.b32.xlu0 %v3108, 6
    %v4260 = vpop.permute.xlu0 %4259
    %4261 = vrot.lane.b32.xlu0 %v3109, 6
    %v4262 = vpop.permute.xlu0 %4261
    %4283 = vrot.lane.b32.xlu0 %v3124, 12
    %v4284 = vpop.permute.xlu0 %4283
    %4285 = vrot.lane.b32.xlu0 %v3125, 12
    %v4286 = vpop.permute.xlu0 %4285
    %4287 = vrot.lane.b32.xlu0 %v3126, 12
    %v4288 = vpop.permute.xlu0 %4287
    %4289 = vrot.lane.b32.xlu0 %v3127, 12
    %v4290 = vpop.permute.xlu0 %4289
    %4291 = vrot.lane.b32.xlu0 %v3130, 12
    %v4292 = vpop.permute.xlu0 %4291
    %4293 = vrot.lane.b32.xlu0 %v3131, 12
    %v4294 = vpop.permute.xlu0 %4293
    %4295 = vrot.lane.b32.xlu0 %v3132, 12
    %v4296 = vpop.permute.xlu0 %4295
    %4297 = vrot.lane.b32.xlu0 %v3133, 12
    %v4298 = vpop.permute.xlu0 %4297
    %4299 = vrot.lane.b32.xlu0 %v3136, 12
    %v4300 = vpop.permute.xlu0 %4299
    %4301 = vrot.lane.b32.xlu0 %v3137, 12
    %v4302 = vpop.permute.xlu0 %4301
    %4303 = vrot.lane.b32.xlu0 %v3138, 12
    %v4304 = vpop.permute.xlu0 %4303
    %4305 = vrot.lane.b32.xlu0 %v3139, 12
    %v4306 = vpop.permute.xlu0 %4305
    %4307 = vrot.lane.b32.xlu0 %v3142, 12
    %v4308 = vpop.permute.xlu0 %4307
    %4309 = vrot.lane.b32.xlu0 %v3143, 12
    %v4310 = vpop.permute.xlu0 %4309
    %4311 = vrot.lane.b32.xlu0 %v3144, 12
    %v4312 = vpop.permute.xlu0 %4311
    %4313 = vrot.lane.b32.xlu0 %v3145, 12
    %v4314 = vpop.permute.xlu0 %4313
    %4332 = vrot.lane.b32.xlu0 %v3089, 18
    %v4333 = vpop.permute.xlu0 %4332
    %4334 = vrot.lane.b32.xlu0 %v3090, 18
    %v4335 = vpop.permute.xlu0 %4334
    %4336 = vrot.lane.b32.xlu0 %v3091, 18
    %v4337 = vpop.permute.xlu0 %4336
    %4338 = vrot.lane.b32.xlu0 %v3092, 18
    %v4339 = vpop.permute.xlu0 %4338
    %4340 = vrot.lane.b32.xlu0 %v3095, 18
    %v4341 = vpop.permute.xlu0 %4340
    %4342 = vrot.lane.b32.xlu0 %v3096, 18
    %v4343 = vpop.permute.xlu0 %4342
    %4344 = vrot.lane.b32.xlu0 %v3097, 18
    %v4345 = vpop.permute.xlu0 %4344
    %4346 = vrot.lane.b32.xlu0 %v3098, 18
    %v4347 = vpop.permute.xlu0 %4346
    %4348 = vrot.lane.b32.xlu0 %v3101, 18
    %v4349 = vpop.permute.xlu0 %4348
    %4350 = vrot.lane.b32.xlu0 %v3102, 18
    %v4351 = vpop.permute.xlu0 %4350
    %4352 = vrot.lane.b32.xlu0 %v3103, 18
    %v4353 = vpop.permute.xlu0 %4352
    %4354 = vrot.lane.b32.xlu0 %v3104, 18
    %v4355 = vpop.permute.xlu0 %4354
    %4356 = vrot.lane.b32.xlu0 %v3107, 18
    %v4357 = vpop.permute.xlu0 %4356
    %4358 = vrot.lane.b32.xlu0 %v3108, 18
    %v4359 = vpop.permute.xlu0 %4358
    %4360 = vrot.lane.b32.xlu0 %v3109, 18
    %v4361 = vpop.permute.xlu0 %4360
    %4362 = vrot.lane.b32.xlu0 %v3110, 18
    %v4363 = vpop.permute.xlu0 %4362
    %4384 = vrot.lane.b32.xlu0 %v3021, 24
    %v4385 = vpop.permute.xlu0 %4384
    %4386 = vrot.lane.b32.xlu0 %v3022, 24
    %v4387 = vpop.permute.xlu0 %4386
    %4388 = vrot.lane.b32.xlu0 %v3027, 24
    %v4389 = vpop.permute.xlu0 %4388
    %4390 = vrot.lane.b32.xlu0 %v3028, 24
    %v4391 = vpop.permute.xlu0 %4390
    %4392 = vrot.lane.b32.xlu0 %v3033, 24
    %v4393 = vpop.permute.xlu0 %4392
    %4394 = vrot.lane.b32.xlu0 %v3034, 24
    %v4395 = vpop.permute.xlu0 %4394
    %4396 = vrot.lane.b32.xlu0 %v3035, 24
    %v4397 = vpop.permute.xlu0 %4396
    %4398 = vrot.lane.b32.xlu0 %v3036, 24
    %v4399 = vpop.permute.xlu0 %4398
    %4400 = vrot.lane.b32.xlu0 %v3039, 24
    %v4401 = vpop.permute.xlu0 %4400
    %4402 = vrot.lane.b32.xlu0 %v3040, 24
    %v4403 = vpop.permute.xlu0 %4402
    %4404 = vrot.lane.b32.xlu0 %v3041, 24
    %v4405 = vpop.permute.xlu0 %4404
    %4406 = vrot.lane.b32.xlu0 %v3042, 24
    %v4407 = vpop.permute.xlu0 %4406
    %4424 = vrot.lane.b32.xlu0 %v3057, 30
    %v4425 = vpop.permute.xlu0 %4424
    %4426 = vrot.lane.b32.xlu0 %v3058, 30
    %v4427 = vpop.permute.xlu0 %4426
    %4428 = vrot.lane.b32.xlu0 %v3059, 30
    %v4429 = vpop.permute.xlu0 %4428
    %4430 = vrot.lane.b32.xlu0 %v3060, 30
    %v4431 = vpop.permute.xlu0 %4430
    %4432 = vrot.lane.b32.xlu0 %v3063, 30
    %v4433 = vpop.permute.xlu0 %4432
    %4434 = vrot.lane.b32.xlu0 %v3064, 30
    %v4435 = vpop.permute.xlu0 %4434
    %4436 = vrot.lane.b32.xlu0 %v3065, 30
    %v4437 = vpop.permute.xlu0 %4436
    %4438 = vrot.lane.b32.xlu0 %v3066, 30
    %v4439 = vpop.permute.xlu0 %4438
    %4440 = vrot.lane.b32.xlu0 %v3069, 30
    %v4441 = vpop.permute.xlu0 %4440
    %4442 = vrot.lane.b32.xlu0 %v3070, 30
    %v4443 = vpop.permute.xlu0 %4442
    %4444 = vrot.lane.b32.xlu0 %v3071, 30
    %v4445 = vpop.permute.xlu0 %4444
    %4446 = vrot.lane.b32.xlu0 %v3072, 30
    %v4447 = vpop.permute.xlu0 %4446
    %4448 = vrot.lane.b32.xlu0 %v3075, 30
    %v4449 = vpop.permute.xlu0 %4448
    %4450 = vrot.lane.b32.xlu0 %v3076, 30
    %v4451 = vpop.permute.xlu0 %4450
    %4452 = vrot.lane.b32.xlu0 %v3077, 30
    %v4453 = vpop.permute.xlu0 %4452
    %4454 = vrot.lane.b32.xlu0 %v3078, 30
    %v4455 = vpop.permute.xlu0 %4454
    %4473 = vrot.lane.b32.xlu0 %v3022, 36
    %v4474 = vpop.permute.xlu0 %4473
    %4475 = vrot.lane.b32.xlu0 %v3023, 36
    %v4476 = vpop.permute.xlu0 %4475
    %4477 = vrot.lane.b32.xlu0 %v3024, 36
    %v4478 = vpop.permute.xlu0 %4477
    %4479 = vrot.lane.b32.xlu0 %v3025, 36
    %v4480 = vpop.permute.xlu0 %4479
    %4481 = vrot.lane.b32.xlu0 %v3028, 36
    %v4482 = vpop.permute.xlu0 %4481
    %4483 = vrot.lane.b32.xlu0 %v3029, 36
    %v4484 = vpop.permute.xlu0 %4483
    %4485 = vrot.lane.b32.xlu0 %v3030, 36
    %v4486 = vpop.permute.xlu0 %4485
    %4487 = vrot.lane.b32.xlu0 %v3031, 36
    %v4488 = vpop.permute.xlu0 %4487
    %4489 = vrot.lane.b32.xlu0 %v3034, 36
    %v4490 = vpop.permute.xlu0 %4489
    %4491 = vrot.lane.b32.xlu0 %v3035, 36
    %v4492 = vpop.permute.xlu0 %4491
    %4493 = vrot.lane.b32.xlu0 %v3036, 36
    %v4494 = vpop.permute.xlu0 %4493
    %4495 = vrot.lane.b32.xlu0 %v3037, 36
    %v4496 = vpop.permute.xlu0 %4495
    %4497 = vrot.lane.b32.xlu0 %v3040, 36
    %v4498 = vpop.permute.xlu0 %4497
    %4499 = vrot.lane.b32.xlu0 %v3041, 36
    %v4500 = vpop.permute.xlu0 %4499
    %4501 = vrot.lane.b32.xlu0 %v3042, 36
    %v4502 = vpop.permute.xlu0 %4501
    %4503 = vrot.lane.b32.xlu0 %v3043, 36
    %v4504 = vpop.permute.xlu0 %4503
    %4522 = vrot.lane.b32.xlu0 %v3058, 42
    %v4523 = vpop.permute.xlu0 %4522
    %4524 = vrot.lane.b32.xlu0 %v3059, 42
    %v4525 = vpop.permute.xlu0 %4524
    %4526 = vrot.lane.b32.xlu0 %v3060, 42
    %v4527 = vpop.permute.xlu0 %4526
    %4528 = vrot.lane.b32.xlu0 %v3061, 42
    %v4529 = vpop.permute.xlu0 %4528
    %4530 = vrot.lane.b32.xlu0 %v3064, 42
    %v4531 = vpop.permute.xlu0 %4530
    %4532 = vrot.lane.b32.xlu0 %v3065, 42
    %v4533 = vpop.permute.xlu0 %4532
    %4534 = vrot.lane.b32.xlu0 %v3066, 42
    %v4535 = vpop.permute.xlu0 %4534
    %4536 = vrot.lane.b32.xlu0 %v3067, 42
    %v4537 = vpop.permute.xlu0 %4536
    %4538 = vrot.lane.b32.xlu0 %v3070, 42
    %v4539 = vpop.permute.xlu0 %4538
    %4540 = vrot.lane.b32.xlu0 %v3071, 42
    %v4541 = vpop.permute.xlu0 %4540
    %4542 = vrot.lane.b32.xlu0 %v3072, 42
    %v4543 = vpop.permute.xlu0 %4542
    %4544 = vrot.lane.b32.xlu0 %v3073, 42
    %v4545 = vpop.permute.xlu0 %4544
    %4546 = vrot.lane.b32.xlu0 %v3076, 42
    %v4547 = vpop.permute.xlu0 %4546
    %4548 = vrot.lane.b32.xlu0 %v3077, 42
    %v4549 = vpop.permute.xlu0 %4548
    %4550 = vrot.lane.b32.xlu0 %v3078, 42
    %v4551 = vpop.permute.xlu0 %4550
    %4552 = vrot.lane.b32.xlu0 %v3079, 42
    %v4553 = vpop.permute.xlu0 %4552
    %4571 = vrot.lane.b32.xlu0 %v3023, 48
    %v4572 = vpop.permute.xlu0 %4571
    %4573 = vrot.lane.b32.xlu0 %v3024, 48
    %v4574 = vpop.permute.xlu0 %4573
    %4575 = vrot.lane.b32.xlu0 %v3025, 48
    %v4576 = vpop.permute.xlu0 %4575
    %4577 = vrot.lane.b32.xlu0 %v3026, 48
    %v4578 = vpop.permute.xlu0 %4577
    %4579 = vrot.lane.b32.xlu0 %v3029, 48
    %v4580 = vpop.permute.xlu0 %4579
    %4581 = vrot.lane.b32.xlu0 %v3030, 48
    %v4582 = vpop.permute.xlu0 %4581
    %4583 = vrot.lane.b32.xlu0 %v3031, 48
    %v4584 = vpop.permute.xlu0 %4583
    %4585 = vrot.lane.b32.xlu0 %v3032, 48
    %v4586 = vpop.permute.xlu0 %4585
    %4587 = vrot.lane.b32.xlu0 %v3035, 48
    %v4588 = vpop.permute.xlu0 %4587
    %4589 = vrot.lane.b32.xlu0 %v3036, 48
    %v4590 = vpop.permute.xlu0 %4589
    %4591 = vrot.lane.b32.xlu0 %v3037, 48
    %v4592 = vpop.permute.xlu0 %4591
    %4593 = vrot.lane.b32.xlu0 %v3038, 48
    %v4594 = vpop.permute.xlu0 %4593
    %4595 = vrot.lane.b32.xlu0 %v3041, 48
    %v4596 = vpop.permute.xlu0 %4595
    %4597 = vrot.lane.b32.xlu0 %v3042, 48
    %v4598 = vpop.permute.xlu0 %4597
    %4599 = vrot.lane.b32.xlu0 %v3043, 48
    %v4600 = vpop.permute.xlu0 %4599
    %4601 = vrot.lane.b32.xlu0 %v3044, 48
    %v4602 = vpop.permute.xlu0 %4601
    %4619 = vrot.lane.b32.xlu0 %v3045, 54
    %v4620 = vpop.permute.xlu0 %4619
    %4621 = vrot.lane.b32.xlu0 %v3046, 54
    %v4622 = vpop.permute.xlu0 %4621
    %4623 = vrot.lane.b32.xlu0 %v3047, 54
    %v4624 = vpop.permute.xlu0 %4623
    %4625 = vrot.lane.b32.xlu0 %v3048, 54
    %v4626 = vpop.permute.xlu0 %4625
    %4627 = vrot.lane.b32.xlu0 %v3051, 54
    %v4628 = vpop.permute.xlu0 %4627
    %4629 = vrot.lane.b32.xlu0 %v3052, 54
    %v4630 = vpop.permute.xlu0 %4629
    %4631 = vrot.lane.b32.xlu0 %v3053, 54
    %v4632 = vpop.permute.xlu0 %4631
    %4633 = vrot.lane.b32.xlu0 %v3054, 54
    %v4634 = vpop.permute.xlu0 %4633
    %4635 = vrot.lane.b32.xlu0 %v3057, 54
    %v4636 = vpop.permute.xlu0 %4635
    %4637 = vrot.lane.b32.xlu0 %v3058, 54
    %v4638 = vpop.permute.xlu0 %4637
    %4639 = vrot.lane.b32.xlu0 %v3059, 54
    %v4640 = vpop.permute.xlu0 %4639
    %4641 = vrot.lane.b32.xlu0 %v3060, 54
    %v4642 = vpop.permute.xlu0 %4641
    %4643 = vrot.lane.b32.xlu0 %v3063, 54
    %v4644 = vpop.permute.xlu0 %4643
    %4645 = vrot.lane.b32.xlu0 %v3064, 54
    %v4646 = vpop.permute.xlu0 %4645
    %4647 = vrot.lane.b32.xlu0 %v3065, 54
    %v4648 = vpop.permute.xlu0 %4647
    %4649 = vrot.lane.b32.xlu0 %v3066, 54
    %v4650 = vpop.permute.xlu0 %4649
    %4667 = vrot.lane.b32.xlu0 %v3010, 60
    %v4668 = vpop.permute.xlu0 %4667
    %4669 = vrot.lane.b32.xlu0 %v3011, 60
    %v4670 = vpop.permute.xlu0 %4669
    %4671 = vrot.lane.b32.xlu0 %v3012, 60
    %v4672 = vpop.permute.xlu0 %4671
    %4673 = vrot.lane.b32.xlu0 %v3013, 60
    %v4674 = vpop.permute.xlu0 %4673
    %4675 = vrot.lane.b32.xlu0 %v3019, 60
    %v4676 = vpop.permute.xlu0 %4675
    %4677 = vrot.lane.b32.xlu0 %v3025, 60
    %v4678 = vpop.permute.xlu0 %4677
    %4679 = vrot.lane.b32.xlu0 %v3031, 60
    %v4680 = vpop.permute.xlu0 %4679
    %4688 = vrot.lane.b32.xlu0 %v3046, 66
    %v4689 = vpop.permute.xlu0 %4688
    %4690 = vrot.lane.b32.xlu0 %v3047, 66
    %v4691 = vpop.permute.xlu0 %4690
    %4692 = vrot.lane.b32.xlu0 %v3048, 66
    %v4693 = vpop.permute.xlu0 %4692
    %4694 = vrot.lane.b32.xlu0 %v3049, 66
    %v4695 = vpop.permute.xlu0 %4694
    %4696 = vrot.lane.b32.xlu0 %v3055, 66
    %v4697 = vpop.permute.xlu0 %4696
    %4698 = vrot.lane.b32.xlu0 %v3061, 66
    %v4699 = vpop.permute.xlu0 %4698
    %4700 = vrot.lane.b32.xlu0 %v3067, 66
    %v4701 = vpop.permute.xlu0 %4700
    %4709 = vrot.lane.b32.xlu0 %v3011, 72
    %v4710 = vpop.permute.xlu0 %4709
    %4711 = vrot.lane.b32.xlu0 %v3012, 72
    %v4712 = vpop.permute.xlu0 %4711
    %4713 = vrot.lane.b32.xlu0 %v3013, 72
    %v4714 = vpop.permute.xlu0 %4713
    %4715 = vrot.lane.b32.xlu0 %v3014, 72
    %v4716 = vpop.permute.xlu0 %4715
    %4717 = vrot.lane.b32.xlu0 %v3020, 72
    %v4718 = vpop.permute.xlu0 %4717
    %4719 = vrot.lane.b32.xlu0 %v3026, 72
    %v4720 = vpop.permute.xlu0 %4719
    %4721 = vrot.lane.b32.xlu0 %v3032, 72
    %v4722 = vpop.permute.xlu0 %4721
    %4734 = vrot.lane.b32.xlu0 %v3047, 78
    %v4735 = vpop.permute.xlu0 %4734
    %4736 = vrot.lane.b32.xlu0 %v3048, 78
    %v4737 = vpop.permute.xlu0 %4736
    %4738 = vrot.lane.b32.xlu0 %v3049, 78
    %v4739 = vpop.permute.xlu0 %4738
    %4740 = vrot.lane.b32.xlu0 %v3050, 78
    %v4741 = vpop.permute.xlu0 %4740
    %4742 = vrot.lane.b32.xlu0 %v3056, 78
    %v4743 = vpop.permute.xlu0 %4742
    %4744 = vrot.lane.b32.xlu0 %v3062, 78
    %v4745 = vpop.permute.xlu0 %4744
    %4746 = vrot.lane.b32.xlu0 %v3068, 78
    %v4747 = vpop.permute.xlu0 %4746
    %4755 = vrot.lane.b32.xlu0 %v3117, 84
    %v4756 = vpop.permute.xlu0 %4755
    %4757 = vrot.lane.b32.xlu0 %v3118, 84
    %v4758 = vpop.permute.xlu0 %4757
    %4759 = vrot.lane.b32.xlu0 %v3119, 84
    %v4760 = vpop.permute.xlu0 %4759
    %4761 = vrot.lane.b32.xlu0 %v3120, 84
    %v4762 = vpop.permute.xlu0 %4761
    %4763 = vrot.lane.b32.xlu0 %v3123, 84
    %v4764 = vpop.permute.xlu0 %4763
    %4765 = vrot.lane.b32.xlu0 %v3124, 84
    %v4766 = vpop.permute.xlu0 %4765
    %4767 = vrot.lane.b32.xlu0 %v3125, 84
    %v4768 = vpop.permute.xlu0 %4767
    %4769 = vrot.lane.b32.xlu0 %v3126, 84
    %v4770 = vpop.permute.xlu0 %4769
    %4771 = vrot.lane.b32.xlu0 %v3129, 84
    %v4772 = vpop.permute.xlu0 %4771
    %4773 = vrot.lane.b32.xlu0 %v3130, 84
    %v4774 = vpop.permute.xlu0 %4773
    %4775 = vrot.lane.b32.xlu0 %v3131, 84
    %v4776 = vpop.permute.xlu0 %4775
    %4777 = vrot.lane.b32.xlu0 %v3132, 84
    %v4778 = vpop.permute.xlu0 %4777
    %4779 = vrot.lane.b32.xlu0 %v3135, 84
    %v4780 = vpop.permute.xlu0 %4779
    %4781 = vrot.lane.b32.xlu0 %v3136, 84
    %v4782 = vpop.permute.xlu0 %4781
    %4783 = vrot.lane.b32.xlu0 %v3137, 84
    %v4784 = vpop.permute.xlu0 %4783
    %4785 = vrot.lane.b32.xlu0 %v3138, 84
    %v4786 = vpop.permute.xlu0 %4785
    %4803 = vrot.lane.b32.xlu0 %v3082, 90
    %v4804 = vpop.permute.xlu0 %4803
    %4805 = vrot.lane.b32.xlu0 %v3083, 90
    %v4806 = vpop.permute.xlu0 %4805
    %4807 = vrot.lane.b32.xlu0 %v3084, 90
    %v4808 = vpop.permute.xlu0 %4807
    %4809 = vrot.lane.b32.xlu0 %v3085, 90
    %v4810 = vpop.permute.xlu0 %4809
    %4811 = vrot.lane.b32.xlu0 %v3091, 90
    %v4812 = vpop.permute.xlu0 %4811
    %4813 = vrot.lane.b32.xlu0 %v3097, 90
    %v4814 = vpop.permute.xlu0 %4813
    %4815 = vrot.lane.b32.xlu0 %v3103, 90
    %v4816 = vpop.permute.xlu0 %4815
    %v4824 = vsel %vm3975, %v3123, %v4232
    %v4825 = vsel %vm3975, %v3124, %v4234
    %v4826 = vsel %vm3975, %v3125, %v4236
    %v4827 = vsel %vm3975, %v3126, %v4238
    %v4828 = vsel %vm3975, %v3129, %v4240
    %v4829 = vsel %vm3975, %v3130, %v4242
    %v4830 = vsel %vm3975, %v3131, %v4244
    %v4831 = vsel %vm3975, %v3132, %v4246
    %v4832 = vsel %vm3975, %v3135, %v4248
    %v4833 = vsel %vm3975, %v3136, %v4250
    %v4834 = vsel %vm3975, %v3137, %v4252
    %v4835 = vsel %vm3975, %v3138, %v4254
    %v4836 = vsel %vm3975, %v3141, %v4256
    %v4837 = vsel %vm3975, %v3142, %v4258
    %v4838 = vsel %vm3975, %v3143, %v4260
    %v4839 = vsel %vm3975, %v3144, %v4262
    %v4840 = vsel %vm3992, %v4824, %v4284
    %v4841 = vsel %vm3992, %v4825, %v4286
    %v4842 = vsel %vm3992, %v4826, %v4288
    %v4843 = vsel %vm3992, %v4827, %v4290
    %v4844 = vsel %vm3992, %v4828, %v4292
    %v4845 = vsel %vm3992, %v4829, %v4294
    %v4846 = vsel %vm3992, %v4830, %v4296
    %v4847 = vsel %vm3992, %v4831, %v4298
    %v4848 = vsel %vm3992, %v4832, %v4300
    %v4849 = vsel %vm3992, %v4833, %v4302
    %v4850 = vsel %vm3992, %v4834, %v4304
    %v4851 = vsel %vm3992, %v4835, %v4306
    %v4852 = vsel %vm3992, %v4836, %v4308
    %v4853 = vsel %vm3992, %v4837, %v4310
    %v4854 = vsel %vm3992, %v4838, %v4312
    %v4855 = vsel %vm3992, %v4839, %v4314
    %v4856 = vsel %vm4009, %v4840, %v4333
    %v4857 = vsel %vm4009, %v4841, %v4335
    %v4858 = vsel %vm4009, %v4842, %v4337
    %v4859 = vsel %vm4009, %v4843, %v4339
    %v4860 = vsel %vm4009, %v4844, %v4341
    %v4861 = vsel %vm4009, %v4845, %v4343
    %v4862 = vsel %vm4009, %v4846, %v4345
    %v4863 = vsel %vm4009, %v4847, %v4347
    %v4864 = vsel %vm4009, %v4848, %v4349
    %v4865 = vsel %vm4009, %v4849, %v4351
    %v4866 = vsel %vm4009, %v4850, %v4353
    %v4867 = vsel %vm4009, %v4851, %v4355
    %v4868 = vsel %vm4009, %v4852, %v4357
    %v4869 = vsel %vm4009, %v4853, %v4359
    %v4870 = vsel %vm4009, %v4854, %v4361
    %v4871 = vsel %vm4009, %v4855, %v4363
    %v4872 = vsel %vm4026, %v4856, %v4385
    %v4873 = vsel %vm4026, %v4857, %v4387
    %v4874 = vsel %vm4026, %v4858, %v3354
    %v4875 = vsel %vm4026, %v4859, %v3356
    %v4876 = vsel %vm4026, %v4860, %v4389
    %v4877 = vsel %vm4026, %v4861, %v4391
    %v4878 = vsel %vm4026, %v4862, %v3362
    %v4879 = vsel %vm4026, %v4863, %v3364
    %v4880 = vsel %vm4026, %v4864, %v4393
    %v4881 = vsel %vm4026, %v4865, %v4395
    %v4882 = vsel %vm4026, %v4866, %v4397
    %v4883 = vsel %vm4026, %v4867, %v4399
    %v4884 = vsel %vm4026, %v4868, %v4401
    %v4885 = vsel %vm4026, %v4869, %v4403
    %v4886 = vsel %vm4026, %v4870, %v4405
    %v4887 = vsel %vm4026, %v4871, %v4407
    %v4888 = vsel %vm4043, %v4872, %v4425
    %v4889 = vsel %vm4043, %v4873, %v4427
    %v4890 = vsel %vm4043, %v4874, %v4429
    %v4891 = vsel %vm4043, %v4875, %v4431
    %v4892 = vsel %vm4043, %v4876, %v4433
    %v4893 = vsel %vm4043, %v4877, %v4435
    %v4894 = vsel %vm4043, %v4878, %v4437
    %v4895 = vsel %vm4043, %v4879, %v4439
    %v4896 = vsel %vm4043, %v4880, %v4441
    %v4897 = vsel %vm4043, %v4881, %v4443
    %v4898 = vsel %vm4043, %v4882, %v4445
    %v4899 = vsel %vm4043, %v4883, %v4447
    %v4900 = vsel %vm4043, %v4884, %v4449
    %v4901 = vsel %vm4043, %v4885, %v4451
    %v4902 = vsel %vm4043, %v4886, %v4453
    %v4903 = vsel %vm4043, %v4887, %v4455
    %v4904 = vsel %vm4060, %v4888, %v4474
    %v4905 = vsel %vm4060, %v4889, %v4476
    %v4906 = vsel %vm4060, %v4890, %v4478
    %v4907 = vsel %vm4060, %v4891, %v4480
    %v4908 = vsel %vm4060, %v4892, %v4482
    %v4909 = vsel %vm4060, %v4893, %v4484
    %v4910 = vsel %vm4060, %v4894, %v4486
    %v4911 = vsel %vm4060, %v4895, %v4488
    %v4912 = vsel %vm4060, %v4896, %v4490
    %v4913 = vsel %vm4060, %v4897, %v4492
    %v4914 = vsel %vm4060, %v4898, %v4494
    %v4915 = vsel %vm4060, %v4899, %v4496
    %v4916 = vsel %vm4060, %v4900, %v4498
    %v4917 = vsel %vm4060, %v4901, %v4500
    %v4918 = vsel %vm4060, %v4902, %v4502
    %v4919 = vsel %vm4060, %v4903, %v4504
    %v4920 = vsel %vm4077, %v4904, %v4523
    %v4921 = vsel %vm4077, %v4905, %v4525
    %v4922 = vsel %vm4077, %v4906, %v4527
    %v4923 = vsel %vm4077, %v4907, %v4529
    %v4924 = vsel %vm4077, %v4908, %v4531
    %v4925 = vsel %vm4077, %v4909, %v4533
    %v4926 = vsel %vm4077, %v4910, %v4535
    %v4927 = vsel %vm4077, %v4911, %v4537
    %v4928 = vsel %vm4077, %v4912, %v4539
    %v4929 = vsel %vm4077, %v4913, %v4541
    %v4930 = vsel %vm4077, %v4914, %v4543
    %v4931 = vsel %vm4077, %v4915, %v4545
    %v4932 = vsel %vm4077, %v4916, %v4547
    %v4933 = vsel %vm4077, %v4917, %v4549
    %v4934 = vsel %vm4077, %v4918, %v4551
    %v4935 = vsel %vm4077, %v4919, %v4553
    %v4936 = vsel %vm4094, %v4920, %v4572
    %v4937 = vsel %vm4094, %v4921, %v4574
    %v4938 = vsel %vm4094, %v4922, %v4576
    %v4939 = vsel %vm4094, %v4923, %v4578
    %v4940 = vsel %vm4094, %v4924, %v4580
    %v4941 = vsel %vm4094, %v4925, %v4582
    %v4942 = vsel %vm4094, %v4926, %v4584
    %v4943 = vsel %vm4094, %v4927, %v4586
    %v4944 = vsel %vm4094, %v4928, %v4588
    %v4945 = vsel %vm4094, %v4929, %v4590
    %v4946 = vsel %vm4094, %v4930, %v4592
    %v4947 = vsel %vm4094, %v4931, %v4594
    %v4948 = vsel %vm4094, %v4932, %v4596
    %v4949 = vsel %vm4094, %v4933, %v4598
    %v4950 = vsel %vm4094, %v4934, %v4600
    %v4951 = vsel %vm4094, %v4935, %v4602
    %v4952 = vsel %vm4111, %v4936, %v4620
    %v4953 = vsel %vm4111, %v4937, %v4622
    %v4954 = vsel %vm4111, %v4938, %v4624
    %v4955 = vsel %vm4111, %v4939, %v4626
    %v4956 = vsel %vm4111, %v4940, %v4628
    %v4957 = vsel %vm4111, %v4941, %v4630
    %v4958 = vsel %vm4111, %v4942, %v4632
    %v4959 = vsel %vm4111, %v4943, %v4634
    %v4960 = vsel %vm4111, %v4944, %v4636
    %v4961 = vsel %vm4111, %v4945, %v4638
    %v4962 = vsel %vm4111, %v4946, %v4640
    %v4963 = vsel %vm4111, %v4947, %v4642
    %v4964 = vsel %vm4111, %v4948, %v4644
    %v4965 = vsel %vm4111, %v4949, %v4646
    %v4966 = vsel %vm4111, %v4950, %v4648
    %v4967 = vsel %vm4111, %v4951, %v4650
    %v4968 = vsel %vm4128, %v4952, %v4668
    %v4969 = vsel %vm4128, %v4953, %v4670
    %v4970 = vsel %vm4128, %v4954, %v4672
    %v4971 = vsel %vm4128, %v4955, %v4674
    %v4972 = vsel %vm4128, %v4956, %v3679
    %v4973 = vsel %vm4128, %v4957, %v3681
    %v4974 = vsel %vm4128, %v4958, %v3683
    %v4975 = vsel %vm4128, %v4959, %v4676
    %v4976 = vsel %vm4128, %v4960, %v3687
    %v4977 = vsel %vm4128, %v4961, %v3689
    %v4978 = vsel %vm4128, %v4962, %v3691
    %v4979 = vsel %vm4128, %v4963, %v4678
    %v4980 = vsel %vm4128, %v4964, %v3695
    %v4981 = vsel %vm4128, %v4965, %v3697
    %v4982 = vsel %vm4128, %v4966, %v3699
    %v4983 = vsel %vm4128, %v4967, %v4680
    %v4984 = vsel %vm4145, %v4968, %v4689
    %v4985 = vsel %vm4145, %v4969, %v4691
    %v4986 = vsel %vm4145, %v4970, %v4693
    %v4987 = vsel %vm4145, %v4971, %v4695
    %v4988 = vsel %vm4145, %v4972, %v3731
    %v4989 = vsel %vm4145, %v4973, %v3733
    %v4990 = vsel %vm4145, %v4974, %v3735
    %v4991 = vsel %vm4145, %v4975, %v4697
    %v4992 = vsel %vm4145, %v4976, %v3739
    %v4993 = vsel %vm4145, %v4977, %v3741
    %v4994 = vsel %vm4145, %v4978, %v3743
    %v4995 = vsel %vm4145, %v4979, %v4699
    %v4996 = vsel %vm4145, %v4980, %v3747
    %v4997 = vsel %vm4145, %v4981, %v3749
    %v4998 = vsel %vm4145, %v4982, %v3751
    %v4999 = vsel %vm4145, %v4983, %v4701
    %v5000 = vsel %vm4162, %v4984, %v4710
    %v5001 = vsel %vm4162, %v4985, %v4712
    %v5002 = vsel %vm4162, %v4986, %v4714
    %v5003 = vsel %vm4162, %v4987, %v4716
    %v5004 = vsel %vm4162, %v4988, %v3780
    %v5005 = vsel %vm4162, %v4989, %v3782
    %v5006 = vsel %vm4162, %v4990, %v3784
    %v5007 = vsel %vm4162, %v4991, %v4718
    %v5008 = vsel %vm4162, %v4992, %v3788
    %v5009 = vsel %vm4162, %v4993, %v3790
    %v5010 = vsel %vm4162, %v4994, %v3792
    %v5011 = vsel %vm4162, %v4995, %v4720
    %v5012 = vsel %vm4162, %v4996, %v3796
    %v5013 = vsel %vm4162, %v4997, %v3798
    %v5014 = vsel %vm4162, %v4998, %v3800
    %v5015 = vsel %vm4162, %v4999, %v4722
    %v5016 = vsel %vm4179, %v5000, %v4735
    %v5017 = vsel %vm4179, %v5001, %v4737
    %v5018 = vsel %vm4179, %v5002, %v4739
    %v5019 = vsel %vm4179, %v5003, %v4741
    %v5020 = vsel %vm4179, %v5004, %v3829
    %v5021 = vsel %vm4179, %v5005, %v3831
    %v5022 = vsel %vm4179, %v5006, %v3833
    %v5023 = vsel %vm4179, %v5007, %v4743
    %v5024 = vsel %vm4179, %v5008, %v3837
    %v5025 = vsel %vm4179, %v5009, %v3839
    %v5026 = vsel %vm4179, %v5010, %v3841
    %v5027 = vsel %vm4179, %v5011, %v4745
    %v5028 = vsel %vm4179, %v5012, %v3845
    %v5029 = vsel %vm4179, %v5013, %v3847
    %v5030 = vsel %vm4179, %v5014, %v3849
    %v5031 = vsel %vm4179, %v5015, %v4747
    %v5032 = vsel %vm4196, %v5016, %v4756
    %v5033 = vsel %vm4196, %v5017, %v4758
    %v5034 = vsel %vm4196, %v5018, %v4760
    %v5035 = vsel %vm4196, %v5019, %v4762
    %v5036 = vsel %vm4196, %v5020, %v4764
    %v5037 = vsel %vm4196, %v5021, %v4766
    %v5038 = vsel %vm4196, %v5022, %v4768
    %v5039 = vsel %vm4196, %v5023, %v4770
    %v5040 = vsel %vm4196, %v5024, %v4772
    %v5041 = vsel %vm4196, %v5025, %v4774
    %v5042 = vsel %vm4196, %v5026, %v4776
    %v5043 = vsel %vm4196, %v5027, %v4778
    %v5044 = vsel %vm4196, %v5028, %v4780
    %v5045 = vsel %vm4196, %v5029, %v4782
    %v5046 = vsel %vm4196, %v5030, %v4784
    %v5047 = vsel %vm4196, %v5031, %v4786
    %v5048 = vsel %vm4213, %v5032, %v4804
    %v5049 = vsel %vm4213, %v5033, %v4806
    %v5050 = vsel %vm4213, %v5034, %v4808
    %v5051 = vsel %vm4213, %v5035, %v4810
    %v5052 = vsel %vm4213, %v5036, %v3930
    %v5053 = vsel %vm4213, %v5037, %v3932
    %v5054 = vsel %vm4213, %v5038, %v3934
    %v5055 = vsel %vm4213, %v5039, %v4812
    %v5056 = vsel %vm4213, %v5040, %v3938
    %v5057 = vsel %vm4213, %v5041, %v3940
    %v5058 = vsel %vm4213, %v5042, %v3942
    %v5059 = vsel %vm4213, %v5043, %v4814
    %v5060 = vsel %vm4213, %v5044, %v3946
    %v5061 = vsel %vm4213, %v5045, %v3948
    %v5062 = vsel %vm4213, %v5046, %v3950
    %v5063 = vsel %vm4213, %v5047, %v4816
    %5064 = vrot.lane.b32.xlu0 %v3083, 6
    %v5065 = vpop.permute.xlu0 %5064
    %5066 = vrot.lane.b32.xlu0 %v3084, 6
    %v5067 = vpop.permute.xlu0 %5066
    %5068 = vrot.lane.b32.xlu0 %v3085, 6
    %v5069 = vpop.permute.xlu0 %5068
    %5070 = vrot.lane.b32.xlu0 %v3086, 6
    %v5071 = vpop.permute.xlu0 %5070
    %5072 = vrot.lane.b32.xlu0 %v3092, 6
    %v5073 = vpop.permute.xlu0 %5072
    %5074 = vrot.lane.b32.xlu0 %v3098, 6
    %v5075 = vpop.permute.xlu0 %5074
    %5076 = vrot.lane.b32.xlu0 %v3104, 6
    %v5077 = vpop.permute.xlu0 %5076
    %5089 = vrot.lane.b32.xlu0 %v3119, 12
    %v5090 = vpop.permute.xlu0 %5089
    %5091 = vrot.lane.b32.xlu0 %v3120, 12
    %v5092 = vpop.permute.xlu0 %5091
    %5093 = vrot.lane.b32.xlu0 %v3121, 12
    %v5094 = vpop.permute.xlu0 %5093
    %5095 = vrot.lane.b32.xlu0 %v3122, 12
    %v5096 = vpop.permute.xlu0 %5095
    %5097 = vrot.lane.b32.xlu0 %v3128, 12
    %v5098 = vpop.permute.xlu0 %5097
    %5099 = vrot.lane.b32.xlu0 %v3134, 12
    %v5100 = vpop.permute.xlu0 %5099
    %5101 = vrot.lane.b32.xlu0 %v3140, 12
    %v5102 = vpop.permute.xlu0 %5101
    %5110 = vrot.lane.b32.xlu0 %v3051, 18
    %v5111 = vpop.permute.xlu0 %5110
    %5112 = vrot.lane.b32.xlu0 %v3057, 18
    %v5113 = vpop.permute.xlu0 %5112
    %5114 = vrot.lane.b32.xlu0 %v3063, 18
    %v5115 = vpop.permute.xlu0 %5114
    %5116 = vrot.lane.b32.xlu0 %v3069, 18
    %v5117 = vpop.permute.xlu0 %5116
    %5118 = vrot.lane.b32.xlu0 %v3070, 18
    %v5119 = vpop.permute.xlu0 %5118
    %5120 = vrot.lane.b32.xlu0 %v3071, 18
    %v5121 = vpop.permute.xlu0 %5120
    %5122 = vrot.lane.b32.xlu0 %v3072, 18
    %v5123 = vpop.permute.xlu0 %5122
    %5131 = vrot.lane.b32.xlu0 %v3016, 24
    %v5132 = vpop.permute.xlu0 %5131
    %5133 = vrot.lane.b32.xlu0 %v3037, 24
    %v5134 = vpop.permute.xlu0 %5133
    %5137 = vrot.lane.b32.xlu0 %v3052, 30
    %v5138 = vpop.permute.xlu0 %5137
    %5139 = vrot.lane.b32.xlu0 %v3053, 30
    %v5140 = vpop.permute.xlu0 %5139
    %5141 = vrot.lane.b32.xlu0 %v3054, 30
    %v5142 = vpop.permute.xlu0 %5141
    %5143 = vrot.lane.b32.xlu0 %v3055, 30
    %v5144 = vpop.permute.xlu0 %5143
    %5145 = vrot.lane.b32.xlu0 %v3061, 30
    %v5146 = vpop.permute.xlu0 %5145
    %5147 = vrot.lane.b32.xlu0 %v3067, 30
    %v5148 = vpop.permute.xlu0 %5147
    %5149 = vrot.lane.b32.xlu0 %v3073, 30
    %v5150 = vpop.permute.xlu0 %5149
    %5158 = vrot.lane.b32.xlu0 %v3017, 36
    %v5159 = vpop.permute.xlu0 %5158
    %5160 = vrot.lane.b32.xlu0 %v3018, 36
    %v5161 = vpop.permute.xlu0 %5160
    %5162 = vrot.lane.b32.xlu0 %v3019, 36
    %v5163 = vpop.permute.xlu0 %5162
    %5164 = vrot.lane.b32.xlu0 %v3020, 36
    %v5165 = vpop.permute.xlu0 %5164
    %5166 = vrot.lane.b32.xlu0 %v3026, 36
    %v5167 = vpop.permute.xlu0 %5166
    %5168 = vrot.lane.b32.xlu0 %v3032, 36
    %v5169 = vpop.permute.xlu0 %5168
    %5170 = vrot.lane.b32.xlu0 %v3038, 36
    %v5171 = vpop.permute.xlu0 %5170
    %5180 = vrot.lane.b32.xlu0 %v3053, 42
    %v5181 = vpop.permute.xlu0 %5180
    %5182 = vrot.lane.b32.xlu0 %v3054, 42
    %v5183 = vpop.permute.xlu0 %5182
    %5184 = vrot.lane.b32.xlu0 %v3055, 42
    %v5185 = vpop.permute.xlu0 %5184
    %5186 = vrot.lane.b32.xlu0 %v3056, 42
    %v5187 = vpop.permute.xlu0 %5186
    %5188 = vrot.lane.b32.xlu0 %v3062, 42
    %v5189 = vpop.permute.xlu0 %5188
    %5190 = vrot.lane.b32.xlu0 %v3068, 42
    %v5191 = vpop.permute.xlu0 %5190
    %5192 = vrot.lane.b32.xlu0 %v3074, 42
    %v5193 = vpop.permute.xlu0 %5192
    %5202 = vrot.lane.b32.xlu0 %v3123, 48
    %v5203 = vpop.permute.xlu0 %5202
    %5204 = vrot.lane.b32.xlu0 %v3129, 48
    %v5205 = vpop.permute.xlu0 %5204
    %5206 = vrot.lane.b32.xlu0 %v3135, 48
    %v5207 = vpop.permute.xlu0 %5206
    %5208 = vrot.lane.b32.xlu0 %v3141, 48
    %v5209 = vpop.permute.xlu0 %5208
    %5210 = vrot.lane.b32.xlu0 %v3142, 48
    %v5211 = vpop.permute.xlu0 %5210
    %5212 = vrot.lane.b32.xlu0 %v3143, 48
    %v5213 = vpop.permute.xlu0 %5212
    %5214 = vrot.lane.b32.xlu0 %v3144, 48
    %v5215 = vpop.permute.xlu0 %5214
    %5223 = vrot.lane.b32.xlu0 %v3088, 54
    %v5224 = vpop.permute.xlu0 %5223
    %5225 = vrot.lane.b32.xlu0 %v3094, 54
    %v5226 = vpop.permute.xlu0 %5225
    %5227 = vrot.lane.b32.xlu0 %v3100, 54
    %v5228 = vpop.permute.xlu0 %5227
    %5229 = vrot.lane.b32.xlu0 %v3106, 54
    %v5230 = vpop.permute.xlu0 %5229
    %5231 = vrot.lane.b32.xlu0 %v3107, 54
    %v5232 = vpop.permute.xlu0 %5231
    %5233 = vrot.lane.b32.xlu0 %v3108, 54
    %v5234 = vpop.permute.xlu0 %5233
    %5235 = vrot.lane.b32.xlu0 %v3109, 54
    %v5236 = vpop.permute.xlu0 %5235
    %5244 = vrot.lane.b32.xlu0 %v3124, 60
    %v5245 = vpop.permute.xlu0 %5244
    %5246 = vrot.lane.b32.xlu0 %v3125, 60
    %v5247 = vpop.permute.xlu0 %5246
    %5248 = vrot.lane.b32.xlu0 %v3126, 60
    %v5249 = vpop.permute.xlu0 %5248
    %5250 = vrot.lane.b32.xlu0 %v3127, 60
    %v5251 = vpop.permute.xlu0 %5250
    %5252 = vrot.lane.b32.xlu0 %v3130, 60
    %v5253 = vpop.permute.xlu0 %5252
    %5254 = vrot.lane.b32.xlu0 %v3131, 60
    %v5255 = vpop.permute.xlu0 %5254
    %5256 = vrot.lane.b32.xlu0 %v3132, 60
    %v5257 = vpop.permute.xlu0 %5256
    %5258 = vrot.lane.b32.xlu0 %v3133, 60
    %v5259 = vpop.permute.xlu0 %5258
    %5260 = vrot.lane.b32.xlu0 %v3136, 60
    %v5261 = vpop.permute.xlu0 %5260
    %5262 = vrot.lane.b32.xlu0 %v3137, 60
    %v5263 = vpop.permute.xlu0 %5262
    %5264 = vrot.lane.b32.xlu0 %v3138, 60
    %v5265 = vpop.permute.xlu0 %5264
    %5266 = vrot.lane.b32.xlu0 %v3139, 60
    %v5267 = vpop.permute.xlu0 %5266
    %5268 = vrot.lane.b32.xlu0 %v3142, 60
    %v5269 = vpop.permute.xlu0 %5268
    %5270 = vrot.lane.b32.xlu0 %v3143, 60
    %v5271 = vpop.permute.xlu0 %5270
    %5272 = vrot.lane.b32.xlu0 %v3144, 60
    %v5273 = vpop.permute.xlu0 %5272
    %5274 = vrot.lane.b32.xlu0 %v3145, 60
    %v5275 = vpop.permute.xlu0 %5274
    %5292 = vrot.lane.b32.xlu0 %v3089, 66
    %v5293 = vpop.permute.xlu0 %5292
    %5294 = vrot.lane.b32.xlu0 %v3090, 66
    %v5295 = vpop.permute.xlu0 %5294
    %5296 = vrot.lane.b32.xlu0 %v3091, 66
    %v5297 = vpop.permute.xlu0 %5296
    %5298 = vrot.lane.b32.xlu0 %v3092, 66
    %v5299 = vpop.permute.xlu0 %5298
    %5300 = vrot.lane.b32.xlu0 %v3095, 66
    %v5301 = vpop.permute.xlu0 %5300
    %5302 = vrot.lane.b32.xlu0 %v3096, 66
    %v5303 = vpop.permute.xlu0 %5302
    %5304 = vrot.lane.b32.xlu0 %v3097, 66
    %v5305 = vpop.permute.xlu0 %5304
    %5306 = vrot.lane.b32.xlu0 %v3098, 66
    %v5307 = vpop.permute.xlu0 %5306
    %5308 = vrot.lane.b32.xlu0 %v3101, 66
    %v5309 = vpop.permute.xlu0 %5308
    %5310 = vrot.lane.b32.xlu0 %v3102, 66
    %v5311 = vpop.permute.xlu0 %5310
    %5312 = vrot.lane.b32.xlu0 %v3103, 66
    %v5313 = vpop.permute.xlu0 %5312
    %5314 = vrot.lane.b32.xlu0 %v3104, 66
    %v5315 = vpop.permute.xlu0 %5314
    %5316 = vrot.lane.b32.xlu0 %v3107, 66
    %v5317 = vpop.permute.xlu0 %5316
    %5318 = vrot.lane.b32.xlu0 %v3108, 66
    %v5319 = vpop.permute.xlu0 %5318
    %5320 = vrot.lane.b32.xlu0 %v3109, 66
    %v5321 = vpop.permute.xlu0 %5320
    %5322 = vrot.lane.b32.xlu0 %v3110, 66
    %v5323 = vpop.permute.xlu0 %5322
    %5341 = vrot.lane.b32.xlu0 %v3125, 72
    %v5342 = vpop.permute.xlu0 %5341
    %5343 = vrot.lane.b32.xlu0 %v3126, 72
    %v5344 = vpop.permute.xlu0 %5343
    %5345 = vrot.lane.b32.xlu0 %v3127, 72
    %v5346 = vpop.permute.xlu0 %5345
    %5347 = vrot.lane.b32.xlu0 %v3128, 72
    %v5348 = vpop.permute.xlu0 %5347
    %5349 = vrot.lane.b32.xlu0 %v3131, 72
    %v5350 = vpop.permute.xlu0 %5349
    %5351 = vrot.lane.b32.xlu0 %v3132, 72
    %v5352 = vpop.permute.xlu0 %5351
    %5353 = vrot.lane.b32.xlu0 %v3133, 72
    %v5354 = vpop.permute.xlu0 %5353
    %5355 = vrot.lane.b32.xlu0 %v3134, 72
    %v5356 = vpop.permute.xlu0 %5355
    %5357 = vrot.lane.b32.xlu0 %v3137, 72
    %v5358 = vpop.permute.xlu0 %5357
    %5359 = vrot.lane.b32.xlu0 %v3138, 72
    %v5360 = vpop.permute.xlu0 %5359
    %5361 = vrot.lane.b32.xlu0 %v3139, 72
    %v5362 = vpop.permute.xlu0 %5361
    %5363 = vrot.lane.b32.xlu0 %v3140, 72
    %v5364 = vpop.permute.xlu0 %5363
    %5365 = vrot.lane.b32.xlu0 %v3143, 72
    %v5366 = vpop.permute.xlu0 %5365
    %5367 = vrot.lane.b32.xlu0 %v3144, 72
    %v5368 = vpop.permute.xlu0 %5367
    %5369 = vrot.lane.b32.xlu0 %v3145, 72
    %v5370 = vpop.permute.xlu0 %5369
    %5371 = vrot.lane.b32.xlu0 %v3146, 72
    %v5372 = vpop.permute.xlu0 %5371
    %5389 = vrot.lane.b32.xlu0 %v3057, 78
    %v5390 = vpop.permute.xlu0 %5389
    %5391 = vrot.lane.b32.xlu0 %v3063, 78
    %v5392 = vpop.permute.xlu0 %5391
    %5393 = vrot.lane.b32.xlu0 %v3069, 78
    %v5394 = vpop.permute.xlu0 %5393
    %5395 = vrot.lane.b32.xlu0 %v3075, 78
    %v5396 = vpop.permute.xlu0 %5395
    %5397 = vrot.lane.b32.xlu0 %v3076, 78
    %v5398 = vpop.permute.xlu0 %5397
    %5399 = vrot.lane.b32.xlu0 %v3077, 78
    %v5400 = vpop.permute.xlu0 %5399
    %5401 = vrot.lane.b32.xlu0 %v3078, 78
    %v5402 = vpop.permute.xlu0 %5401
    %5410 = vrot.lane.b32.xlu0 %v3022, 84
    %v5411 = vpop.permute.xlu0 %5410
    %5412 = vrot.lane.b32.xlu0 %v3028, 84
    %v5413 = vpop.permute.xlu0 %5412
    %5414 = vrot.lane.b32.xlu0 %v3034, 84
    %v5415 = vpop.permute.xlu0 %5414
    %5416 = vrot.lane.b32.xlu0 %v3040, 84
    %v5417 = vpop.permute.xlu0 %5416
    %5418 = vrot.lane.b32.xlu0 %v3041, 84
    %v5419 = vpop.permute.xlu0 %5418
    %5420 = vrot.lane.b32.xlu0 %v3042, 84
    %v5421 = vpop.permute.xlu0 %5420
    %5422 = vrot.lane.b32.xlu0 %v3043, 84
    %v5423 = vpop.permute.xlu0 %5422
    %5431 = vrot.lane.b32.xlu0 %v3058, 90
    %v5432 = vpop.permute.xlu0 %5431
    %5433 = vrot.lane.b32.xlu0 %v3059, 90
    %v5434 = vpop.permute.xlu0 %5433
    %5435 = vrot.lane.b32.xlu0 %v3060, 90
    %v5436 = vpop.permute.xlu0 %5435
    %5437 = vrot.lane.b32.xlu0 %v3061, 90
    %v5438 = vpop.permute.xlu0 %5437
    %5439 = vrot.lane.b32.xlu0 %v3064, 90
    %v5440 = vpop.permute.xlu0 %5439
    %5441 = vrot.lane.b32.xlu0 %v3065, 90
    %v5442 = vpop.permute.xlu0 %5441
    %5443 = vrot.lane.b32.xlu0 %v3066, 90
    %v5444 = vpop.permute.xlu0 %5443
    %5445 = vrot.lane.b32.xlu0 %v3067, 90
    %v5446 = vpop.permute.xlu0 %5445
    %5447 = vrot.lane.b32.xlu0 %v3070, 90
    %v5448 = vpop.permute.xlu0 %5447
    %5449 = vrot.lane.b32.xlu0 %v3071, 90
    %v5450 = vpop.permute.xlu0 %5449
    %5451 = vrot.lane.b32.xlu0 %v3072, 90
    %v5452 = vpop.permute.xlu0 %5451
    %5453 = vrot.lane.b32.xlu0 %v3073, 90
    %v5454 = vpop.permute.xlu0 %5453
    %5455 = vrot.lane.b32.xlu0 %v3076, 90
    %v5456 = vpop.permute.xlu0 %5455
    %5457 = vrot.lane.b32.xlu0 %v3077, 90
    %v5458 = vpop.permute.xlu0 %5457
    %5459 = vrot.lane.b32.xlu0 %v3078, 90
    %v5460 = vpop.permute.xlu0 %5459
    %5461 = vrot.lane.b32.xlu0 %v3079, 90
    %v5462 = vpop.permute.xlu0 %5461
    %v5479 = vsel %vm3975, %v3118, %v5065
    %v5480 = vsel %vm3975, %v3119, %v5067
    %v5481 = vsel %vm3975, %v3120, %v5069
    %v5482 = vsel %vm3975, %v3121, %v5071
    %v5483 = vsel %vm3975, %v3127, %v5073
    %v5484 = vsel %vm3975, %v3133, %v5075
    %v5485 = vsel %vm3975, %v3139, %v5077
    %v5486 = vsel %vm3992, %v5479, %v5090
    %v5487 = vsel %vm3992, %v5480, %v5092
    %v5488 = vsel %vm3992, %v5481, %v5094
    %v5489 = vsel %vm3992, %v5482, %v5096
    %v5490 = vsel %vm3992, %v5483, %v5098
    %v5491 = vsel %vm3992, %v5484, %v5100
    %v5492 = vsel %vm3992, %v5485, %v5102
    %v5493 = vsel %vm4009, %v5486, %v5111
    %v5494 = vsel %vm4009, %v5487, %v3294
    %v5495 = vsel %vm4009, %v5488, %v3296
    %v5496 = vsel %vm4009, %v5489, %v3298
    %v5497 = vsel %vm4009, %v4841, %v5113
    %v5498 = vsel %vm4009, %v4842, %v3302
    %v5499 = vsel %vm4009, %v4843, %v3304
    %v5500 = vsel %vm4009, %v5490, %v3306
    %v5501 = vsel %vm4009, %v4845, %v5115
    %v5502 = vsel %vm4009, %v4846, %v3310
    %v5503 = vsel %vm4009, %v4847, %v3312
    %v5504 = vsel %vm4009, %v5491, %v3314
    %v5505 = vsel %vm4009, %v4849, %v5117
    %v5506 = vsel %vm4009, %v4850, %v5119
    %v5507 = vsel %vm4009, %v4851, %v5121
    %v5508 = vsel %vm4009, %v5492, %v5123
    %v5509 = vsel %vm4026, %v5493, %v5132
    %v5510 = vsel %vm4026, %v5494, %v3346
    %v5511 = vsel %vm4026, %v5495, %v3348
    %v5512 = vsel %vm4026, %v5496, %v3350
    %v5513 = vsel %vm4026, %v5497, %v4387
    %v5514 = vsel %vm4026, %v5498, %v3354
    %v5515 = vsel %vm4026, %v5499, %v3356
    %v5516 = vsel %vm4026, %v5500, %v3358
    %v5517 = vsel %vm4026, %v5501, %v4391
    %v5518 = vsel %vm4026, %v5502, %v3362
    %v5519 = vsel %vm4026, %v5503, %v3364
    %v5520 = vsel %vm4026, %v5504, %v3366
    %v5521 = vsel %vm4026, %v5505, %v4395
    %v5522 = vsel %vm4026, %v5506, %v4397
    %v5523 = vsel %vm4026, %v5507, %v4399
    %v5524 = vsel %vm4026, %v5508, %v5134
    %v5525 = vsel %vm4043, %v5509, %v5138
    %v5526 = vsel %vm4043, %v5510, %v5140
    %v5527 = vsel %vm4043, %v5511, %v5142
    %v5528 = vsel %vm4043, %v5512, %v5144
    %v5529 = vsel %vm4043, %v5513, %v4427
    %v5530 = vsel %vm4043, %v5514, %v4429
    %v5531 = vsel %vm4043, %v5515, %v4431
    %v5532 = vsel %vm4043, %v5516, %v5146
    %v5533 = vsel %vm4043, %v5517, %v4435
    %v5534 = vsel %vm4043, %v5518, %v4437
    %v5535 = vsel %vm4043, %v5519, %v4439
    %v5536 = vsel %vm4043, %v5520, %v5148
    %v5537 = vsel %vm4043, %v5521, %v4443
    %v5538 = vsel %vm4043, %v5522, %v4445
    %v5539 = vsel %vm4043, %v5523, %v4447
    %v5540 = vsel %vm4043, %v5524, %v5150
    %v5541 = vsel %vm4060, %v5525, %v5159
    %v5542 = vsel %vm4060, %v5526, %v5161
    %v5543 = vsel %vm4060, %v5527, %v5163
    %v5544 = vsel %vm4060, %v5528, %v5165
    %v5545 = vsel %vm4060, %v5529, %v4476
    %v5546 = vsel %vm4060, %v5530, %v4478
    %v5547 = vsel %vm4060, %v5531, %v4480
    %v5548 = vsel %vm4060, %v5532, %v5167
    %v5549 = vsel %vm4060, %v5533, %v4484
    %v5550 = vsel %vm4060, %v5534, %v4486
    %v5551 = vsel %vm4060, %v5535, %v4488
    %v5552 = vsel %vm4060, %v5536, %v5169
    %v5553 = vsel %vm4060, %v5537, %v4492
    %v5554 = vsel %vm4060, %v5538, %v4494
    %v5555 = vsel %vm4060, %v5539, %v4496
    %v5556 = vsel %vm4060, %v5540, %v5171
    %v5557 = vsel %vm4077, %v5541, %v5181
    %v5558 = vsel %vm4077, %v5542, %v5183
    %v5559 = vsel %vm4077, %v5543, %v5185
    %v5560 = vsel %vm4077, %v5544, %v5187
    %v5561 = vsel %vm4077, %v5545, %v4525
    %v5562 = vsel %vm4077, %v5546, %v4527
    %v5563 = vsel %vm4077, %v5547, %v4529
    %v5564 = vsel %vm4077, %v5548, %v5189
    %v5565 = vsel %vm4077, %v5549, %v4533
    %v5566 = vsel %vm4077, %v5550, %v4535
    %v5567 = vsel %vm4077, %v5551, %v4537
    %v5568 = vsel %vm4077, %v5552, %v5191
    %v5569 = vsel %vm4077, %v5553, %v4541
    %v5570 = vsel %vm4077, %v5554, %v4543
    %v5571 = vsel %vm4077, %v5555, %v4545
    %v5572 = vsel %vm4077, %v5556, %v5193
    %v5573 = vsel %vm4094, %v5557, %v5203
    %v5574 = vsel %vm4094, %v5558, %v3578
    %v5575 = vsel %vm4094, %v5559, %v3580
    %v5576 = vsel %vm4094, %v5560, %v3582
    %v5577 = vsel %vm4094, %v5561, %v5205
    %v5578 = vsel %vm4094, %v5562, %v3586
    %v5579 = vsel %vm4094, %v5563, %v3588
    %v5580 = vsel %vm4094, %v5564, %v3590
    %v5581 = vsel %vm4094, %v5565, %v5207
    %v5582 = vsel %vm4094, %v5566, %v3594
    %v5583 = vsel %vm4094, %v5567, %v3596
    %v5584 = vsel %vm4094, %v5568, %v3598
    %v5585 = vsel %vm4094, %v5569, %v5209
    %v5586 = vsel %vm4094, %v5570, %v5211
    %v5587 = vsel %vm4094, %v5571, %v5213
    %v5588 = vsel %vm4094, %v5572, %v5215
    %v5589 = vsel %vm4111, %v5573, %v5224
    %v5590 = vsel %vm4111, %v5574, %v3630
    %v5591 = vsel %vm4111, %v5575, %v3632
    %v5592 = vsel %vm4111, %v5576, %v3634
    %v5593 = vsel %vm4111, %v5577, %v5226
    %v5594 = vsel %vm4111, %v5578, %v3638
    %v5595 = vsel %vm4111, %v5579, %v3640
    %v5596 = vsel %vm4111, %v5580, %v3642
    %v5597 = vsel %vm4111, %v5581, %v5228
    %v5598 = vsel %vm4111, %v5582, %v3646
    %v5599 = vsel %vm4111, %v5583, %v3648
    %v5600 = vsel %vm4111, %v5584, %v3650
    %v5601 = vsel %vm4111, %v5585, %v5230
    %v5602 = vsel %vm4111, %v5586, %v5232
    %v5603 = vsel %vm4111, %v5587, %v5234
    %v5604 = vsel %vm4111, %v5588, %v5236
    %v5605 = vsel %vm4128, %v5589, %v5245
    %v5606 = vsel %vm4128, %v5590, %v5247
    %v5607 = vsel %vm4128, %v5591, %v5249
    %v5608 = vsel %vm4128, %v5592, %v5251
    %v5609 = vsel %vm4128, %v5593, %v5253
    %v5610 = vsel %vm4128, %v5594, %v5255
    %v5611 = vsel %vm4128, %v5595, %v5257
    %v5612 = vsel %vm4128, %v5596, %v5259
    %v5613 = vsel %vm4128, %v5597, %v5261
    %v5614 = vsel %vm4128, %v5598, %v5263
    %v5615 = vsel %vm4128, %v5599, %v5265
    %v5616 = vsel %vm4128, %v5600, %v5267
    %v5617 = vsel %vm4128, %v5601, %v5269
    %v5618 = vsel %vm4128, %v5602, %v5271
    %v5619 = vsel %vm4128, %v5603, %v5273
    %v5620 = vsel %vm4128, %v5604, %v5275
    %v5621 = vsel %vm4145, %v5605, %v5293
    %v5622 = vsel %vm4145, %v5606, %v5295
    %v5623 = vsel %vm4145, %v5607, %v5297
    %v5624 = vsel %vm4145, %v5608, %v5299
    %v5625 = vsel %vm4145, %v5609, %v5301
    %v5626 = vsel %vm4145, %v5610, %v5303
    %v5627 = vsel %vm4145, %v5611, %v5305
    %v5628 = vsel %vm4145, %v5612, %v5307
    %v5629 = vsel %vm4145, %v5613, %v5309
    %v5630 = vsel %vm4145, %v5614, %v5311
    %v5631 = vsel %vm4145, %v5615, %v5313
    %v5632 = vsel %vm4145, %v5616, %v5315
    %v5633 = vsel %vm4145, %v5617, %v5317
    %v5634 = vsel %vm4145, %v5618, %v5319
    %v5635 = vsel %vm4145, %v5619, %v5321
    %v5636 = vsel %vm4145, %v5620, %v5323
    %v5637 = vsel %vm4162, %v5621, %v5342
    %v5638 = vsel %vm4162, %v5622, %v5344
    %v5639 = vsel %vm4162, %v5623, %v5346
    %v5640 = vsel %vm4162, %v5624, %v5348
    %v5641 = vsel %vm4162, %v5625, %v5350
    %v5642 = vsel %vm4162, %v5626, %v5352
    %v5643 = vsel %vm4162, %v5627, %v5354
    %v5644 = vsel %vm4162, %v5628, %v5356
    %v5645 = vsel %vm4162, %v5629, %v5358
    %v5646 = vsel %vm4162, %v5630, %v5360
    %v5647 = vsel %vm4162, %v5631, %v5362
    %v5648 = vsel %vm4162, %v5632, %v5364
    %v5649 = vsel %vm4162, %v5633, %v5366
    %v5650 = vsel %vm4162, %v5634, %v5368
    %v5651 = vsel %vm4162, %v5635, %v5370
    %v5652 = vsel %vm4162, %v5636, %v5372
    %v5653 = vsel %vm4179, %v5637, %v5390
    %v5654 = vsel %vm4179, %v5638, %v3835
    %v5655 = vsel %vm4179, %v5639, %v3837
    %v5656 = vsel %vm4179, %v5640, %v3839
    %v5657 = vsel %vm4179, %v5641, %v5392
    %v5658 = vsel %vm4179, %v5642, %v3843
    %v5659 = vsel %vm4179, %v5643, %v3845
    %v5660 = vsel %vm4179, %v5644, %v3847
    %v5661 = vsel %vm4179, %v5645, %v5394
    %v5662 = vsel %vm4179, %v5646, %v3851
    %v5663 = vsel %vm4179, %v5647, %v3853
    %v5664 = vsel %vm4179, %v5648, %v3855
    %v5665 = vsel %vm4179, %v5649, %v5396
    %v5666 = vsel %vm4179, %v5650, %v5398
    %v5667 = vsel %vm4179, %v5651, %v5400
    %v5668 = vsel %vm4179, %v5652, %v5402
    %v5669 = vsel %vm4196, %v5653, %v5411
    %v5670 = vsel %vm4196, %v5654, %v3884
    %v5671 = vsel %vm4196, %v5655, %v3886
    %v5672 = vsel %vm4196, %v5656, %v3888
    %v5673 = vsel %vm4196, %v5657, %v5413
    %v5674 = vsel %vm4196, %v5658, %v3892
    %v5675 = vsel %vm4196, %v5659, %v3894
    %v5676 = vsel %vm4196, %v5660, %v3896
    %v5677 = vsel %vm4196, %v5661, %v5415
    %v5678 = vsel %vm4196, %v5662, %v3900
    %v5679 = vsel %vm4196, %v5663, %v3902
    %v5680 = vsel %vm4196, %v5664, %v3904
    %v5681 = vsel %vm4196, %v5665, %v5417
    %v5682 = vsel %vm4196, %v5666, %v5419
    %v5683 = vsel %vm4196, %v5667, %v5421
    %v5684 = vsel %vm4196, %v5668, %v5423
    %v5685 = vsel %vm4213, %v5669, %v5432
    %v5686 = vsel %vm4213, %v5670, %v5434
    %v5687 = vsel %vm4213, %v5671, %v5436
    %v5688 = vsel %vm4213, %v5672, %v5438
    %v5689 = vsel %vm4213, %v5673, %v5440
    %v5690 = vsel %vm4213, %v5674, %v5442
    %v5691 = vsel %vm4213, %v5675, %v5444
    %v5692 = vsel %vm4213, %v5676, %v5446
    %v5693 = vsel %vm4213, %v5677, %v5448
    %v5694 = vsel %vm4213, %v5678, %v5450
    %v5695 = vsel %vm4213, %v5679, %v5452
    %v5696 = vsel %vm4213, %v5680, %v5454
    %v5697 = vsel %vm4213, %v5681, %v5456
    %v5698 = vsel %vm4213, %v5682, %v5458
    %v5699 = vsel %vm4213, %v5683, %v5460
    %v5700 = vsel %vm4213, %v5684, %v5462
    %5702 = vrot.lane.b32.xlu0 %v3061, 6
    %v5703 = vpop.permute.xlu0 %5702
    %5704 = vrot.lane.b32.xlu0 %v3062, 6
    %v5705 = vpop.permute.xlu0 %5704
    %5706 = vrot.lane.b32.xlu0 %v3067, 6
    %v5707 = vpop.permute.xlu0 %5706
    %5708 = vrot.lane.b32.xlu0 %v3068, 6
    %v5709 = vpop.permute.xlu0 %5708
    %5710 = vrot.lane.b32.xlu0 %v3071, 6
    %v5711 = vpop.permute.xlu0 %5710
    %5712 = vrot.lane.b32.xlu0 %v3072, 6
    %v5713 = vpop.permute.xlu0 %5712
    %5714 = vrot.lane.b32.xlu0 %v3073, 6
    %v5715 = vpop.permute.xlu0 %5714
    %5716 = vrot.lane.b32.xlu0 %v3074, 6
    %v5717 = vpop.permute.xlu0 %5716
    %5718 = vrot.lane.b32.xlu0 %v3077, 6
    %v5719 = vpop.permute.xlu0 %5718
    %5720 = vrot.lane.b32.xlu0 %v3078, 6
    %v5721 = vpop.permute.xlu0 %5720
    %5722 = vrot.lane.b32.xlu0 %v3079, 6
    %v5723 = vpop.permute.xlu0 %5722
    %5724 = vrot.lane.b32.xlu0 %v3080, 6
    %v5725 = vpop.permute.xlu0 %5724
    %5738 = vrot.lane.b32.xlu0 %v3081, 12
    %v5739 = vpop.permute.xlu0 %5738
    %5740 = vrot.lane.b32.xlu0 %v3082, 12
    %v5741 = vpop.permute.xlu0 %5740
    %5742 = vrot.lane.b32.xlu0 %v3083, 12
    %v5743 = vpop.permute.xlu0 %5742
    %5744 = vrot.lane.b32.xlu0 %v3084, 12
    %v5745 = vpop.permute.xlu0 %5744
    %5746 = vrot.lane.b32.xlu0 %v3087, 12
    %v5747 = vpop.permute.xlu0 %5746
    %5748 = vrot.lane.b32.xlu0 %v3088, 12
    %v5749 = vpop.permute.xlu0 %5748
    %5750 = vrot.lane.b32.xlu0 %v3089, 12
    %v5751 = vpop.permute.xlu0 %5750
    %5752 = vrot.lane.b32.xlu0 %v3090, 12
    %v5753 = vpop.permute.xlu0 %5752
    %5754 = vrot.lane.b32.xlu0 %v3093, 12
    %v5755 = vpop.permute.xlu0 %5754
    %5756 = vrot.lane.b32.xlu0 %v3094, 12
    %v5757 = vpop.permute.xlu0 %5756
    %5758 = vrot.lane.b32.xlu0 %v3095, 12
    %v5759 = vpop.permute.xlu0 %5758
    %5760 = vrot.lane.b32.xlu0 %v3096, 12
    %v5761 = vpop.permute.xlu0 %5760
    %5762 = vrot.lane.b32.xlu0 %v3099, 12
    %v5763 = vpop.permute.xlu0 %5762
    %5764 = vrot.lane.b32.xlu0 %v3100, 12
    %v5765 = vpop.permute.xlu0 %5764
    %5766 = vrot.lane.b32.xlu0 %v3101, 12
    %v5767 = vpop.permute.xlu0 %5766
    %5768 = vrot.lane.b32.xlu0 %v3102, 12
    %v5769 = vpop.permute.xlu0 %5768
    %5786 = vrot.lane.b32.xlu0 %v3117, 18
    %v5787 = vpop.permute.xlu0 %5786
    %5788 = vrot.lane.b32.xlu0 %v3118, 18
    %v5789 = vpop.permute.xlu0 %5788
    %5790 = vrot.lane.b32.xlu0 %v3119, 18
    %v5791 = vpop.permute.xlu0 %5790
    %5792 = vrot.lane.b32.xlu0 %v3120, 18
    %v5793 = vpop.permute.xlu0 %5792
    %5794 = vrot.lane.b32.xlu0 %v3123, 18
    %v5795 = vpop.permute.xlu0 %5794
    %5796 = vrot.lane.b32.xlu0 %v3124, 18
    %v5797 = vpop.permute.xlu0 %5796
    %5798 = vrot.lane.b32.xlu0 %v3125, 18
    %v5799 = vpop.permute.xlu0 %5798
    %5800 = vrot.lane.b32.xlu0 %v3126, 18
    %v5801 = vpop.permute.xlu0 %5800
    %5802 = vrot.lane.b32.xlu0 %v3129, 18
    %v5803 = vpop.permute.xlu0 %5802
    %5804 = vrot.lane.b32.xlu0 %v3130, 18
    %v5805 = vpop.permute.xlu0 %5804
    %5806 = vrot.lane.b32.xlu0 %v3131, 18
    %v5807 = vpop.permute.xlu0 %5806
    %5808 = vrot.lane.b32.xlu0 %v3132, 18
    %v5809 = vpop.permute.xlu0 %5808
    %5810 = vrot.lane.b32.xlu0 %v3135, 18
    %v5811 = vpop.permute.xlu0 %5810
    %5812 = vrot.lane.b32.xlu0 %v3136, 18
    %v5813 = vpop.permute.xlu0 %5812
    %5814 = vrot.lane.b32.xlu0 %v3137, 18
    %v5815 = vpop.permute.xlu0 %5814
    %5816 = vrot.lane.b32.xlu0 %v3138, 18
    %v5817 = vpop.permute.xlu0 %5816
    %5834 = vrot.lane.b32.xlu0 %v3082, 24
    %v5835 = vpop.permute.xlu0 %5834
    %5836 = vrot.lane.b32.xlu0 %v3083, 24
    %v5837 = vpop.permute.xlu0 %5836
    %5838 = vrot.lane.b32.xlu0 %v3084, 24
    %v5839 = vpop.permute.xlu0 %5838
    %5840 = vrot.lane.b32.xlu0 %v3085, 24
    %v5841 = vpop.permute.xlu0 %5840
    %5842 = vrot.lane.b32.xlu0 %v3088, 24
    %v5843 = vpop.permute.xlu0 %5842
    %5844 = vrot.lane.b32.xlu0 %v3089, 24
    %v5845 = vpop.permute.xlu0 %5844
    %5846 = vrot.lane.b32.xlu0 %v3090, 24
    %v5847 = vpop.permute.xlu0 %5846
    %5848 = vrot.lane.b32.xlu0 %v3091, 24
    %v5849 = vpop.permute.xlu0 %5848
    %5850 = vrot.lane.b32.xlu0 %v3094, 24
    %v5851 = vpop.permute.xlu0 %5850
    %5852 = vrot.lane.b32.xlu0 %v3095, 24
    %v5853 = vpop.permute.xlu0 %5852
    %5854 = vrot.lane.b32.xlu0 %v3096, 24
    %v5855 = vpop.permute.xlu0 %5854
    %5856 = vrot.lane.b32.xlu0 %v3097, 24
    %v5857 = vpop.permute.xlu0 %5856
    %5858 = vrot.lane.b32.xlu0 %v3100, 24
    %v5859 = vpop.permute.xlu0 %5858
    %5860 = vrot.lane.b32.xlu0 %v3101, 24
    %v5861 = vpop.permute.xlu0 %5860
    %5862 = vrot.lane.b32.xlu0 %v3102, 24
    %v5863 = vpop.permute.xlu0 %5862
    %5864 = vrot.lane.b32.xlu0 %v3103, 24
    %v5865 = vpop.permute.xlu0 %5864
    %5882 = vrot.lane.b32.xlu0 %v3118, 30
    %v5883 = vpop.permute.xlu0 %5882
    %5884 = vrot.lane.b32.xlu0 %v3119, 30
    %v5885 = vpop.permute.xlu0 %5884
    %5886 = vrot.lane.b32.xlu0 %v3120, 30
    %v5887 = vpop.permute.xlu0 %5886
    %5888 = vrot.lane.b32.xlu0 %v3121, 30
    %v5889 = vpop.permute.xlu0 %5888
    %5890 = vrot.lane.b32.xlu0 %v3124, 30
    %v5891 = vpop.permute.xlu0 %5890
    %5892 = vrot.lane.b32.xlu0 %v3125, 30
    %v5893 = vpop.permute.xlu0 %5892
    %5894 = vrot.lane.b32.xlu0 %v3126, 30
    %v5895 = vpop.permute.xlu0 %5894
    %5896 = vrot.lane.b32.xlu0 %v3127, 30
    %v5897 = vpop.permute.xlu0 %5896
    %5898 = vrot.lane.b32.xlu0 %v3130, 30
    %v5899 = vpop.permute.xlu0 %5898
    %5900 = vrot.lane.b32.xlu0 %v3131, 30
    %v5901 = vpop.permute.xlu0 %5900
    %5902 = vrot.lane.b32.xlu0 %v3132, 30
    %v5903 = vpop.permute.xlu0 %5902
    %5904 = vrot.lane.b32.xlu0 %v3133, 30
    %v5905 = vpop.permute.xlu0 %5904
    %5906 = vrot.lane.b32.xlu0 %v3136, 30
    %v5907 = vpop.permute.xlu0 %5906
    %5908 = vrot.lane.b32.xlu0 %v3137, 30
    %v5909 = vpop.permute.xlu0 %5908
    %5910 = vrot.lane.b32.xlu0 %v3138, 30
    %v5911 = vpop.permute.xlu0 %5910
    %5912 = vrot.lane.b32.xlu0 %v3139, 30
    %v5913 = vpop.permute.xlu0 %5912
    %5930 = vrot.lane.b32.xlu0 %v3083, 36
    %v5931 = vpop.permute.xlu0 %5930
    %5932 = vrot.lane.b32.xlu0 %v3084, 36
    %v5933 = vpop.permute.xlu0 %5932
    %5934 = vrot.lane.b32.xlu0 %v3085, 36
    %v5935 = vpop.permute.xlu0 %5934
    %5936 = vrot.lane.b32.xlu0 %v3086, 36
    %v5937 = vpop.permute.xlu0 %5936
    %5938 = vrot.lane.b32.xlu0 %v3089, 36
    %v5939 = vpop.permute.xlu0 %5938
    %5940 = vrot.lane.b32.xlu0 %v3090, 36
    %v5941 = vpop.permute.xlu0 %5940
    %5942 = vrot.lane.b32.xlu0 %v3091, 36
    %v5943 = vpop.permute.xlu0 %5942
    %5944 = vrot.lane.b32.xlu0 %v3092, 36
    %v5945 = vpop.permute.xlu0 %5944
    %5946 = vrot.lane.b32.xlu0 %v3095, 36
    %v5947 = vpop.permute.xlu0 %5946
    %5948 = vrot.lane.b32.xlu0 %v3096, 36
    %v5949 = vpop.permute.xlu0 %5948
    %5950 = vrot.lane.b32.xlu0 %v3097, 36
    %v5951 = vpop.permute.xlu0 %5950
    %5952 = vrot.lane.b32.xlu0 %v3098, 36
    %v5953 = vpop.permute.xlu0 %5952
    %5954 = vrot.lane.b32.xlu0 %v3101, 36
    %v5955 = vpop.permute.xlu0 %5954
    %5956 = vrot.lane.b32.xlu0 %v3102, 36
    %v5957 = vpop.permute.xlu0 %5956
    %5958 = vrot.lane.b32.xlu0 %v3103, 36
    %v5959 = vpop.permute.xlu0 %5958
    %5960 = vrot.lane.b32.xlu0 %v3104, 36
    %v5961 = vpop.permute.xlu0 %5960
    %5978 = vrot.lane.b32.xlu0 %v3015, 42
    %v5979 = vpop.permute.xlu0 %5978
    %5980 = vrot.lane.b32.xlu0 %v3016, 42
    %v5981 = vpop.permute.xlu0 %5980
    %5982 = vrot.lane.b32.xlu0 %v3017, 42
    %v5983 = vpop.permute.xlu0 %5982
    %5984 = vrot.lane.b32.xlu0 %v3018, 42
    %v5985 = vpop.permute.xlu0 %5984
    %5986 = vrot.lane.b32.xlu0 %v3021, 42
    %v5987 = vpop.permute.xlu0 %5986
    %5988 = vrot.lane.b32.xlu0 %v3022, 42
    %v5989 = vpop.permute.xlu0 %5988
    %5990 = vrot.lane.b32.xlu0 %v3023, 42
    %v5991 = vpop.permute.xlu0 %5990
    %5992 = vrot.lane.b32.xlu0 %v3024, 42
    %v5993 = vpop.permute.xlu0 %5992
    %5994 = vrot.lane.b32.xlu0 %v3027, 42
    %v5995 = vpop.permute.xlu0 %5994
    %5996 = vrot.lane.b32.xlu0 %v3028, 42
    %v5997 = vpop.permute.xlu0 %5996
    %5998 = vrot.lane.b32.xlu0 %v3029, 42
    %v5999 = vpop.permute.xlu0 %5998
    %6000 = vrot.lane.b32.xlu0 %v3030, 42
    %v6001 = vpop.permute.xlu0 %6000
    %6002 = vrot.lane.b32.xlu0 %v3033, 42
    %v6003 = vpop.permute.xlu0 %6002
    %6004 = vrot.lane.b32.xlu0 %v3034, 42
    %v6005 = vpop.permute.xlu0 %6004
    %6006 = vrot.lane.b32.xlu0 %v3035, 42
    %v6007 = vpop.permute.xlu0 %6006
    %6008 = vrot.lane.b32.xlu0 %v3036, 42
    %v6009 = vpop.permute.xlu0 %6008
    %6026 = vrot.lane.b32.xlu0 %v3051, 48
    %v6027 = vpop.permute.xlu0 %6026
    %6028 = vrot.lane.b32.xlu0 %v3052, 48
    %v6029 = vpop.permute.xlu0 %6028
    %6030 = vrot.lane.b32.xlu0 %v3053, 48
    %v6031 = vpop.permute.xlu0 %6030
    %6032 = vrot.lane.b32.xlu0 %v3054, 48
    %v6033 = vpop.permute.xlu0 %6032
    %6034 = vrot.lane.b32.xlu0 %v3057, 48
    %v6035 = vpop.permute.xlu0 %6034
    %6036 = vrot.lane.b32.xlu0 %v3058, 48
    %v6037 = vpop.permute.xlu0 %6036
    %6038 = vrot.lane.b32.xlu0 %v3059, 48
    %v6039 = vpop.permute.xlu0 %6038
    %6040 = vrot.lane.b32.xlu0 %v3060, 48
    %v6041 = vpop.permute.xlu0 %6040
    %6042 = vrot.lane.b32.xlu0 %v3063, 48
    %v6043 = vpop.permute.xlu0 %6042
    %6044 = vrot.lane.b32.xlu0 %v3064, 48
    %v6045 = vpop.permute.xlu0 %6044
    %6046 = vrot.lane.b32.xlu0 %v3065, 48
    %v6047 = vpop.permute.xlu0 %6046
    %6048 = vrot.lane.b32.xlu0 %v3066, 48
    %v6049 = vpop.permute.xlu0 %6048
    %6050 = vrot.lane.b32.xlu0 %v3069, 48
    %v6051 = vpop.permute.xlu0 %6050
    %6052 = vrot.lane.b32.xlu0 %v3070, 48
    %v6053 = vpop.permute.xlu0 %6052
    %6054 = vrot.lane.b32.xlu0 %v3071, 48
    %v6055 = vpop.permute.xlu0 %6054
    %6056 = vrot.lane.b32.xlu0 %v3072, 48
    %v6057 = vpop.permute.xlu0 %6056
    %6074 = vrot.lane.b32.xlu0 %v3016, 54
    %v6075 = vpop.permute.xlu0 %6074
    %6076 = vrot.lane.b32.xlu0 %v3017, 54
    %v6077 = vpop.permute.xlu0 %6076
    %6078 = vrot.lane.b32.xlu0 %v3018, 54
    %v6079 = vpop.permute.xlu0 %6078
    %6080 = vrot.lane.b32.xlu0 %v3019, 54
    %v6081 = vpop.permute.xlu0 %6080
    %6082 = vrot.lane.b32.xlu0 %v3022, 54
    %v6083 = vpop.permute.xlu0 %6082
    %6084 = vrot.lane.b32.xlu0 %v3023, 54
    %v6085 = vpop.permute.xlu0 %6084
    %6086 = vrot.lane.b32.xlu0 %v3024, 54
    %v6087 = vpop.permute.xlu0 %6086
    %6088 = vrot.lane.b32.xlu0 %v3025, 54
    %v6089 = vpop.permute.xlu0 %6088
    %6090 = vrot.lane.b32.xlu0 %v3028, 54
    %v6091 = vpop.permute.xlu0 %6090
    %6092 = vrot.lane.b32.xlu0 %v3029, 54
    %v6093 = vpop.permute.xlu0 %6092
    %6094 = vrot.lane.b32.xlu0 %v3030, 54
    %v6095 = vpop.permute.xlu0 %6094
    %6096 = vrot.lane.b32.xlu0 %v3031, 54
    %v6097 = vpop.permute.xlu0 %6096
    %6098 = vrot.lane.b32.xlu0 %v3034, 54
    %v6099 = vpop.permute.xlu0 %6098
    %6100 = vrot.lane.b32.xlu0 %v3035, 54
    %v6101 = vpop.permute.xlu0 %6100
    %6102 = vrot.lane.b32.xlu0 %v3036, 54
    %v6103 = vpop.permute.xlu0 %6102
    %6104 = vrot.lane.b32.xlu0 %v3037, 54
    %v6105 = vpop.permute.xlu0 %6104
    %6122 = vrot.lane.b32.xlu0 %v3052, 60
    %v6123 = vpop.permute.xlu0 %6122
    %6124 = vrot.lane.b32.xlu0 %v3053, 60
    %v6125 = vpop.permute.xlu0 %6124
    %6126 = vrot.lane.b32.xlu0 %v3054, 60
    %v6127 = vpop.permute.xlu0 %6126
    %6128 = vrot.lane.b32.xlu0 %v3055, 60
    %v6129 = vpop.permute.xlu0 %6128
    %6130 = vrot.lane.b32.xlu0 %v3058, 60
    %v6131 = vpop.permute.xlu0 %6130
    %6132 = vrot.lane.b32.xlu0 %v3059, 60
    %v6133 = vpop.permute.xlu0 %6132
    %6134 = vrot.lane.b32.xlu0 %v3060, 60
    %v6135 = vpop.permute.xlu0 %6134
    %6136 = vrot.lane.b32.xlu0 %v3061, 60
    %v6137 = vpop.permute.xlu0 %6136
    %6138 = vrot.lane.b32.xlu0 %v3064, 60
    %v6139 = vpop.permute.xlu0 %6138
    %6140 = vrot.lane.b32.xlu0 %v3065, 60
    %v6141 = vpop.permute.xlu0 %6140
    %6142 = vrot.lane.b32.xlu0 %v3066, 60
    %v6143 = vpop.permute.xlu0 %6142
    %6144 = vrot.lane.b32.xlu0 %v3067, 60
    %v6145 = vpop.permute.xlu0 %6144
    %6146 = vrot.lane.b32.xlu0 %v3070, 60
    %v6147 = vpop.permute.xlu0 %6146
    %6148 = vrot.lane.b32.xlu0 %v3071, 60
    %v6149 = vpop.permute.xlu0 %6148
    %6150 = vrot.lane.b32.xlu0 %v3072, 60
    %v6151 = vpop.permute.xlu0 %6150
    %6152 = vrot.lane.b32.xlu0 %v3073, 60
    %v6153 = vpop.permute.xlu0 %6152
    %6170 = vrot.lane.b32.xlu0 %v3017, 66
    %v6171 = vpop.permute.xlu0 %6170
    %6172 = vrot.lane.b32.xlu0 %v3018, 66
    %v6173 = vpop.permute.xlu0 %6172
    %6174 = vrot.lane.b32.xlu0 %v3019, 66
    %v6175 = vpop.permute.xlu0 %6174
    %6176 = vrot.lane.b32.xlu0 %v3020, 66
    %v6177 = vpop.permute.xlu0 %6176
    %6178 = vrot.lane.b32.xlu0 %v3023, 66
    %v6179 = vpop.permute.xlu0 %6178
    %6180 = vrot.lane.b32.xlu0 %v3024, 66
    %v6181 = vpop.permute.xlu0 %6180
    %6182 = vrot.lane.b32.xlu0 %v3025, 66
    %v6183 = vpop.permute.xlu0 %6182
    %6184 = vrot.lane.b32.xlu0 %v3026, 66
    %v6185 = vpop.permute.xlu0 %6184
    %6186 = vrot.lane.b32.xlu0 %v3029, 66
    %v6187 = vpop.permute.xlu0 %6186
    %6188 = vrot.lane.b32.xlu0 %v3030, 66
    %v6189 = vpop.permute.xlu0 %6188
    %6190 = vrot.lane.b32.xlu0 %v3031, 66
    %v6191 = vpop.permute.xlu0 %6190
    %6192 = vrot.lane.b32.xlu0 %v3032, 66
    %v6193 = vpop.permute.xlu0 %6192
    %6194 = vrot.lane.b32.xlu0 %v3035, 66
    %v6195 = vpop.permute.xlu0 %6194
    %6196 = vrot.lane.b32.xlu0 %v3036, 66
    %v6197 = vpop.permute.xlu0 %6196
    %6198 = vrot.lane.b32.xlu0 %v3037, 66
    %v6199 = vpop.permute.xlu0 %6198
    %6200 = vrot.lane.b32.xlu0 %v3038, 66
    %v6201 = vpop.permute.xlu0 %6200
    %6218 = vrot.lane.b32.xlu0 %v3087, 72
    %v6219 = vpop.permute.xlu0 %6218
    %6220 = vrot.lane.b32.xlu0 %v3088, 72
    %v6221 = vpop.permute.xlu0 %6220
    %6222 = vrot.lane.b32.xlu0 %v3089, 72
    %v6223 = vpop.permute.xlu0 %6222
    %6224 = vrot.lane.b32.xlu0 %v3090, 72
    %v6225 = vpop.permute.xlu0 %6224
    %6226 = vrot.lane.b32.xlu0 %v3093, 72
    %v6227 = vpop.permute.xlu0 %6226
    %6228 = vrot.lane.b32.xlu0 %v3094, 72
    %v6229 = vpop.permute.xlu0 %6228
    %6230 = vrot.lane.b32.xlu0 %v3095, 72
    %v6231 = vpop.permute.xlu0 %6230
    %6232 = vrot.lane.b32.xlu0 %v3096, 72
    %v6233 = vpop.permute.xlu0 %6232
    %6234 = vrot.lane.b32.xlu0 %v3099, 72
    %v6235 = vpop.permute.xlu0 %6234
    %6236 = vrot.lane.b32.xlu0 %v3100, 72
    %v6237 = vpop.permute.xlu0 %6236
    %6238 = vrot.lane.b32.xlu0 %v3101, 72
    %v6239 = vpop.permute.xlu0 %6238
    %6240 = vrot.lane.b32.xlu0 %v3102, 72
    %v6241 = vpop.permute.xlu0 %6240
    %6242 = vrot.lane.b32.xlu0 %v3105, 72
    %v6243 = vpop.permute.xlu0 %6242
    %6244 = vrot.lane.b32.xlu0 %v3106, 72
    %v6245 = vpop.permute.xlu0 %6244
    %6246 = vrot.lane.b32.xlu0 %v3107, 72
    %v6247 = vpop.permute.xlu0 %6246
    %6248 = vrot.lane.b32.xlu0 %v3108, 72
    %v6249 = vpop.permute.xlu0 %6248
    %6266 = vrot.lane.b32.xlu0 %v3123, 78
    %v6267 = vpop.permute.xlu0 %6266
    %6268 = vrot.lane.b32.xlu0 %v3124, 78
    %v6269 = vpop.permute.xlu0 %6268
    %6270 = vrot.lane.b32.xlu0 %v3125, 78
    %v6271 = vpop.permute.xlu0 %6270
    %6272 = vrot.lane.b32.xlu0 %v3126, 78
    %v6273 = vpop.permute.xlu0 %6272
    %6274 = vrot.lane.b32.xlu0 %v3129, 78
    %v6275 = vpop.permute.xlu0 %6274
    %6276 = vrot.lane.b32.xlu0 %v3130, 78
    %v6277 = vpop.permute.xlu0 %6276
    %6278 = vrot.lane.b32.xlu0 %v3131, 78
    %v6279 = vpop.permute.xlu0 %6278
    %6280 = vrot.lane.b32.xlu0 %v3132, 78
    %v6281 = vpop.permute.xlu0 %6280
    %6282 = vrot.lane.b32.xlu0 %v3135, 78
    %v6283 = vpop.permute.xlu0 %6282
    %6284 = vrot.lane.b32.xlu0 %v3136, 78
    %v6285 = vpop.permute.xlu0 %6284
    %6286 = vrot.lane.b32.xlu0 %v3137, 78
    %v6287 = vpop.permute.xlu0 %6286
    %6288 = vrot.lane.b32.xlu0 %v3138, 78
    %v6289 = vpop.permute.xlu0 %6288
    %6290 = vrot.lane.b32.xlu0 %v3141, 78
    %v6291 = vpop.permute.xlu0 %6290
    %6292 = vrot.lane.b32.xlu0 %v3142, 78
    %v6293 = vpop.permute.xlu0 %6292
    %6294 = vrot.lane.b32.xlu0 %v3143, 78
    %v6295 = vpop.permute.xlu0 %6294
    %6296 = vrot.lane.b32.xlu0 %v3144, 78
    %v6297 = vpop.permute.xlu0 %6296
    %6314 = vrot.lane.b32.xlu0 %v3088, 84
    %v6315 = vpop.permute.xlu0 %6314
    %6316 = vrot.lane.b32.xlu0 %v3089, 84
    %v6317 = vpop.permute.xlu0 %6316
    %6318 = vrot.lane.b32.xlu0 %v3090, 84
    %v6319 = vpop.permute.xlu0 %6318
    %6320 = vrot.lane.b32.xlu0 %v3091, 84
    %v6321 = vpop.permute.xlu0 %6320
    %6322 = vrot.lane.b32.xlu0 %v3094, 84
    %v6323 = vpop.permute.xlu0 %6322
    %6324 = vrot.lane.b32.xlu0 %v3095, 84
    %v6325 = vpop.permute.xlu0 %6324
    %6326 = vrot.lane.b32.xlu0 %v3096, 84
    %v6327 = vpop.permute.xlu0 %6326
    %6328 = vrot.lane.b32.xlu0 %v3097, 84
    %v6329 = vpop.permute.xlu0 %6328
    %6330 = vrot.lane.b32.xlu0 %v3100, 84
    %v6331 = vpop.permute.xlu0 %6330
    %6332 = vrot.lane.b32.xlu0 %v3101, 84
    %v6333 = vpop.permute.xlu0 %6332
    %6334 = vrot.lane.b32.xlu0 %v3102, 84
    %v6335 = vpop.permute.xlu0 %6334
    %6336 = vrot.lane.b32.xlu0 %v3103, 84
    %v6337 = vpop.permute.xlu0 %6336
    %6338 = vrot.lane.b32.xlu0 %v3106, 84
    %v6339 = vpop.permute.xlu0 %6338
    %6340 = vrot.lane.b32.xlu0 %v3107, 84
    %v6341 = vpop.permute.xlu0 %6340
    %6342 = vrot.lane.b32.xlu0 %v3108, 84
    %v6343 = vpop.permute.xlu0 %6342
    %6344 = vrot.lane.b32.xlu0 %v3109, 84
    %v6345 = vpop.permute.xlu0 %6344
    %6362 = vrot.lane.b32.xlu0 %v3124, 90
    %v6363 = vpop.permute.xlu0 %6362
    %6364 = vrot.lane.b32.xlu0 %v3125, 90
    %v6365 = vpop.permute.xlu0 %6364
    %6366 = vrot.lane.b32.xlu0 %v3126, 90
    %v6367 = vpop.permute.xlu0 %6366
    %6368 = vrot.lane.b32.xlu0 %v3127, 90
    %v6369 = vpop.permute.xlu0 %6368
    %6370 = vrot.lane.b32.xlu0 %v3130, 90
    %v6371 = vpop.permute.xlu0 %6370
    %6372 = vrot.lane.b32.xlu0 %v3131, 90
    %v6373 = vpop.permute.xlu0 %6372
    %6374 = vrot.lane.b32.xlu0 %v3132, 90
    %v6375 = vpop.permute.xlu0 %6374
    %6376 = vrot.lane.b32.xlu0 %v3133, 90
    %v6377 = vpop.permute.xlu0 %6376
    %6378 = vrot.lane.b32.xlu0 %v3136, 90
    %v6379 = vpop.permute.xlu0 %6378
    %6380 = vrot.lane.b32.xlu0 %v3137, 90
    %v6381 = vpop.permute.xlu0 %6380
    %6382 = vrot.lane.b32.xlu0 %v3138, 90
    %v6383 = vpop.permute.xlu0 %6382
    %6384 = vrot.lane.b32.xlu0 %v3139, 90
    %v6385 = vpop.permute.xlu0 %6384
    %6386 = vrot.lane.b32.xlu0 %v3142, 90
    %v6387 = vpop.permute.xlu0 %6386
    %6388 = vrot.lane.b32.xlu0 %v3143, 90
    %v6389 = vpop.permute.xlu0 %6388
    %6390 = vrot.lane.b32.xlu0 %v3144, 90
    %v6391 = vpop.permute.xlu0 %6390
    %6392 = vrot.lane.b32.xlu0 %v3145, 90
    %v6393 = vpop.permute.xlu0 %6392
    %v6410 = vsel %vm3975, %v3025, %v5703
    %v6411 = vsel %vm3975, %v3026, %v5705
    %v6412 = vsel %vm3975, %v3031, %v5707
    %v6413 = vsel %vm3975, %v3032, %v5709
    %v6414 = vsel %vm3975, %v3035, %v5711
    %v6415 = vsel %vm3975, %v3036, %v5713
    %v6416 = vsel %vm3975, %v3037, %v5715
    %v6417 = vsel %vm3975, %v3038, %v5717
    %v6418 = vsel %vm3975, %v3041, %v5719
    %v6419 = vsel %vm3975, %v3042, %v5721
    %v6420 = vsel %vm3975, %v3043, %v5723
    %v6421 = vsel %vm3975, %v3044, %v5725
    %v6422 = vsel %vm3992, %v3986, %v5739
    %v6423 = vsel %vm3992, %v3987, %v5741
    %v6424 = vsel %vm3992, %v6410, %v5743
    %v6425 = vsel %vm3992, %v6411, %v5745
    %v6426 = vsel %vm3992, %v3990, %v5747
    %v6427 = vsel %vm3992, %v3991, %v5749
    %v6428 = vsel %vm3992, %v6412, %v5751
    %v6429 = vsel %vm3992, %v6413, %v5753
    %v6430 = vsel %vm3992, %v6414, %v5755
    %v6431 = vsel %vm3992, %v6415, %v5757
    %v6432 = vsel %vm3992, %v6416, %v5759
    %v6433 = vsel %vm3992, %v6417, %v5761
    %v6434 = vsel %vm3992, %v6418, %v5763
    %v6435 = vsel %vm3992, %v6419, %v5765
    %v6436 = vsel %vm3992, %v6420, %v5767
    %v6437 = vsel %vm3992, %v6421, %v5769
    %v6438 = vsel %vm4009, %v6422, %v5787
    %v6439 = vsel %vm4009, %v6423, %v5789
    %v6440 = vsel %vm4009, %v6424, %v5791
    %v6441 = vsel %vm4009, %v6425, %v5793
    %v6442 = vsel %vm4009, %v6426, %v5795
    %v6443 = vsel %vm4009, %v6427, %v5797
    %v6444 = vsel %vm4009, %v6428, %v5799
    %v6445 = vsel %vm4009, %v6429, %v5801
    %v6446 = vsel %vm4009, %v6430, %v5803
    %v6447 = vsel %vm4009, %v6431, %v5805
    %v6448 = vsel %vm4009, %v6432, %v5807
    %v6449 = vsel %vm4009, %v6433, %v5809
    %v6450 = vsel %vm4009, %v6434, %v5811
    %v6451 = vsel %vm4009, %v6435, %v5813
    %v6452 = vsel %vm4009, %v6436, %v5815
    %v6453 = vsel %vm4009, %v6437, %v5817
    %v6454 = vsel %vm4026, %v6438, %v5835
    %v6455 = vsel %vm4026, %v6439, %v5837
    %v6456 = vsel %vm4026, %v6440, %v5839
    %v6457 = vsel %vm4026, %v6441, %v5841
    %v6458 = vsel %vm4026, %v6442, %v5843
    %v6459 = vsel %vm4026, %v6443, %v5845
    %v6460 = vsel %vm4026, %v6444, %v5847
    %v6461 = vsel %vm4026, %v6445, %v5849
    %v6462 = vsel %vm4026, %v6446, %v5851
    %v6463 = vsel %vm4026, %v6447, %v5853
    %v6464 = vsel %vm4026, %v6448, %v5855
    %v6465 = vsel %vm4026, %v6449, %v5857
    %v6466 = vsel %vm4026, %v6450, %v5859
    %v6467 = vsel %vm4026, %v6451, %v5861
    %v6468 = vsel %vm4026, %v6452, %v5863
    %v6469 = vsel %vm4026, %v6453, %v5865
    %v6470 = vsel %vm4043, %v6454, %v5883
    %v6471 = vsel %vm4043, %v6455, %v5885
    %v6472 = vsel %vm4043, %v6456, %v5887
    %v6473 = vsel %vm4043, %v6457, %v5889
    %v6474 = vsel %vm4043, %v6458, %v5891
    %v6475 = vsel %vm4043, %v6459, %v5893
    %v6476 = vsel %vm4043, %v6460, %v5895
    %v6477 = vsel %vm4043, %v6461, %v5897
    %v6478 = vsel %vm4043, %v6462, %v5899
    %v6479 = vsel %vm4043, %v6463, %v5901
    %v6480 = vsel %vm4043, %v6464, %v5903
    %v6481 = vsel %vm4043, %v6465, %v5905
    %v6482 = vsel %vm4043, %v6466, %v5907
    %v6483 = vsel %vm4043, %v6467, %v5909
    %v6484 = vsel %vm4043, %v6468, %v5911
    %v6485 = vsel %vm4043, %v6469, %v5913
    %v6486 = vsel %vm4060, %v6470, %v5931
    %v6487 = vsel %vm4060, %v6471, %v5933
    %v6488 = vsel %vm4060, %v6472, %v5935
    %v6489 = vsel %vm4060, %v6473, %v5937
    %v6490 = vsel %vm4060, %v6474, %v5939
    %v6491 = vsel %vm4060, %v6475, %v5941
    %v6492 = vsel %vm4060, %v6476, %v5943
    %v6493 = vsel %vm4060, %v6477, %v5945
    %v6494 = vsel %vm4060, %v6478, %v5947
    %v6495 = vsel %vm4060, %v6479, %v5949
    %v6496 = vsel %vm4060, %v6480, %v5951
    %v6497 = vsel %vm4060, %v6481, %v5953
    %v6498 = vsel %vm4060, %v6482, %v5955
    %v6499 = vsel %vm4060, %v6483, %v5957
    %v6500 = vsel %vm4060, %v6484, %v5959
    %v6501 = vsel %vm4060, %v6485, %v5961
    %v6502 = vsel %vm4077, %v6486, %v5979
    %v6503 = vsel %vm4077, %v6487, %v5981
    %v6504 = vsel %vm4077, %v6488, %v5983
    %v6505 = vsel %vm4077, %v6489, %v5985
    %v6506 = vsel %vm4077, %v6490, %v5987
    %v6507 = vsel %vm4077, %v6491, %v5989
    %v6508 = vsel %vm4077, %v6492, %v5991
    %v6509 = vsel %vm4077, %v6493, %v5993
    %v6510 = vsel %vm4077, %v6494, %v5995
    %v6511 = vsel %vm4077, %v6495, %v5997
    %v6512 = vsel %vm4077, %v6496, %v5999
    %v6513 = vsel %vm4077, %v6497, %v6001
    %v6514 = vsel %vm4077, %v6498, %v6003
    %v6515 = vsel %vm4077, %v6499, %v6005
    %v6516 = vsel %vm4077, %v6500, %v6007
    %v6517 = vsel %vm4077, %v6501, %v6009
    %v6518 = vsel %vm4094, %v6502, %v6027
    %v6519 = vsel %vm4094, %v6503, %v6029
    %v6520 = vsel %vm4094, %v6504, %v6031
    %v6521 = vsel %vm4094, %v6505, %v6033
    %v6522 = vsel %vm4094, %v6506, %v6035
    %v6523 = vsel %vm4094, %v6507, %v6037
    %v6524 = vsel %vm4094, %v6508, %v6039
    %v6525 = vsel %vm4094, %v6509, %v6041
    %v6526 = vsel %vm4094, %v6510, %v6043
    %v6527 = vsel %vm4094, %v6511, %v6045
    %v6528 = vsel %vm4094, %v6512, %v6047
    %v6529 = vsel %vm4094, %v6513, %v6049
    %v6530 = vsel %vm4094, %v6514, %v6051
    %v6531 = vsel %vm4094, %v6515, %v6053
    %v6532 = vsel %vm4094, %v6516, %v6055
    %v6533 = vsel %vm4094, %v6517, %v6057
    %v6534 = vsel %vm4111, %v6518, %v6075
    %v6535 = vsel %vm4111, %v6519, %v6077
    %v6536 = vsel %vm4111, %v6520, %v6079
    %v6537 = vsel %vm4111, %v6521, %v6081
    %v6538 = vsel %vm4111, %v6522, %v6083
    %v6539 = vsel %vm4111, %v6523, %v6085
    %v6540 = vsel %vm4111, %v6524, %v6087
    %v6541 = vsel %vm4111, %v6525, %v6089
    %v6542 = vsel %vm4111, %v6526, %v6091
    %v6543 = vsel %vm4111, %v6527, %v6093
    %v6544 = vsel %vm4111, %v6528, %v6095
    %v6545 = vsel %vm4111, %v6529, %v6097
    %v6546 = vsel %vm4111, %v6530, %v6099
    %v6547 = vsel %vm4111, %v6531, %v6101
    %v6548 = vsel %vm4111, %v6532, %v6103
    %v6549 = vsel %vm4111, %v6533, %v6105
    %v6550 = vsel %vm4128, %v6534, %v6123
    %v6551 = vsel %vm4128, %v6535, %v6125
    %v6552 = vsel %vm4128, %v6536, %v6127
    %v6553 = vsel %vm4128, %v6537, %v6129
    %v6554 = vsel %vm4128, %v6538, %v6131
    %v6555 = vsel %vm4128, %v6539, %v6133
    %v6556 = vsel %vm4128, %v6540, %v6135
    %v6557 = vsel %vm4128, %v6541, %v6137
    %v6558 = vsel %vm4128, %v6542, %v6139
    %v6559 = vsel %vm4128, %v6543, %v6141
    %v6560 = vsel %vm4128, %v6544, %v6143
    %v6561 = vsel %vm4128, %v6545, %v6145
    %v6562 = vsel %vm4128, %v6546, %v6147
    %v6563 = vsel %vm4128, %v6547, %v6149
    %v6564 = vsel %vm4128, %v6548, %v6151
    %v6565 = vsel %vm4128, %v6549, %v6153
    %v6566 = vsel %vm4145, %v6550, %v6171
    %v6567 = vsel %vm4145, %v6551, %v6173
    %v6568 = vsel %vm4145, %v6552, %v6175
    %v6569 = vsel %vm4145, %v6553, %v6177
    %v6570 = vsel %vm4145, %v6554, %v6179
    %v6571 = vsel %vm4145, %v6555, %v6181
    %v6572 = vsel %vm4145, %v6556, %v6183
    %v6573 = vsel %vm4145, %v6557, %v6185
    %v6574 = vsel %vm4145, %v6558, %v6187
    %v6575 = vsel %vm4145, %v6559, %v6189
    %v6576 = vsel %vm4145, %v6560, %v6191
    %v6577 = vsel %vm4145, %v6561, %v6193
    %v6578 = vsel %vm4145, %v6562, %v6195
    %v6579 = vsel %vm4145, %v6563, %v6197
    %v6580 = vsel %vm4145, %v6564, %v6199
    %v6581 = vsel %vm4145, %v6565, %v6201
    %v6582 = vsel %vm4162, %v6566, %v6219
    %v6583 = vsel %vm4162, %v6567, %v6221
    %v6584 = vsel %vm4162, %v6568, %v6223
    %v6585 = vsel %vm4162, %v6569, %v6225
    %v6586 = vsel %vm4162, %v6570, %v6227
    %v6587 = vsel %vm4162, %v6571, %v6229
    %v6588 = vsel %vm4162, %v6572, %v6231
    %v6589 = vsel %vm4162, %v6573, %v6233
    %v6590 = vsel %vm4162, %v6574, %v6235
    %v6591 = vsel %vm4162, %v6575, %v6237
    %v6592 = vsel %vm4162, %v6576, %v6239
    %v6593 = vsel %vm4162, %v6577, %v6241
    %v6594 = vsel %vm4162, %v6578, %v6243
    %v6595 = vsel %vm4162, %v6579, %v6245
    %v6596 = vsel %vm4162, %v6580, %v6247
    %v6597 = vsel %vm4162, %v6581, %v6249
    %v6598 = vsel %vm4179, %v6582, %v6267
    %v6599 = vsel %vm4179, %v6583, %v6269
    %v6600 = vsel %vm4179, %v6584, %v6271
    %v6601 = vsel %vm4179, %v6585, %v6273
    %v6602 = vsel %vm4179, %v6586, %v6275
    %v6603 = vsel %vm4179, %v6587, %v6277
    %v6604 = vsel %vm4179, %v6588, %v6279
    %v6605 = vsel %vm4179, %v6589, %v6281
    %v6606 = vsel %vm4179, %v6590, %v6283
    %v6607 = vsel %vm4179, %v6591, %v6285
    %v6608 = vsel %vm4179, %v6592, %v6287
    %v6609 = vsel %vm4179, %v6593, %v6289
    %v6610 = vsel %vm4179, %v6594, %v6291
    %v6611 = vsel %vm4179, %v6595, %v6293
    %v6612 = vsel %vm4179, %v6596, %v6295
    %v6613 = vsel %vm4179, %v6597, %v6297
    %v6614 = vsel %vm4196, %v6598, %v6315
    %v6615 = vsel %vm4196, %v6599, %v6317
    %v6616 = vsel %vm4196, %v6600, %v6319
    %v6617 = vsel %vm4196, %v6601, %v6321
    %v6618 = vsel %vm4196, %v6602, %v6323
    %v6619 = vsel %vm4196, %v6603, %v6325
    %v6620 = vsel %vm4196, %v6604, %v6327
    %v6621 = vsel %vm4196, %v6605, %v6329
    %v6622 = vsel %vm4196, %v6606, %v6331
    %v6623 = vsel %vm4196, %v6607, %v6333
    %v6624 = vsel %vm4196, %v6608, %v6335
    %v6625 = vsel %vm4196, %v6609, %v6337
    %v6626 = vsel %vm4196, %v6610, %v6339
    %v6627 = vsel %vm4196, %v6611, %v6341
    %v6628 = vsel %vm4196, %v6612, %v6343
    %v6629 = vsel %vm4196, %v6613, %v6345
    %v6630 = vsel %vm4213, %v6614, %v6363
    %v6631 = vsel %vm4213, %v6615, %v6365
    %v6632 = vsel %vm4213, %v6616, %v6367
    %v6633 = vsel %vm4213, %v6617, %v6369
    %v6634 = vsel %vm4213, %v6618, %v6371
    %v6635 = vsel %vm4213, %v6619, %v6373
    %v6636 = vsel %vm4213, %v6620, %v6375
    %v6637 = vsel %vm4213, %v6621, %v6377
    %v6638 = vsel %vm4213, %v6622, %v6379
    %v6639 = vsel %vm4213, %v6623, %v6381
    %v6640 = vsel %vm4213, %v6624, %v6383
    %v6641 = vsel %vm4213, %v6625, %v6385
    %v6642 = vsel %vm4213, %v6626, %v6387
    %v6643 = vsel %vm4213, %v6627, %v6389
    %v6644 = vsel %vm4213, %v6628, %v6391
    %v6645 = vsel %vm4213, %v6629, %v6393
    %6646 = vrot.lane.b32.xlu0 %v3021, 6
    %v6647 = vpop.permute.xlu0 %6646
    %6648 = vrot.lane.b32.xlu0 %v3022, 6
    %v6649 = vpop.permute.xlu0 %6648
    %6650 = vrot.lane.b32.xlu0 %v3023, 6
    %v6651 = vpop.permute.xlu0 %6650
    %6652 = vrot.lane.b32.xlu0 %v3024, 6
    %v6653 = vpop.permute.xlu0 %6652
    %6654 = vrot.lane.b32.xlu0 %v3027, 6
    %v6655 = vpop.permute.xlu0 %6654
    %6656 = vrot.lane.b32.xlu0 %v3028, 6
    %v6657 = vpop.permute.xlu0 %6656
    %6658 = vrot.lane.b32.xlu0 %v3029, 6
    %v6659 = vpop.permute.xlu0 %6658
    %6660 = vrot.lane.b32.xlu0 %v3030, 6
    %v6661 = vpop.permute.xlu0 %6660
    %6662 = vrot.lane.b32.xlu0 %v3033, 6
    %v6663 = vpop.permute.xlu0 %6662
    %6664 = vrot.lane.b32.xlu0 %v3034, 6
    %v6665 = vpop.permute.xlu0 %6664
    %6666 = vrot.lane.b32.xlu0 %v3035, 6
    %v6667 = vpop.permute.xlu0 %6666
    %6668 = vrot.lane.b32.xlu0 %v3036, 6
    %v6669 = vpop.permute.xlu0 %6668
    %6670 = vrot.lane.b32.xlu0 %v3039, 6
    %v6671 = vpop.permute.xlu0 %6670
    %6672 = vrot.lane.b32.xlu0 %v3040, 6
    %v6673 = vpop.permute.xlu0 %6672
    %6674 = vrot.lane.b32.xlu0 %v3041, 6
    %v6675 = vpop.permute.xlu0 %6674
    %6676 = vrot.lane.b32.xlu0 %v3042, 6
    %v6677 = vpop.permute.xlu0 %6676
    %6694 = vrot.lane.b32.xlu0 %v3057, 12
    %v6695 = vpop.permute.xlu0 %6694
    %6696 = vrot.lane.b32.xlu0 %v3058, 12
    %v6697 = vpop.permute.xlu0 %6696
    %6698 = vrot.lane.b32.xlu0 %v3059, 12
    %v6699 = vpop.permute.xlu0 %6698
    %6700 = vrot.lane.b32.xlu0 %v3060, 12
    %v6701 = vpop.permute.xlu0 %6700
    %6702 = vrot.lane.b32.xlu0 %v3063, 12
    %v6703 = vpop.permute.xlu0 %6702
    %6704 = vrot.lane.b32.xlu0 %v3064, 12
    %v6705 = vpop.permute.xlu0 %6704
    %6706 = vrot.lane.b32.xlu0 %v3065, 12
    %v6707 = vpop.permute.xlu0 %6706
    %6708 = vrot.lane.b32.xlu0 %v3066, 12
    %v6709 = vpop.permute.xlu0 %6708
    %6710 = vrot.lane.b32.xlu0 %v3069, 12
    %v6711 = vpop.permute.xlu0 %6710
    %6712 = vrot.lane.b32.xlu0 %v3070, 12
    %v6713 = vpop.permute.xlu0 %6712
    %6714 = vrot.lane.b32.xlu0 %v3071, 12
    %v6715 = vpop.permute.xlu0 %6714
    %6716 = vrot.lane.b32.xlu0 %v3072, 12
    %v6717 = vpop.permute.xlu0 %6716
    %6718 = vrot.lane.b32.xlu0 %v3075, 12
    %v6719 = vpop.permute.xlu0 %6718
    %6720 = vrot.lane.b32.xlu0 %v3076, 12
    %v6721 = vpop.permute.xlu0 %6720
    %6722 = vrot.lane.b32.xlu0 %v3077, 12
    %v6723 = vpop.permute.xlu0 %6722
    %6724 = vrot.lane.b32.xlu0 %v3078, 12
    %v6725 = vpop.permute.xlu0 %6724
    %6742 = vrot.lane.b32.xlu0 %v3022, 18
    %v6743 = vpop.permute.xlu0 %6742
    %6744 = vrot.lane.b32.xlu0 %v3023, 18
    %v6745 = vpop.permute.xlu0 %6744
    %6746 = vrot.lane.b32.xlu0 %v3024, 18
    %v6747 = vpop.permute.xlu0 %6746
    %6748 = vrot.lane.b32.xlu0 %v3025, 18
    %v6749 = vpop.permute.xlu0 %6748
    %6750 = vrot.lane.b32.xlu0 %v3028, 18
    %v6751 = vpop.permute.xlu0 %6750
    %6752 = vrot.lane.b32.xlu0 %v3029, 18
    %v6753 = vpop.permute.xlu0 %6752
    %6754 = vrot.lane.b32.xlu0 %v3030, 18
    %v6755 = vpop.permute.xlu0 %6754
    %6756 = vrot.lane.b32.xlu0 %v3031, 18
    %v6757 = vpop.permute.xlu0 %6756
    %6758 = vrot.lane.b32.xlu0 %v3034, 18
    %v6759 = vpop.permute.xlu0 %6758
    %6760 = vrot.lane.b32.xlu0 %v3035, 18
    %v6761 = vpop.permute.xlu0 %6760
    %6762 = vrot.lane.b32.xlu0 %v3036, 18
    %v6763 = vpop.permute.xlu0 %6762
    %6764 = vrot.lane.b32.xlu0 %v3037, 18
    %v6765 = vpop.permute.xlu0 %6764
    %6766 = vrot.lane.b32.xlu0 %v3040, 18
    %v6767 = vpop.permute.xlu0 %6766
    %6768 = vrot.lane.b32.xlu0 %v3041, 18
    %v6769 = vpop.permute.xlu0 %6768
    %6770 = vrot.lane.b32.xlu0 %v3042, 18
    %v6771 = vpop.permute.xlu0 %6770
    %6772 = vrot.lane.b32.xlu0 %v3043, 18
    %v6773 = vpop.permute.xlu0 %6772
    %6790 = vrot.lane.b32.xlu0 %v3058, 24
    %v6791 = vpop.permute.xlu0 %6790
    %6792 = vrot.lane.b32.xlu0 %v3059, 24
    %v6793 = vpop.permute.xlu0 %6792
    %6794 = vrot.lane.b32.xlu0 %v3060, 24
    %v6795 = vpop.permute.xlu0 %6794
    %6796 = vrot.lane.b32.xlu0 %v3061, 24
    %v6797 = vpop.permute.xlu0 %6796
    %6798 = vrot.lane.b32.xlu0 %v3064, 24
    %v6799 = vpop.permute.xlu0 %6798
    %6800 = vrot.lane.b32.xlu0 %v3065, 24
    %v6801 = vpop.permute.xlu0 %6800
    %6802 = vrot.lane.b32.xlu0 %v3066, 24
    %v6803 = vpop.permute.xlu0 %6802
    %6804 = vrot.lane.b32.xlu0 %v3067, 24
    %v6805 = vpop.permute.xlu0 %6804
    %6806 = vrot.lane.b32.xlu0 %v3070, 24
    %v6807 = vpop.permute.xlu0 %6806
    %6808 = vrot.lane.b32.xlu0 %v3071, 24
    %v6809 = vpop.permute.xlu0 %6808
    %6810 = vrot.lane.b32.xlu0 %v3072, 24
    %v6811 = vpop.permute.xlu0 %6810
    %6812 = vrot.lane.b32.xlu0 %v3073, 24
    %v6813 = vpop.permute.xlu0 %6812
    %6814 = vrot.lane.b32.xlu0 %v3076, 24
    %v6815 = vpop.permute.xlu0 %6814
    %6816 = vrot.lane.b32.xlu0 %v3077, 24
    %v6817 = vpop.permute.xlu0 %6816
    %6818 = vrot.lane.b32.xlu0 %v3078, 24
    %v6819 = vpop.permute.xlu0 %6818
    %6820 = vrot.lane.b32.xlu0 %v3079, 24
    %v6821 = vpop.permute.xlu0 %6820
    %6838 = vrot.lane.b32.xlu0 %v3023, 30
    %v6839 = vpop.permute.xlu0 %6838
    %6840 = vrot.lane.b32.xlu0 %v3024, 30
    %v6841 = vpop.permute.xlu0 %6840
    %6842 = vrot.lane.b32.xlu0 %v3025, 30
    %v6843 = vpop.permute.xlu0 %6842
    %6844 = vrot.lane.b32.xlu0 %v3026, 30
    %v6845 = vpop.permute.xlu0 %6844
    %6846 = vrot.lane.b32.xlu0 %v3029, 30
    %v6847 = vpop.permute.xlu0 %6846
    %6848 = vrot.lane.b32.xlu0 %v3030, 30
    %v6849 = vpop.permute.xlu0 %6848
    %6850 = vrot.lane.b32.xlu0 %v3031, 30
    %v6851 = vpop.permute.xlu0 %6850
    %6852 = vrot.lane.b32.xlu0 %v3032, 30
    %v6853 = vpop.permute.xlu0 %6852
    %6854 = vrot.lane.b32.xlu0 %v3035, 30
    %v6855 = vpop.permute.xlu0 %6854
    %6856 = vrot.lane.b32.xlu0 %v3036, 30
    %v6857 = vpop.permute.xlu0 %6856
    %6858 = vrot.lane.b32.xlu0 %v3037, 30
    %v6859 = vpop.permute.xlu0 %6858
    %6860 = vrot.lane.b32.xlu0 %v3038, 30
    %v6861 = vpop.permute.xlu0 %6860
    %6862 = vrot.lane.b32.xlu0 %v3041, 30
    %v6863 = vpop.permute.xlu0 %6862
    %6864 = vrot.lane.b32.xlu0 %v3042, 30
    %v6865 = vpop.permute.xlu0 %6864
    %6866 = vrot.lane.b32.xlu0 %v3043, 30
    %v6867 = vpop.permute.xlu0 %6866
    %6868 = vrot.lane.b32.xlu0 %v3044, 30
    %v6869 = vpop.permute.xlu0 %6868
    %6890 = vrot.lane.b32.xlu0 %v3093, 36
    %v6891 = vpop.permute.xlu0 %6890
    %6892 = vrot.lane.b32.xlu0 %v3094, 36
    %v6893 = vpop.permute.xlu0 %6892
    %6894 = vrot.lane.b32.xlu0 %v3099, 36
    %v6895 = vpop.permute.xlu0 %6894
    %6896 = vrot.lane.b32.xlu0 %v3100, 36
    %v6897 = vpop.permute.xlu0 %6896
    %6898 = vrot.lane.b32.xlu0 %v3105, 36
    %v6899 = vpop.permute.xlu0 %6898
    %6900 = vrot.lane.b32.xlu0 %v3106, 36
    %v6901 = vpop.permute.xlu0 %6900
    %6902 = vrot.lane.b32.xlu0 %v3107, 36
    %v6903 = vpop.permute.xlu0 %6902
    %6904 = vrot.lane.b32.xlu0 %v3108, 36
    %v6905 = vpop.permute.xlu0 %6904
    %6906 = vrot.lane.b32.xlu0 %v3111, 36
    %v6907 = vpop.permute.xlu0 %6906
    %6908 = vrot.lane.b32.xlu0 %v3112, 36
    %v6909 = vpop.permute.xlu0 %6908
    %6910 = vrot.lane.b32.xlu0 %v3113, 36
    %v6911 = vpop.permute.xlu0 %6910
    %6912 = vrot.lane.b32.xlu0 %v3114, 36
    %v6913 = vpop.permute.xlu0 %6912
    %6930 = vrot.lane.b32.xlu0 %v3129, 42
    %v6931 = vpop.permute.xlu0 %6930
    %6932 = vrot.lane.b32.xlu0 %v3130, 42
    %v6933 = vpop.permute.xlu0 %6932
    %6934 = vrot.lane.b32.xlu0 %v3131, 42
    %v6935 = vpop.permute.xlu0 %6934
    %6936 = vrot.lane.b32.xlu0 %v3132, 42
    %v6937 = vpop.permute.xlu0 %6936
    %6938 = vrot.lane.b32.xlu0 %v3135, 42
    %v6939 = vpop.permute.xlu0 %6938
    %6940 = vrot.lane.b32.xlu0 %v3136, 42
    %v6941 = vpop.permute.xlu0 %6940
    %6942 = vrot.lane.b32.xlu0 %v3137, 42
    %v6943 = vpop.permute.xlu0 %6942
    %6944 = vrot.lane.b32.xlu0 %v3138, 42
    %v6945 = vpop.permute.xlu0 %6944
    %6946 = vrot.lane.b32.xlu0 %v3141, 42
    %v6947 = vpop.permute.xlu0 %6946
    %6948 = vrot.lane.b32.xlu0 %v3142, 42
    %v6949 = vpop.permute.xlu0 %6948
    %6950 = vrot.lane.b32.xlu0 %v3143, 42
    %v6951 = vpop.permute.xlu0 %6950
    %6952 = vrot.lane.b32.xlu0 %v3144, 42
    %v6953 = vpop.permute.xlu0 %6952
    %6954 = vrot.lane.b32.xlu0 %v3147, 42
    %v6955 = vpop.permute.xlu0 %6954
    %6956 = vrot.lane.b32.xlu0 %v3148, 42
    %v6957 = vpop.permute.xlu0 %6956
    %6958 = vrot.lane.b32.xlu0 %v3149, 42
    %v6959 = vpop.permute.xlu0 %6958
    %6960 = vrot.lane.b32.xlu0 %v3150, 42
    %v6961 = vpop.permute.xlu0 %6960
    %6979 = vrot.lane.b32.xlu0 %v3094, 48
    %v6980 = vpop.permute.xlu0 %6979
    %6981 = vrot.lane.b32.xlu0 %v3095, 48
    %v6982 = vpop.permute.xlu0 %6981
    %6983 = vrot.lane.b32.xlu0 %v3096, 48
    %v6984 = vpop.permute.xlu0 %6983
    %6985 = vrot.lane.b32.xlu0 %v3097, 48
    %v6986 = vpop.permute.xlu0 %6985
    %6987 = vrot.lane.b32.xlu0 %v3100, 48
    %v6988 = vpop.permute.xlu0 %6987
    %6989 = vrot.lane.b32.xlu0 %v3101, 48
    %v6990 = vpop.permute.xlu0 %6989
    %6991 = vrot.lane.b32.xlu0 %v3102, 48
    %v6992 = vpop.permute.xlu0 %6991
    %6993 = vrot.lane.b32.xlu0 %v3103, 48
    %v6994 = vpop.permute.xlu0 %6993
    %6995 = vrot.lane.b32.xlu0 %v3106, 48
    %v6996 = vpop.permute.xlu0 %6995
    %6997 = vrot.lane.b32.xlu0 %v3107, 48
    %v6998 = vpop.permute.xlu0 %6997
    %6999 = vrot.lane.b32.xlu0 %v3108, 48
    %v7000 = vpop.permute.xlu0 %6999
    %7001 = vrot.lane.b32.xlu0 %v3109, 48
    %v7002 = vpop.permute.xlu0 %7001
    %7003 = vrot.lane.b32.xlu0 %v3112, 48
    %v7004 = vpop.permute.xlu0 %7003
    %7005 = vrot.lane.b32.xlu0 %v3113, 48
    %v7006 = vpop.permute.xlu0 %7005
    %7007 = vrot.lane.b32.xlu0 %v3114, 48
    %v7008 = vpop.permute.xlu0 %7007
    %7009 = vrot.lane.b32.xlu0 %v3115, 48
    %v7010 = vpop.permute.xlu0 %7009
    %7028 = vrot.lane.b32.xlu0 %v3130, 54
    %v7029 = vpop.permute.xlu0 %7028
    %7030 = vrot.lane.b32.xlu0 %v3131, 54
    %v7031 = vpop.permute.xlu0 %7030
    %7032 = vrot.lane.b32.xlu0 %v3132, 54
    %v7033 = vpop.permute.xlu0 %7032
    %7034 = vrot.lane.b32.xlu0 %v3133, 54
    %v7035 = vpop.permute.xlu0 %7034
    %7036 = vrot.lane.b32.xlu0 %v3136, 54
    %v7037 = vpop.permute.xlu0 %7036
    %7038 = vrot.lane.b32.xlu0 %v3137, 54
    %v7039 = vpop.permute.xlu0 %7038
    %7040 = vrot.lane.b32.xlu0 %v3138, 54
    %v7041 = vpop.permute.xlu0 %7040
    %7042 = vrot.lane.b32.xlu0 %v3139, 54
    %v7043 = vpop.permute.xlu0 %7042
    %7044 = vrot.lane.b32.xlu0 %v3142, 54
    %v7045 = vpop.permute.xlu0 %7044
    %7046 = vrot.lane.b32.xlu0 %v3143, 54
    %v7047 = vpop.permute.xlu0 %7046
    %7048 = vrot.lane.b32.xlu0 %v3144, 54
    %v7049 = vpop.permute.xlu0 %7048
    %7050 = vrot.lane.b32.xlu0 %v3145, 54
    %v7051 = vpop.permute.xlu0 %7050
    %7052 = vrot.lane.b32.xlu0 %v3148, 54
    %v7053 = vpop.permute.xlu0 %7052
    %7054 = vrot.lane.b32.xlu0 %v3149, 54
    %v7055 = vpop.permute.xlu0 %7054
    %7056 = vrot.lane.b32.xlu0 %v3150, 54
    %v7057 = vpop.permute.xlu0 %7056
    %7058 = vrot.lane.b32.xlu0 %v3151, 54
    %v7059 = vpop.permute.xlu0 %7058
    %7077 = vrot.lane.b32.xlu0 %v3095, 60
    %v7078 = vpop.permute.xlu0 %7077
    %7079 = vrot.lane.b32.xlu0 %v3096, 60
    %v7080 = vpop.permute.xlu0 %7079
    %7081 = vrot.lane.b32.xlu0 %v3097, 60
    %v7082 = vpop.permute.xlu0 %7081
    %7083 = vrot.lane.b32.xlu0 %v3098, 60
    %v7084 = vpop.permute.xlu0 %7083
    %7085 = vrot.lane.b32.xlu0 %v3101, 60
    %v7086 = vpop.permute.xlu0 %7085
    %7087 = vrot.lane.b32.xlu0 %v3102, 60
    %v7088 = vpop.permute.xlu0 %7087
    %7089 = vrot.lane.b32.xlu0 %v3103, 60
    %v7090 = vpop.permute.xlu0 %7089
    %7091 = vrot.lane.b32.xlu0 %v3104, 60
    %v7092 = vpop.permute.xlu0 %7091
    %7093 = vrot.lane.b32.xlu0 %v3107, 60
    %v7094 = vpop.permute.xlu0 %7093
    %7095 = vrot.lane.b32.xlu0 %v3108, 60
    %v7096 = vpop.permute.xlu0 %7095
    %7097 = vrot.lane.b32.xlu0 %v3109, 60
    %v7098 = vpop.permute.xlu0 %7097
    %7099 = vrot.lane.b32.xlu0 %v3110, 60
    %v7100 = vpop.permute.xlu0 %7099
    %7101 = vrot.lane.b32.xlu0 %v3113, 60
    %v7102 = vpop.permute.xlu0 %7101
    %7103 = vrot.lane.b32.xlu0 %v3114, 60
    %v7104 = vpop.permute.xlu0 %7103
    %7105 = vrot.lane.b32.xlu0 %v3115, 60
    %v7106 = vpop.permute.xlu0 %7105
    %7107 = vrot.lane.b32.xlu0 %v3116, 60
    %v7108 = vpop.permute.xlu0 %7107
    %7125 = vrot.lane.b32.xlu0 %v3117, 66
    %v7126 = vpop.permute.xlu0 %7125
    %7127 = vrot.lane.b32.xlu0 %v3118, 66
    %v7128 = vpop.permute.xlu0 %7127
    %7129 = vrot.lane.b32.xlu0 %v3119, 66
    %v7130 = vpop.permute.xlu0 %7129
    %7131 = vrot.lane.b32.xlu0 %v3120, 66
    %v7132 = vpop.permute.xlu0 %7131
    %7133 = vrot.lane.b32.xlu0 %v3123, 66
    %v7134 = vpop.permute.xlu0 %7133
    %7135 = vrot.lane.b32.xlu0 %v3124, 66
    %v7136 = vpop.permute.xlu0 %7135
    %7137 = vrot.lane.b32.xlu0 %v3125, 66
    %v7138 = vpop.permute.xlu0 %7137
    %7139 = vrot.lane.b32.xlu0 %v3126, 66
    %v7140 = vpop.permute.xlu0 %7139
    %7141 = vrot.lane.b32.xlu0 %v3129, 66
    %v7142 = vpop.permute.xlu0 %7141
    %7143 = vrot.lane.b32.xlu0 %v3130, 66
    %v7144 = vpop.permute.xlu0 %7143
    %7145 = vrot.lane.b32.xlu0 %v3131, 66
    %v7146 = vpop.permute.xlu0 %7145
    %7147 = vrot.lane.b32.xlu0 %v3132, 66
    %v7148 = vpop.permute.xlu0 %7147
    %7149 = vrot.lane.b32.xlu0 %v3135, 66
    %v7150 = vpop.permute.xlu0 %7149
    %7151 = vrot.lane.b32.xlu0 %v3136, 66
    %v7152 = vpop.permute.xlu0 %7151
    %7153 = vrot.lane.b32.xlu0 %v3137, 66
    %v7154 = vpop.permute.xlu0 %7153
    %7155 = vrot.lane.b32.xlu0 %v3138, 66
    %v7156 = vpop.permute.xlu0 %7155
    %7173 = vrot.lane.b32.xlu0 %v3082, 72
    %v7174 = vpop.permute.xlu0 %7173
    %7175 = vrot.lane.b32.xlu0 %v3083, 72
    %v7176 = vpop.permute.xlu0 %7175
    %7177 = vrot.lane.b32.xlu0 %v3084, 72
    %v7178 = vpop.permute.xlu0 %7177
    %7179 = vrot.lane.b32.xlu0 %v3085, 72
    %v7180 = vpop.permute.xlu0 %7179
    %7181 = vrot.lane.b32.xlu0 %v3091, 72
    %v7182 = vpop.permute.xlu0 %7181
    %7183 = vrot.lane.b32.xlu0 %v3097, 72
    %v7184 = vpop.permute.xlu0 %7183
    %7185 = vrot.lane.b32.xlu0 %v3103, 72
    %v7186 = vpop.permute.xlu0 %7185
    %7194 = vrot.lane.b32.xlu0 %v3118, 78
    %v7195 = vpop.permute.xlu0 %7194
    %7196 = vrot.lane.b32.xlu0 %v3119, 78
    %v7197 = vpop.permute.xlu0 %7196
    %7198 = vrot.lane.b32.xlu0 %v3120, 78
    %v7199 = vpop.permute.xlu0 %7198
    %7200 = vrot.lane.b32.xlu0 %v3121, 78
    %v7201 = vpop.permute.xlu0 %7200
    %7202 = vrot.lane.b32.xlu0 %v3127, 78
    %v7203 = vpop.permute.xlu0 %7202
    %7204 = vrot.lane.b32.xlu0 %v3133, 78
    %v7205 = vpop.permute.xlu0 %7204
    %7206 = vrot.lane.b32.xlu0 %v3139, 78
    %v7207 = vpop.permute.xlu0 %7206
    %7215 = vrot.lane.b32.xlu0 %v3083, 84
    %v7216 = vpop.permute.xlu0 %7215
    %7217 = vrot.lane.b32.xlu0 %v3084, 84
    %v7218 = vpop.permute.xlu0 %7217
    %7219 = vrot.lane.b32.xlu0 %v3085, 84
    %v7220 = vpop.permute.xlu0 %7219
    %7221 = vrot.lane.b32.xlu0 %v3086, 84
    %v7222 = vpop.permute.xlu0 %7221
    %7223 = vrot.lane.b32.xlu0 %v3092, 84
    %v7224 = vpop.permute.xlu0 %7223
    %7225 = vrot.lane.b32.xlu0 %v3098, 84
    %v7226 = vpop.permute.xlu0 %7225
    %7227 = vrot.lane.b32.xlu0 %v3104, 84
    %v7228 = vpop.permute.xlu0 %7227
    %7236 = vrot.lane.b32.xlu0 %v3119, 90
    %v7237 = vpop.permute.xlu0 %7236
    %7238 = vrot.lane.b32.xlu0 %v3120, 90
    %v7239 = vpop.permute.xlu0 %7238
    %7240 = vrot.lane.b32.xlu0 %v3121, 90
    %v7241 = vpop.permute.xlu0 %7240
    %7242 = vrot.lane.b32.xlu0 %v3122, 90
    %v7243 = vpop.permute.xlu0 %7242
    %7244 = vrot.lane.b32.xlu0 %v3128, 90
    %v7245 = vpop.permute.xlu0 %7244
    %7246 = vrot.lane.b32.xlu0 %v3134, 90
    %v7247 = vpop.permute.xlu0 %7246
    %7248 = vrot.lane.b32.xlu0 %v3140, 90
    %v7249 = vpop.permute.xlu0 %7248
    %v7257 = vsel %vm3975, %v3089, %v6647
    %v7258 = vsel %vm3975, %v3090, %v6649
    %v7259 = vsel %vm3975, %v3091, %v6651
    %v7260 = vsel %vm3975, %v3092, %v6653
    %v7261 = vsel %vm3975, %v3095, %v6655
    %v7262 = vsel %vm3975, %v3096, %v6657
    %v7263 = vsel %vm3975, %v3097, %v6659
    %v7264 = vsel %vm3975, %v3098, %v6661
    %v7265 = vsel %vm3975, %v3101, %v6663
    %v7266 = vsel %vm3975, %v3102, %v6665
    %v7267 = vsel %vm3975, %v3103, %v6667
    %v7268 = vsel %vm3975, %v3104, %v6669
    %v7269 = vsel %vm3975, %v3107, %v6671
    %v7270 = vsel %vm3975, %v3108, %v6673
    %v7271 = vsel %vm3975, %v3109, %v6675
    %v7272 = vsel %vm3975, %v3110, %v6677
    %v7273 = vsel %vm3992, %v7257, %v6695
    %v7274 = vsel %vm3992, %v7258, %v6697
    %v7275 = vsel %vm3992, %v7259, %v6699
    %v7276 = vsel %vm3992, %v7260, %v6701
    %v7277 = vsel %vm3992, %v7261, %v6703
    %v7278 = vsel %vm3992, %v7262, %v6705
    %v7279 = vsel %vm3992, %v7263, %v6707
    %v7280 = vsel %vm3992, %v7264, %v6709
    %v7281 = vsel %vm3992, %v7265, %v6711
    %v7282 = vsel %vm3992, %v7266, %v6713
    %v7283 = vsel %vm3992, %v7267, %v6715
    %v7284 = vsel %vm3992, %v7268, %v6717
    %v7285 = vsel %vm3992, %v7269, %v6719
    %v7286 = vsel %vm3992, %v7270, %v6721
    %v7287 = vsel %vm3992, %v7271, %v6723
    %v7288 = vsel %vm3992, %v7272, %v6725
    %v7289 = vsel %vm4009, %v7273, %v6743
    %v7290 = vsel %vm4009, %v7274, %v6745
    %v7291 = vsel %vm4009, %v7275, %v6747
    %v7292 = vsel %vm4009, %v7276, %v6749
    %v7293 = vsel %vm4009, %v7277, %v6751
    %v7294 = vsel %vm4009, %v7278, %v6753
    %v7295 = vsel %vm4009, %v7279, %v6755
    %v7296 = vsel %vm4009, %v7280, %v6757
    %v7297 = vsel %vm4009, %v7281, %v6759
    %v7298 = vsel %vm4009, %v7282, %v6761
    %v7299 = vsel %vm4009, %v7283, %v6763
    %v7300 = vsel %vm4009, %v7284, %v6765
    %v7301 = vsel %vm4009, %v7285, %v6767
    %v7302 = vsel %vm4009, %v7286, %v6769
    %v7303 = vsel %vm4009, %v7287, %v6771
    %v7304 = vsel %vm4009, %v7288, %v6773
    %v7305 = vsel %vm4026, %v7289, %v6791
    %v7306 = vsel %vm4026, %v7290, %v6793
    %v7307 = vsel %vm4026, %v7291, %v6795
    %v7308 = vsel %vm4026, %v7292, %v6797
    %v7309 = vsel %vm4026, %v7293, %v6799
    %v7310 = vsel %vm4026, %v7294, %v6801
    %v7311 = vsel %vm4026, %v7295, %v6803
    %v7312 = vsel %vm4026, %v7296, %v6805
    %v7313 = vsel %vm4026, %v7297, %v6807
    %v7314 = vsel %vm4026, %v7298, %v6809
    %v7315 = vsel %vm4026, %v7299, %v6811
    %v7316 = vsel %vm4026, %v7300, %v6813
    %v7317 = vsel %vm4026, %v7301, %v6815
    %v7318 = vsel %vm4026, %v7302, %v6817
    %v7319 = vsel %vm4026, %v7303, %v6819
    %v7320 = vsel %vm4026, %v7304, %v6821
    %v7321 = vsel %vm4043, %v7305, %v6839
    %v7322 = vsel %vm4043, %v7306, %v6841
    %v7323 = vsel %vm4043, %v7307, %v6843
    %v7324 = vsel %vm4043, %v7308, %v6845
    %v7325 = vsel %vm4043, %v7309, %v6847
    %v7326 = vsel %vm4043, %v7310, %v6849
    %v7327 = vsel %vm4043, %v7311, %v6851
    %v7328 = vsel %vm4043, %v7312, %v6853
    %v7329 = vsel %vm4043, %v7313, %v6855
    %v7330 = vsel %vm4043, %v7314, %v6857
    %v7331 = vsel %vm4043, %v7315, %v6859
    %v7332 = vsel %vm4043, %v7316, %v6861
    %v7333 = vsel %vm4043, %v7317, %v6863
    %v7334 = vsel %vm4043, %v7318, %v6865
    %v7335 = vsel %vm4043, %v7319, %v6867
    %v7336 = vsel %vm4043, %v7320, %v6869
    %v7337 = vsel %vm4060, %v7321, %v6891
    %v7338 = vsel %vm4060, %v7322, %v6893
    %v7339 = vsel %vm4060, %v7323, %v5947
    %v7340 = vsel %vm4060, %v7324, %v5949
    %v7341 = vsel %vm4060, %v7325, %v6895
    %v7342 = vsel %vm4060, %v7326, %v6897
    %v7343 = vsel %vm4060, %v7327, %v5955
    %v7344 = vsel %vm4060, %v7328, %v5957
    %v7345 = vsel %vm4060, %v7329, %v6899
    %v7346 = vsel %vm4060, %v7330, %v6901
    %v7347 = vsel %vm4060, %v7331, %v6903
    %v7348 = vsel %vm4060, %v7332, %v6905
    %v7349 = vsel %vm4060, %v7333, %v6907
    %v7350 = vsel %vm4060, %v7334, %v6909
    %v7351 = vsel %vm4060, %v7335, %v6911
    %v7352 = vsel %vm4060, %v7336, %v6913
    %v7353 = vsel %vm4077, %v7337, %v6931
    %v7354 = vsel %vm4077, %v7338, %v6933
    %v7355 = vsel %vm4077, %v7339, %v6935
    %v7356 = vsel %vm4077, %v7340, %v6937
    %v7357 = vsel %vm4077, %v7341, %v6939
    %v7358 = vsel %vm4077, %v7342, %v6941
    %v7359 = vsel %vm4077, %v7343, %v6943
    %v7360 = vsel %vm4077, %v7344, %v6945
    %v7361 = vsel %vm4077, %v7345, %v6947
    %v7362 = vsel %vm4077, %v7346, %v6949
    %v7363 = vsel %vm4077, %v7347, %v6951
    %v7364 = vsel %vm4077, %v7348, %v6953
    %v7365 = vsel %vm4077, %v7349, %v6955
    %v7366 = vsel %vm4077, %v7350, %v6957
    %v7367 = vsel %vm4077, %v7351, %v6959
    %v7368 = vsel %vm4077, %v7352, %v6961
    %v7369 = vsel %vm4094, %v7353, %v6980
    %v7370 = vsel %vm4094, %v7354, %v6982
    %v7371 = vsel %vm4094, %v7355, %v6984
    %v7372 = vsel %vm4094, %v7356, %v6986
    %v7373 = vsel %vm4094, %v7357, %v6988
    %v7374 = vsel %vm4094, %v7358, %v6990
    %v7375 = vsel %vm4094, %v7359, %v6992
    %v7376 = vsel %vm4094, %v7360, %v6994
    %v7377 = vsel %vm4094, %v7361, %v6996
    %v7378 = vsel %vm4094, %v7362, %v6998
    %v7379 = vsel %vm4094, %v7363, %v7000
    %v7380 = vsel %vm4094, %v7364, %v7002
    %v7381 = vsel %vm4094, %v7365, %v7004
    %v7382 = vsel %vm4094, %v7366, %v7006
    %v7383 = vsel %vm4094, %v7367, %v7008
    %v7384 = vsel %vm4094, %v7368, %v7010
    %v7385 = vsel %vm4111, %v7369, %v7029
    %v7386 = vsel %vm4111, %v7370, %v7031
    %v7387 = vsel %vm4111, %v7371, %v7033
    %v7388 = vsel %vm4111, %v7372, %v7035
    %v7389 = vsel %vm4111, %v7373, %v7037
    %v7390 = vsel %vm4111, %v7374, %v7039
    %v7391 = vsel %vm4111, %v7375, %v7041
    %v7392 = vsel %vm4111, %v7376, %v7043
    %v7393 = vsel %vm4111, %v7377, %v7045
    %v7394 = vsel %vm4111, %v7378, %v7047
    %v7395 = vsel %vm4111, %v7379, %v7049
    %v7396 = vsel %vm4111, %v7380, %v7051
    %v7397 = vsel %vm4111, %v7381, %v7053
    %v7398 = vsel %vm4111, %v7382, %v7055
    %v7399 = vsel %vm4111, %v7383, %v7057
    %v7400 = vsel %vm4111, %v7384, %v7059
    %v7401 = vsel %vm4128, %v7385, %v7078
    %v7402 = vsel %vm4128, %v7386, %v7080
    %v7403 = vsel %vm4128, %v7387, %v7082
    %v7404 = vsel %vm4128, %v7388, %v7084
    %v7405 = vsel %vm4128, %v7389, %v7086
    %v7406 = vsel %vm4128, %v7390, %v7088
    %v7407 = vsel %vm4128, %v7391, %v7090
    %v7408 = vsel %vm4128, %v7392, %v7092
    %v7409 = vsel %vm4128, %v7393, %v7094
    %v7410 = vsel %vm4128, %v7394, %v7096
    %v7411 = vsel %vm4128, %v7395, %v7098
    %v7412 = vsel %vm4128, %v7396, %v7100
    %v7413 = vsel %vm4128, %v7397, %v7102
    %v7414 = vsel %vm4128, %v7398, %v7104
    %v7415 = vsel %vm4128, %v7399, %v7106
    %v7416 = vsel %vm4128, %v7400, %v7108
    %v7417 = vsel %vm4145, %v7401, %v7126
    %v7418 = vsel %vm4145, %v7402, %v7128
    %v7419 = vsel %vm4145, %v7403, %v7130
    %v7420 = vsel %vm4145, %v7404, %v7132
    %v7421 = vsel %vm4145, %v7405, %v7134
    %v7422 = vsel %vm4145, %v7406, %v7136
    %v7423 = vsel %vm4145, %v7407, %v7138
    %v7424 = vsel %vm4145, %v7408, %v7140
    %v7425 = vsel %vm4145, %v7409, %v7142
    %v7426 = vsel %vm4145, %v7410, %v7144
    %v7427 = vsel %vm4145, %v7411, %v7146
    %v7428 = vsel %vm4145, %v7412, %v7148
    %v7429 = vsel %vm4145, %v7413, %v7150
    %v7430 = vsel %vm4145, %v7414, %v7152
    %v7431 = vsel %vm4145, %v7415, %v7154
    %v7432 = vsel %vm4145, %v7416, %v7156
    %v7433 = vsel %vm4162, %v7417, %v7174
    %v7434 = vsel %vm4162, %v7418, %v7176
    %v7435 = vsel %vm4162, %v7419, %v7178
    %v7436 = vsel %vm4162, %v7420, %v7180
    %v7437 = vsel %vm4162, %v7421, %v6221
    %v7438 = vsel %vm4162, %v7422, %v6223
    %v7439 = vsel %vm4162, %v7423, %v6225
    %v7440 = vsel %vm4162, %v7424, %v7182
    %v7441 = vsel %vm4162, %v7425, %v6229
    %v7442 = vsel %vm4162, %v7426, %v6231
    %v7443 = vsel %vm4162, %v7427, %v6233
    %v7444 = vsel %vm4162, %v7428, %v7184
    %v7445 = vsel %vm4162, %v7429, %v6237
    %v7446 = vsel %vm4162, %v7430, %v6239
    %v7447 = vsel %vm4162, %v7431, %v6241
    %v7448 = vsel %vm4162, %v7432, %v7186
    %v7449 = vsel %vm4179, %v7433, %v7195
    %v7450 = vsel %vm4179, %v7434, %v7197
    %v7451 = vsel %vm4179, %v7435, %v7199
    %v7452 = vsel %vm4179, %v7436, %v7201
    %v7453 = vsel %vm4179, %v7437, %v6269
    %v7454 = vsel %vm4179, %v7438, %v6271
    %v7455 = vsel %vm4179, %v7439, %v6273
    %v7456 = vsel %vm4179, %v7440, %v7203
    %v7457 = vsel %vm4179, %v7441, %v6277
    %v7458 = vsel %vm4179, %v7442, %v6279
    %v7459 = vsel %vm4179, %v7443, %v6281
    %v7460 = vsel %vm4179, %v7444, %v7205
    %v7461 = vsel %vm4179, %v7445, %v6285
    %v7462 = vsel %vm4179, %v7446, %v6287
    %v7463 = vsel %vm4179, %v7447, %v6289
    %v7464 = vsel %vm4179, %v7448, %v7207
    %v7465 = vsel %vm4196, %v7449, %v7216
    %v7466 = vsel %vm4196, %v7450, %v7218
    %v7467 = vsel %vm4196, %v7451, %v7220
    %v7468 = vsel %vm4196, %v7452, %v7222
    %v7469 = vsel %vm4196, %v7453, %v6317
    %v7470 = vsel %vm4196, %v7454, %v6319
    %v7471 = vsel %vm4196, %v7455, %v6321
    %v7472 = vsel %vm4196, %v7456, %v7224
    %v7473 = vsel %vm4196, %v7457, %v6325
    %v7474 = vsel %vm4196, %v7458, %v6327
    %v7475 = vsel %vm4196, %v7459, %v6329
    %v7476 = vsel %vm4196, %v7460, %v7226
    %v7477 = vsel %vm4196, %v7461, %v6333
    %v7478 = vsel %vm4196, %v7462, %v6335
    %v7479 = vsel %vm4196, %v7463, %v6337
    %v7480 = vsel %vm4196, %v7464, %v7228
    %v7481 = vsel %vm4213, %v7465, %v7237
    %v7482 = vsel %vm4213, %v7466, %v7239
    %v7483 = vsel %vm4213, %v7467, %v7241
    %v7484 = vsel %vm4213, %v7468, %v7243
    %v7485 = vsel %vm4213, %v7469, %v6365
    %v7486 = vsel %vm4213, %v7470, %v6367
    %v7487 = vsel %vm4213, %v7471, %v6369
    %v7488 = vsel %vm4213, %v7472, %v7245
    %v7489 = vsel %vm4213, %v7473, %v6373
    %v7490 = vsel %vm4213, %v7474, %v6375
    %v7491 = vsel %vm4213, %v7475, %v6377
    %v7492 = vsel %vm4213, %v7476, %v7247
    %v7493 = vsel %vm4213, %v7477, %v6381
    %v7494 = vsel %vm4213, %v7478, %v6383
    %v7495 = vsel %vm4213, %v7479, %v6385
    %v7496 = vsel %vm4213, %v7480, %v7249
    %7497 = vrot.lane.b32.xlu0 %v3016, 6
    %v7498 = vpop.permute.xlu0 %7497
    %7499 = vrot.lane.b32.xlu0 %v3017, 6
    %v7500 = vpop.permute.xlu0 %7499
    %7501 = vrot.lane.b32.xlu0 %v3018, 6
    %v7502 = vpop.permute.xlu0 %7501
    %7503 = vrot.lane.b32.xlu0 %v3019, 6
    %v7504 = vpop.permute.xlu0 %7503
    %7505 = vrot.lane.b32.xlu0 %v3025, 6
    %v7506 = vpop.permute.xlu0 %7505
    %7507 = vrot.lane.b32.xlu0 %v3031, 6
    %v7508 = vpop.permute.xlu0 %7507
    %7509 = vrot.lane.b32.xlu0 %v3037, 6
    %v7510 = vpop.permute.xlu0 %7509
    %7518 = vrot.lane.b32.xlu0 %v3052, 12
    %v7519 = vpop.permute.xlu0 %7518
    %7520 = vrot.lane.b32.xlu0 %v3053, 12
    %v7521 = vpop.permute.xlu0 %7520
    %7522 = vrot.lane.b32.xlu0 %v3054, 12
    %v7523 = vpop.permute.xlu0 %7522
    %7524 = vrot.lane.b32.xlu0 %v3055, 12
    %v7525 = vpop.permute.xlu0 %7524
    %7526 = vrot.lane.b32.xlu0 %v3061, 12
    %v7527 = vpop.permute.xlu0 %7526
    %7528 = vrot.lane.b32.xlu0 %v3067, 12
    %v7529 = vpop.permute.xlu0 %7528
    %7530 = vrot.lane.b32.xlu0 %v3073, 12
    %v7531 = vpop.permute.xlu0 %7530
    %7539 = vrot.lane.b32.xlu0 %v3017, 18
    %v7540 = vpop.permute.xlu0 %7539
    %7541 = vrot.lane.b32.xlu0 %v3018, 18
    %v7542 = vpop.permute.xlu0 %7541
    %7543 = vrot.lane.b32.xlu0 %v3019, 18
    %v7544 = vpop.permute.xlu0 %7543
    %7545 = vrot.lane.b32.xlu0 %v3020, 18
    %v7546 = vpop.permute.xlu0 %7545
    %7547 = vrot.lane.b32.xlu0 %v3026, 18
    %v7548 = vpop.permute.xlu0 %7547
    %7549 = vrot.lane.b32.xlu0 %v3032, 18
    %v7550 = vpop.permute.xlu0 %7549
    %7551 = vrot.lane.b32.xlu0 %v3038, 18
    %v7552 = vpop.permute.xlu0 %7551
    %7560 = vrot.lane.b32.xlu0 %v3053, 24
    %v7561 = vpop.permute.xlu0 %7560
    %7562 = vrot.lane.b32.xlu0 %v3054, 24
    %v7563 = vpop.permute.xlu0 %7562
    %7564 = vrot.lane.b32.xlu0 %v3055, 24
    %v7565 = vpop.permute.xlu0 %7564
    %7566 = vrot.lane.b32.xlu0 %v3056, 24
    %v7567 = vpop.permute.xlu0 %7566
    %7568 = vrot.lane.b32.xlu0 %v3062, 24
    %v7569 = vpop.permute.xlu0 %7568
    %7570 = vrot.lane.b32.xlu0 %v3068, 24
    %v7571 = vpop.permute.xlu0 %7570
    %7572 = vrot.lane.b32.xlu0 %v3074, 24
    %v7573 = vpop.permute.xlu0 %7572
    %7581 = vrot.lane.b32.xlu0 %v3123, 30
    %v7582 = vpop.permute.xlu0 %7581
    %7583 = vrot.lane.b32.xlu0 %v3129, 30
    %v7584 = vpop.permute.xlu0 %7583
    %7585 = vrot.lane.b32.xlu0 %v3135, 30
    %v7586 = vpop.permute.xlu0 %7585
    %7587 = vrot.lane.b32.xlu0 %v3141, 30
    %v7588 = vpop.permute.xlu0 %7587
    %7589 = vrot.lane.b32.xlu0 %v3142, 30
    %v7590 = vpop.permute.xlu0 %7589
    %7591 = vrot.lane.b32.xlu0 %v3143, 30
    %v7592 = vpop.permute.xlu0 %7591
    %7593 = vrot.lane.b32.xlu0 %v3144, 30
    %v7594 = vpop.permute.xlu0 %7593
    %7602 = vrot.lane.b32.xlu0 %v3088, 36
    %v7603 = vpop.permute.xlu0 %7602
    %7604 = vrot.lane.b32.xlu0 %v3109, 36
    %v7605 = vpop.permute.xlu0 %7604
    %7608 = vrot.lane.b32.xlu0 %v3124, 42
    %v7609 = vpop.permute.xlu0 %7608
    %7610 = vrot.lane.b32.xlu0 %v3125, 42
    %v7611 = vpop.permute.xlu0 %7610
    %7612 = vrot.lane.b32.xlu0 %v3126, 42
    %v7613 = vpop.permute.xlu0 %7612
    %7614 = vrot.lane.b32.xlu0 %v3127, 42
    %v7615 = vpop.permute.xlu0 %7614
    %7616 = vrot.lane.b32.xlu0 %v3133, 42
    %v7617 = vpop.permute.xlu0 %7616
    %7618 = vrot.lane.b32.xlu0 %v3139, 42
    %v7619 = vpop.permute.xlu0 %7618
    %7620 = vrot.lane.b32.xlu0 %v3145, 42
    %v7621 = vpop.permute.xlu0 %7620
    %7629 = vrot.lane.b32.xlu0 %v3089, 48
    %v7630 = vpop.permute.xlu0 %7629
    %7631 = vrot.lane.b32.xlu0 %v3090, 48
    %v7632 = vpop.permute.xlu0 %7631
    %7633 = vrot.lane.b32.xlu0 %v3091, 48
    %v7634 = vpop.permute.xlu0 %7633
    %7635 = vrot.lane.b32.xlu0 %v3092, 48
    %v7636 = vpop.permute.xlu0 %7635
    %7637 = vrot.lane.b32.xlu0 %v3098, 48
    %v7638 = vpop.permute.xlu0 %7637
    %7639 = vrot.lane.b32.xlu0 %v3104, 48
    %v7640 = vpop.permute.xlu0 %7639
    %7641 = vrot.lane.b32.xlu0 %v3110, 48
    %v7642 = vpop.permute.xlu0 %7641
    %7650 = vrot.lane.b32.xlu0 %v3125, 54
    %v7651 = vpop.permute.xlu0 %7650
    %7652 = vrot.lane.b32.xlu0 %v3126, 54
    %v7653 = vpop.permute.xlu0 %7652
    %7654 = vrot.lane.b32.xlu0 %v3127, 54
    %v7655 = vpop.permute.xlu0 %7654
    %7656 = vrot.lane.b32.xlu0 %v3128, 54
    %v7657 = vpop.permute.xlu0 %7656
    %7658 = vrot.lane.b32.xlu0 %v3134, 54
    %v7659 = vpop.permute.xlu0 %7658
    %7660 = vrot.lane.b32.xlu0 %v3140, 54
    %v7661 = vpop.permute.xlu0 %7660
    %7662 = vrot.lane.b32.xlu0 %v3146, 54
    %v7663 = vpop.permute.xlu0 %7662
    %7671 = vrot.lane.b32.xlu0 %v3057, 60
    %v7672 = vpop.permute.xlu0 %7671
    %7673 = vrot.lane.b32.xlu0 %v3063, 60
    %v7674 = vpop.permute.xlu0 %7673
    %7675 = vrot.lane.b32.xlu0 %v3069, 60
    %v7676 = vpop.permute.xlu0 %7675
    %7677 = vrot.lane.b32.xlu0 %v3075, 60
    %v7678 = vpop.permute.xlu0 %7677
    %7679 = vrot.lane.b32.xlu0 %v3076, 60
    %v7680 = vpop.permute.xlu0 %7679
    %7681 = vrot.lane.b32.xlu0 %v3077, 60
    %v7682 = vpop.permute.xlu0 %7681
    %7683 = vrot.lane.b32.xlu0 %v3078, 60
    %v7684 = vpop.permute.xlu0 %7683
    %7692 = vrot.lane.b32.xlu0 %v3022, 66
    %v7693 = vpop.permute.xlu0 %7692
    %7694 = vrot.lane.b32.xlu0 %v3028, 66
    %v7695 = vpop.permute.xlu0 %7694
    %7696 = vrot.lane.b32.xlu0 %v3034, 66
    %v7697 = vpop.permute.xlu0 %7696
    %7698 = vrot.lane.b32.xlu0 %v3040, 66
    %v7699 = vpop.permute.xlu0 %7698
    %7700 = vrot.lane.b32.xlu0 %v3041, 66
    %v7701 = vpop.permute.xlu0 %7700
    %7702 = vrot.lane.b32.xlu0 %v3042, 66
    %v7703 = vpop.permute.xlu0 %7702
    %7704 = vrot.lane.b32.xlu0 %v3043, 66
    %v7705 = vpop.permute.xlu0 %7704
    %7713 = vrot.lane.b32.xlu0 %v3058, 72
    %v7714 = vpop.permute.xlu0 %7713
    %7715 = vrot.lane.b32.xlu0 %v3059, 72
    %v7716 = vpop.permute.xlu0 %7715
    %7717 = vrot.lane.b32.xlu0 %v3060, 72
    %v7718 = vpop.permute.xlu0 %7717
    %7719 = vrot.lane.b32.xlu0 %v3061, 72
    %v7720 = vpop.permute.xlu0 %7719
    %7721 = vrot.lane.b32.xlu0 %v3064, 72
    %v7722 = vpop.permute.xlu0 %7721
    %7723 = vrot.lane.b32.xlu0 %v3065, 72
    %v7724 = vpop.permute.xlu0 %7723
    %7725 = vrot.lane.b32.xlu0 %v3066, 72
    %v7726 = vpop.permute.xlu0 %7725
    %7727 = vrot.lane.b32.xlu0 %v3067, 72
    %v7728 = vpop.permute.xlu0 %7727
    %7729 = vrot.lane.b32.xlu0 %v3070, 72
    %v7730 = vpop.permute.xlu0 %7729
    %7731 = vrot.lane.b32.xlu0 %v3071, 72
    %v7732 = vpop.permute.xlu0 %7731
    %7733 = vrot.lane.b32.xlu0 %v3072, 72
    %v7734 = vpop.permute.xlu0 %7733
    %7735 = vrot.lane.b32.xlu0 %v3073, 72
    %v7736 = vpop.permute.xlu0 %7735
    %7737 = vrot.lane.b32.xlu0 %v3076, 72
    %v7738 = vpop.permute.xlu0 %7737
    %7739 = vrot.lane.b32.xlu0 %v3077, 72
    %v7740 = vpop.permute.xlu0 %7739
    %7741 = vrot.lane.b32.xlu0 %v3078, 72
    %v7742 = vpop.permute.xlu0 %7741
    %7743 = vrot.lane.b32.xlu0 %v3079, 72
    %v7744 = vpop.permute.xlu0 %7743
    %7761 = vrot.lane.b32.xlu0 %v3023, 78
    %v7762 = vpop.permute.xlu0 %7761
    %7763 = vrot.lane.b32.xlu0 %v3024, 78
    %v7764 = vpop.permute.xlu0 %7763
    %7765 = vrot.lane.b32.xlu0 %v3025, 78
    %v7766 = vpop.permute.xlu0 %7765
    %7767 = vrot.lane.b32.xlu0 %v3026, 78
    %v7768 = vpop.permute.xlu0 %7767
    %7769 = vrot.lane.b32.xlu0 %v3029, 78
    %v7770 = vpop.permute.xlu0 %7769
    %7771 = vrot.lane.b32.xlu0 %v3030, 78
    %v7772 = vpop.permute.xlu0 %7771
    %7773 = vrot.lane.b32.xlu0 %v3031, 78
    %v7774 = vpop.permute.xlu0 %7773
    %7775 = vrot.lane.b32.xlu0 %v3032, 78
    %v7776 = vpop.permute.xlu0 %7775
    %7777 = vrot.lane.b32.xlu0 %v3035, 78
    %v7778 = vpop.permute.xlu0 %7777
    %7779 = vrot.lane.b32.xlu0 %v3036, 78
    %v7780 = vpop.permute.xlu0 %7779
    %7781 = vrot.lane.b32.xlu0 %v3037, 78
    %v7782 = vpop.permute.xlu0 %7781
    %7783 = vrot.lane.b32.xlu0 %v3038, 78
    %v7784 = vpop.permute.xlu0 %7783
    %7785 = vrot.lane.b32.xlu0 %v3041, 78
    %v7786 = vpop.permute.xlu0 %7785
    %7787 = vrot.lane.b32.xlu0 %v3042, 78
    %v7788 = vpop.permute.xlu0 %7787
    %7789 = vrot.lane.b32.xlu0 %v3043, 78
    %v7790 = vpop.permute.xlu0 %7789
    %7791 = vrot.lane.b32.xlu0 %v3044, 78
    %v7792 = vpop.permute.xlu0 %7791
    %7809 = vrot.lane.b32.xlu0 %v3059, 84
    %v7810 = vpop.permute.xlu0 %7809
    %7811 = vrot.lane.b32.xlu0 %v3060, 84
    %v7812 = vpop.permute.xlu0 %7811
    %7813 = vrot.lane.b32.xlu0 %v3061, 84
    %v7814 = vpop.permute.xlu0 %7813
    %7815 = vrot.lane.b32.xlu0 %v3062, 84
    %v7816 = vpop.permute.xlu0 %7815
    %7817 = vrot.lane.b32.xlu0 %v3065, 84
    %v7818 = vpop.permute.xlu0 %7817
    %7819 = vrot.lane.b32.xlu0 %v3066, 84
    %v7820 = vpop.permute.xlu0 %7819
    %7821 = vrot.lane.b32.xlu0 %v3067, 84
    %v7822 = vpop.permute.xlu0 %7821
    %7823 = vrot.lane.b32.xlu0 %v3068, 84
    %v7824 = vpop.permute.xlu0 %7823
    %7825 = vrot.lane.b32.xlu0 %v3071, 84
    %v7826 = vpop.permute.xlu0 %7825
    %7827 = vrot.lane.b32.xlu0 %v3072, 84
    %v7828 = vpop.permute.xlu0 %7827
    %7829 = vrot.lane.b32.xlu0 %v3073, 84
    %v7830 = vpop.permute.xlu0 %7829
    %7831 = vrot.lane.b32.xlu0 %v3074, 84
    %v7832 = vpop.permute.xlu0 %7831
    %7833 = vrot.lane.b32.xlu0 %v3077, 84
    %v7834 = vpop.permute.xlu0 %7833
    %7835 = vrot.lane.b32.xlu0 %v3078, 84
    %v7836 = vpop.permute.xlu0 %7835
    %7837 = vrot.lane.b32.xlu0 %v3079, 84
    %v7838 = vpop.permute.xlu0 %7837
    %7839 = vrot.lane.b32.xlu0 %v3080, 84
    %v7840 = vpop.permute.xlu0 %7839
    %7857 = vrot.lane.b32.xlu0 %v3129, 90
    %v7858 = vpop.permute.xlu0 %7857
    %7859 = vrot.lane.b32.xlu0 %v3135, 90
    %v7860 = vpop.permute.xlu0 %7859
    %7861 = vrot.lane.b32.xlu0 %v3141, 90
    %v7862 = vpop.permute.xlu0 %7861
    %7863 = vrot.lane.b32.xlu0 %v3147, 90
    %v7864 = vpop.permute.xlu0 %7863
    %7865 = vrot.lane.b32.xlu0 %v3148, 90
    %v7866 = vpop.permute.xlu0 %7865
    %7867 = vrot.lane.b32.xlu0 %v3149, 90
    %v7868 = vpop.permute.xlu0 %7867
    %7869 = vrot.lane.b32.xlu0 %v3150, 90
    %v7870 = vpop.permute.xlu0 %7869
    %v7878 = vsel %vm3975, %v3051, %v7498
    %v7879 = vsel %vm3975, %v3052, %v7500
    %v7880 = vsel %vm3975, %v3053, %v7502
    %v7881 = vsel %vm3975, %v3054, %v7504
    %v7882 = vsel %vm3975, %v3057, %v6649
    %v7883 = vsel %vm3975, %v3058, %v6651
    %v7884 = vsel %vm3975, %v3059, %v6653
    %v7885 = vsel %vm3975, %v3060, %v7506
    %v7886 = vsel %vm3975, %v3063, %v6657
    %v7887 = vsel %vm3975, %v3064, %v6659
    %v7888 = vsel %vm3975, %v3065, %v6661
    %v7889 = vsel %vm3975, %v3066, %v7508
    %v7890 = vsel %vm3975, %v3069, %v6665
    %v7891 = vsel %vm3975, %v3070, %v6667
    %v7892 = vsel %vm3975, %v3071, %v6669
    %v7893 = vsel %vm3975, %v3072, %v7510
    %v7894 = vsel %vm3992, %v7878, %v7519
    %v7895 = vsel %vm3992, %v7879, %v7521
    %v7896 = vsel %vm3992, %v7880, %v7523
    %v7897 = vsel %vm3992, %v7881, %v7525
    %v7898 = vsel %vm3992, %v7882, %v6697
    %v7899 = vsel %vm3992, %v7883, %v6699
    %v7900 = vsel %vm3992, %v7884, %v6701
    %v7901 = vsel %vm3992, %v7885, %v7527
    %v7902 = vsel %vm3992, %v7886, %v6705
    %v7903 = vsel %vm3992, %v7887, %v6707
    %v7904 = vsel %vm3992, %v7888, %v6709
    %v7905 = vsel %vm3992, %v7889, %v7529
    %v7906 = vsel %vm3992, %v7890, %v6713
    %v7907 = vsel %vm3992, %v7891, %v6715
    %v7908 = vsel %vm3992, %v7892, %v6717
    %v7909 = vsel %vm3992, %v7893, %v7531
    %v7910 = vsel %vm4009, %v7894, %v7540
    %v7911 = vsel %vm4009, %v7895, %v7542
    %v7912 = vsel %vm4009, %v7896, %v7544
    %v7913 = vsel %vm4009, %v7897, %v7546
    %v7914 = vsel %vm4009, %v7898, %v6745
    %v7915 = vsel %vm4009, %v7899, %v6747
    %v7916 = vsel %vm4009, %v7900, %v6749
    %v7917 = vsel %vm4009, %v7901, %v7548
    %v7918 = vsel %vm4009, %v7902, %v6753
    %v7919 = vsel %vm4009, %v7903, %v6755
    %v7920 = vsel %vm4009, %v7904, %v6757
    %v7921 = vsel %vm4009, %v7905, %v7550
    %v7922 = vsel %vm4009, %v7906, %v6761
    %v7923 = vsel %vm4009, %v7907, %v6763
    %v7924 = vsel %vm4009, %v7908, %v6765
    %v7925 = vsel %vm4009, %v7909, %v7552
    %v7926 = vsel %vm4026, %v7910, %v7561
    %v7927 = vsel %vm4026, %v7911, %v7563
    %v7928 = vsel %vm4026, %v7912, %v7565
    %v7929 = vsel %vm4026, %v7913, %v7567
    %v7930 = vsel %vm4026, %v7914, %v6793
    %v7931 = vsel %vm4026, %v7915, %v6795
    %v7932 = vsel %vm4026, %v7916, %v6797
    %v7933 = vsel %vm4026, %v7917, %v7569
    %v7934 = vsel %vm4026, %v7918, %v6801
    %v7935 = vsel %vm4026, %v7919, %v6803
    %v7936 = vsel %vm4026, %v7920, %v6805
    %v7937 = vsel %vm4026, %v7921, %v7571
    %v7938 = vsel %vm4026, %v7922, %v6809
    %v7939 = vsel %vm4026, %v7923, %v6811
    %v7940 = vsel %vm4026, %v7924, %v6813
    %v7941 = vsel %vm4026, %v7925, %v7573
    %v7942 = vsel %vm4043, %v7926, %v7582
    %v7943 = vsel %vm4043, %v7927, %v5891
    %v7944 = vsel %vm4043, %v7928, %v5893
    %v7945 = vsel %vm4043, %v7929, %v5895
    %v7946 = vsel %vm4043, %v7930, %v7584
    %v7947 = vsel %vm4043, %v7931, %v5899
    %v7948 = vsel %vm4043, %v7932, %v5901
    %v7949 = vsel %vm4043, %v7933, %v5903
    %v7950 = vsel %vm4043, %v7934, %v7586
    %v7951 = vsel %vm4043, %v7935, %v5907
    %v7952 = vsel %vm4043, %v7936, %v5909
    %v7953 = vsel %vm4043, %v7937, %v5911
    %v7954 = vsel %vm4043, %v7938, %v7588
    %v7955 = vsel %vm4043, %v7939, %v7590
    %v7956 = vsel %vm4043, %v7940, %v7592
    %v7957 = vsel %vm4043, %v7941, %v7594
    %v7958 = vsel %vm4060, %v7942, %v7603
    %v7959 = vsel %vm4060, %v7943, %v5939
    %v7960 = vsel %vm4060, %v7944, %v5941
    %v7961 = vsel %vm4060, %v7945, %v5943
    %v7962 = vsel %vm4060, %v7946, %v6893
    %v7963 = vsel %vm4060, %v7947, %v5947
    %v7964 = vsel %vm4060, %v7948, %v5949
    %v7965 = vsel %vm4060, %v7949, %v5951
    %v7966 = vsel %vm4060, %v7950, %v6897
    %v7967 = vsel %vm4060, %v7951, %v5955
    %v7968 = vsel %vm4060, %v7952, %v5957
    %v7969 = vsel %vm4060, %v7953, %v5959
    %v7970 = vsel %vm4060, %v7954, %v6901
    %v7971 = vsel %vm4060, %v7955, %v6903
    %v7972 = vsel %vm4060, %v7956, %v6905
    %v7973 = vsel %vm4060, %v7957, %v7605
    %v7974 = vsel %vm4077, %v7958, %v7609
    %v7975 = vsel %vm4077, %v7959, %v7611
    %v7976 = vsel %vm4077, %v7960, %v7613
    %v7977 = vsel %vm4077, %v7961, %v7615
    %v7978 = vsel %vm4077, %v7962, %v6933
    %v7979 = vsel %vm4077, %v7963, %v6935
    %v7980 = vsel %vm4077, %v7964, %v6937
    %v7981 = vsel %vm4077, %v7965, %v7617
    %v7982 = vsel %vm4077, %v7966, %v6941
    %v7983 = vsel %vm4077, %v7967, %v6943
    %v7984 = vsel %vm4077, %v7968, %v6945
    %v7985 = vsel %vm4077, %v7969, %v7619
    %v7986 = vsel %vm4077, %v7970, %v6949
    %v7987 = vsel %vm4077, %v7971, %v6951
    %v7988 = vsel %vm4077, %v7972, %v6953
    %v7989 = vsel %vm4077, %v7973, %v7621
    %v7990 = vsel %vm4094, %v7974, %v7630
    %v7991 = vsel %vm4094, %v7975, %v7632
    %v7992 = vsel %vm4094, %v7976, %v7634
    %v7993 = vsel %vm4094, %v7977, %v7636
    %v7994 = vsel %vm4094, %v7978, %v6982
    %v7995 = vsel %vm4094, %v7979, %v6984
    %v7996 = vsel %vm4094, %v7980, %v6986
    %v7997 = vsel %vm4094, %v7981, %v7638
    %v7998 = vsel %vm4094, %v7982, %v6990
    %v7999 = vsel %vm4094, %v7983, %v6992
    %v8000 = vsel %vm4094, %v7984, %v6994
    %v8001 = vsel %vm4094, %v7985, %v7640
    %v8002 = vsel %vm4094, %v7986, %v6998
    %v8003 = vsel %vm4094, %v7987, %v7000
    %v8004 = vsel %vm4094, %v7988, %v7002
    %v8005 = vsel %vm4094, %v7989, %v7642
    %v8006 = vsel %vm4111, %v7990, %v7651
    %v8007 = vsel %vm4111, %v7991, %v7653
    %v8008 = vsel %vm4111, %v7992, %v7655
    %v8009 = vsel %vm4111, %v7993, %v7657
    %v8010 = vsel %vm4111, %v7994, %v7031
    %v8011 = vsel %vm4111, %v7995, %v7033
    %v8012 = vsel %vm4111, %v7996, %v7035
    %v8013 = vsel %vm4111, %v7997, %v7659
    %v8014 = vsel %vm4111, %v7998, %v7039
    %v8015 = vsel %vm4111, %v7999, %v7041
    %v8016 = vsel %vm4111, %v8000, %v7043
    %v8017 = vsel %vm4111, %v8001, %v7661
    %v8018 = vsel %vm4111, %v8002, %v7047
    %v8019 = vsel %vm4111, %v8003, %v7049
    %v8020 = vsel %vm4111, %v8004, %v7051
    %v8021 = vsel %vm4111, %v8005, %v7663
    %v8022 = vsel %vm4128, %v8006, %v7672
    %v8023 = vsel %vm4128, %v8007, %v6131
    %v8024 = vsel %vm4128, %v8008, %v6133
    %v8025 = vsel %vm4128, %v8009, %v6135
    %v8026 = vsel %vm4128, %v8010, %v7674
    %v8027 = vsel %vm4128, %v8011, %v6139
    %v8028 = vsel %vm4128, %v8012, %v6141
    %v8029 = vsel %vm4128, %v8013, %v6143
    %v8030 = vsel %vm4128, %v8014, %v7676
    %v8031 = vsel %vm4128, %v8015, %v6147
    %v8032 = vsel %vm4128, %v8016, %v6149
    %v8033 = vsel %vm4128, %v8017, %v6151
    %v8034 = vsel %vm4128, %v8018, %v7678
    %v8035 = vsel %vm4128, %v8019, %v7680
    %v8036 = vsel %vm4128, %v8020, %v7682
    %v8037 = vsel %vm4128, %v8021, %v7684
    %v8038 = vsel %vm4145, %v8022, %v7693
    %v8039 = vsel %vm4145, %v8023, %v6179
    %v8040 = vsel %vm4145, %v8024, %v6181
    %v8041 = vsel %vm4145, %v8025, %v6183
    %v8042 = vsel %vm4145, %v8026, %v7695
    %v8043 = vsel %vm4145, %v8027, %v6187
    %v8044 = vsel %vm4145, %v8028, %v6189
    %v8045 = vsel %vm4145, %v8029, %v6191
    %v8046 = vsel %vm4145, %v8030, %v7697
    %v8047 = vsel %vm4145, %v8031, %v6195
    %v8048 = vsel %vm4145, %v8032, %v6197
    %v8049 = vsel %vm4145, %v8033, %v6199
    %v8050 = vsel %vm4145, %v8034, %v7699
    %v8051 = vsel %vm4145, %v8035, %v7701
    %v8052 = vsel %vm4145, %v8036, %v7703
    %v8053 = vsel %vm4145, %v8037, %v7705
    %v8054 = vsel %vm4162, %v8038, %v7714
    %v8055 = vsel %vm4162, %v8039, %v7716
    %v8056 = vsel %vm4162, %v8040, %v7718
    %v8057 = vsel %vm4162, %v8041, %v7720
    %v8058 = vsel %vm4162, %v8042, %v7722
    %v8059 = vsel %vm4162, %v8043, %v7724
    %v8060 = vsel %vm4162, %v8044, %v7726
    %v8061 = vsel %vm4162, %v8045, %v7728
    %v8062 = vsel %vm4162, %v8046, %v7730
    %v8063 = vsel %vm4162, %v8047, %v7732
    %v8064 = vsel %vm4162, %v8048, %v7734
    %v8065 = vsel %vm4162, %v8049, %v7736
    %v8066 = vsel %vm4162, %v8050, %v7738
    %v8067 = vsel %vm4162, %v8051, %v7740
    %v8068 = vsel %vm4162, %v8052, %v7742
    %v8069 = vsel %vm4162, %v8053, %v7744
    %v8070 = vsel %vm4179, %v8054, %v7762
    %v8071 = vsel %vm4179, %v8055, %v7764
    %v8072 = vsel %vm4179, %v8056, %v7766
    %v8073 = vsel %vm4179, %v8057, %v7768
    %v8074 = vsel %vm4179, %v8058, %v7770
    %v8075 = vsel %vm4179, %v8059, %v7772
    %v8076 = vsel %vm4179, %v8060, %v7774
    %v8077 = vsel %vm4179, %v8061, %v7776
    %v8078 = vsel %vm4179, %v8062, %v7778
    %v8079 = vsel %vm4179, %v8063, %v7780
    %v8080 = vsel %vm4179, %v8064, %v7782
    %v8081 = vsel %vm4179, %v8065, %v7784
    %v8082 = vsel %vm4179, %v8066, %v7786
    %v8083 = vsel %vm4179, %v8067, %v7788
    %v8084 = vsel %vm4179, %v8068, %v7790
    %v8085 = vsel %vm4179, %v8069, %v7792
    %v8086 = vsel %vm4196, %v8070, %v7810
    %v8087 = vsel %vm4196, %v8071, %v7812
    %v8088 = vsel %vm4196, %v8072, %v7814
    %v8089 = vsel %vm4196, %v8073, %v7816
    %v8090 = vsel %vm4196, %v8074, %v7818
    %v8091 = vsel %vm4196, %v8075, %v7820
    %v8092 = vsel %vm4196, %v8076, %v7822
    %v8093 = vsel %vm4196, %v8077, %v7824
    %v8094 = vsel %vm4196, %v8078, %v7826
    %v8095 = vsel %vm4196, %v8079, %v7828
    %v8096 = vsel %vm4196, %v8080, %v7830
    %v8097 = vsel %vm4196, %v8081, %v7832
    %v8098 = vsel %vm4196, %v8082, %v7834
    %v8099 = vsel %vm4196, %v8083, %v7836
    %v8100 = vsel %vm4196, %v8084, %v7838
    %v8101 = vsel %vm4196, %v8085, %v7840
    %v8102 = vsel %vm4213, %v8086, %v7858
    %v8103 = vsel %vm4213, %v8087, %v6371
    %v8104 = vsel %vm4213, %v8088, %v6373
    %v8105 = vsel %vm4213, %v8089, %v6375
    %v8106 = vsel %vm4213, %v8090, %v7860
    %v8107 = vsel %vm4213, %v8091, %v6379
    %v8108 = vsel %vm4213, %v8092, %v6381
    %v8109 = vsel %vm4213, %v8093, %v6383
    %v8110 = vsel %vm4213, %v8094, %v7862
    %v8111 = vsel %vm4213, %v8095, %v6387
    %v8112 = vsel %vm4213, %v8096, %v6389
    %v8113 = vsel %vm4213, %v8097, %v6391
    %v8114 = vsel %vm4213, %v8098, %v7864
    %v8115 = vsel %vm4213, %v8099, %v7866
    %v8116 = vsel %vm4213, %v8100, %v7868
    %v8117 = vsel %vm4213, %v8101, %v7870
    %8118 = vrot.lane.b32.xlu0 %v3130, 6
    %v8119 = vpop.permute.xlu0 %8118
    %8120 = vrot.lane.b32.xlu0 %v3131, 6
    %v8121 = vpop.permute.xlu0 %8120
    %8122 = vrot.lane.b32.xlu0 %v3132, 6
    %v8123 = vpop.permute.xlu0 %8122
    %8124 = vrot.lane.b32.xlu0 %v3133, 6
    %v8125 = vpop.permute.xlu0 %8124
    %8126 = vrot.lane.b32.xlu0 %v3136, 6
    %v8127 = vpop.permute.xlu0 %8126
    %8128 = vrot.lane.b32.xlu0 %v3137, 6
    %v8129 = vpop.permute.xlu0 %8128
    %8130 = vrot.lane.b32.xlu0 %v3138, 6
    %v8131 = vpop.permute.xlu0 %8130
    %8132 = vrot.lane.b32.xlu0 %v3139, 6
    %v8133 = vpop.permute.xlu0 %8132
    %8134 = vrot.lane.b32.xlu0 %v3142, 6
    %v8135 = vpop.permute.xlu0 %8134
    %8136 = vrot.lane.b32.xlu0 %v3143, 6
    %v8137 = vpop.permute.xlu0 %8136
    %8138 = vrot.lane.b32.xlu0 %v3144, 6
    %v8139 = vpop.permute.xlu0 %8138
    %8140 = vrot.lane.b32.xlu0 %v3145, 6
    %v8141 = vpop.permute.xlu0 %8140
    %8142 = vrot.lane.b32.xlu0 %v3148, 6
    %v8143 = vpop.permute.xlu0 %8142
    %8144 = vrot.lane.b32.xlu0 %v3149, 6
    %v8145 = vpop.permute.xlu0 %8144
    %8146 = vrot.lane.b32.xlu0 %v3150, 6
    %v8147 = vpop.permute.xlu0 %8146
    %8148 = vrot.lane.b32.xlu0 %v3151, 6
    %v8149 = vpop.permute.xlu0 %8148
    %8166 = vrot.lane.b32.xlu0 %v3097, 12
    %v8167 = vpop.permute.xlu0 %8166
    %8168 = vrot.lane.b32.xlu0 %v3098, 12
    %v8169 = vpop.permute.xlu0 %8168
    %8170 = vrot.lane.b32.xlu0 %v3103, 12
    %v8171 = vpop.permute.xlu0 %8170
    %8172 = vrot.lane.b32.xlu0 %v3104, 12
    %v8173 = vpop.permute.xlu0 %8172
    %8174 = vrot.lane.b32.xlu0 %v3107, 12
    %v8175 = vpop.permute.xlu0 %8174
    %8176 = vrot.lane.b32.xlu0 %v3108, 12
    %v8177 = vpop.permute.xlu0 %8176
    %8178 = vrot.lane.b32.xlu0 %v3109, 12
    %v8179 = vpop.permute.xlu0 %8178
    %8180 = vrot.lane.b32.xlu0 %v3110, 12
    %v8181 = vpop.permute.xlu0 %8180
    %8182 = vrot.lane.b32.xlu0 %v3113, 12
    %v8183 = vpop.permute.xlu0 %8182
    %8184 = vrot.lane.b32.xlu0 %v3114, 12
    %v8185 = vpop.permute.xlu0 %8184
    %8186 = vrot.lane.b32.xlu0 %v3115, 12
    %v8187 = vpop.permute.xlu0 %8186
    %8188 = vrot.lane.b32.xlu0 %v3116, 12
    %v8189 = vpop.permute.xlu0 %8188
    %8203 = vrot.lane.b32.xlu0 %v3133, 18
    %v8204 = vpop.permute.xlu0 %8203
    %8205 = vrot.lane.b32.xlu0 %v3134, 18
    %v8206 = vpop.permute.xlu0 %8205
    %8207 = vrot.lane.b32.xlu0 %v3139, 18
    %v8208 = vpop.permute.xlu0 %8207
    %8209 = vrot.lane.b32.xlu0 %v3140, 18
    %v8210 = vpop.permute.xlu0 %8209
    %8211 = vrot.lane.b32.xlu0 %v3143, 18
    %v8212 = vpop.permute.xlu0 %8211
    %8213 = vrot.lane.b32.xlu0 %v3144, 18
    %v8214 = vpop.permute.xlu0 %8213
    %8215 = vrot.lane.b32.xlu0 %v3145, 18
    %v8216 = vpop.permute.xlu0 %8215
    %8217 = vrot.lane.b32.xlu0 %v3146, 18
    %v8218 = vpop.permute.xlu0 %8217
    %8219 = vrot.lane.b32.xlu0 %v3149, 18
    %v8220 = vpop.permute.xlu0 %8219
    %8221 = vrot.lane.b32.xlu0 %v3150, 18
    %v8222 = vpop.permute.xlu0 %8221
    %8223 = vrot.lane.b32.xlu0 %v3151, 18
    %v8224 = vpop.permute.xlu0 %8223
    %8225 = vrot.lane.b32.xlu0 %v3152, 18
    %v8226 = vpop.permute.xlu0 %8225
    %v8239 = vsel %vm3975, %v3094, %v8119
    %v8240 = vsel %vm3975, %v3095, %v8121
    %v8241 = vsel %vm3975, %v3096, %v8123
    %v8242 = vsel %vm3975, %v3097, %v8125
    %v8243 = vsel %vm3975, %v3100, %v8127
    %v8244 = vsel %vm3975, %v3101, %v8129
    %v8245 = vsel %vm3975, %v3102, %v8131
    %v8246 = vsel %vm3975, %v3103, %v8133
    %v8247 = vsel %vm3975, %v3106, %v8135
    %v8248 = vsel %vm3975, %v3107, %v8137
    %v8249 = vsel %vm3975, %v3108, %v8139
    %v8250 = vsel %vm3975, %v3109, %v8141
    %v8251 = vsel %vm3975, %v3112, %v8143
    %v8252 = vsel %vm3975, %v3113, %v8145
    %v8253 = vsel %vm3975, %v3114, %v8147
    %v8254 = vsel %vm3975, %v3115, %v8149
    %v8255 = vsel %vm3992, %v8239, %v5759
    %v8256 = vsel %vm3992, %v8240, %v5761
    %v8257 = vsel %vm3992, %v8241, %v8167
    %v8258 = vsel %vm3992, %v8242, %v8169
    %v8259 = vsel %vm3992, %v8243, %v5767
    %v8260 = vsel %vm3992, %v8244, %v5769
    %v8261 = vsel %vm3992, %v8245, %v8171
    %v8262 = vsel %vm3992, %v8246, %v8173
    %v8263 = vsel %vm3992, %v8247, %v8175
    %v8264 = vsel %vm3992, %v8248, %v8177
    %v8265 = vsel %vm3992, %v8249, %v8179
    %v8266 = vsel %vm3992, %v8250, %v8181
    %v8267 = vsel %vm3992, %v8251, %v8183
    %v8268 = vsel %vm3992, %v8252, %v8185
    %v8269 = vsel %vm3992, %v8253, %v8187
    %v8270 = vsel %vm3992, %v8254, %v8189
    %v8271 = vsel %vm4009, %v8255, %v5807
    %v8272 = vsel %vm4009, %v8256, %v5809
    %v8273 = vsel %vm4009, %v8257, %v8204
    %v8274 = vsel %vm4009, %v8258, %v8206
    %v8275 = vsel %vm4009, %v8259, %v5815
    %v8276 = vsel %vm4009, %v8260, %v5817
    %v8277 = vsel %vm4009, %v8261, %v8208
    %v8278 = vsel %vm4009, %v8262, %v8210
    %v8279 = vsel %vm4009, %v8263, %v8212
    %v8280 = vsel %vm4009, %v8264, %v8214
    %v8281 = vsel %vm4009, %v8265, %v8216
    %v8282 = vsel %vm4009, %v8266, %v8218
    %v8283 = vsel %vm4009, %v8267, %v8220
    %v8284 = vsel %vm4009, %v8268, %v8222
    %v8285 = vsel %vm4009, %v8269, %v8224
    %v8286 = vsel %vm4009, %v8270, %v8226
    %8303 = vrot.lane.b32.xlu0 %v5048, 96
    %v8304 = vpop.permute.xlu0 %8303
    %8305 = vrot.lane.b32.xlu0 %v5049, 96
    %v8306 = vpop.permute.xlu0 %8305
    %8307 = vrot.lane.b32.xlu0 %v5050, 96
    %v8308 = vpop.permute.xlu0 %8307
    %8309 = vrot.lane.b32.xlu0 %v5051, 96
    %v8310 = vpop.permute.xlu0 %8309
    %8311 = vrot.lane.b32.xlu0 %v5052, 96
    %v8312 = vpop.permute.xlu0 %8311
    %8313 = vrot.lane.b32.xlu0 %v5053, 96
    %v8314 = vpop.permute.xlu0 %8313
    %8315 = vrot.lane.b32.xlu0 %v5054, 96
    %v8316 = vpop.permute.xlu0 %8315
    %8317 = vrot.lane.b32.xlu0 %v5055, 96
    %v8318 = vpop.permute.xlu0 %8317
    %8319 = vrot.lane.b32.xlu0 %v5056, 96
    %v8320 = vpop.permute.xlu0 %8319
    %8321 = vrot.lane.b32.xlu0 %v5057, 96
    %v8322 = vpop.permute.xlu0 %8321
    %8323 = vrot.lane.b32.xlu0 %v5058, 96
    %v8324 = vpop.permute.xlu0 %8323
    %8325 = vrot.lane.b32.xlu0 %v5059, 96
    %v8326 = vpop.permute.xlu0 %8325
    %8327 = vrot.lane.b32.xlu0 %v5060, 96
    %v8328 = vpop.permute.xlu0 %8327
    %8329 = vrot.lane.b32.xlu0 %v5061, 96
    %v8330 = vpop.permute.xlu0 %8329
    %8331 = vrot.lane.b32.xlu0 %v5062, 96
    %v8332 = vpop.permute.xlu0 %8331
    %8333 = vrot.lane.b32.xlu0 %v5063, 96
    %v8334 = vpop.permute.xlu0 %8333
    %8367 = vrot.lane.b32.xlu0 %v5685, 64
    %v8368 = vpop.permute.xlu0 %8367
    %8369 = vrot.lane.b32.xlu0 %v5686, 64
    %v8370 = vpop.permute.xlu0 %8369
    %8371 = vrot.lane.b32.xlu0 %v5687, 64
    %v8372 = vpop.permute.xlu0 %8371
    %8373 = vrot.lane.b32.xlu0 %v5688, 64
    %v8374 = vpop.permute.xlu0 %8373
    %8375 = vrot.lane.b32.xlu0 %v5689, 64
    %v8376 = vpop.permute.xlu0 %8375
    %8377 = vrot.lane.b32.xlu0 %v5690, 64
    %v8378 = vpop.permute.xlu0 %8377
    %8379 = vrot.lane.b32.xlu0 %v5691, 64
    %v8380 = vpop.permute.xlu0 %8379
    %8381 = vrot.lane.b32.xlu0 %v5692, 64
    %v8382 = vpop.permute.xlu0 %8381
    %8383 = vrot.lane.b32.xlu0 %v5693, 64
    %v8384 = vpop.permute.xlu0 %8383
    %8385 = vrot.lane.b32.xlu0 %v5694, 64
    %v8386 = vpop.permute.xlu0 %8385
    %8387 = vrot.lane.b32.xlu0 %v5695, 64
    %v8388 = vpop.permute.xlu0 %8387
    %8389 = vrot.lane.b32.xlu0 %v5696, 64
    %v8390 = vpop.permute.xlu0 %8389
    %8391 = vrot.lane.b32.xlu0 %v5697, 64
    %v8392 = vpop.permute.xlu0 %8391
    %8393 = vrot.lane.b32.xlu0 %v5698, 64
    %v8394 = vpop.permute.xlu0 %8393
    %8395 = vrot.lane.b32.xlu0 %v5699, 64
    %v8396 = vpop.permute.xlu0 %8395
    %8397 = vrot.lane.b32.xlu0 %v5700, 64
    %v8398 = vpop.permute.xlu0 %8397
    %8431 = vrot.lane.b32.xlu0 %v6630, 32
    %v8432 = vpop.permute.xlu0 %8431
    %8433 = vrot.lane.b32.xlu0 %v6631, 32
    %v8434 = vpop.permute.xlu0 %8433
    %8435 = vrot.lane.b32.xlu0 %v6632, 32
    %v8436 = vpop.permute.xlu0 %8435
    %8437 = vrot.lane.b32.xlu0 %v6633, 32
    %v8438 = vpop.permute.xlu0 %8437
    %8439 = vrot.lane.b32.xlu0 %v6634, 32
    %v8440 = vpop.permute.xlu0 %8439
    %8441 = vrot.lane.b32.xlu0 %v6635, 32
    %v8442 = vpop.permute.xlu0 %8441
    %8443 = vrot.lane.b32.xlu0 %v6636, 32
    %v8444 = vpop.permute.xlu0 %8443
    %8445 = vrot.lane.b32.xlu0 %v6637, 32
    %v8446 = vpop.permute.xlu0 %8445
    %8447 = vrot.lane.b32.xlu0 %v6638, 32
    %v8448 = vpop.permute.xlu0 %8447
    %8449 = vrot.lane.b32.xlu0 %v6639, 32
    %v8450 = vpop.permute.xlu0 %8449
    %8451 = vrot.lane.b32.xlu0 %v6640, 32
    %v8452 = vpop.permute.xlu0 %8451
    %8453 = vrot.lane.b32.xlu0 %v6641, 32
    %v8454 = vpop.permute.xlu0 %8453
    %8455 = vrot.lane.b32.xlu0 %v6642, 32
    %v8456 = vpop.permute.xlu0 %8455
    %8457 = vrot.lane.b32.xlu0 %v6643, 32
    %v8458 = vpop.permute.xlu0 %8457
    %8459 = vrot.lane.b32.xlu0 %v6644, 32
    %v8460 = vpop.permute.xlu0 %8459
    %8461 = vrot.lane.b32.xlu0 %v6645, 32
    %v8462 = vpop.permute.xlu0 %8461
    %8495 = vrot.lane.b32.xlu0 %v8102, 96
    %v8496 = vpop.permute.xlu0 %8495
    %8497 = vrot.lane.b32.xlu0 %v8103, 96
    %v8498 = vpop.permute.xlu0 %8497
    %8499 = vrot.lane.b32.xlu0 %v8104, 96
    %v8500 = vpop.permute.xlu0 %8499
    %8501 = vrot.lane.b32.xlu0 %v8105, 96
    %v8502 = vpop.permute.xlu0 %8501
    %8503 = vrot.lane.b32.xlu0 %v8106, 96
    %v8504 = vpop.permute.xlu0 %8503
    %8505 = vrot.lane.b32.xlu0 %v8107, 96
    %v8506 = vpop.permute.xlu0 %8505
    %8507 = vrot.lane.b32.xlu0 %v8108, 96
    %v8508 = vpop.permute.xlu0 %8507
    %8509 = vrot.lane.b32.xlu0 %v8109, 96
    %v8510 = vpop.permute.xlu0 %8509
    %8511 = vrot.lane.b32.xlu0 %v8110, 96
    %v8512 = vpop.permute.xlu0 %8511
    %8513 = vrot.lane.b32.xlu0 %v8111, 96
    %v8514 = vpop.permute.xlu0 %8513
    %8515 = vrot.lane.b32.xlu0 %v8112, 96
    %v8516 = vpop.permute.xlu0 %8515
    %8517 = vrot.lane.b32.xlu0 %v8113, 96
    %v8518 = vpop.permute.xlu0 %8517
    %8519 = vrot.lane.b32.xlu0 %v8114, 96
    %v8520 = vpop.permute.xlu0 %8519
    %8521 = vrot.lane.b32.xlu0 %v8115, 96
    %v8522 = vpop.permute.xlu0 %8521
    %8523 = vrot.lane.b32.xlu0 %v8116, 96
    %v8524 = vpop.permute.xlu0 %8523
    %8525 = vrot.lane.b32.xlu0 %v8117, 96
    %v8526 = vpop.permute.xlu0 %8525
    %8559 = vrot.lane.b32.xlu0 %v8271, 64
    %v8560 = vpop.permute.xlu0 %8559
    %8561 = vrot.lane.b32.xlu0 %v8272, 64
    %v8562 = vpop.permute.xlu0 %8561
    %8563 = vrot.lane.b32.xlu0 %v8273, 64
    %v8564 = vpop.permute.xlu0 %8563
    %8565 = vrot.lane.b32.xlu0 %v8274, 64
    %v8566 = vpop.permute.xlu0 %8565
    %8567 = vrot.lane.b32.xlu0 %v8275, 64
    %v8568 = vpop.permute.xlu0 %8567
    %8569 = vrot.lane.b32.xlu0 %v8276, 64
    %v8570 = vpop.permute.xlu0 %8569
    %8571 = vrot.lane.b32.xlu0 %v8277, 64
    %v8572 = vpop.permute.xlu0 %8571
    %8573 = vrot.lane.b32.xlu0 %v8278, 64
    %v8574 = vpop.permute.xlu0 %8573
    %8575 = vrot.lane.b32.xlu0 %v8279, 64
    %v8576 = vpop.permute.xlu0 %8575
    %8577 = vrot.lane.b32.xlu0 %v8280, 64
    %v8578 = vpop.permute.xlu0 %8577
    %8579 = vrot.lane.b32.xlu0 %v8281, 64
    %v8580 = vpop.permute.xlu0 %8579
    %8581 = vrot.lane.b32.xlu0 %v8282, 64
    %v8582 = vpop.permute.xlu0 %8581
    %8583 = vrot.lane.b32.xlu0 %v8283, 64
    %v8584 = vpop.permute.xlu0 %8583
    %8585 = vrot.lane.b32.xlu0 %v8284, 64
    %v8586 = vpop.permute.xlu0 %8585
    %8587 = vrot.lane.b32.xlu0 %v8285, 64
    %v8588 = vpop.permute.xlu0 %8587
    %8589 = vrot.lane.b32.xlu0 %v8286, 64
    %v8590 = vpop.permute.xlu0 %8589
    %vm8607 = vcmask 785408
    %v8608 = vsel %vm8607, %v4214, %v8304
    %v8609 = vsel %vm8607, %v4215, %v8306
    %v8610 = vsel %vm8607, %v4216, %v8308
    %v8611 = vsel %vm8607, %v4217, %v8310
    %v8612 = vsel %vm8607, %v4218, %v8312
    %v8613 = vsel %vm8607, %v4219, %v8314
    %v8614 = vsel %vm8607, %v4220, %v8316
    %v8615 = vsel %vm8607, %v4221, %v8318
    %v8616 = vsel %vm8607, %v4222, %v8320
    %v8617 = vsel %vm8607, %v4223, %v8322
    %v8618 = vsel %vm8607, %v4224, %v8324
    %v8619 = vsel %vm8607, %v4225, %v8326
    %v8620 = vsel %vm8607, %v4226, %v8328
    %v8621 = vsel %vm8607, %v4227, %v8330
    %v8622 = vsel %vm8607, %v4228, %v8332
    %v8623 = vsel %vm8607, %v4229, %v8334
    %vm8624 = vcmask 523264
    %v8625 = vsel %vm8624, %v8304, %v8368
    %v8626 = vsel %vm8624, %v8306, %v8370
    %v8627 = vsel %vm8624, %v8308, %v8372
    %v8628 = vsel %vm8624, %v8310, %v8374
    %v8629 = vsel %vm8624, %v8312, %v8376
    %v8630 = vsel %vm8624, %v8314, %v8378
    %v8631 = vsel %vm8624, %v8316, %v8380
    %v8632 = vsel %vm8624, %v8318, %v8382
    %v8633 = vsel %vm8624, %v8320, %v8384
    %v8634 = vsel %vm8624, %v8322, %v8386
    %v8635 = vsel %vm8624, %v8324, %v8388
    %v8636 = vsel %vm8624, %v8326, %v8390
    %v8637 = vsel %vm8624, %v8328, %v8392
    %v8638 = vsel %vm8624, %v8330, %v8394
    %v8639 = vsel %vm8624, %v8332, %v8396
    %v8640 = vsel %vm8624, %v8334, %v8398
    %vm8641 = vcmask 261120
    %v8642 = vsel %vm8641, %v8368, %v8432
    %v8643 = vsel %vm8641, %v8370, %v8434
    %v8644 = vsel %vm8641, %v8372, %v8436
    %v8645 = vsel %vm8641, %v8374, %v8438
    %v8646 = vsel %vm8641, %v8376, %v8440
    %v8647 = vsel %vm8641, %v8378, %v8442
    %v8648 = vsel %vm8641, %v8380, %v8444
    %v8649 = vsel %vm8641, %v8382, %v8446
    %v8650 = vsel %vm8641, %v8384, %v8448
    %v8651 = vsel %vm8641, %v8386, %v8450
    %v8652 = vsel %vm8641, %v8388, %v8452
    %v8653 = vsel %vm8641, %v8390, %v8454
    %v8654 = vsel %vm8641, %v8392, %v8456
    %v8655 = vsel %vm8641, %v8394, %v8458
    %v8656 = vsel %vm8641, %v8396, %v8460
    %v8657 = vsel %vm8641, %v8398, %v8462
    %v8658 = vsel %vm8607, %v7481, %v8496
    %v8659 = vsel %vm8607, %v7482, %v8498
    %v8660 = vsel %vm8607, %v7483, %v8500
    %v8661 = vsel %vm8607, %v7484, %v8502
    %v8662 = vsel %vm8607, %v7485, %v8504
    %v8663 = vsel %vm8607, %v7486, %v8506
    %v8664 = vsel %vm8607, %v7487, %v8508
    %v8665 = vsel %vm8607, %v7488, %v8510
    %v8666 = vsel %vm8607, %v7489, %v8512
    %v8667 = vsel %vm8607, %v7490, %v8514
    %v8668 = vsel %vm8607, %v7491, %v8516
    %v8669 = vsel %vm8607, %v7492, %v8518
    %v8670 = vsel %vm8607, %v7493, %v8520
    %v8671 = vsel %vm8607, %v7494, %v8522
    %v8672 = vsel %vm8607, %v7495, %v8524
    %v8673 = vsel %vm8607, %v7496, %v8526
    %v8674 = vsel %vm8624, %v8496, %v8560
    %v8675 = vsel %vm8624, %v8498, %v8562
    %v8676 = vsel %vm8624, %v8500, %v8564
    %v8677 = vsel %vm8624, %v8502, %v8566
    %v8678 = vsel %vm8624, %v8504, %v8568
    %v8679 = vsel %vm8624, %v8506, %v8570
    %v8680 = vsel %vm8624, %v8508, %v8572
    %v8681 = vsel %vm8624, %v8510, %v8574
    %v8682 = vsel %vm8624, %v8512, %v8576
    %v8683 = vsel %vm8624, %v8514, %v8578
    %v8684 = vsel %vm8624, %v8516, %v8580
    %v8685 = vsel %vm8624, %v8518, %v8582
    %v8686 = vsel %vm8624, %v8520, %v8584
    %v8687 = vsel %vm8624, %v8522, %v8586
    %v8688 = vsel %vm8624, %v8524, %v8588
    %v8689 = vsel %vm8624, %v8526, %v8590
    %v8690 = vld [vmem:[%s3] sm:$0xff]
    %v8691 = vld [vmem:[%s3 + $0x8] sm:$0xff]
    %v8692 = vld [vmem:[%s3 + $0x10] sm:$0xff]
    %v8693 = vld [vmem:[%s3 + $0x18] sm:$0xff]
    %v8694 = vld [vmem:[%s3 + $0x20] sm:$0xff]
    %v8695 = vld [vmem:[%s3 + $0x28] sm:$0xff]
    %v8696 = vld [vmem:[%s3 + $0x30] sm:$0xff]
    %v8697 = vld [vmem:[%s3 + $0x38] sm:$0xff]
    %v8698 = vld [vmem:[%s3 + $0x40] sm:$0xff]
    %v8699 = vld [vmem:[%s3 + $0x48] sm:$0xff]
    %v8700 = vld [vmem:[%s3 + $0x50] sm:$0xff]
    %v8701 = vld [vmem:[%s3 + $0x58] sm:$0xff]
    %v8702 = vld [vmem:[%s3 + $0x60] sm:$0xff]
    %v8703 = vld [vmem:[%s3 + $0x68] sm:$0xff]
    %v8704 = vld [vmem:[%s3 + $0x70] sm:$0xff]
    %v8705 = vld [vmem:[%s3 + $0x78] sm:$0xff]
    %v8706 = vld [vmem:[%s3 + $0x80] sm:$0xff]
    %v8707 = vld [vmem:[%s3 + $0x88] sm:$0xff]
    %v8708 = vld [vmem:[%s3 + $0x90] sm:$0xff]
    %v8709 = vld [vmem:[%s3 + $0x98] sm:$0xff]
    %v8710 = vld [vmem:[%s3 + $0xa0] sm:$0xff]
    %v8711 = vld [vmem:[%s3 + $0xa8] sm:$0xff]
    %v8712 = vld [vmem:[%s3 + $0xb0] sm:$0xff]
    %v8713 = vld [vmem:[%s3 + $0xb8] sm:$0xff]
    %v8714 = vld [vmem:[%s3 + $0xc0] sm:$0xff]
    %v8715 = vld [vmem:[%s3 + $0xc8] sm:$0xff]
    %v8716 = vld [vmem:[%s3 + $0xd0] sm:$0xff]
    %v8717 = vld [vmem:[%s3 + $0xd8] sm:$0xff]
    %v8718 = vld [vmem:[%s3 + $0xe0] sm:$0xff]
    %v8719 = vld [vmem:[%s3 + $0xe8] sm:$0xff]
    %v8720 = vld [vmem:[%s3 + $0xf0] sm:$0xff]
    %v8721 = vld [vmem:[%s3 + $0xf8] sm:$0xff]
    %v8722 = vld [vmem:[%s3 + $0x100] sm:$0xff]
    %v8723 = vld [vmem:[%s3 + $0x108] sm:$0xff]
    %v8724 = vld [vmem:[%s3 + $0x110] sm:$0xff]
    %v8725 = vld [vmem:[%s3 + $0x118] sm:$0xff]
    %v8726 = vld [vmem:[%s3 + $0x120] sm:$0xff]
    %v8727 = vld [vmem:[%s3 + $0x128] sm:$0xff]
    %v8728 = vld [vmem:[%s3 + $0x130] sm:$0xff]
    %v8729 = vld [vmem:[%s3 + $0x138] sm:$0xff]
    %v8730 = vld [vmem:[%s3 + $0x140] sm:$0xff]
    %v8731 = vld [vmem:[%s3 + $0x148] sm:$0xff]
    %v8732 = vld [vmem:[%s3 + $0x150] sm:$0xff]
    %v8733 = vld [vmem:[%s3 + $0x158] sm:$0xff]
    %v8734 = vld [vmem:[%s3 + $0x160] sm:$0xff]
    %v8735 = vld [vmem:[%s3 + $0x168] sm:$0xff]
    %v8736 = vld [vmem:[%s3 + $0x170] sm:$0xff]
    %v8737 = vld [vmem:[%s3 + $0x178] sm:$0xff]
    %v8738 = vld [vmem:[%s3 + $0x180] sm:$0xff]
    %v8739 = vld [vmem:[%s3 + $0x188] sm:$0xff]
    %v8740 = vld [vmem:[%s3 + $0x190] sm:$0xff]
    %v8741 = vld [vmem:[%s3 + $0x198] sm:$0xff]
    %v8742 = vld [vmem:[%s3 + $0x1a0] sm:$0xff]
    %v8743 = vld [vmem:[%s3 + $0x1a8] sm:$0xff]
    %v8744 = vld [vmem:[%s3 + $0x1b0] sm:$0xff]
    %v8745 = vld [vmem:[%s3 + $0x1b8] sm:$0xff]
    %v8746 = vld [vmem:[%s3 + $0x1c0] sm:$0xff]
    %v8747 = vld [vmem:[%s3 + $0x1c8] sm:$0xff]
    %v8748 = vld [vmem:[%s3 + $0x1d0] sm:$0xff]
    %v8749 = vld [vmem:[%s3 + $0x1d8] sm:$0xff]
    %v8750 = vld [vmem:[%s3 + $0x1e0] sm:$0xff]
    %v8751 = vld [vmem:[%s3 + $0x1e8] sm:$0xff]
    %v8752 = vld [vmem:[%s3 + $0x1f0] sm:$0xff]
    %v8753 = vld [vmem:[%s3 + $0x1f8] sm:$0xff]
    %v8754 = vld [vmem:[%s3 + $0x200] sm:$0xff]
    %v8755 = vld [vmem:[%s3 + $0x208] sm:$0xff]
    %v8756 = vld [vmem:[%s3 + $0x210] sm:$0xff]
    %v8757 = vld [vmem:[%s3 + $0x218] sm:$0xff]
    %v8758 = vld [vmem:[%s3 + $0x220] sm:$0xff]
    %v8759 = vld [vmem:[%s3 + $0x228] sm:$0xff]
    %v8760 = vld [vmem:[%s3 + $0x230] sm:$0xff]
    %v8761 = vld [vmem:[%s3 + $0x238] sm:$0xff]
    %v8762 = vld [vmem:[%s3 + $0x240] sm:$0xff]
    %v8763 = vld [vmem:[%s3 + $0x248] sm:$0xff]
    %v8764 = vld [vmem:[%s3 + $0x250] sm:$0xff]
    %vm8765 = vcmask 719872
    %v8767 = vsel %vm8765, %v8674, 0
    %v8770 = vsel %vm8765, %v8675, 0
    %v8773 = vsel %vm8765, %v8676, 0
    %v8776 = vsel %vm8765, %v8677, 0
    %v8779 = vsel %vm8765, %v8678, 0
    %v8782 = vsel %vm8765, %v8679, 0
    %v8785 = vsel %vm8765, %v8680, 0
    %v8788 = vsel %vm8765, %v8681, 0
    %v8791 = vsel %vm8765, %v8682, 0
    %v8794 = vsel %vm8765, %v8683, 0
    %v8797 = vsel %vm8765, %v8684, 0
    %v8800 = vsel %vm8765, %v8685, 0
    %v8803 = vsel %vm8765, %v8686, 0
    %v8806 = vsel %vm8765, %v8687, 0
    %v8809 = vsel %vm8765, %v8688, 0
    %v8812 = vsel %vm8765, %v8689, 0
    %8814 = vmatprep.subr.mxu0 0.0
    %8815 = vmatpush1.msra.mxu0 %v8690
    %8816 = vmatprep.subr.mxu0 0.0
    %8817 = vmatpush1.msra.mxu0 %v8691
    %8818 = vmatprep.subr.mxu0 0.0
    %8819 = vmatpush1.msra.mxu0 %v8692
    %8820 = vmatprep.subr.mxu0 0.0
    %8821 = vmatpush1.msra.mxu0 %v8693
    %8822 = vmatprep.subr.mxu0 0.0
    %8823 = vmatpush1.msra.mxu0 %v8694
    %8824 = vmatprep.subr.mxu0 0.0
    %8825 = vmatpush1.msra.mxu0 %v8695
    %8826 = vmatprep.subr.mxu0 0.0
    %8827 = vmatpush1.msra.mxu0 %v8696
    %8828 = vmatprep.subr.mxu0 0.0
    %8829 = vmatpush1.msra.mxu0 %v8697
    %8830 = vmatprep.subr.mxu0 0.0
    %8831 = vmatpush1.msra.mxu0 %v8698
    %8832 = vmatprep.subr.mxu0 0.0
    %8833 = vmatpush1.msra.mxu0 %v8699
    %8834 = vmatprep.subr.mxu0 0.0
    %8835 = vmatpush1.msra.mxu0 %v8700
    %8836 = vmatprep.subr.mxu0 0.0
    %8837 = vmatpush1.msra.mxu0 %v8701
    %8838 = vmatprep.subr.mxu0 0.0
    %8839 = vmatpush1.msra.mxu0 %v8702
    %8840 = vmatprep.subr.mxu0 0.0
    %8841 = vmatpush1.msra.mxu0 %v8703
    %8842 = vmatprep.subr.mxu0 0.0
    %8843 = vmatpush1.msra.mxu0 %v8704
    %8844 = vmatprep.subr.mxu0 0.0
    %8845 = vmatpush1.msra.mxu0 %v8705
    %8846 = vmatprep.subr.mxu0 0.0
    %8847 = vmatpush1.msra.mxu0 %v8706
    %8848 = vmatprep.subr.mxu0 0.0
    %8849 = vmatpush1.msra.mxu0 %v8707
    %8850 = vmatprep.subr.mxu0 0.0
    %8851 = vmatpush1.msra.mxu0 %v8708
    %8852 = vmatprep.subr.mxu0 0.0
    %8853 = vmatpush1.msra.mxu0 %v8709
    %8854 = vmatprep.subr.mxu0 0.0
    %8855 = vmatpush1.msra.mxu0 %v8710
    %8856 = vmatprep.subr.mxu0 0.0
    %8857 = vmatpush1.msra.mxu0 %v8711
    %8858 = vmatprep.subr.mxu0 0.0
    %8859 = vmatpush1.msra.mxu0 %v8712
    %8860 = vmatprep.subr.mxu0 0.0
    %8861 = vmatpush1.msra.mxu0 %v8713
    %8862 = vmatprep.subr.mxu0 0.0
    %8863 = vmatpush1.msra.mxu0 %v8714
    %8864 = vmatprep.subr.mxu0 0.0
    %8865 = vmatpush1.msra.mxu0 %v8715
    %8866 = vmatprep.subr.mxu0 0.0
    %8867 = vmatpush1.msra.mxu0 %v8716
    %8868 = vmatprep.subr.mxu0 0.0
    %8869 = vmatpush1.msra.mxu0 %v8717
    %8870 = vmatprep.subr.mxu0 0.0
    %8871 = vmatpush1.msra.mxu0 %v8718
    %8872 = vmatprep.subr.mxu0 0.0
    %8873 = vmatpush1.msra.mxu0 %v8719
    %8874 = vmatprep.subr.mxu0 0.0
    %8875 = vmatpush1.msra.mxu0 %v8720
    %8876 = vmatprep.subr.mxu0 0.0
    %8877 = vmatpush1.msra.mxu0 %v8721
    %8878 = vmatprep.mubr.f32.mxu0 %v8625
    %8879 = vmatmul.mubr.f32.gmra.mrb[0].mxu0 %v8608
    %v8880 = vpop.f32.mrb[0].mxu0
    %v8881 = vadd.f32 0.0, %v8880
    %v8882 = vpop.f32.mrb[0].mxu0
    %8883 = vmatprep.mubr.f32.mxu0 %v8626
    %8884 = vmatmul.mubr.f32.gmra.mrb[0].mxu0 %v8609
    %v8885 = vpop.f32.mrb[0].mxu0
    %v8886 = vadd.f32 0.0, %v8885
    %v8887 = vpop.f32.mrb[0].mxu0
    %8888 = vmatprep.mubr.f32.mxu0 %v8627
    %8889 = vmatmul.mubr.f32.gmra.mrb[0].mxu0 %v8610
    %v8890 = vpop.f32.mrb[0].mxu0
    %v8891 = vadd.f32 0.0, %v8890
    %v8892 = vpop.f32.mrb[0].mxu0
    %8893 = vmatprep.mubr.f32.mxu0 %v8628
    %8894 = vmatmul.mubr.f32.gmra.mrb[0].mxu0 %v8611
    %v8895 = vpop.f32.mrb[0].mxu0
    %v8896 = vadd.f32 0.0, %v8895
    %v8897 = vpop.f32.mrb[0].mxu0
    %8898 = vmatprep.mubr.f32.mxu0 %v8629
    %8899 = vmatmul.mubr.f32.gmra.mrb[0].mxu0 %v8612
    %v8900 = vpop.f32.mrb[0].mxu0
    %v8901 = vadd.f32 0.0, %v8900
    %v8902 = vpop.f32.mrb[0].mxu0
    %8903 = vmatprep.mubr.f32.mxu0 %v8630
    %8904 = vmatmul.mubr.f32.gmra.mrb[0].mxu0 %v8613
    %v8905 = vpop.f32.mrb[0].mxu0
    %v8906 = vadd.f32 0.0, %v8905
    %v8907 = vpop.f32.mrb[0].mxu0
    %8908 = vmatprep.mubr.f32.mxu0 %v8631
    %8909 = vmatmul.mubr.f32.gmra.mrb[0].mxu0 %v8614
    %v8910 = vpop.f32.mrb[0].mxu0
    %v8911 = vadd.f32 0.0, %v8910
    %v8912 = vpop.f32.mrb[0].mxu0
    %8913 = vmatprep.mubr.f32.mxu0 %v8632
    %8914 = vmatmul.mubr.f32.gmra.mrb[0].mxu0 %v8615
    %v8915 = vpop.f32.mrb[0].mxu0
    %v8916 = vadd.f32 0.0, %v8915
    %v8917 = vpop.f32.mrb[0].mxu0
    %8918 = vmatprep.mubr.f32.mxu0 %v8633
    %8919 = vmatmul.mubr.f32.gmra.mrb[0].mxu0 %v8616
    %v8920 = vpop.f32.mrb[0].mxu0
    %v8921 = vadd.f32 0.0, %v8920
    %v8922 = vpop.f32.mrb[0].mxu0
    %8923 = vmatprep.mubr.f32.mxu0 %v8634
    %8924 = vmatmul.mubr.f32.gmra.mrb[0].mxu0 %v8617
    %v8925 = vpop.f32.mrb[0].mxu0
    %v8926 = vadd.f32 0.0, %v8925
    %v8927 = vpop.f32.mrb[0].mxu0
    %8928 = vmatprep.mubr.f32.mxu0 %v8635
    %8929 = vmatmul.mubr.f32.gmra.mrb[0].mxu0 %v8618
    %v8930 = vpop.f32.mrb[0].mxu0
    %v8931 = vadd.f32 0.0, %v8930
    %v8932 = vpop.f32.mrb[0].mxu0
    %8933 = vmatprep.mubr.f32.mxu0 %v8636
    %8934 = vmatmul.mubr.f32.gmra.mrb[0].mxu0 %v8619
    %v8935 = vpop.f32.mrb[0].mxu0
    %v8936 = vadd.f32 0.0, %v8935
    %v8937 = vpop.f32.mrb[0].mxu0
    %8938 = vmatprep.mubr.f32.mxu0 %v8637
    %8939 = vmatmul.mubr.f32.gmra.mrb[0].mxu0 %v8620
    %v8940 = vpop.f32.mrb[0].mxu0
    %v8941 = vadd.f32 0.0, %v8940
    %v8942 = vpop.f32.mrb[0].mxu0
    %8943 = vmatprep.mubr.f32.mxu0 %v8638
    %8944 = vmatmul.mubr.f32.gmra.mrb[0].mxu0 %v8621
    %v8945 = vpop.f32.mrb[0].mxu0
    %v8946 = vadd.f32 0.0, %v8945
    %v8947 = vpop.f32.mrb[0].mxu0
    %8948 = vmatprep.mubr.f32.mxu0 %v8639
    %8949 = vmatmul.mubr.f32.gmra.mrb[0].mxu0 %v8622
    %v8950 = vpop.f32.mrb[0].mxu0
    %v8951 = vadd.f32 0.0, %v8950
    %v8952 = vpop.f32.mrb[0].mxu0
    %8953 = vmatprep.mubr.f32.mxu0 %v8640
    %8954 = vmatmul.mubr.f32.gmra.mrb[0].mxu0 %v8623
    %v8955 = vpop.f32.mrb[0].mxu0
    %v8956 = vadd.f32 0.0, %v8955
    %v8957 = vpop.f32.mrb[0].mxu0
    %8958 = vdwg.mxu0
    %8959 = vmatprep.subr.mxu0 0.0
    %8960 = vmatpush1.msra.mxu0 %v8722
    %8961 = vmatprep.subr.mxu0 0.0
    %8962 = vmatpush1.msra.mxu0 %v8723
    %8963 = vmatprep.subr.mxu0 0.0
    %8964 = vmatpush1.msra.mxu0 %v8724
    %8965 = vmatprep.subr.mxu0 0.0
    %8966 = vmatpush1.msra.mxu0 %v8725
    %8967 = vmatprep.subr.mxu0 0.0
    %8968 = vmatpush1.msra.mxu0 %v8726
    %8969 = vmatprep.subr.mxu0 0.0
    %8970 = vmatpush1.msra.mxu0 %v8727
    %8971 = vmatprep.subr.mxu0 0.0
    %8972 = vmatpush1.msra.mxu0 %v8728
    %8973 = vmatprep.subr.mxu0 0.0
    %8974 = vmatpush1.msra.mxu0 %v8729
    %8975 = vmatprep.subr.mxu0 0.0
    %8976 = vmatpush1.msra.mxu0 %v8730
    %8977 = vmatprep.subr.mxu0 0.0
    %8978 = vmatpush1.msra.mxu0 %v8731
    %8979 = vmatprep.subr.mxu0 0.0
    %8980 = vmatpush1.msra.mxu0 %v8732
    %8981 = vmatprep.subr.mxu0 0.0
    %8982 = vmatpush1.msra.mxu0 %v8733
    %8983 = vmatprep.subr.mxu0 0.0
    %8984 = vmatpush1.msra.mxu0 %v8734
    %8985 = vmatprep.subr.mxu0 0.0
    %8986 = vmatpush1.msra.mxu0 %v8735
    %8987 = vmatprep.subr.mxu0 0.0
    %8988 = vmatpush1.msra.mxu0 %v8736
    %8989 = vmatprep.subr.mxu0 0.0
    %8990 = vmatpush1.msra.mxu0 %v8737
    %8991 = vmatprep.subr.mxu0 0.0
    %8992 = vmatpush1.msra.mxu0 %v8738
    %8993 = vmatprep.subr.mxu0 0.0
    %8994 = vmatpush1.msra.mxu0 %v8739
    %8995 = vmatprep.subr.mxu0 0.0
    %8996 = vmatpush1.msra.mxu0 %v8740
    %8997 = vmatprep.subr.mxu0 0.0
    %8998 = vmatpush1.msra.mxu0 %v8741
    %8999 = vmatprep.subr.mxu0 0.0
    %9000 = vmatpush1.msra.mxu0 %v8742
    %9001 = vmatprep.subr.mxu0 0.0
    %9002 = vmatpush1.msra.mxu0 %v8743
    %9003 = vmatprep.subr.mxu0 0.0
    %9004 = vmatpush1.msra.mxu0 %v8744
    %9005 = vmatprep.subr.mxu0 0.0
    %9006 = vmatpush1.msra.mxu0 %v8745
    %9007 = vmatprep.subr.mxu0 0.0
    %9008 = vmatpush1.msra.mxu0 %v8746
    %9009 = vmatprep.subr.mxu0 0.0
    %9010 = vmatpush1.msra.mxu0 %v8747
    %9011 = vmatprep.subr.mxu0 0.0
    %9012 = vmatpush1.msra.mxu0 %v8748
    %9013 = vmatprep.subr.mxu0 0.0
    %9014 = vmatpush1.msra.mxu0 %v8749
    %9015 = vmatprep.subr.mxu0 0.0
    %9016 = vmatpush1.msra.mxu0 %v8750
    %9017 = vmatprep.subr.mxu0 0.0
    %9018 = vmatpush1.msra.mxu0 %v8751
    %9019 = vmatprep.subr.mxu0 0.0
    %9020 = vmatpush1.msra.mxu0 %v8752
    %9021 = vmatprep.subr.mxu0 0.0
    %9022 = vmatpush1.msra.mxu0 %v8753
    %9023 = vmatprep.mubr.f32.mxu0 %v8658
    %9024 = vmatmul.mubr.f32.gmra.mrb[0].mxu0 %v8642
    %v9025 = vpop.f32.mrb[0].mxu0
    %v9026 = vadd.f32 %v8881, %v9025
    %v9027 = vpop.f32.mrb[0].mxu0
    %9028 = vmatprep.mubr.f32.mxu0 %v8659
    %9029 = vmatmul.mubr.f32.gmra.mrb[0].mxu0 %v8643
    %v9030 = vpop.f32.mrb[0].mxu0
    %v9031 = vadd.f32 %v8886, %v9030
    %v9032 = vpop.f32.mrb[0].mxu0
    %9033 = vmatprep.mubr.f32.mxu0 %v8660
    %9034 = vmatmul.mubr.f32.gmra.mrb[0].mxu0 %v8644
    %v9035 = vpop.f32.mrb[0].mxu0
    %v9036 = vadd.f32 %v8891, %v9035
    %v9037 = vpop.f32.mrb[0].mxu0
    %9038 = vmatprep.mubr.f32.mxu0 %v8661
    %9039 = vmatmul.mubr.f32.gmra.mrb[0].mxu0 %v8645
    %v9040 = vpop.f32.mrb[0].mxu0
    %v9041 = vadd.f32 %v8896, %v9040
    %v9042 = vpop.f32.mrb[0].mxu0
    %9043 = vmatprep.mubr.f32.mxu0 %v8662
    %9044 = vmatmul.mubr.f32.gmra.mrb[0].mxu0 %v8646
    %v9045 = vpop.f32.mrb[0].mxu0
    %v9046 = vadd.f32 %v8901, %v9045
    %v9047 = vpop.f32.mrb[0].mxu0
    %9048 = vmatprep.mubr.f32.mxu0 %v8663
    %9049 = vmatmul.mubr.f32.gmra.mrb[0].mxu0 %v8647
    %v9050 = vpop.f32.mrb[0].mxu0
    %v9051 = vadd.f32 %v8906, %v9050
    %v9052 = vpop.f32.mrb[0].mxu0
    %9053 = vmatprep.mubr.f32.mxu0 %v8664
    %9054 = vmatmul.mubr.f32.gmra.mrb[0].mxu0 %v8648
    %v9055 = vpop.f32.mrb[0].mxu0
    %v9056 = vadd.f32 %v8911, %v9055
    %v9057 = vpop.f32.mrb[0].mxu0
    %9058 = vmatprep.mubr.f32.mxu0 %v8665
    %9059 = vmatmul.mubr.f32.gmra.mrb[0].mxu0 %v8649
    %v9060 = vpop.f32.mrb[0].mxu0
    %v9061 = vadd.f32 %v8916, %v9060
    %v9062 = vpop.f32.mrb[0].mxu0
    %9063 = vmatprep.mubr.f32.mxu0 %v8666
    %9064 = vmatmul.mubr.f32.gmra.mrb[0].mxu0 %v8650
    %v9065 = vpop.f32.mrb[0].mxu0
    %v9066 = vadd.f32 %v8921, %v9065
    %v9067 = vpop.f32.mrb[0].mxu0
    %9068 = vmatprep.mubr.f32.mxu0 %v8667
    %9069 = vmatmul.mubr.f32.gmra.mrb[0].mxu0 %v8651
    %v9070 = vpop.f32.mrb[0].mxu0
    %v9071 = vadd.f32 %v8926, %v9070
    %v9072 = vpop.f32.mrb[0].mxu0
    %9073 = vmatprep.mubr.f32.mxu0 %v8668
    %9074 = vmatmul.mubr.f32.gmra.mrb[0].mxu0 %v8652
    %v9075 = vpop.f32.mrb[0].mxu0
    %v9076 = vadd.f32 %v8931, %v9075
    %v9077 = vpop.f32.mrb[0].mxu0
    %9078 = vmatprep.mubr.f32.mxu0 %v8669
    %9079 = vmatmul.mubr.f32.gmra.mrb[0].mxu0 %v8653
    %v9080 = vpop.f32.mrb[0].mxu0
    %v9081 = vadd.f32 %v8936, %v9080
    %v9082 = vpop.f32.mrb[0].mxu0
    %9083 = vmatprep.mubr.f32.mxu0 %v8670
    %9084 = vmatmul.mubr.f32.gmra.mrb[0].mxu0 %v8654
    %v9085 = vpop.f32.mrb[0].mxu0
    %v9086 = vadd.f32 %v8941, %v9085
    %v9087 = vpop.f32.mrb[0].mxu0
    %9088 = vmatprep.mubr.f32.mxu0 %v8671
    %9089 = vmatmul.mubr.f32.gmra.mrb[0].mxu0 %v8655
    %v9090 = vpop.f32.mrb[0].mxu0
    %v9091 = vadd.f32 %v8946, %v9090
    %v9092 = vpop.f32.mrb[0].mxu0
    %9093 = vmatprep.mubr.f32.mxu0 %v8672
    %9094 = vmatmul.mubr.f32.gmra.mrb[0].mxu0 %v8656
    %v9095 = vpop.f32.mrb[0].mxu0
    %v9096 = vadd.f32 %v8951, %v9095
    %v9097 = vpop.f32.mrb[0].mxu0
    %9098 = vmatprep.mubr.f32.mxu0 %v8673
    %9099 = vmatmul.mubr.f32.gmra.mrb[0].mxu0 %v8657
    %v9100 = vpop.f32.mrb[0].mxu0
    %v9101 = vadd.f32 %v8956, %v9100
    %v9102 = vpop.f32.mrb[0].mxu0
    %9103 = vdwg.mxu0
    %9104 = vmatprep.subr.mxu0 0.0
    %9105 = vmatpush1.msra.mxu0 %v8754
    %9106 = vmatprep.subr.mxu0 0.0
    %9107 = vmatpush1.msra.mxu0 %v8755
    %9108 = vmatprep.subr.mxu0 0.0
    %9109 = vmatpush1.msra.mxu0 %v8756
    %9110 = vmatprep.subr.mxu0 0.0
    %9111 = vmatpush1.msra.mxu0 %v8757
    %9112 = vmatprep.subr.mxu0 0.0
    %9113 = vmatpush1.msra.mxu0 %v8758
    %9114 = vmatprep.subr.mxu0 0.0
    %9115 = vmatpush1.msra.mxu0 %v8759
    %9116 = vmatprep.subr.mxu0 0.0
    %9117 = vmatpush1.msra.mxu0 %v8760
    %9118 = vmatprep.subr.mxu0 0.0
    %9119 = vmatpush1.msra.mxu0 %v8761
    %9120 = vmatprep.subr.mxu0 0.0
    %9121 = vmatpush1.msra.mxu0 %v8762
    %9122 = vmatprep.subr.mxu0 0.0
    %9123 = vmatpush1.msra.mxu0 %v8763
    %9124 = vmatprep.subr.mxu0 0.0
    %9125 = vmatpush1.msra.mxu0 %v8764
    %9126 = vmatprep.subr.mxu0 0.0
    %9127 = vmatpush1.msra.mxu0 0.0
    %9128 = vmatprep.subr.mxu0 0.0
    %9129 = vmatpush1.msra.mxu0 0.0
    %9130 = vmatprep.subr.mxu0 0.0
    %9131 = vmatpush1.msra.mxu0 0.0
    %9132 = vmatprep.subr.mxu0 0.0
    %9133 = vmatpush1.msra.mxu0 0.0
    %9134 = vmatprep.subr.mxu0 0.0
    %9135 = vmatpush1.msra.mxu0 0.0
    %9136 = vmatprep.subr.mxu0 0.0
    %9137 = vmatpush1.msra.mxu0 0.0
    %9138 = vmatprep.subr.mxu0 0.0
    %9139 = vmatpush1.msra.mxu0 0.0
    %9140 = vmatprep.subr.mxu0 0.0
    %9141 = vmatpush1.msra.mxu0 0.0
    %9142 = vmatprep.subr.mxu0 0.0
    %9143 = vmatpush1.msra.mxu0 0.0
    %9144 = vmatprep.subr.mxu0 0.0
    %9145 = vmatpush1.msra.mxu0 0.0
    %9146 = vmatprep.subr.mxu0 0.0
    %9147 = vmatpush1.msra.mxu0 0.0
    %9148 = vmatprep.subr.mxu0 0.0
    %9149 = vmatpush1.msra.mxu0 0.0
    %9150 = vmatprep.subr.mxu0 0.0
    %9151 = vmatpush1.msra.mxu0 0.0
    %9152 = vmatprep.subr.mxu0 0.0
    %9153 = vmatpush1.msra.mxu0 0.0
    %9154 = vmatprep.subr.mxu0 0.0
    %9155 = vmatpush1.msra.mxu0 0.0
    %9156 = vmatprep.subr.mxu0 0.0
    %9157 = vmatpush1.msra.mxu0 0.0
    %9158 = vmatprep.subr.mxu0 0.0
    %9159 = vmatpush1.msra.mxu0 0.0
    %9160 = vmatprep.subr.mxu0 0.0
    %9161 = vmatpush1.msra.mxu0 0.0
    %9162 = vmatprep.subr.mxu0 0.0
    %9163 = vmatpush1.msra.mxu0 0.0
    %9164 = vmatprep.subr.mxu0 0.0
    %9165 = vmatpush1.msra.mxu0 0.0
    %9166 = vmatprep.subr.mxu0 0.0
    %9167 = vmatpush1.msra.mxu0 0.0
    %9168 = vmatprep.mubr.f32.mxu0 0.0
    %9169 = vmatmul.mubr.f32.gmra.mrb[0].mxu0 %v8767
    %v9170 = vpop.f32.mrb[0].mxu0
    %v9171 = vadd.f32 %v9026, %v9170
    %v9172 = vpop.f32.mrb[0].mxu0
    %9173 = vmatprep.mubr.f32.mxu0 0.0
    %9174 = vmatmul.mubr.f32.gmra.mrb[0].mxu0 %v8770
    %v9175 = vpop.f32.mrb[0].mxu0
    %v9176 = vadd.f32 %v9031, %v9175
    %v9177 = vpop.f32.mrb[0].mxu0
    %9178 = vmatprep.mubr.f32.mxu0 0.0
    %9179 = vmatmul.mubr.f32.gmra.mrb[0].mxu0 %v8773
    %v9180 = vpop.f32.mrb[0].mxu0
    %v9181 = vadd.f32 %v9036, %v9180
    %v9182 = vpop.f32.mrb[0].mxu0
    %9183 = vmatprep.mubr.f32.mxu0 0.0
    %9184 = vmatmul.mubr.f32.gmra.mrb[0].mxu0 %v8776
    %v9185 = vpop.f32.mrb[0].mxu0
    %v9186 = vadd.f32 %v9041, %v9185
    %v9187 = vpop.f32.mrb[0].mxu0
    %9188 = vmatprep.mubr.f32.mxu0 0.0
    %9189 = vmatmul.mubr.f32.gmra.mrb[0].mxu0 %v8779
    %v9190 = vpop.f32.mrb[0].mxu0
    %v9191 = vadd.f32 %v9046, %v9190
    %v9192 = vpop.f32.mrb[0].mxu0
    %9193 = vmatprep.mubr.f32.mxu0 0.0
    %9194 = vmatmul.mubr.f32.gmra.mrb[0].mxu0 %v8782
    %v9195 = vpop.f32.mrb[0].mxu0
    %v9196 = vadd.f32 %v9051, %v9195
    %v9197 = vpop.f32.mrb[0].mxu0
    %9198 = vmatprep.mubr.f32.mxu0 0.0
    %9199 = vmatmul.mubr.f32.gmra.mrb[0].mxu0 %v8785
    %v9200 = vpop.f32.mrb[0].mxu0
    %v9201 = vadd.f32 %v9056, %v9200
    %v9202 = vpop.f32.mrb[0].mxu0
    %9203 = vmatprep.mubr.f32.mxu0 0.0
    %9204 = vmatmul.mubr.f32.gmra.mrb[0].mxu0 %v8788
    %v9205 = vpop.f32.mrb[0].mxu0
    %v9206 = vadd.f32 %v9061, %v9205
    %v9207 = vpop.f32.mrb[0].mxu0
    %9208 = vmatprep.mubr.f32.mxu0 0.0
    %9209 = vmatmul.mubr.f32.gmra.mrb[0].mxu0 %v8791
    %v9210 = vpop.f32.mrb[0].mxu0
    %v9211 = vadd.f32 %v9066, %v9210
    %v9212 = vpop.f32.mrb[0].mxu0
    %9213 = vmatprep.mubr.f32.mxu0 0.0
    %9214 = vmatmul.mubr.f32.gmra.mrb[0].mxu0 %v8794
    %v9215 = vpop.f32.mrb[0].mxu0
    %v9216 = vadd.f32 %v9071, %v9215
    %v9217 = vpop.f32.mrb[0].mxu0
    %9218 = vmatprep.mubr.f32.mxu0 0.0
    %9219 = vmatmul.mubr.f32.gmra.mrb[0].mxu0 %v8797
    %v9220 = vpop.f32.mrb[0].mxu0
    %v9221 = vadd.f32 %v9076, %v9220
    %v9222 = vpop.f32.mrb[0].mxu0
    %9223 = vmatprep.mubr.f32.mxu0 0.0
    %9224 = vmatmul.mubr.f32.gmra.mrb[0].mxu0 %v8800
    %v9225 = vpop.f32.mrb[0].mxu0
    %v9226 = vadd.f32 %v9081, %v9225
    %v9227 = vpop.f32.mrb[0].mxu0
    %9228 = vmatprep.mubr.f32.mxu0 0.0
    %9229 = vmatmul.mubr.f32.gmra.mrb[0].mxu0 %v8803
    %v9230 = vpop.f32.mrb[0].mxu0
    %v9231 = vadd.f32 %v9086, %v9230
    %v9232 = vpop.f32.mrb[0].mxu0
    %9233 = vmatprep.mubr.f32.mxu0 0.0
    %9234 = vmatmul.mubr.f32.gmra.mrb[0].mxu0 %v8806
    %v9235 = vpop.f32.mrb[0].mxu0
    %v9236 = vadd.f32 %v9091, %v9235
    %v9237 = vpop.f32.mrb[0].mxu0
    %9238 = vmatprep.mubr.f32.mxu0 0.0
    %9239 = vmatmul.mubr.f32.gmra.mrb[0].mxu0 %v8809
    %v9240 = vpop.f32.mrb[0].mxu0
    %v9241 = vadd.f32 %v9096, %v9240
    %v9242 = vpop.f32.mrb[0].mxu0
    %9243 = vmatprep.mubr.f32.mxu0 0.0
    %9244 = vmatmul.mubr.f32.gmra.mrb[0].mxu0 %v8812
    %v9245 = vpop.f32.mrb[0].mxu0
    %v9246 = vadd.f32 %v9101, %v9245
    %v9247 = vpop.f32.mrb[0].mxu0
    %9248 = vdwg.mxu0
    %9265 = vrot.lane.b32.xlu0 %v9171, 112
    %v9266 = vpop.permute.xlu0 %9265
    %9267 = vrot.lane.b32.xlu0 %v9176, 112
    %v9268 = vpop.permute.xlu0 %9267
    %9269 = vrot.lane.b32.xlu0 %v9181, 112
    %v9270 = vpop.permute.xlu0 %9269
    %9271 = vrot.lane.b32.xlu0 %v9186, 112
    %v9272 = vpop.permute.xlu0 %9271
    %9273 = vrot.lane.b32.xlu0 %v9191, 112
    %v9274 = vpop.permute.xlu0 %9273
    %9275 = vrot.lane.b32.xlu0 %v9196, 112
    %v9276 = vpop.permute.xlu0 %9275
    %9277 = vrot.lane.b32.xlu0 %v9201, 112
    %v9278 = vpop.permute.xlu0 %9277
    %9279 = vrot.lane.b32.xlu0 %v9206, 112
    %v9280 = vpop.permute.xlu0 %9279
    %9281 = vrot.lane.b32.xlu0 %v9211, 112
    %v9282 = vpop.permute.xlu0 %9281
    %9283 = vrot.lane.b32.xlu0 %v9216, 112
    %v9284 = vpop.permute.xlu0 %9283
    %9285 = vrot.lane.b32.xlu0 %v9221, 112
    %v9286 = vpop.permute.xlu0 %9285
    %9287 = vrot.lane.b32.xlu0 %v9226, 112
    %v9288 = vpop.permute.xlu0 %9287
    %9289 = vrot.lane.b32.xlu0 %v9231, 112
    %v9290 = vpop.permute.xlu0 %9289
    %9291 = vrot.lane.b32.xlu0 %v9236, 112
    %v9292 = vpop.permute.xlu0 %9291
    %9293 = vrot.lane.b32.xlu0 %v9241, 112
    %v9294 = vpop.permute.xlu0 %9293
    %9295 = vrot.lane.b32.xlu0 %v9246, 112
    %v9296 = vpop.permute.xlu0 %9295
    %v9313 = vmax.f32 %v9171, %v9266
    %v9314 = vmax.f32 %v9176, %v9268
    %v9315 = vmax.f32 %v9181, %v9270
    %v9316 = vmax.f32 %v9186, %v9272
    %v9317 = vmax.f32 %v9191, %v9274
    %v9318 = vmax.f32 %v9196, %v9276
    %v9319 = vmax.f32 %v9201, %v9278
    %v9320 = vmax.f32 %v9206, %v9280
    %v9321 = vmax.f32 %v9211, %v9282
    %v9322 = vmax.f32 %v9216, %v9284
    %v9323 = vmax.f32 %v9221, %v9286
    %v9324 = vmax.f32 %v9226, %v9288
    %v9325 = vmax.f32 %v9231, %v9290
    %v9326 = vmax.f32 %v9236, %v9292
    %v9327 = vmax.f32 %v9241, %v9294
    %v9328 = vmax.f32 %v9246, %v9296
    %9345 = vrot.lane.b32.xlu0 %v9313, 96
    %v9346 = vpop.permute.xlu0 %9345
    %9347 = vrot.lane.b32.xlu0 %v9314, 96
    %v9348 = vpop.permute.xlu0 %9347
    %9349 = vrot.lane.b32.xlu0 %v9315, 96
    %v9350 = vpop.permute.xlu0 %9349
    %9351 = vrot.lane.b32.xlu0 %v9316, 96
    %v9352 = vpop.permute.xlu0 %9351
    %9353 = vrot.lane.b32.xlu0 %v9317, 96
    %v9354 = vpop.permute.xlu0 %9353
    %9355 = vrot.lane.b32.xlu0 %v9318, 96
    %v9356 = vpop.permute.xlu0 %9355
    %9357 = vrot.lane.b32.xlu0 %v9319, 96
    %v9358 = vpop.permute.xlu0 %9357
    %9359 = vrot.lane.b32.xlu0 %v9320, 96
    %v9360 = vpop.permute.xlu0 %9359
    %9361 = vrot.lane.b32.xlu0 %v9321, 96
    %v9362 = vpop.permute.xlu0 %9361
    %9363 = vrot.lane.b32.xlu0 %v9322, 96
    %v9364 = vpop.permute.xlu0 %9363
    %9365 = vrot.lane.b32.xlu0 %v9323, 96
    %v9366 = vpop.permute.xlu0 %9365
    %9367 = vrot.lane.b32.xlu0 %v9324, 96
    %v9368 = vpop.permute.xlu0 %9367
    %9369 = vrot.lane.b32.xlu0 %v9325, 96
    %v9370 = vpop.permute.xlu0 %9369
    %9371 = vrot.lane.b32.xlu0 %v9326, 96
    %v9372 = vpop.permute.xlu0 %9371
    %9373 = vrot.lane.b32.xlu0 %v9327, 96
    %v9374 = vpop.permute.xlu0 %9373
    %9375 = vrot.lane.b32.xlu0 %v9328, 96
    %v9376 = vpop.permute.xlu0 %9375
    %v9393 = vmax.f32 %v9313, %v9346
    %v9394 = vmax.f32 %v9314, %v9348
    %v9395 = vmax.f32 %v9315, %v9350
    %v9396 = vmax.f32 %v9316, %v9352
    %v9397 = vmax.f32 %v9317, %v9354
    %v9398 = vmax.f32 %v9318, %v9356
    %v9399 = vmax.f32 %v9319, %v9358
    %v9400 = vmax.f32 %v9320, %v9360
    %v9401 = vmax.f32 %v9321, %v9362
    %v9402 = vmax.f32 %v9322, %v9364
    %v9403 = vmax.f32 %v9323, %v9366
    %v9404 = vmax.f32 %v9324, %v9368
    %v9405 = vmax.f32 %v9325, %v9370
    %v9406 = vmax.f32 %v9326, %v9372
    %v9407 = vmax.f32 %v9327, %v9374
    %v9408 = vmax.f32 %v9328, %v9376
    %v9409 = vld [vmem:[%s4] sm:$0x1]
    %v9411 = vlaneseq
    %v9412 = vshrl.u32 %v9411, 7
    %v9413 = vsub.s32 0, %v9412
    %v9414 = vrot.slane %v9409, %v9413
    %v9416 = vadd.f32 %v9393, %v9414
    %v9417 = vadd.f32 %v9394, %v9414
    %v9418 = vadd.f32 %v9395, %v9414
    %v9419 = vadd.f32 %v9396, %v9414
    %v9420 = vadd.f32 %v9397, %v9414
    %v9421 = vadd.f32 %v9398, %v9414
    %v9422 = vadd.f32 %v9399, %v9414
    %v9423 = vadd.f32 %v9400, %v9414
    %v9424 = vadd.f32 %v9401, %v9414
    %v9425 = vadd.f32 %v9402, %v9414
    %v9426 = vadd.f32 %v9403, %v9414
    %v9427 = vadd.f32 %v9404, %v9414
    %v9428 = vadd.f32 %v9405, %v9414
    %v9429 = vadd.f32 %v9406, %v9414
    %v9430 = vadd.f32 %v9407, %v9414
    %v9431 = vadd.f32 %v9408, %v9414
    %v9432 = vmax.f32 %v9416, 0.0
    %v9433 = vmax.f32 %v9417, 0.0
    %v9434 = vmax.f32 %v9418, 0.0
    %v9435 = vmax.f32 %v9419, 0.0
    %v9436 = vmax.f32 %v9420, 0.0
    %v9437 = vmax.f32 %v9421, 0.0
    %v9438 = vmax.f32 %v9422, 0.0
    %v9439 = vmax.f32 %v9423, 0.0
    %v9440 = vmax.f32 %v9424, 0.0
    %v9441 = vmax.f32 %v9425, 0.0
    %v9442 = vmax.f32 %v9426, 0.0
    %v9443 = vmax.f32 %v9427, 0.0
    %v9444 = vmax.f32 %v9428, 0.0
    %v9445 = vmax.f32 %v9429, 0.0
    %v9446 = vmax.f32 %v9430, 0.0
    %v9447 = vmax.f32 %v9431, 0.0
    %9449 = vrot.lane.b32.xlu0 %v9433, 16
    %v9450 = vpop.permute.xlu0 %9449
    %9453 = vrot.lane.b32.xlu0 %v9434, 32
    %v9454 = vpop.permute.xlu0 %9453
    %9457 = vrot.lane.b32.xlu0 %v9435, 48
    %v9458 = vpop.permute.xlu0 %9457
    %9461 = vrot.lane.b32.xlu0 %v9436, 64
    %v9462 = vpop.permute.xlu0 %9461
    %9465 = vrot.lane.b32.xlu0 %v9437, 80
    %v9466 = vpop.permute.xlu0 %9465
    %9469 = vrot.lane.b32.xlu0 %v9438, 96
    %v9470 = vpop.permute.xlu0 %9469
    %9473 = vrot.lane.b32.xlu0 %v9439, 112
    %v9474 = vpop.permute.xlu0 %9473
    %9477 = vrot.lane.b32.xlu0 %v9441, 16
    %v9478 = vpop.permute.xlu0 %9477
    %9481 = vrot.lane.b32.xlu0 %v9442, 32
    %v9482 = vpop.permute.xlu0 %9481
    %9485 = vrot.lane.b32.xlu0 %v9443, 48
    %v9486 = vpop.permute.xlu0 %9485
    %9489 = vrot.lane.b32.xlu0 %v9444, 64
    %v9490 = vpop.permute.xlu0 %9489
    %9493 = vrot.lane.b32.xlu0 %v9445, 80
    %v9494 = vpop.permute.xlu0 %9493
    %9497 = vrot.lane.b32.xlu0 %v9446, 96
    %v9498 = vpop.permute.xlu0 %9497
    %9501 = vrot.lane.b32.xlu0 %v9447, 112
    %v9502 = vpop.permute.xlu0 %9501
    %vm9504 = vcmask 130048
    %v9505 = vsel %vm9504, %v9432, %v9450
    %v9506 = vsel %vm8641, %v9505, %v9454
    %v9507 = vsel %vm4094, %v9506, %v9458
    %v9508 = vsel %vm8624, %v9507, %v9462
    %vm9509 = vcmask 654336
    %v9510 = vsel %vm9509, %v9508, %v9466
    %v9511 = vsel %vm8607, %v9510, %v9470
    %vm9512 = vcmask 916480
    %v9513 = vsel %vm9512, %v9511, %v9474
    %v9514 = vsel %vm9504, %v9440, %v9478
    %v9515 = vsel %vm8641, %v9514, %v9482
    %v9516 = vsel %vm4094, %v9515, %v9486
    %v9517 = vsel %vm8624, %v9516, %v9490
    %v9518 = vsel %vm9509, %v9517, %v9494
    %v9519 = vsel %vm8607, %v9518, %v9498
    %v9520 = vsel %vm9512, %v9519, %v9502
    %v9521 = vld [vmem:[%s5] sm:$0xff]
    %v9522 = vld [vmem:[%s5 + $0x8] sm:$0xff]
    %v9523 = vld [vmem:[%s5 + $0x10] sm:$0xff]
    %v9524 = vld [vmem:[%s5 + $0x18] sm:$0xff]
    %v9525 = vld [vmem:[%s5 + $0x20] sm:$0xff]
    %v9526 = vld [vmem:[%s5 + $0x28] sm:$0xff]
    %v9527 = vld [vmem:[%s5 + $0x30] sm:$0xff]
    %v9528 = vld [vmem:[%s5 + $0x38] sm:$0xff]
    %v9529 = vld [vmem:[%s5 + $0x40] sm:$0xff]
    %v9530 = vld [vmem:[%s5 + $0x48] sm:$0xff]
    %v9531 = vld [vmem:[%s5 + $0x50] sm:$0xff]
    %v9532 = vld [vmem:[%s5 + $0x58] sm:$0xff]
    %v9533 = vld [vmem:[%s5 + $0x60] sm:$0xff]
    %v9534 = vld [vmem:[%s5 + $0x68] sm:$0xff]
    %v9535 = vld [vmem:[%s5 + $0x70] sm:$0xff]
    %v9536 = vld [vmem:[%s5 + $0x78] sm:$0xff]
    %v9537 = vld [vmem:[%s5 + $0x80] sm:$0xff]
    %v9538 = vld [vmem:[%s5 + $0x88] sm:$0xff]
    %v9539 = vld [vmem:[%s5 + $0x90] sm:$0xff]
    %v9540 = vld [vmem:[%s5 + $0x98] sm:$0xff]
    %v9541 = vld [vmem:[%s5 + $0xa0] sm:$0xff]
    %v9542 = vld [vmem:[%s5 + $0xa8] sm:$0xff]
    %v9543 = vld [vmem:[%s5 + $0xb0] sm:$0xff]
    %v9544 = vld [vmem:[%s5 + $0xb8] sm:$0xff]
    %v9545 = vld [vmem:[%s5 + $0xc0] sm:$0xff]
    %v9546 = vld [vmem:[%s5 + $0xc8] sm:$0xff]
    %v9547 = vld [vmem:[%s5 + $0xd0] sm:$0xff]
    %v9548 = vld [vmem:[%s5 + $0xd8] sm:$0xff]
    %v9549 = vld [vmem:[%s5 + $0xe0] sm:$0xff]
    %v9550 = vld [vmem:[%s5 + $0xe8] sm:$0xff]
    %v9551 = vld [vmem:[%s5 + $0xf0] sm:$0xff]
    %v9552 = vld [vmem:[%s5 + $0xf8] sm:$0xff]
    %v9553 = vld [vmem:[%s6] sm:$0x1]
    %v9555 = vlaneseq
    %v9556 = vshrl.u32 %v9555, 7
    %v9557 = vsub.s32 0, %v9556
    %v9558 = vrot.slane %v9553, %v9557
    %9560 = vmatprep.subr.mxu0 0.0
    %9561 = vmatpush1.msra.mxu0 %v9521
    %9562 = vmatprep.subr.mxu0 0.0
    %9563 = vmatpush1.msra.mxu0 %v9522
    %9564 = vmatprep.subr.mxu0 0.0
    %9565 = vmatpush1.msra.mxu0 %v9523
    %9566 = vmatprep.subr.mxu0 0.0
    %9567 = vmatpush1.msra.mxu0 %v9524
    %9568 = vmatprep.subr.mxu0 0.0
    %9569 = vmatpush1.msra.mxu0 %v9525
    %9570 = vmatprep.subr.mxu0 0.0
    %9571 = vmatpush1.msra.mxu0 %v9526
    %9572 = vmatprep.subr.mxu0 0.0
    %9573 = vmatpush1.msra.mxu0 %v9527
    %9574 = vmatprep.subr.mxu0 0.0
    %9575 = vmatpush1.msra.mxu0 %v9528
    %9576 = vmatprep.subr.mxu0 0.0
    %9577 = vmatpush1.msra.mxu0 %v9529
    %9578 = vmatprep.subr.mxu0 0.0
    %9579 = vmatpush1.msra.mxu0 %v9530
    %9580 = vmatprep.subr.mxu0 0.0
    %9581 = vmatpush1.msra.mxu0 %v9531
    %9582 = vmatprep.subr.mxu0 0.0
    %9583 = vmatpush1.msra.mxu0 %v9532
    %9584 = vmatprep.subr.mxu0 0.0
    %9585 = vmatpush1.msra.mxu0 %v9533
    %9586 = vmatprep.subr.mxu0 0.0
    %9587 = vmatpush1.msra.mxu0 %v9534
    %9588 = vmatprep.subr.mxu0 0.0
    %9589 = vmatpush1.msra.mxu0 %v9535
    %9590 = vmatprep.subr.mxu0 0.0
    %9591 = vmatpush1.msra.mxu0 %v9536
    %9592 = vmatprep.subr.mxu0 0.0
    %9593 = vmatpush1.msra.mxu0 %v9537
    %9594 = vmatprep.subr.mxu0 0.0
    %9595 = vmatpush1.msra.mxu0 %v9538
    %9596 = vmatprep.subr.mxu0 0.0
    %9597 = vmatpush1.msra.mxu0 %v9539
    %9598 = vmatprep.subr.mxu0 0.0
    %9599 = vmatpush1.msra.mxu0 %v9540
    %9600 = vmatprep.subr.mxu0 0.0
    %9601 = vmatpush1.msra.mxu0 %v9541
    %9602 = vmatprep.subr.mxu0 0.0
    %9603 = vmatpush1.msra.mxu0 %v9542
    %9604 = vmatprep.subr.mxu0 0.0
    %9605 = vmatpush1.msra.mxu0 %v9543
    %9606 = vmatprep.subr.mxu0 0.0
    %9607 = vmatpush1.msra.mxu0 %v9544
    %9608 = vmatprep.subr.mxu0 0.0
    %9609 = vmatpush1.msra.mxu0 %v9545
    %9610 = vmatprep.subr.mxu0 0.0
    %9611 = vmatpush1.msra.mxu0 %v9546
    %9612 = vmatprep.subr.mxu0 0.0
    %9613 = vmatpush1.msra.mxu0 %v9547
    %9614 = vmatprep.subr.mxu0 0.0
    %9615 = vmatpush1.msra.mxu0 %v9548
    %9616 = vmatprep.subr.mxu0 0.0
    %9617 = vmatpush1.msra.mxu0 %v9549
    %9618 = vmatprep.subr.mxu0 0.0
    %9619 = vmatpush1.msra.mxu0 %v9550
    %9620 = vmatprep.subr.mxu0 0.0
    %9621 = vmatpush1.msra.mxu0 %v9551
    %9622 = vmatprep.subr.mxu0 0.0
    %9623 = vmatpush1.msra.mxu0 %v9552
    %9624 = vmatprep.mubr.f32.mxu0 %v9520
    %9625 = vmatmul.mubr.f32.gmra.mrb[0].mxu0 %v9513
    %v9626 = vpop.f32.mrb[0].mxu0
    %v9627 = vadd.f32 %v9558, %v9626
    %v9628 = vpop.f32.mrb[0].mxu0
    %9629 = vdwg.mxu0
    %v9630 = vmax.f32 %v9627, 0.0
    %v9631 = vld [vmem:[%s7] sm:$0xff]
    %v9632 = vld [vmem:[%s7 + $0x8] sm:$0xff]
    %v9633 = vld [vmem:[%s7 + $0x10] sm:$0xff]
    %v9634 = vld [vmem:[%s7 + $0x18] sm:$0xff]
    %v9635 = vld [vmem:[%s7 + $0x20] sm:$0xff]
    %v9636 = vld [vmem:[%s7 + $0x28] sm:$0xff]
    %v9637 = vld [vmem:[%s7 + $0x30] sm:$0xff]
    %v9638 = vld [vmem:[%s7 + $0x38] sm:$0xff]
    %v9639 = vld [vmem:[%s7 + $0x40] sm:$0xff]
    %v9640 = vld [vmem:[%s7 + $0x48] sm:$0xff]
    %v9641 = vld [vmem:[%s7 + $0x50] sm:$0xff]
    %v9642 = vld [vmem:[%s7 + $0x58] sm:$0xff]
    %v9643 = vld [vmem:[%s7 + $0x60] sm:$0xff]
    %v9644 = vld [vmem:[%s7 + $0x68] sm:$0xff]
    %v9645 = vld [vmem:[%s7 + $0x70] sm:$0xff]
    %v9646 = vld [vmem:[%s8] sm:$0x1]
    %v9648 = vlaneseq
    %v9649 = vshrl.u32 %v9648, 7
    %v9650 = vsub.s32 0, %v9649
    %v9651 = vrot.slane %v9646, %v9650
    %vm9653 = vcmask 982016
    %v9655 = vsel %vm9653, %v9630, 0
    %9657 = vmatprep.subr.mxu0 0.0
    %9658 = vmatpush1.msra.mxu0 %v9631
    %9659 = vmatprep.subr.mxu0 0.0
    %9660 = vmatpush1.msra.mxu0 %v9632
    %9661 = vmatprep.subr.mxu0 0.0
    %9662 = vmatpush1.msra.mxu0 %v9633
    %9663 = vmatprep.subr.mxu0 0.0
    %9664 = vmatpush1.msra.mxu0 %v9634
    %9665 = vmatprep.subr.mxu0 0.0
    %9666 = vmatpush1.msra.mxu0 %v9635
    %9667 = vmatprep.subr.mxu0 0.0
    %9668 = vmatpush1.msra.mxu0 %v9636
    %9669 = vmatprep.subr.mxu0 0.0
    %9670 = vmatpush1.msra.mxu0 %v9637
    %9671 = vmatprep.subr.mxu0 0.0
    %9672 = vmatpush1.msra.mxu0 %v9638
    %9673 = vmatprep.subr.mxu0 0.0
    %9674 = vmatpush1.msra.mxu0 %v9639
    %9675 = vmatprep.subr.mxu0 0.0
    %9676 = vmatpush1.msra.mxu0 %v9640
    %9677 = vmatprep.subr.mxu0 0.0
    %9678 = vmatpush1.msra.mxu0 %v9641
    %9679 = vmatprep.subr.mxu0 0.0
    %9680 = vmatpush1.msra.mxu0 %v9642
    %9681 = vmatprep.subr.mxu0 0.0
    %9682 = vmatpush1.msra.mxu0 %v9643
    %9683 = vmatprep.subr.mxu0 0.0
    %9684 = vmatpush1.msra.mxu0 %v9644
    %9685 = vmatprep.subr.mxu0 0.0
    %9686 = vmatpush1.msra.mxu0 %v9645
    %9687 = vmatprep.subr.mxu0 0.0
    %9688 = vmatpush1.msra.mxu0 0.0
    %9689 = vmatprep.subr.mxu0 0.0
    %9690 = vmatpush1.msra.mxu0 0.0
    %9691 = vmatprep.subr.mxu0 0.0
    %9692 = vmatpush1.msra.mxu0 0.0
    %9693 = vmatprep.subr.mxu0 0.0
    %9694 = vmatpush1.msra.mxu0 0.0
    %9695 = vmatprep.subr.mxu0 0.0
    %9696 = vmatpush1.msra.mxu0 0.0
    %9697 = vmatprep.subr.mxu0 0.0
    %9698 = vmatpush1.msra.mxu0 0.0
    %9699 = vmatprep.subr.mxu0 0.0
    %9700 = vmatpush1.msra.mxu0 0.0
    %9701 = vmatprep.subr.mxu0 0.0
    %9702 = vmatpush1.msra.mxu0 0.0
    %9703 = vmatprep.subr.mxu0 0.0
    %9704 = vmatpush1.msra.mxu0 0.0
    %9705 = vmatprep.subr.mxu0 0.0
    %9706 = vmatpush1.msra.mxu0 0.0
    %9707 = vmatprep.subr.mxu0 0.0
    %9708 = vmatpush1.msra.mxu0 0.0
    %9709 = vmatprep.subr.mxu0 0.0
    %9710 = vmatpush1.msra.mxu0 0.0
    %9711 = vmatprep.subr.mxu0 0.0
    %9712 = vmatpush1.msra.mxu0 0.0
    %9713 = vmatprep.subr.mxu0 0.0
    %9714 = vmatpush1.msra.mxu0 0.0
    %9715 = vmatprep.subr.mxu0 0.0
    %9716 = vmatpush1.msra.mxu0 0.0
    %9717 = vmatprep.subr.mxu0 0.0
    %9718 = vmatpush1.msra.mxu0 0.0
    %9719 = vmatprep.subr.mxu0 0.0
    %9720 = vmatpush1.msra.mxu0 0.0
    %9721 = vmatprep.mubr.f32.mxu0 0.0
    %9722 = vmatmul.mubr.f32.gmra.mrb[0].mxu0 %v9655
    %v9723 = vpop.f32.mrb[0].mxu0
    %v9724 = vadd.f32 %v9651, %v9723
    %v9725 = vpop.f32.mrb[0].mxu0
    %9726 = vdwg.mxu0
    %v9727 = vmax.f32 %v9724, 0.0
    %v9728 = vld [vmem:[%s9] sm:$0xff]
    %v9729 = vld [vmem:[%s9 + $0x8] sm:$0xff]
    %v9730 = vld [vmem:[%s9 + $0x10] sm:$0xff]
    %v9731 = vld [vmem:[%s9 + $0x18] sm:$0xff]
    %v9732 = vld [vmem:[%s9 + $0x20] sm:$0xff]
    %v9733 = vld [vmem:[%s9 + $0x28] sm:$0xff]
    %v9734 = vld [vmem:[%s9 + $0x30] sm:$0xff]
    %v9735 = vld [vmem:[%s9 + $0x38] sm:$0xff]
    %v9736 = vld [vmem:[%s9 + $0x40] sm:$0xff]
    %v9737 = vld [vmem:[%s9 + $0x48] sm:$0xff]
    %v9738 = vld [vmem:[%s9 + $0x50] sm:$0xf]
    %v9739 = vld [vmem:[%s10] sm:$0x1]
    %v9741 = vlaneseq
    %v9742 = vshrl.u32 %v9741, 7
    %v9743 = vsub.s32 0, %v9742
    %v9744 = vrot.slane %v9739, %v9743
    %v9747 = vsel %vm4196, %v9727, 0
    %v9750 = vsel %vm629, %v9738, 0
    %9752 = vmatprep.subr.mxu0 0.0
    %9753 = vmatpush1.msra.mxu0 %v9728
    %9754 = vmatprep.subr.mxu0 0.0
    %9755 = vmatpush1.msra.mxu0 %v9729
    %9756 = vmatprep.subr.mxu0 0.0
    %9757 = vmatpush1.msra.mxu0 %v9730
    %9758 = vmatprep.subr.mxu0 0.0
    %9759 = vmatpush1.msra.mxu0 %v9731
    %9760 = vmatprep.subr.mxu0 0.0
    %9761 = vmatpush1.msra.mxu0 %v9732
    %9762 = vmatprep.subr.mxu0 0.0
    %9763 = vmatpush1.msra.mxu0 %v9733
    %9764 = vmatprep.subr.mxu0 0.0
    %9765 = vmatpush1.msra.mxu0 %v9734
    %9766 = vmatprep.subr.mxu0 0.0
    %9767 = vmatpush1.msra.mxu0 %v9735
    %9768 = vmatprep.subr.mxu0 0.0
    %9769 = vmatpush1.msra.mxu0 %v9736
    %9770 = vmatprep.subr.mxu0 0.0
    %9771 = vmatpush1.msra.mxu0 %v9737
    %9772 = vmatprep.subr.mxu0 0.0
    %9773 = vmatpush1.msra.mxu0 %v9750
    %9774 = vmatprep.subr.mxu0 0.0
    %9775 = vmatpush1.msra.mxu0 0.0
    %9776 = vmatprep.subr.mxu0 0.0
    %9777 = vmatpush1.msra.mxu0 0.0
    %9778 = vmatprep.subr.mxu0 0.0
    %9779 = vmatpush1.msra.mxu0 0.0
    %9780 = vmatprep.subr.mxu0 0.0
    %9781 = vmatpush1.msra.mxu0 0.0
    %9782 = vmatprep.subr.mxu0 0.0
    %9783 = vmatpush1.msra.mxu0 0.0
    %9784 = vmatprep.subr.mxu0 0.0
    %9785 = vmatpush1.msra.mxu0 0.0
    %9786 = vmatprep.subr.mxu0 0.0
    %9787 = vmatpush1.msra.mxu0 0.0
    %9788 = vmatprep.subr.mxu0 0.0
    %9789 = vmatpush1.msra.mxu0 0.0
    %9790 = vmatprep.subr.mxu0 0.0
    %9791 = vmatpush1.msra.mxu0 0.0
    %9792 = vmatprep.subr.mxu0 0.0
    %9793 = vmatpush1.msra.mxu0 0.0
    %9794 = vmatprep.subr.mxu0 0.0
    %9795 = vmatpush1.msra.mxu0 0.0
    %9796 = vmatprep.subr.mxu0 0.0
    %9797 = vmatpush1.msra.mxu0 0.0
    %9798 = vmatprep.subr.mxu0 0.0
    %9799 = vmatpush1.msra.mxu0 0.0
    %9800 = vmatprep.subr.mxu0 0.0
    %9801 = vmatpush1.msra.mxu0 0.0
    %9802 = vmatprep.subr.mxu0 0.0
    %9803 = vmatpush1.msra.mxu0 0.0
    %9804 = vmatprep.subr.mxu0 0.0
    %9805 = vmatpush1.msra.mxu0 0.0
    %9806 = vmatprep.subr.mxu0 0.0
    %9807 = vmatpush1.msra.mxu0 0.0
    %9808 = vmatprep.subr.mxu0 0.0
    %9809 = vmatpush1.msra.mxu0 0.0
    %9810 = vmatprep.subr.mxu0 0.0
    %9811 = vmatpush1.msra.mxu0 0.0
    %9812 = vmatprep.subr.mxu0 0.0
    %9813 = vmatpush1.msra.mxu0 0.0
    %9814 = vmatprep.subr.mxu0 0.0
    %9815 = vmatpush1.msra.mxu0 0.0
    %9816 = vmatprep.mubr.f32.mxu0 0.0
    %9817 = vmatmul.mubr.f32.gmra.mrb[0].mxu0 %v9747
    %v9818 = vpop.f32.mrb[0].mxu0
    %v9819 = vadd.f32 %v9744, %v9818
    %v9820 = vpop.f32.mrb[0].mxu0
    %9821 = vdwg.mxu0
    %9822 = vst [vmem:[#allocation2] sm:$0xff] %v9819
    // Predicated region
    $region46: #{net_forward.1} parent=1 // pred_check
      _
    $region47: #{net_forward.1} parent=1 // pred_check_branch
      %9824 = sbr.rel (0) target = $region49
    $region48: #{net_forward.1} parent=1 // pred_region
      %s9826 = ssub.s32 128, 128
      %9827 = vsyncadd [#allocation3], %s9826
      %s9829 = sshll.u32 [#allocation2], 4
      %s9830 = int_to_ptr.vmem [resolvable:$true] %s9829
      %9832 = dma.vmem_to_hbm [thread:$0]  %s9830, 128, %s11, [#allocation3]
    $region49: #{net_forward.1} parent=1 // pred_fallthru
      _
    // Predicated region
    $region50: #{net_forward.1} parent=1 // pred_check
      _
    $region51: #{net_forward.1} parent=1 // pred_check_branch
      %9834 = sbr.rel (0) target = $region53
    $region52: #{net_forward.1} parent=1 // pred_region
      %9835 = dma.done [#allocation3], 128
    $region53: #{net_forward.1} parent=1 // pred_fallthru
      _
    %9836 = vsyncpa [#allocation3], 1

</llo_original>
